<compile_context>
chip_gen: v7x
topology: tpu7x:2x2x1
jax: 0.10.0
libtpu: 0.0.40
codegen_flags: <defaults>
</compile_context>

<pallas_src>
import functools

import jax
import jax.numpy as jnp
from jax import lax
from jax.experimental import pallas as pl
from jax.experimental.pallas import tpu as pltpu


# Smallest *normal* float32. torch uses clamp_min(1e-38), but 1e-38 is subnormal and TPUs
# flush subnormals to zero; the nearest normal value gives identical results for any
# non-degenerate denominator and avoids inf/NaN on all-zero rows.
_EPS = float(jnp.finfo(jnp.float32).tiny)
_HP = jax.lax.Precision.HIGHEST


# ----------------------------- Pallas kernel -----------------------------

def encoder_list_kernel(x_ref, w_ref, b_ref, wq_ref, bq_ref, wkv_ref, bkv_ref,
                        cos_ref, sina_ref, sinb_ref, hme_ref, hmt_ref,
                        zm_ref, zt_ref, o_ref, act_ref,
                        *, dz, dk, dh, de, dht):
    D = dh * de
    Dt = dht * de
    hde = de // 2
    N = dz * dk
    l = pl.program_id(0)

    # layer 0: load the input activations into the resident VMEM carry
    @pl.when(l == 0)
    def _():
        act_ref[...] = x_ref[...]

    x = act_ref[...]                      # (N, D) activations, resident across layers
    cos_t = cos_ref[...]                  # (N, D)
    sin_a = sina_ref[...]                 # (N, D): -sin on 1st half-lanes of each head
    sin_b = sinb_ref[...]                 # (N, D): +sin on 2nd half-lanes of each head
    hm_exp = hme_ref[...]                 # (dh*N, D) head-lane masks, head-major blocks
    hrows = [hm_exp[h * N:h * N + 1, :] for h in range(dh)]   # (1, D) per head

    def rot(t):
        # rotary: rotate_half folded into sign/zero-split sin tables; the two full-width
        # lane rotations only wrap across head boundaries on lanes where the matching sin
        # table is zero, so no cross-head contamination.
        return (t * cos_t
                + pltpu.roll(t, shift=D - hde, axis=1) * sin_a
                + pltpu.roll(t, shift=hde, axis=1) * sin_b)

    # ---------------- one ResEncoderBase layer (head-packed) ----------------
    qkv = (jnp.dot(x, w_ref[0], preferred_element_type=jnp.float32, precision=_HP)
           + b_ref[0])                                         # (N, 3D)
    q = rot(qkv[:, :D])
    k = rot(qkv[:, D:2 * D])
    v3 = qkv[:, 2 * D:]
    v3 = v3 * v3 * v3                                          # inf_cube numerator

    # per-head inf-norm of v3: segmented lane max, broadcast back to each head's lanes
    a3 = jnp.abs(v3)
    mf = hrows[0] * jnp.max(a3 * hrows[0], axis=1, keepdims=True)
    for h in range(1, dh):
        mf = mf + hrows[h] * jnp.max(a3 * hrows[h], axis=1, keepdims=True)
    v_full = v3 / jnp.maximum(mf, _EPS)                        # (N, D)

    # all-head scores in ONE matmul: q replicated per head block and lane-masked
    q_stack = jnp.concatenate([q] * dh, axis=0) * hm_exp       # (dh*N, D)
    s = lax.dot_general(q_stack, k, (((1,), (1,)), ((), ())),
                        preferred_element_type=jnp.float32, precision=_HP)  # (dh*N, N)
    s = s * zm_ref[...]                                        # zero cross-batch keys
    s2 = s * s
    wgt = s2 / jnp.maximum(jnp.sum(s2, axis=1, keepdims=True), _EPS)
    # all-head outputs in ONE matmul, then per-head lane mask + sublane block sum
    res = jnp.dot(wgt, v_full, preferred_element_type=jnp.float32,
                  precision=_HP) * hm_exp                      # (dh*N, D)
    out_c = res[0:N]
    for h in range(1, dh):
        out_c = out_c + res[h * N:(h + 1) * N]
    x_new = x + out_c                                          # residual
    act_ref[...] = x_new

    # ---------------- TopEncoderBase (last grid step only) ----------------
    @pl.when(l == pl.num_programs(0) - 1)
    def _():
        hmt = hmt_ref[...]                                     # (dht*dz, Dt)
        kvt = (jnp.dot(x_new, wkv_ref[...], preferred_element_type=jnp.float32,
                       precision=_HP) + bkv_ref[...])          # (N, 2Dt)
        kt = rot(kvt[:, :Dt])
        v2 = kvt[:, Dt:]
        v2 = v2 * v2                                           # normed_square numerator
        den = hrows[0] * jnp.sum(v2 * hrows[0], axis=1, keepdims=True)
        for h in range(1, dht):
            den = den + hrows[h] * jnp.sum(v2 * hrows[h], axis=1, keepdims=True)
        v2n = v2 / jnp.maximum(den, _EPS)                      # (N, Dt)

        # first token of each batch: static row slices (no selection matmul)
        x0 = jnp.concatenate([x_new[z * dk:z * dk + 1, :] for z in range(dz)], axis=0)
        qt = (jnp.dot(x0, wq_ref[...], preferred_element_type=jnp.float32,
                      precision=_HP) + bq_ref[...])            # (dz, Dt)
        qt_stack = jnp.concatenate([qt] * dht, axis=0) * hmt   # (dht*dz, Dt)
        st = lax.dot_general(qt_stack, kt, (((1,), (1,)), ((), ())),
                             preferred_element_type=jnp.float32,
                             precision=_HP)                    # (dht*dz, N)
        st = st * zt_ref[...]
        st2 = st * st
        wgt_t = st2 / jnp.maximum(jnp.sum(st2, axis=1, keepdims=True), _EPS)
        rest = jnp.dot(wgt_t, v2n, preferred_element_type=jnp.float32,
                       precision=_HP) * hmt                    # (dht*dz, Dt)
        out = rest[0:dz]
        for h in range(1, dht):
            out = out + rest[h * dz:(h + 1) * dz]              # (dz, Dt)
        o_ref[...] = out / jnp.maximum(jnp.sum(out, axis=1, keepdims=True), _EPS)


# ----------------------------- wrapper -----------------------------

def _const_spec(shape):
    zeros = (0,) * len(shape)
    return pl.BlockSpec(shape, lambda l, _z=zeros: _z)


def _rotary_tables(dk, de):
    half = jnp.power(jnp.float32(10000.0),
                     jnp.arange(0.0, -1.0, -2.0 / de, dtype=jnp.float32))
    freq = jnp.concatenate([half, half[: half.shape[0] - de % 2]])
    emb = jnp.arange(dk, dtype=jnp.float32)[:, None] * freq[None, :]
    return jnp.cos(emb), jnp.sin(emb)              # (dk, de)


@functools.partial(jax.jit, static_argnames=("dh", "de", "dht"))
def encoder_list_forward(x, W_stack, b_stack, Wq, bq, Wkv, bkv, *, dh, de, dht):
    dz, dk, D = x.shape
    depth = W_stack.shape[0]
    Dt = dht * de
    N = dz * dk
    assert D == dh * de
    assert Dt == D   # TODO(synk): dim_top_head != dim_head unsupported

    # rotary tables tiled over heads and batch, rotate_half sign folded into sin tables
    cos, sin = _rotary_tables(dk, de)
    cos_t = jnp.tile(cos, (dz, dh))                               # (N, D)
    sin_t = jnp.tile(sin, (dz, dh))
    first_half = (jnp.arange(D) % de) < (de // 2)
    sin_a = jnp.where(first_half[None, :], -sin_t, 0.0)
    sin_b = jnp.where(first_half[None, :], 0.0, sin_t)

    # static masks (built once, outside the kernel)
    hm = (jnp.arange(D)[None, :] // de
          == jnp.arange(dh)[:, None]).astype(jnp.float32)         # (dh, D)
    hm_exp = jnp.repeat(hm, N, axis=0)                            # (dh*N, D)
    hmt = jnp.repeat(hm[:dht], dz, axis=0)                        # (dht*dz, Dt)
    rowz = jnp.arange(N) // dk
    zmask = (rowz[:, None] == rowz[None, :]).astype(jnp.float32)  # (N, N)
    zmask_t = jnp.tile(zmask, (dh, 1))                            # (dh*N, N)
    zt = (jnp.arange(dz)[:, None] == rowz[None, :]).astype(jnp.float32)   # (dz, N)
    zt_t = jnp.tile(zt, (dht, 1))                                 # (dht*dz, N)

    x2 = x.reshape(N, D)
    kernel = functools.partial(encoder_list_kernel, dz=dz, dk=dk, dh=dh, de=de, dht=dht)

    return pl.pallas_call(
        kernel,
        out_shape=jax.ShapeDtypeStruct((dz, Dt), jnp.float32),
        grid_spec=pltpu.PrefetchScalarGridSpec(
            num_scalar_prefetch=0,
            grid=(depth,),                                        # stream layers
            in_specs=[
                _const_spec((N, D)),                              # x (loaded once)
                pl.BlockSpec((1, D, 3 * D), lambda l: (l, 0, 0)),  # W_l (streamed)
                pl.BlockSpec((1, 1, 3 * D), lambda l: (l, 0, 0)),  # b_l (streamed)
                _const_spec((D, Dt)),                             # Wq
                _const_spec((1, Dt)),                             # bq
                _const_spec((D, 2 * Dt)),                         # Wkv
                _const_spec((1, 2 * Dt)),                         # bkv
                _const_spec((N, D)),                              # cos
                _const_spec((N, D)),                              # sin (first halves)
                _const_spec((N, D)),                              # sin (second halves)
                _const_spec((dh * N, D)),                         # head-lane masks (stacked)
                _const_spec((dht * dz, Dt)),                      # head-lane masks (top)
                _const_spec((dh * N, N)),                         # same-batch mask (stacked)
                _const_spec((dht * dz, N)),                       # same-batch mask (top)
            ],
            out_specs=_const_spec((dz, Dt)),
            scratch_shapes=[pltpu.VMEM((N, D), jnp.float32)],     # activation carry
        ),
        compiler_params=pltpu.CompilerParams(
            dimension_semantics=("arbitrary",),
            vmem_limit_bytes=32 * 1024 * 1024,
        ),
    )(x2, W_stack, b_stack, Wq, bq, Wkv, bkv,
      cos_t, sin_a, sin_b, hm_exp, hmt, zmask_t, zt_t)


# ----------------------------- parameter setup -----------------------------

def init_linear(key, fan_in, fan_out):
    kw, kb = jax.random.split(key)
    bound = 1.0 / float(jnp.sqrt(float(fan_in)))
    W = jax.random.uniform(kw, (fan_in, fan_out), jnp.float32, -bound, bound)
    b = jax.random.uniform(kb, (1, fan_out), jnp.float32, -bound, bound)
    return W, b


# ----------------------------- pure-JAX reference -----------------------------

def _ref_rot(x, cos, sin):
    de = x.shape[-1]
    x1, x2 = x[..., : de // 2], x[..., de // 2:]
    return x * cos + jnp.concatenate([-x2, x1], axis=-1) * sin


def ref_res_layer(x, W, b, cos, sin, dh, de):
    dz, dk, D = x.shape
    c = cos[None, :, None, :]
    s_ = sin[None, :, None, :]
    qkv = (jnp.einsum('zkd,df->zkf', x, W, precision=_HP) + b).reshape(dz, dk, 3, dh, de)
    q = _ref_rot(qkv[:, :, 0], c, s_)
    k = _ref_rot(qkv[:, :, 1], c, s_)
    v3 = qkv[:, :, 2] ** 3
    v = v3 / jnp.maximum(jnp.max(jnp.abs(v3), axis=-1, keepdims=True), _EPS)
    sw = jnp.einsum('zqhe,zkhe->zqkh', q, k, precision=_HP)
    sw2 = sw * sw
    w = sw2 / jnp.maximum(jnp.sum(sw2, axis=-2, keepdims=True), _EPS)
    out = jnp.einsum('zqkh,zkhe->zqhe', w, v, precision=_HP).reshape(dz, dk, dh * de)
    return x + out


def ref_top(x, Wq, bq, Wkv, bkv, cos, sin, dht, de):
    dz, dk, D = x.shape
    c = cos[None, :, None, :]
    s_ = sin[None, :, None, :]
    kv = (jnp.einsum('zkd,df->zkf', x, Wkv, precision=_HP) + bkv).reshape(dz, dk, 2, dht, de)
    q = (jnp.einsum('zd,df->zf', x[:, 0], Wq, precision=_HP) + bq).reshape(dz, dht, de)
    k = _ref_rot(kv[:, :, 0], c, s_)
    v2 = kv[:, :, 1] ** 2
    v = v2 / jnp.maximum(jnp.sum(v2, axis=-1, keepdims=True), _EPS)
    sw = jnp.einsum('zhe,zkhe->zkh', q, k, precision=_HP)
    sw2 = sw * sw
    w = sw2 / jnp.maximum(jnp.sum(sw2, axis=-2, keepdims=True), _EPS)
    out = jnp.einsum('zkh,zkhe->zhe', w, v, precision=_HP).reshape(dz, dht * de)
    return out / jnp.maximum(jnp.sum(out, axis=-1, keepdims=True), _EPS)


# ----------------------------- main -----------------------------

if __name__ == "__main__":
    depth = 2
    dh, de = 4, 32            # dim_head, dim_emb (small shapes)
    dht = dh                  # dim_top_head defaults to dim_head
    dz, dk = 2, 8             # batch, sequence
    D = dh * de               # 128
    Dt = dht * de             # 128

    key = jax.random.PRNGKey(0)
    keys = jax.random.split(key, depth + 3)
    x = jax.random.normal(keys[0], (dz, dk, D), jnp.float32)

    layer_params = [init_linear(keys[1 + i], D, 3 * D) for i in range(depth)]
    Wq, bq = init_linear(keys[1 + depth], D, Dt)
    Wkv, bkv = init_linear(keys[2 + depth], D, 2 * Dt)

    W_stack = jnp.stack([W for (W, _) in layer_params])   # (depth, D, 3D)
    b_stack = jnp.stack([b for (_, b) in layer_params])   # (depth, 1, 3D)

    out = encoder_list_forward(x, W_stack, b_stack, Wq, bq, Wkv, bkv,
                               dh=dh, de=de, dht=dht)
    out = jax.block_until_ready(out)

    # pure-JAX reference check
    cos, sin = _rotary_tables(dk, de)
    href = x
    for (W, b) in layer_params:
        href = ref_res_layer(href, W, b, cos, sin, dh, de)
    ref = ref_top(href, Wq, bq, Wkv, bkv, cos, sin, dht, de)

    assert out.shape == (dz, Dt)
    assert bool(jnp.allclose(out, ref, rtol=2e-3, atol=2e-3)), "mismatch vs reference"
    print("KERNEL_OK")
</pallas_src>

<mosaic_0001>
module attributes {stable_mosaic.version = 11 : i64} {
  func.func @encoder_list_kernel(%arg0: i32, %arg1: memref<16x128xf32, #tpu.memory_space<vmem>>, %arg2: memref<1x128x384xf32, #tpu.memory_space<vmem>>, %arg3: memref<1x1x384xf32, #tpu.memory_space<vmem>>, %arg4: memref<128x128xf32, #tpu.memory_space<vmem>>, %arg5: memref<1x128xf32, #tpu.memory_space<vmem>>, %arg6: memref<128x256xf32, #tpu.memory_space<vmem>>, %arg7: memref<1x256xf32, #tpu.memory_space<vmem>>, %arg8: memref<16x128xf32, #tpu.memory_space<vmem>>, %arg9: memref<16x128xf32, #tpu.memory_space<vmem>>, %arg10: memref<16x128xf32, #tpu.memory_space<vmem>>, %arg11: memref<64x128xf32, #tpu.memory_space<vmem>>, %arg12: memref<8x128xf32, #tpu.memory_space<vmem>>, %arg13: memref<64x16xf32, #tpu.memory_space<vmem>>, %arg14: memref<8x16xf32, #tpu.memory_space<vmem>>, %arg15: memref<2x128xf32, #tpu.memory_space<vmem>>, %arg16: memref<16x128xf32, #tpu.memory_space<vmem>>) attributes {dimension_semantics = [#tpu.dimension_semantics<arbitrary>], iteration_bounds = array<i64: 2>, scalar_prefetch = 0 : i64, scratch_operands = 1 : i64, tpu.core_type = #tpu.core_type<tc>, window_params = [{pipeline_mode = #tpu.pipeline_mode<synchronous>, transform_indices = @transform_0, window_bounds = array<i64: 16, 128>}, {transform_indices = @transform_1, window_bounds = array<i64: 1, 128, 384>}, {transform_indices = @transform_2, window_bounds = array<i64: 1, 1, 384>}, {pipeline_mode = #tpu.pipeline_mode<synchronous>, transform_indices = @transform_3, window_bounds = array<i64: 128, 128>}, {pipeline_mode = #tpu.pipeline_mode<synchronous>, transform_indices = @transform_4, window_bounds = array<i64: 1, 128>}, {pipeline_mode = #tpu.pipeline_mode<synchronous>, transform_indices = @transform_5, window_bounds = array<i64: 128, 256>}, {pipeline_mode = #tpu.pipeline_mode<synchronous>, transform_indices = @transform_6, window_bounds = array<i64: 1, 256>}, {pipeline_mode = #tpu.pipeline_mode<synchronous>, transform_indices = @transform_7, window_bounds = array<i64: 16, 128>}, {pipeline_mode = #tpu.pipeline_mode<synchronous>, transform_indices = @transform_8, window_bounds = array<i64: 16, 128>}, {pipeline_mode = #tpu.pipeline_mode<synchronous>, transform_indices = @transform_9, window_bounds = array<i64: 16, 128>}, {pipeline_mode = #tpu.pipeline_mode<synchronous>, transform_indices = @transform_10, window_bounds = array<i64: 64, 128>}, {pipeline_mode = #tpu.pipeline_mode<synchronous>, transform_indices = @transform_11, window_bounds = array<i64: 8, 128>}, {pipeline_mode = #tpu.pipeline_mode<synchronous>, transform_indices = @transform_12, window_bounds = array<i64: 64, 16>}, {pipeline_mode = #tpu.pipeline_mode<synchronous>, transform_indices = @transform_13, window_bounds = array<i64: 8, 16>}, {pipeline_mode = #tpu.pipeline_mode<synchronous>, transform_indices = @transform_14, window_bounds = array<i64: 2, 128>}]} {
    %c0_i32 = arith.constant 0 : i32
    %0 = arith.cmpi eq, %arg0, %c0_i32 : i32
    %1 = arith.extui %0 : i1 to i32
    %c0_i32_0 = arith.constant 0 : i32
    %2 = arith.cmpi ne, %1, %c0_i32_0 : i32
    scf.if %2 {
      %c0_32 = arith.constant 0 : index
      %c0_33 = arith.constant 0 : index
      %99 = vector.load %arg1[%c0_32, %c0_33] : memref<16x128xf32, #tpu.memory_space<vmem>>, vector<16x128xf32>
      %c0_34 = arith.constant 0 : index
      %c0_35 = arith.constant 0 : index
      %100 = vector.load %arg16[%c0_34, %c0_35] : memref<16x128xf32, #tpu.memory_space<vmem>>, vector<16x128xf32>
      tpu.vector_store %arg16[%c0_34, %c0_35], %99 {strides = array<i32>} : memref<16x128xf32, #tpu.memory_space<vmem>>, vector<16x128xf32>,
    } else {
    }
    %c0 = arith.constant 0 : index
    %c0_1 = arith.constant 0 : index
    %3 = vector.load %arg16[%c0, %c0_1] : memref<16x128xf32, #tpu.memory_space<vmem>>, vector<16x128xf32>
    %c0_2 = arith.constant 0 : index
    %c0_3 = arith.constant 0 : index
    %4 = vector.load %arg8[%c0_2, %c0_3] : memref<16x128xf32, #tpu.memory_space<vmem>>, vector<16x128xf32>
    %c0_4 = arith.constant 0 : index
    %c0_5 = arith.constant 0 : index
    %5 = vector.load %arg9[%c0_4, %c0_5] : memref<16x128xf32, #tpu.memory_space<vmem>>, vector<16x128xf32>
    %c0_6 = arith.constant 0 : index
    %c0_7 = arith.constant 0 : index
    %6 = vector.load %arg10[%c0_6, %c0_7] : memref<16x128xf32, #tpu.memory_space<vmem>>, vector<16x128xf32>
    %c0_8 = arith.constant 0 : index
    %c0_9 = arith.constant 0 : index
    %7 = vector.load %arg11[%c0_8, %c0_9] : memref<64x128xf32, #tpu.memory_space<vmem>>, vector<64x128xf32>
    %8 = vector.extract_strided_slice %7 {offsets = [0, 0], sizes = [1, 128], strides = [1, 1]} : vector<64x128xf32> to vector<1x128xf32>
    %9 = vector.extract_strided_slice %7 {offsets = [16, 0], sizes = [1, 128], strides = [1, 1]} : vector<64x128xf32> to vector<1x128xf32>
    %10 = vector.extract_strided_slice %7 {offsets = [32, 0], sizes = [1, 128], strides = [1, 1]} : vector<64x128xf32> to vector<1x128xf32>
    %11 = vector.extract_strided_slice %7 {offsets = [48, 0], sizes = [1, 128], strides = [1, 1]} : vector<64x128xf32> to vector<1x128xf32>
    %c0_10 = arith.constant 0 : index
    %c0_11 = arith.constant 0 : index
    %c0_12 = arith.constant 0 : index
    %12 = vector.load %arg2[%c0_10, %c0_11, %c0_12] : memref<1x128x384xf32, #tpu.memory_space<vmem>>, vector<1x128x384xf32>
    %13 = vector.shape_cast %12 : vector<1x128x384xf32> to vector<128x384xf32>
    %cst = arith.constant dense<0.000000e+00> : vector<16x384xf32>
    %14 = tpu.matmul %3, %13, %cst {dimension_numbers = #tpu.dot_dimension_numbers<[1], [0], [0], [1], [0, 0, 1, 1], [], []>, precision = #tpu.contract_precision<fp32>} : vector<16x128xf32>, vector<128x384xf32>, vector<16x384xf32> -> vector<16x384xf32>
    %c0_13 = arith.constant 0 : index
    %c0_14 = arith.constant 0 : index
    %c0_15 = arith.constant 0 : index
    %15 = vector.load %arg3[%c0_13, %c0_14, %c0_15] : memref<1x1x384xf32, #tpu.memory_space<vmem>>, vector<1x1x384xf32>
    %16 = vector.shape_cast %15 : vector<1x1x384xf32> to vector<1x384xf32>
    %17 = vector.broadcast %16 : vector<1x384xf32> to vector<16x384xf32>
    %18 = arith.addf %14, %17 : vector<16x384xf32>
    %19 = vector.extract_strided_slice %18 {offsets = [0, 0], sizes = [16, 128], strides = [1, 1]} : vector<16x384xf32> to vector<16x128xf32>
    %20 = arith.mulf %19, %4 : vector<16x128xf32>
    %c112_i32 = arith.constant 112 : i32
    %21 = tpu.dynamic_rotate %19 by %c112_i32 dim 1 : vector<16x128xf32>, i32 -> vector<16x128xf32>
    %22 = arith.mulf %21, %5 : vector<16x128xf32>
    %23 = arith.addf %20, %22 : vector<16x128xf32>
    %c16_i32 = arith.constant 16 : i32
    %24 = tpu.dynamic_rotate %19 by %c16_i32 dim 1 : vector<16x128xf32>, i32 -> vector<16x128xf32>
    %25 = arith.mulf %24, %6 : vector<16x128xf32>
    %26 = arith.addf %23, %25 : vector<16x128xf32>
    %27 = vector.extract_strided_slice %18 {offsets = [0, 128], sizes = [16, 128], strides = [1, 1]} : vector<16x384xf32> to vector<16x128xf32>
    %28 = arith.mulf %27, %4 : vector<16x128xf32>
    %c112_i32_16 = arith.constant 112 : i32
    %29 = tpu.dynamic_rotate %27 by %c112_i32_16 dim 1 : vector<16x128xf32>, i32 -> vector<16x128xf32>
    %30 = arith.mulf %29, %5 : vector<16x128xf32>
    %31 = arith.addf %28, %30 : vector<16x128xf32>
    %c16_i32_17 = arith.constant 16 : i32
    %32 = tpu.dynamic_rotate %27 by %c16_i32_17 dim 1 : vector<16x128xf32>, i32 -> vector<16x128xf32>
    %33 = arith.mulf %32, %6 : vector<16x128xf32>
    %34 = arith.addf %31, %33 : vector<16x128xf32>
    %35 = vector.extract_strided_slice %18 {offsets = [0, 256], sizes = [16, 128], strides = [1, 1]} : vector<16x384xf32> to vector<16x128xf32>
    %36 = arith.mulf %35, %35 : vector<16x128xf32>
    %37 = arith.mulf %36, %35 : vector<16x128xf32>
    %38 = math.absf %37 : vector<16x128xf32>
    %39 = vector.broadcast %8 : vector<1x128xf32> to vector<16x128xf32>
    %40 = arith.mulf %38, %39 : vector<16x128xf32>
    %cst_18 = arith.constant dense<0xFF800000> : vector<16xf32>
    %41 = vector.multi_reduction <maximumf>, %40, %cst_18 [1] : vector<16x128xf32> to vector<16xf32>
    %42 = vector.shape_cast %41 : vector<16xf32> to vector<16x1xf32>
    %43 = vector.broadcast %8 : vector<1x128xf32> to vector<16x128xf32>
    %44 = vector.broadcast %42 : vector<16x1xf32> to vector<16x128xf32>
    %45 = arith.mulf %43, %44 : vector<16x128xf32>
    %46 = vector.broadcast %9 : vector<1x128xf32> to vector<16x128xf32>
    %47 = arith.mulf %38, %46 : vector<16x128xf32>
    %cst_19 = arith.constant dense<0xFF800000> : vector<16xf32>
    %48 = vector.multi_reduction <maximumf>, %47, %cst_19 [1] : vector<16x128xf32> to vector<16xf32>
    %49 = vector.shape_cast %48 : vector<16xf32> to vector<16x1xf32>
    %50 = vector.broadcast %9 : vector<1x128xf32> to vector<16x128xf32>
    %51 = vector.broadcast %49 : vector<16x1xf32> to vector<16x128xf32>
    %52 = arith.mulf %50, %51 : vector<16x128xf32>
    %53 = arith.addf %45, %52 : vector<16x128xf32>
    %54 = vector.broadcast %10 : vector<1x128xf32> to vector<16x128xf32>
    %55 = arith.mulf %38, %54 : vector<16x128xf32>
    %cst_20 = arith.constant dense<0xFF800000> : vector<16xf32>
    %56 = vector.multi_reduction <maximumf>, %55, %cst_20 [1] : vector<16x128xf32> to vector<16xf32>
    %57 = vector.shape_cast %56 : vector<16xf32> to vector<16x1xf32>
    %58 = vector.broadcast %10 : vector<1x128xf32> to vector<16x128xf32>
    %59 = vector.broadcast %57 : vector<16x1xf32> to vector<16x128xf32>
    %60 = arith.mulf %58, %59 : vector<16x128xf32>
    %61 = arith.addf %53, %60 : vector<16x128xf32>
    %62 = vector.broadcast %11 : vector<1x128xf32> to vector<16x128xf32>
    %63 = arith.mulf %38, %62 : vector<16x128xf32>
    %cst_21 = arith.constant dense<0xFF800000> : vector<16xf32>
    %64 = vector.multi_reduction <maximumf>, %63, %cst_21 [1] : vector<16x128xf32> to vector<16xf32>
    %65 = vector.shape_cast %64 : vector<16xf32> to vector<16x1xf32>
    %66 = vector.broadcast %11 : vector<1x128xf32> to vector<16x128xf32>
    %67 = vector.broadcast %65 : vector<16x1xf32> to vector<16x128xf32>
    %68 = arith.mulf %66, %67 : vector<16x128xf32>
    %69 = arith.addf %61, %68 : vector<16x128xf32>
    %cst_22 = arith.constant 1.17549435E-38 : f32
    %70 = vector.broadcast %cst_22 : f32 to vector<16x128xf32>
    %71 = arith.maximumf %69, %70 : vector<16x128xf32>
    %72 = arith.divf %37, %71 : vector<16x128xf32>
    %73 = tpu.concatenate %26, %26, %26, %26 in 0 : vector<16x128xf32>, vector<16x128xf32>, vector<16x128xf32>, vector<16x128xf32> -> vector<64x128xf32>
    %74 = arith.mulf %73, %7 : vector<64x128xf32>
    %cst_23 = arith.constant dense<0.000000e+00> : vector<64x16xf32>
    %75 = tpu.matmul %74, %34, %cst_23 {dimension_numbers = #tpu.dot_dimension_numbers<[1], [1], [0], [0], [0, 0, 1, 0], [], []>, precision = #tpu.contract_precision<fp32>} : vector<64x128xf32>, vector<16x128xf32>, vector<64x16xf32> -> vector<64x16xf32>
    %c0_24 = arith.constant 0 : index
    %c0_25 = arith.constant 0 : index
    %76 = vector.load %arg13[%c0_24, %c0_25] : memref<64x16xf32, #tpu.memory_space<vmem>>, vector<64x16xf32>
    %77 = arith.mulf %75, %76 : vector<64x16xf32>
    %78 = arith.mulf %77, %77 : vector<64x16xf32>
    %cst_26 = arith.constant dense<0.000000e+00> : vector<64xf32>
    %79 = vector.multi_reduction <add>, %78, %cst_26 [1] : vector<64x16xf32> to vector<64xf32>
    %80 = vector.shape_cast %79 : vector<64xf32> to vector<64x1xf32>
    %cst_27 = arith.constant 1.17549435E-38 : f32
    %81 = vector.broadcast %cst_27 : f32 to vector<64x1xf32>
    %82 = arith.maximumf %80, %81 : vector<64x1xf32>
    %83 = vector.broadcast %82 : vector<64x1xf32> to vector<64x16xf32>
    %84 = arith.divf %78, %83 : vector<64x16xf32>
    %cst_28 = arith.constant dense<0.000000e+00> : vector<64x128xf32>
    %85 = tpu.matmul %84, %72, %cst_28 {dimension_numbers = #tpu.dot_dimension_numbers<[1], [0], [0], [1], [0, 0, 1, 1], [], []>, precision = #tpu.contract_precision<fp32>} : vector<64x16xf32>, vector<16x128xf32>, vector<64x128xf32> -> vector<64x128xf32>
    %86 = arith.mulf %85, %7 : vector<64x128xf32>
    %87 = vector.extract_strided_slice %86 {offsets = [0, 0], sizes = [16, 128], strides = [1, 1]} : vector<64x128xf32> to vector<16x128xf32>
    %88 = vector.extract_strided_slice %86 {offsets = [16, 0], sizes = [16, 128], strides = [1, 1]} : vector<64x128xf32> to vector<16x128xf32>
    %89 = arith.addf %87, %88 : vector<16x128xf32>
    %90 = vector.extract_strided_slice %86 {offsets = [32, 0], sizes = [16, 128], strides = [1, 1]} : vector<64x128xf32> to vector<16x128xf32>
    %91 = arith.addf %89, %90 : vector<16x128xf32>
    %92 = vector.extract_strided_slice %86 {offsets = [48, 0], sizes = [16, 128], strides = [1, 1]} : vector<64x128xf32> to vector<16x128xf32>
    %93 = arith.addf %91, %92 : vector<16x128xf32>
    %94 = arith.addf %3, %93 : vector<16x128xf32>
    %c0_29 = arith.constant 0 : index
    %c0_30 = arith.constant 0 : index
    %95 = vector.load %arg16[%c0_29, %c0_30] : memref<16x128xf32, #tpu.memory_space<vmem>>, vector<16x128xf32>
    tpu.vector_store %arg16[%c0_29, %c0_30], %94 {strides = array<i32>} : memref<16x128xf32, #tpu.memory_space<vmem>>, vector<16x128xf32>,
    %c1_i32 = arith.constant 1 : i32
    %96 = arith.cmpi eq, %arg0, %c1_i32 : i32
    %97 = arith.extui %96 : i1 to i32
    %c0_i32_31 = arith.constant 0 : i32
    %98 = arith.cmpi ne, %97, %c0_i32_31 : i32
    scf.if %98 {
      %c0_32 = arith.constant 0 : index
      %c0_33 = arith.constant 0 : index
      %99 = vector.load %arg12[%c0_32, %c0_33] : memref<8x128xf32, #tpu.memory_space<vmem>>, vector<8x128xf32>
      %c0_34 = arith.constant 0 : index
      %c0_35 = arith.constant 0 : index
      %100 = vector.load %arg6[%c0_34, %c0_35] : memref<128x256xf32, #tpu.memory_space<vmem>>, vector<128x256xf32>
      %cst_36 = arith.constant dense<0.000000e+00> : vector<16x256xf32>
      %101 = tpu.matmul %94, %100, %cst_36 {dimension_numbers = #tpu.dot_dimension_numbers<[1], [0], [0], [1], [0, 0, 1, 1], [], []>, precision = #tpu.contract_precision<fp32>} : vector<16x128xf32>, vector<128x256xf32>, vector<16x256xf32> -> vector<16x256xf32>
      %c0_37 = arith.constant 0 : index
      %c0_38 = arith.constant 0 : index
      %102 = vector.load %arg7[%c0_37, %c0_38] : memref<1x256xf32, #tpu.memory_space<vmem>>, vector<1x256xf32>
      %103 = vector.broadcast %102 : vector<1x256xf32> to vector<16x256xf32>
      %104 = arith.addf %101, %103 : vector<16x256xf32>
      %105 = vector.extract_strided_slice %104 {offsets = [0, 0], sizes = [16, 128], strides = [1, 1]} : vector<16x256xf32> to vector<16x128xf32>
      %106 = arith.mulf %105, %4 : vector<16x128xf32>
      %c112_i32_39 = arith.constant 112 : i32
      %107 = tpu.dynamic_rotate %105 by %c112_i32_39 dim 1 : vector<16x128xf32>, i32 -> vector<16x128xf32>
      %108 = arith.mulf %107, %5 : vector<16x128xf32>
      %109 = arith.addf %106, %108 : vector<16x128xf32>
      %c16_i32_40 = arith.constant 16 : i32
      %110 = tpu.dynamic_rotate %105 by %c16_i32_40 dim 1 : vector<16x128xf32>, i32 -> vector<16x128xf32>
      %111 = arith.mulf %110, %6 : vector<16x128xf32>
      %112 = arith.addf %109, %111 : vector<16x128xf32>
      %113 = vector.extract_strided_slice %104 {offsets = [0, 128], sizes = [16, 128], strides = [1, 1]} : vector<16x256xf32> to vector<16x128xf32>
      %114 = arith.mulf %113, %113 : vector<16x128xf32>
      %115 = vector.broadcast %8 : vector<1x128xf32> to vector<16x128xf32>
      %116 = arith.mulf %114, %115 : vector<16x128xf32>
      %cst_41 = arith.constant dense<0.000000e+00> : vector<16xf32>
      %117 = vector.multi_reduction <add>, %116, %cst_41 [1] : vector<16x128xf32> to vector<16xf32>
      %118 = vector.shape_cast %117 : vector<16xf32> to vector<16x1xf32>
      %119 = vector.broadcast %8 : vector<1x128xf32> to vector<16x128xf32>
      %120 = vector.broadcast %118 : vector<16x1xf32> to vector<16x128xf32>
      %121 = arith.mulf %119, %120 : vector<16x128xf32>
      %122 = vector.broadcast %9 : vector<1x128xf32> to vector<16x128xf32>
      %123 = arith.mulf %114, %122 : vector<16x128xf32>
      %cst_42 = arith.constant dense<0.000000e+00> : vector<16xf32>
      %124 = vector.multi_reduction <add>, %123, %cst_42 [1] : vector<16x128xf32> to vector<16xf32>
      %125 = vector.shape_cast %124 : vector<16xf32> to vector<16x1xf32>
      %126 = vector.broadcast %9 : vector<1x128xf32> to vector<16x128xf32>
      %127 = vector.broadcast %125 : vector<16x1xf32> to vector<16x128xf32>
      %128 = arith.mulf %126, %127 : vector<16x128xf32>
      %129 = arith.addf %121, %128 : vector<16x128xf32>
      %130 = vector.broadcast %10 : vector<1x128xf32> to vector<16x128xf32>
      %131 = arith.mulf %114, %130 : vector<16x128xf32>
      %cst_43 = arith.constant dense<0.000000e+00> : vector<16xf32>
      %132 = vector.multi_reduction <add>, %131, %cst_43 [1] : vector<16x128xf32> to vector<16xf32>
      %133 = vector.shape_cast %132 : vector<16xf32> to vector<16x1xf32>
      %134 = vector.broadcast %10 : vector<1x128xf32> to vector<16x128xf32>
      %135 = vector.broadcast %133 : vector<16x1xf32> to vector<16x128xf32>
      %136 = arith.mulf %134, %135 : vector<16x128xf32>
      %137 = arith.addf %129, %136 : vector<16x128xf32>
      %138 = vector.broadcast %11 : vector<1x128xf32> to vector<16x128xf32>
      %139 = arith.mulf %114, %138 : vector<16x128xf32>
      %cst_44 = arith.constant dense<0.000000e+00> : vector<16xf32>
      %140 = vector.multi_reduction <add>, %139, %cst_44 [1] : vector<16x128xf32> to vector<16xf32>
      %141 = vector.shape_cast %140 : vector<16xf32> to vector<16x1xf32>
      %142 = vector.broadcast %11 : vector<1x128xf32> to vector<16x128xf32>
      %143 = vector.broadcast %141 : vector<16x1xf32> to vector<16x128xf32>
      %144 = arith.mulf %142, %143 : vector<16x128xf32>
      %145 = arith.addf %137, %144 : vector<16x128xf32>
      %cst_45 = arith.constant 1.17549435E-38 : f32
      %146 = vector.broadcast %cst_45 : f32 to vector<16x128xf32>
      %147 = arith.maximumf %145, %146 : vector<16x128xf32>
      %148 = arith.divf %114, %147 : vector<16x128xf32>
      %149 = vector.extract_strided_slice %94 {offsets = [0, 0], sizes = [1, 128], strides = [1, 1]} : vector<16x128xf32> to vector<1x128xf32>
      %150 = vector.extract_strided_slice %94 {offsets = [8, 0], sizes = [1, 128], strides = [1, 1]} : vector<16x128xf32> to vector<1x128xf32>
      %151 = tpu.concatenate %149, %150 in 0 : vector<1x128xf32>, vector<1x128xf32> -> vector<2x128xf32>
      %c0_46 = arith.constant 0 : index
      %c0_47 = arith.constant 0 : index
      %152 = vector.load %arg4[%c0_46, %c0_47] : memref<128x128xf32, #tpu.memory_space<vmem>>, vector<128x128xf32>
      %cst_48 = arith.constant dense<0.000000e+00> : vector<2x128xf32>
      %153 = tpu.matmul %151, %152, %cst_48 {dimension_numbers = #tpu.dot_dimension_numbers<[1], [0], [0], [1], [0, 0, 1, 1], [], []>, precision = #tpu.contract_precision<fp32>} : vector<2x128xf32>, vector<128x128xf32>, vector<2x128xf32> -> vector<2x128xf32>
      %c0_49 = arith.constant 0 : index
      %c0_50 = arith.constant 0 : index
      %154 = vector.load %arg5[%c0_49, %c0_50] : memref<1x128xf32, #tpu.memory_space<vmem>>, vector<1x128xf32>
      %155 = vector.broadcast %154 : vector<1x128xf32> to vector<2x128xf32>
      %156 = arith.addf %153, %155 : vector<2x128xf32>
      %157 = tpu.concatenate %156, %156, %156, %156 in 0 : vector<2x128xf32>, vector<2x128xf32>, vector<2x128xf32>, vector<2x128xf32> -> vector<8x128xf32>
      %158 = arith.mulf %157, %99 : vector<8x128xf32>
      %cst_51 = arith.constant dense<0.000000e+00> : vector<8x16xf32>
      %159 = tpu.matmul %158, %112, %cst_51 {dimension_numbers = #tpu.dot_dimension_numbers<[1], [1], [0], [0], [0, 0, 1, 0], [], []>, precision = #tpu.contract_precision<fp32>} : vector<8x128xf32>, vector<16x128xf32>, vector<8x16xf32> -> vector<8x16xf32>
      %c0_52 = arith.constant 0 : index
      %c0_53 = arith.constant 0 : index
      %160 = vector.load %arg14[%c0_52, %c0_53] : memref<8x16xf32, #tpu.memory_space<vmem>>, vector<8x16xf32>
      %161 = arith.mulf %159, %160 : vector<8x16xf32>
      %162 = arith.mulf %161, %161 : vector<8x16xf32>
      %cst_54 = arith.constant dense<0.000000e+00> : vector<8xf32>
      %163 = vector.multi_reduction <add>, %162, %cst_54 [1] : vector<8x16xf32> to vector<8xf32>
      %164 = vector.shape_cast %163 : vector<8xf32> to vector<8x1xf32>
      %cst_55 = arith.constant 1.17549435E-38 : f32
      %165 = vector.broadcast %cst_55 : f32 to vector<8x1xf32>
      %166 = arith.maximumf %164, %165 : vector<8x1xf32>
      %167 = vector.broadcast %166 : vector<8x1xf32> to vector<8x16xf32>
      %168 = arith.divf %162, %167 : vector<8x16xf32>
      %cst_56 = arith.constant dense<0.000000e+00> : vector<8x128xf32>
      %169 = tpu.matmul %168, %148, %cst_56 {dimension_numbers = #tpu.dot_dimension_numbers<[1], [0], [0], [1], [0, 0, 1, 1], [], []>, precision = #tpu.contract_precision<fp32>} : vector<8x16xf32>, vector<16x128xf32>, vector<8x128xf32> -> vector<8x128xf32>
      %170 = arith.mulf %169, %99 : vector<8x128xf32>
      %171 = vector.extract_strided_slice %170 {offsets = [0, 0], sizes = [2, 128], strides = [1, 1]} : vector<8x128xf32> to vector<2x128xf32>
      %172 = vector.extract_strided_slice %170 {offsets = [2, 0], sizes = [2, 128], strides = [1, 1]} : vector<8x128xf32> to vector<2x128xf32>
      %173 = arith.addf %171, %172 : vector<2x128xf32>
      %174 = vector.extract_strided_slice %170 {offsets = [4, 0], sizes = [2, 128], strides = [1, 1]} : vector<8x128xf32> to vector<2x128xf32>
      %175 = arith.addf %173, %174 : vector<2x128xf32>
      %176 = vector.extract_strided_slice %170 {offsets = [6, 0], sizes = [2, 128], strides = [1, 1]} : vector<8x128xf32> to vector<2x128xf32>
      %177 = arith.addf %175, %176 : vector<2x128xf32>
      %cst_57 = arith.constant dense<0.000000e+00> : vector<2xf32>
      %178 = vector.multi_reduction <add>, %177, %cst_57 [1] : vector<2x128xf32> to vector<2xf32>
      %179 = vector.shape_cast %178 : vector<2xf32> to vector<2x1xf32>
      %cst_58 = arith.constant 1.17549435E-38 : f32
      %180 = vector.broadcast %cst_58 : f32 to vector<2x1xf32>
      %181 = arith.maximumf %179, %180 : vector<2x1xf32>
      %182 = vector.broadcast %181 : vector<2x1xf32> to vector<2x128xf32>
      %183 = arith.divf %177, %182 : vector<2x128xf32>
      %c0_59 = arith.constant 0 : index
      %c0_60 = arith.constant 0 : index
      %184 = vector.load %arg15[%c0_59, %c0_60] : memref<2x128xf32, #tpu.memory_space<vmem>>, vector<2x128xf32>
      tpu.vector_store %arg15[%c0_59, %c0_60], %183 {strides = array<i32>} : memref<2x128xf32, #tpu.memory_space<vmem>>, vector<2x128xf32>,
    } else {
    }
    return
  }
  func.func @transform_0(%arg0: i32) -> (i32, i32) {
    %c0_i32 = arith.constant 0 : i32
    %c0_i32_0 = arith.constant 0 : i32
    %c0_i32_1 = arith.constant 0 : i32
    return %c0_i32, %c0_i32_0 : i32, i32
  }
  func.func @transform_1(%arg0: i32) -> (i32, i32, i32) {
    %c0_i32 = arith.constant 0 : i32
    %c0_i32_0 = arith.constant 0 : i32
    %c0_i32_1 = arith.constant 0 : i32
    return %arg0, %c0_i32, %c0_i32_0 : i32, i32, i32
  }
  func.func @transform_2(%arg0: i32) -> (i32, i32, i32) {
    %c0_i32 = arith.constant 0 : i32
    %c0_i32_0 = arith.constant 0 : i32
    %c0_i32_1 = arith.constant 0 : i32
    return %arg0, %c0_i32, %c0_i32_0 : i32, i32, i32
  }
  func.func @transform_3(%arg0: i32) -> (i32, i32) {
    %c0_i32 = arith.constant 0 : i32
    %c0_i32_0 = arith.constant 0 : i32
    %c0_i32_1 = arith.constant 0 : i32
    return %c0_i32, %c0_i32_0 : i32, i32
  }
  func.func @transform_4(%arg0: i32) -> (i32, i32) {
    %c0_i32 = arith.constant 0 : i32
    %c0_i32_0 = arith.constant 0 : i32
    %c0_i32_1 = arith.constant 0 : i32
    return %c0_i32, %c0_i32_0 : i32, i32
  }
  func.func @transform_5(%arg0: i32) -> (i32, i32) {
    %c0_i32 = arith.constant 0 : i32
    %c0_i32_0 = arith.constant 0 : i32
    %c0_i32_1 = arith.constant 0 : i32
    return %c0_i32, %c0_i32_0 : i32, i32
  }
  func.func @transform_6(%arg0: i32) -> (i32, i32) {
    %c0_i32 = arith.constant 0 : i32
    %c0_i32_0 = arith.constant 0 : i32
    %c0_i32_1 = arith.constant 0 : i32
    return %c0_i32, %c0_i32_0 : i32, i32
  }
  func.func @transform_7(%arg0: i32) -> (i32, i32) {
    %c0_i32 = arith.constant 0 : i32
    %c0_i32_0 = arith.constant 0 : i32
    %c0_i32_1 = arith.constant 0 : i32
    return %c0_i32, %c0_i32_0 : i32, i32
  }
  func.func @transform_8(%arg0: i32) -> (i32, i32) {
    %c0_i32 = arith.constant 0 : i32
    %c0_i32_0 = arith.constant 0 : i32
    %c0_i32_1 = arith.constant 0 : i32
    return %c0_i32, %c0_i32_0 : i32, i32
  }
  func.func @transform_9(%arg0: i32) -> (i32, i32) {
    %c0_i32 = arith.constant 0 : i32
    %c0_i32_0 = arith.constant 0 : i32
    %c0_i32_1 = arith.constant 0 : i32
    return %c0_i32, %c0_i32_0 : i32, i32
  }
  func.func @transform_10(%arg0: i32) -> (i32, i32) {
    %c0_i32 = arith.constant 0 : i32
    %c0_i32_0 = arith.constant 0 : i32
    %c0_i32_1 = arith.constant 0 : i32
    return %c0_i32, %c0_i32_0 : i32, i32
  }
  func.func @transform_11(%arg0: i32) -> (i32, i32) {
    %c0_i32 = arith.constant 0 : i32
    %c0_i32_0 = arith.constant 0 : i32
    %c0_i32_1 = arith.constant 0 : i32
    return %c0_i32, %c0_i32_0 : i32, i32
  }
  func.func @transform_12(%arg0: i32) -> (i32, i32) {
    %c0_i32 = arith.constant 0 : i32
    %c0_i32_0 = arith.constant 0 : i32
    %c0_i32_1 = arith.constant 0 : i32
    return %c0_i32, %c0_i32_0 : i32, i32
  }
  func.func @transform_13(%arg0: i32) -> (i32, i32) {
    %c0_i32 = arith.constant 0 : i32
    %c0_i32_0 = arith.constant 0 : i32
    %c0_i32_1 = arith.constant 0 : i32
    return %c0_i32, %c0_i32_0 : i32, i32
  }
  func.func @transform_14(%arg0: i32) -> (i32, i32) {
    %c0_i32 = arith.constant 0 : i32
    %c0_i32_0 = arith.constant 0 : i32
    %c0_i32_1 = arith.constant 0 : i32
    return %c0_i32, %c0_i32_0 : i32, i32
  }
}

</mosaic_0001>

<llo_original>
// kernel: tile.28
$region0: #{tile.28}
  #allocation0 [shape = 's32[1]{0}', space=sflag, size = 0x4, scoped, tag = 'scoped memory for tile.28']
  %s0 = inlined_call_operand.vmem [shape: f32[8,32], index: 0, kind: input, shape index: {}]
  %s1 = inlined_call_operand.vmem [shape: f32[2,8,4,32], index: 1, kind: output, shape index: {}]
  // Predicated region
  $region2: #{tile.28} parent=0 // pred_check
    _
  $region3: #{tile.28} parent=0 // pred_check_branch
    %3 = sbr.rel (0) target = $region5
  $region4: #{tile.28} parent=0 // pred_region
    _
  $region5: #{tile.28} parent=0 // pred_fallthru
    _
  %v4 = vld [vmem:[%s0] ss:$0 sm:$0xff]
  %5 = vst [vmem:[%s1] sm:$0xf] %v4
  %s6 = scalar_lea.vmem %s1, 32
  %7 = vst [vmem:[%s6] sm:$0xf] %v4
  %s8 = scalar_lea.vmem %s0, 1
  %v9 = vld [vmem:[%s8] ss:$0 sm:$0xff]
  %s10 = scalar_lea.vmem %s1, 4
  %11 = vst [vmem:[%s10] sm:$0xf] %v9
  %s12 = scalar_lea.vmem %s1, 36
  %13 = vst [vmem:[%s12] sm:$0xf] %v9
  %s14 = scalar_lea.vmem %s0, 2
  %v15 = vld [vmem:[%s14] ss:$0 sm:$0xff]
  %s16 = scalar_lea.vmem %s1, 8
  %17 = vst [vmem:[%s16] sm:$0xf] %v15
  %s18 = scalar_lea.vmem %s1, 40
  %19 = vst [vmem:[%s18] sm:$0xf] %v15
  %s20 = scalar_lea.vmem %s0, 3
  %v21 = vld [vmem:[%s20] ss:$0 sm:$0xff]
  %s22 = scalar_lea.vmem %s1, 12
  %23 = vst [vmem:[%s22] sm:$0xf] %v21
  %s24 = scalar_lea.vmem %s1, 44
  %25 = vst [vmem:[%s24] sm:$0xf] %v21
  %s26 = scalar_lea.vmem %s0, 4
  %v27 = vld [vmem:[%s26] ss:$0 sm:$0xff]
  %s28 = scalar_lea.vmem %s1, 16
  %29 = vst [vmem:[%s28] sm:$0xf] %v27
  %s30 = scalar_lea.vmem %s1, 48
  %31 = vst [vmem:[%s30] sm:$0xf] %v27
  %s32 = scalar_lea.vmem %s0, 5
  %v33 = vld [vmem:[%s32] ss:$0 sm:$0xff]
  %s34 = scalar_lea.vmem %s1, 20
  %35 = vst [vmem:[%s34] sm:$0xf] %v33
  %s36 = scalar_lea.vmem %s1, 52
  %37 = vst [vmem:[%s36] sm:$0xf] %v33
  %s38 = scalar_lea.vmem %s0, 6
  %v39 = vld [vmem:[%s38] ss:$0 sm:$0xff]
  %s40 = scalar_lea.vmem %s1, 24
  %41 = vst [vmem:[%s40] sm:$0xf] %v39
  %s42 = scalar_lea.vmem %s1, 56
  %43 = vst [vmem:[%s42] sm:$0xf] %v39
  %s44 = scalar_lea.vmem %s0, 7
  %v45 = vld [vmem:[%s44] ss:$0 sm:$0xff]
  %s46 = scalar_lea.vmem %s1, 28
  %47 = vst [vmem:[%s46] sm:$0xf] %v45
  %s48 = scalar_lea.vmem %s1, 60
  %49 = vst [vmem:[%s48] sm:$0xf] %v45

// kernel: tile.29
$region0: #{tile.29}
  %s0 = inlined_call_operand.vmem [shape: f32[2,8,4,32], index: 0, kind: input, shape index: {}]
  %s1 = inlined_call_operand.vmem [shape: f32[16,128], index: 1, kind: output, shape index: {}]
  $region1: #{tile.29} parent=0
    #allocation0 [shape = 'u8[65536]{0}', space=vmem, size = 0x10000, scoped, tag = 'scoped mem for input reshape']
    %s3 = sshllo.u32 0, 4
    %s4 = smul.addr 4, 15
    %s5 = scalar_lea.vmem %s0, %s4
    %v6 = vld [vmem:[%s5] sm:%s3]
    %s7 = scalar_lea.vmem [#allocation0], 120
    %8 = vst [vmem:[%s7] sm:%s3] %v6
    %s9 = smul.addr 4, 14
    %s10 = scalar_lea.vmem %s0, %s9
    %v11 = vld [vmem:[%s10] sm:%s3]
    %s12 = scalar_lea.vmem [#allocation0], 112
    %13 = vst [vmem:[%s12] sm:%s3] %v11
    %s14 = smul.addr 4, 13
    %s15 = scalar_lea.vmem %s0, %s14
    %v16 = vld [vmem:[%s15] sm:%s3]
    %s17 = scalar_lea.vmem [#allocation0], 104
    %18 = vst [vmem:[%s17] sm:%s3] %v16
    %s19 = smul.addr 4, 12
    %s20 = scalar_lea.vmem %s0, %s19
    %v21 = vld [vmem:[%s20] sm:%s3]
    %s22 = scalar_lea.vmem [#allocation0], 96
    %23 = vst [vmem:[%s22] sm:%s3] %v21
    %s24 = smul.addr 4, 11
    %s25 = scalar_lea.vmem %s0, %s24
    %v26 = vld [vmem:[%s25] sm:%s3]
    %s27 = scalar_lea.vmem [#allocation0], 88
    %28 = vst [vmem:[%s27] sm:%s3] %v26
    %s29 = smul.addr 4, 10
    %s30 = scalar_lea.vmem %s0, %s29
    %v31 = vld [vmem:[%s30] sm:%s3]
    %s32 = scalar_lea.vmem [#allocation0], 80
    %33 = vst [vmem:[%s32] sm:%s3] %v31
    %s34 = smul.addr 4, 9
    %s35 = scalar_lea.vmem %s0, %s34
    %v36 = vld [vmem:[%s35] sm:%s3]
    %s37 = scalar_lea.vmem [#allocation0], 72
    %38 = vst [vmem:[%s37] sm:%s3] %v36
    %s39 = smul.addr 4, 8
    %s40 = scalar_lea.vmem %s0, %s39
    %v41 = vld [vmem:[%s40] sm:%s3]
    %s42 = scalar_lea.vmem [#allocation0], 64
    %43 = vst [vmem:[%s42] sm:%s3] %v41
    %s44 = smul.addr 4, 7
    %s45 = scalar_lea.vmem %s0, %s44
    %v46 = vld [vmem:[%s45] sm:%s3]
    %s47 = scalar_lea.vmem [#allocation0], 56
    %48 = vst [vmem:[%s47] sm:%s3] %v46
    %s49 = smul.addr 4, 6
    %s50 = scalar_lea.vmem %s0, %s49
    %v51 = vld [vmem:[%s50] sm:%s3]
    %s52 = scalar_lea.vmem [#allocation0], 48
    %53 = vst [vmem:[%s52] sm:%s3] %v51
    %s54 = smul.addr 4, 5
    %s55 = scalar_lea.vmem %s0, %s54
    %v56 = vld [vmem:[%s55] sm:%s3]
    %s57 = scalar_lea.vmem [#allocation0], 40
    %58 = vst [vmem:[%s57] sm:%s3] %v56
    %s59 = smul.addr 4, 4
    %s60 = scalar_lea.vmem %s0, %s59
    %v61 = vld [vmem:[%s60] sm:%s3]
    %s62 = scalar_lea.vmem [#allocation0], 32
    %63 = vst [vmem:[%s62] sm:%s3] %v61
    %s64 = smul.addr 4, 3
    %s65 = scalar_lea.vmem %s0, %s64
    %v66 = vld [vmem:[%s65] sm:%s3]
    %s67 = scalar_lea.vmem [#allocation0], 24
    %68 = vst [vmem:[%s67] sm:%s3] %v66
    %s69 = smul.addr 4, 2
    %s70 = scalar_lea.vmem %s0, %s69
    %v71 = vld [vmem:[%s70] sm:%s3]
    %s72 = scalar_lea.vmem [#allocation0], 16
    %73 = vst [vmem:[%s72] sm:%s3] %v71
    %s74 = scalar_lea.vmem %s0, 4
    %v75 = vld [vmem:[%s74] sm:%s3]
    %s76 = scalar_lea.vmem [#allocation0], 8
    %77 = vst [vmem:[%s76] sm:%s3] %v75
    %v78 = vld [vmem:[%s0] sm:%s3]
    %79 = vst [vmem:[#allocation0] sm:%s3] %v78
    %v80 = vld [vmem:[#allocation0] ss:$8 sm:$0xf]
    %v81 = vld [vmem:[#allocation0] ss:$8 sm:$0xf0]
    %vm82 = vcmask 1047556
    %v83 = vsel %vm82, %v81, %v80
    %vm84 = vcmask 261120
    %85 = vst.msk [vmem:[%s1] sm:$0xff] %vm84, %v83
    %s86 = scalar_lea.vmem [#allocation0], 64
    %v87 = vld [vmem:[%s86] ss:$8 sm:$0xf]
    %s88 = scalar_lea.vmem [#allocation0], 64
    %v89 = vld [vmem:[%s88] ss:$8 sm:$0xf0]
    %vm90 = vcmask 1047556
    %v91 = vsel %vm90, %v89, %v87
    %vm92 = vcmask 261120
    %s93 = scalar_lea.vmem %s1, 8
    %94 = vst.msk [vmem:[%s93] sm:$0xff] %vm92, %v91
    %s95 = scalar_lea.vmem [#allocation0], 3
    %v96 = vld [vmem:[%s95] ss:$8 sm:$0xf]
    %s97 = scalar_lea.vmem [#allocation0], 3
    %v98 = vld [vmem:[%s97] ss:$8 sm:$0xf0]
    %vm99 = vcmask 1047556
    %v100 = vsel %vm99, %v98, %v96
    %101 = vrot.lane.b32.xlu0 %v100, 96
    %v102 = vpop.permute.xlu0 %101
    %vm103 = vcmask 1048320
    %104 = vst.msk [vmem:[%s1] sm:$0xff] %vm103, %v102
    %s105 = scalar_lea.vmem [#allocation0], 67
    %v106 = vld [vmem:[%s105] ss:$8 sm:$0xf]
    %s107 = scalar_lea.vmem [#allocation0], 67
    %v108 = vld [vmem:[%s107] ss:$8 sm:$0xf0]
    %vm109 = vcmask 1047556
    %v110 = vsel %vm109, %v108, %v106
    %111 = vrot.lane.b32.xlu0 %v110, 96
    %v112 = vpop.permute.xlu0 %111
    %vm113 = vcmask 1048320
    %s114 = scalar_lea.vmem %s1, 8
    %115 = vst.msk [vmem:[%s114] sm:$0xff] %vm113, %v112
    %s116 = scalar_lea.vmem [#allocation0], 2
    %v117 = vld [vmem:[%s116] ss:$8 sm:$0xf]
    %s118 = scalar_lea.vmem [#allocation0], 2
    %v119 = vld [vmem:[%s118] ss:$8 sm:$0xf0]
    %vm120 = vcmask 1047556
    %v121 = vsel %vm120, %v119, %v117
    %122 = vrot.lane.b32.xlu0 %v121, 64
    %v123 = vpop.permute.xlu0 %122
    %vm124 = vcmask 785920
    %125 = vst.msk [vmem:[%s1] sm:$0xff] %vm124, %v123
    %s126 = scalar_lea.vmem [#allocation0], 66
    %v127 = vld [vmem:[%s126] ss:$8 sm:$0xf]
    %s128 = scalar_lea.vmem [#allocation0], 66
    %v129 = vld [vmem:[%s128] ss:$8 sm:$0xf0]
    %vm130 = vcmask 1047556
    %v131 = vsel %vm130, %v129, %v127
    %132 = vrot.lane.b32.xlu0 %v131, 64
    %v133 = vpop.permute.xlu0 %132
    %vm134 = vcmask 785920
    %s135 = scalar_lea.vmem %s1, 8
    %136 = vst.msk [vmem:[%s135] sm:$0xff] %vm134, %v133
    %s137 = scalar_lea.vmem [#allocation0], 1
    %v138 = vld [vmem:[%s137] ss:$8 sm:$0xf]
    %s139 = scalar_lea.vmem [#allocation0], 1
    %v140 = vld [vmem:[%s139] ss:$8 sm:$0xf0]
    %vm141 = vcmask 1047556
    %v142 = vsel %vm141, %v140, %v138
    %143 = vrot.lane.b32.xlu0 %v142, 32
    %v144 = vpop.permute.xlu0 %143
    %vm145 = vcmask 523520
    %146 = vst.msk [vmem:[%s1] sm:$0xff] %vm145, %v144
    %s147 = scalar_lea.vmem [#allocation0], 65
    %v148 = vld [vmem:[%s147] ss:$8 sm:$0xf]
    %s149 = scalar_lea.vmem [#allocation0], 65
    %v150 = vld [vmem:[%s149] ss:$8 sm:$0xf0]
    %vm151 = vcmask 1047556
    %v152 = vsel %vm151, %v150, %v148
    %153 = vrot.lane.b32.xlu0 %v152, 32
    %v154 = vpop.permute.xlu0 %153
    %vm155 = vcmask 523520
    %s156 = scalar_lea.vmem %s1, 8
    %157 = vst.msk [vmem:[%s156] sm:$0xff] %vm155, %v154

// kernel: encoder_list_forward.1
$region0: #{encoder_list_forward.1}
  #allocation0 [shape = 'u32[]', space=smem, size = 0x4, offset = 0x4, fixed_abs, tag = 'smem constant byte address 0x4 - core index']
  #allocation1 [shape = 'u32[144,128]{1,0:T(1,128)}', space=vmem, size = 0x12000, scoped, tag = 'internal scratch']
  #allocation2 [shape = 'f32[16,128]{1,0:T(8,128)}', space=vmem, size = 0x2000, scoped, tag = 'scratch operand']
  %s0 = inlined_call_operand.vmem [shape: f32[16,128], index: 0, kind: input, shape index: {}]
  %s1 = inlined_call_operand.hbm [shape: f32[2,128,384], index: 1, kind: input, shape index: {}]
  %s2 = inlined_call_operand.vmem [shape: f32[2,1,384], index: 2, kind: input, shape index: {}]
  %s3 = inlined_call_operand.vmem [shape: f32[128,128], index: 3, kind: input, shape index: {}]
  %s4 = inlined_call_operand.vmem [shape: f32[1,128], index: 4, kind: input, shape index: {}]
  %s5 = inlined_call_operand.vmem [shape: f32[128,256], index: 5, kind: input, shape index: {}]
  %s6 = inlined_call_operand.vmem [shape: f32[1,256], index: 6, kind: input, shape index: {}]
  %s7 = inlined_call_operand.vmem [shape: f32[16,128], index: 7, kind: input, shape index: {}]
  %s8 = inlined_call_operand.vmem [shape: f32[16,128], index: 8, kind: input, shape index: {}]
  %s9 = inlined_call_operand.vmem [shape: f32[16,128], index: 9, kind: input, shape index: {}]
  %s10 = inlined_call_operand.vmem [shape: f32[64,128], index: 10, kind: input, shape index: {}]
  %s11 = inlined_call_operand.vmem [shape: f32[8,128], index: 11, kind: input, shape index: {}]
  %s12 = inlined_call_operand.vmem [shape: f32[64,16], index: 12, kind: input, shape index: {}]
  %s13 = inlined_call_operand.vmem [shape: f32[8,16], index: 13, kind: input, shape index: {}]
  %s14 = inlined_call_operand.hbm [shape: f32[2,128], index: 14, kind: output, shape index: {}]
  %s15 = sld [smem:[#allocation0]]
  $region101: #{encoder_list_forward.1} parent=0
    _
  %s17 = ssub.s32 1, %s15
  %s18 = scalar_select 0, %s17, %s15
  $region1: #{encoder_list_forward.1} parent=0
    #allocation3 [shape = 'u8[393216]{0}', space=vmem, size = 0x60000, scoped, tag = 'input window, operand 1']
    #allocation4 [shape = 's32[2]{0}', space=sflag, size = 0x8, scoped, tag = 'scoped memory for encoder_list_forward.1']
    #allocation5 [shape = 's32[2]{0}', space=sflag, size = 0x8, scoped, tag = 'scoped memory for encoder_list_forward.1']
    #allocation6 [shape = 'u8[1024]{0}', space=vmem, size = 0x400, scoped, tag = 'output window, operand 0, single buffered']
    %19 = vsyncpa [#allocation4], 0
    %s20 = scalar_lea.sflag [#allocation4], 1
    %21 = vsyncpa %s20, 0
    %22 = vsyncpa [#allocation5], 0
    loop: start=0, step=1, limit=4
    $region2: #{encoder_list_forward.1} parent=1 // loop_pre_header
      _
    $region3: #{encoder_list_forward.1} parent=1 // loop_header
      %s24 = sphi 0, %s28
      %p25 = scmp.ge.s32.totalorder %s24, 4
      %s32 = sphi 0, %s32
      %s34 = sphi 0, %s32
      %s35 = sphi 0, %s34
      %s49 = sphi 0, %s35
      %s55 = sphi 0, %s57
      %s58 = sphi 0, %s55
      %s59 = sphi 0, %s58
      %s75 = sphi 0, %s59
      %s81 = sphi 0, %s83
      %s84 = sphi 0, %s81
      %s85 = sphi 0, %s84
      %s101 = sphi 0, %s85
      %s105 = sphi 0, %s105
      %s107 = sphi 0, %s105
      %s108 = sphi 0, %s107
      %s122 = sphi 0, %s108
      %s126 = sphi 0, %s126
      %s128 = sphi 0, %s126
      %s129 = sphi 0, %s128
      %s143 = sphi 0, %s129
      %s147 = sphi 0, %s147
      %s149 = sphi 0, %s147
      %s150 = sphi 0, %s149
      %s164 = sphi 0, %s150
      %s168 = sphi 0, %s168
      %s170 = sphi 0, %s168
      %s171 = sphi 0, %s170
      %s185 = sphi 0, %s171
      %s189 = sphi 0, %s189
      %s191 = sphi 0, %s189
      %s192 = sphi 0, %s191
      %s206 = sphi 0, %s192
      %s210 = sphi 0, %s210
      %s212 = sphi 0, %s210
      %s213 = sphi 0, %s212
      %s227 = sphi 0, %s213
      %s231 = sphi 0, %s231
      %s233 = sphi 0, %s231
      %s234 = sphi 0, %s233
      %s248 = sphi 0, %s234
      %s252 = sphi 0, %s252
      %s254 = sphi 0, %s252
      %s255 = sphi 0, %s254
      %s269 = sphi 0, %s255
      %s273 = sphi 0, %s273
      %s275 = sphi 0, %s273
      %s276 = sphi 0, %s275
      %s290 = sphi 0, %s276
      %s294 = sphi 0, %s294
      %s296 = sphi 0, %s294
      %s297 = sphi 0, %s296
      %s311 = sphi 0, %s297
      %s315 = sphi 0, %s315
      %s317 = sphi 0, %s315
      %s318 = sphi 0, %s317
      %s332 = sphi 0, %s318
      %s336 = sphi 0, %s336
      %s338 = sphi 0, %s336
      %s339 = sphi 0, %s338
      %s353 = sphi 0, %s339
    $region4: #{encoder_list_forward.1} parent=1 // loop_header_branch
      %27 = sbr.rel (%p25) target = $region8
    $region5: #{encoder_list_forward.1} parent=1 // loop_body
      %s29 = ssub.s32 %s24, 1
      %s30 = ssub.s32 %s24, 2
      %s31 = sadd.s32 %s24, 1
      %s33 = sadd.s32 %s32, 1
      %p36 = scmp.eq.s32.totalorder %s24, 1
      %p37 = scmp.ne.s32.totalorder %s32, %s34
      %p38 = scmp.eq.s32.totalorder %s24, 0
      %p39 = por %p37, %p38
      %p40 = scmp.ne.s32.totalorder %s32, %s34
      %p41 = scmp.eq.s32.totalorder %s29, 1
      %p42 = por %p40, %p41
      %p43 = scmp.ne.s32.totalorder %s34, %s35
      %p44 = scmp.eq.s32.totalorder %s29, 0
      %p45 = por %p43, %p44
      %p46 = scmp.ne.s32.totalorder %s34, %s35
      %p47 = scmp.eq.s32.totalorder %s30, 1
      %p48 = por %p46, %p47
      %p50 = scmp.ne.s32.totalorder %s35, %s49
      %p51 = scmp.eq.s32.totalorder %s30, 0
      %p52 = por %p50, %p51
      %s53 = ssub.s32 %s24, %s31
      %p54 = scmp.eq.s32.totalorder %s53, 0
      %s56 = sadd.s32 %s55, 1
      %s57 = scalar_select %p54, %s55, %s56
      %p60 = pneg %p54
      %p61 = scmp.eq.s32.totalorder %s24, 1
      %p62 = por %p60, %p61
      %p63 = scmp.ne.s32.totalorder %s55, %s58
      %p64 = scmp.eq.s32.totalorder %s24, 0
      %p65 = por %p63, %p64
      %p66 = scmp.ne.s32.totalorder %s55, %s58
      %p67 = scmp.eq.s32.totalorder %s29, 1
      %p68 = por %p66, %p67
      %p69 = scmp.ne.s32.totalorder %s58, %s59
      %p70 = scmp.eq.s32.totalorder %s29, 0
      %p71 = por %p69, %p70
      %p72 = scmp.ne.s32.totalorder %s58, %s59
      %p73 = scmp.eq.s32.totalorder %s30, 1
      %p74 = por %p72, %p73
      %p76 = scmp.ne.s32.totalorder %s59, %s75
      %p77 = scmp.eq.s32.totalorder %s30, 0
      %p78 = por %p76, %p77
      %s79 = ssub.s32 %s24, %s31
      %p80 = scmp.eq.s32.totalorder %s79, 0
      %s82 = sadd.s32 %s81, 1
      %s83 = scalar_select %p80, %s81, %s82
      %p86 = pneg %p80
      %p87 = scmp.eq.s32.totalorder %s24, 1
      %p88 = por %p86, %p87
      %p89 = scmp.ne.s32.totalorder %s81, %s84
      %p90 = scmp.eq.s32.totalorder %s24, 0
      %p91 = por %p89, %p90
      %p92 = scmp.ne.s32.totalorder %s81, %s84
      %p93 = scmp.eq.s32.totalorder %s29, 1
      %p94 = por %p92, %p93
      %p95 = scmp.ne.s32.totalorder %s84, %s85
      %p96 = scmp.eq.s32.totalorder %s29, 0
      %p97 = por %p95, %p96
      %p98 = scmp.ne.s32.totalorder %s84, %s85
      %p99 = scmp.eq.s32.totalorder %s30, 1
      %p100 = por %p98, %p99
      %p102 = scmp.ne.s32.totalorder %s85, %s101
      %p103 = scmp.eq.s32.totalorder %s30, 0
      %p104 = por %p102, %p103
      %s106 = sadd.s32 %s105, 1
      %p109 = scmp.eq.s32.totalorder %s24, 1
      %p110 = scmp.ne.s32.totalorder %s105, %s107
      %p111 = scmp.eq.s32.totalorder %s24, 0
      %p112 = por %p110, %p111
      %p113 = scmp.ne.s32.totalorder %s105, %s107
      %p114 = scmp.eq.s32.totalorder %s29, 1
      %p115 = por %p113, %p114
      %p116 = scmp.ne.s32.totalorder %s107, %s108
      %p117 = scmp.eq.s32.totalorder %s29, 0
      %p118 = por %p116, %p117
      %p119 = scmp.ne.s32.totalorder %s107, %s108
      %p120 = scmp.eq.s32.totalorder %s30, 1
      %p121 = por %p119, %p120
      %p123 = scmp.ne.s32.totalorder %s108, %s122
      %p124 = scmp.eq.s32.totalorder %s30, 0
      %p125 = por %p123, %p124
      %s127 = sadd.s32 %s126, 1
      %p130 = scmp.eq.s32.totalorder %s24, 1
      %p131 = scmp.ne.s32.totalorder %s126, %s128
      %p132 = scmp.eq.s32.totalorder %s24, 0
      %p133 = por %p131, %p132
      %p134 = scmp.ne.s32.totalorder %s126, %s128
      %p135 = scmp.eq.s32.totalorder %s29, 1
      %p136 = por %p134, %p135
      %p137 = scmp.ne.s32.totalorder %s128, %s129
      %p138 = scmp.eq.s32.totalorder %s29, 0
      %p139 = por %p137, %p138
      %p140 = scmp.ne.s32.totalorder %s128, %s129
      %p141 = scmp.eq.s32.totalorder %s30, 1
      %p142 = por %p140, %p141
      %p144 = scmp.ne.s32.totalorder %s129, %s143
      %p145 = scmp.eq.s32.totalorder %s30, 0
      %p146 = por %p144, %p145
      %s148 = sadd.s32 %s147, 1
      %p151 = scmp.eq.s32.totalorder %s24, 1
      %p152 = scmp.ne.s32.totalorder %s147, %s149
      %p153 = scmp.eq.s32.totalorder %s24, 0
      %p154 = por %p152, %p153
      %p155 = scmp.ne.s32.totalorder %s147, %s149
      %p156 = scmp.eq.s32.totalorder %s29, 1
      %p157 = por %p155, %p156
      %p158 = scmp.ne.s32.totalorder %s149, %s150
      %p159 = scmp.eq.s32.totalorder %s29, 0
      %p160 = por %p158, %p159
      %p161 = scmp.ne.s32.totalorder %s149, %s150
      %p162 = scmp.eq.s32.totalorder %s30, 1
      %p163 = por %p161, %p162
      %p165 = scmp.ne.s32.totalorder %s150, %s164
      %p166 = scmp.eq.s32.totalorder %s30, 0
      %p167 = por %p165, %p166
      %s169 = sadd.s32 %s168, 1
      %p172 = scmp.eq.s32.totalorder %s24, 1
      %p173 = scmp.ne.s32.totalorder %s168, %s170
      %p174 = scmp.eq.s32.totalorder %s24, 0
      %p175 = por %p173, %p174
      %p176 = scmp.ne.s32.totalorder %s168, %s170
      %p177 = scmp.eq.s32.totalorder %s29, 1
      %p178 = por %p176, %p177
      %p179 = scmp.ne.s32.totalorder %s170, %s171
      %p180 = scmp.eq.s32.totalorder %s29, 0
      %p181 = por %p179, %p180
      %p182 = scmp.ne.s32.totalorder %s170, %s171
      %p183 = scmp.eq.s32.totalorder %s30, 1
      %p184 = por %p182, %p183
      %p186 = scmp.ne.s32.totalorder %s171, %s185
      %p187 = scmp.eq.s32.totalorder %s30, 0
      %p188 = por %p186, %p187
      %s190 = sadd.s32 %s189, 1
      %p193 = scmp.eq.s32.totalorder %s24, 1
      %p194 = scmp.ne.s32.totalorder %s189, %s191
      %p195 = scmp.eq.s32.totalorder %s24, 0
      %p196 = por %p194, %p195
      %p197 = scmp.ne.s32.totalorder %s189, %s191
      %p198 = scmp.eq.s32.totalorder %s29, 1
      %p199 = por %p197, %p198
      %p200 = scmp.ne.s32.totalorder %s191, %s192
      %p201 = scmp.eq.s32.totalorder %s29, 0
      %p202 = por %p200, %p201
      %p203 = scmp.ne.s32.totalorder %s191, %s192
      %p204 = scmp.eq.s32.totalorder %s30, 1
      %p205 = por %p203, %p204
      %p207 = scmp.ne.s32.totalorder %s192, %s206
      %p208 = scmp.eq.s32.totalorder %s30, 0
      %p209 = por %p207, %p208
      %s211 = sadd.s32 %s210, 1
      %p214 = scmp.eq.s32.totalorder %s24, 1
      %p215 = scmp.ne.s32.totalorder %s210, %s212
      %p216 = scmp.eq.s32.totalorder %s24, 0
      %p217 = por %p215, %p216
      %p218 = scmp.ne.s32.totalorder %s210, %s212
      %p219 = scmp.eq.s32.totalorder %s29, 1
      %p220 = por %p218, %p219
      %p221 = scmp.ne.s32.totalorder %s212, %s213
      %p222 = scmp.eq.s32.totalorder %s29, 0
      %p223 = por %p221, %p222
      %p224 = scmp.ne.s32.totalorder %s212, %s213
      %p225 = scmp.eq.s32.totalorder %s30, 1
      %p226 = por %p224, %p225
      %p228 = scmp.ne.s32.totalorder %s213, %s227
      %p229 = scmp.eq.s32.totalorder %s30, 0
      %p230 = por %p228, %p229
      %s232 = sadd.s32 %s231, 1
      %p235 = scmp.eq.s32.totalorder %s24, 1
      %p236 = scmp.ne.s32.totalorder %s231, %s233
      %p237 = scmp.eq.s32.totalorder %s24, 0
      %p238 = por %p236, %p237
      %p239 = scmp.ne.s32.totalorder %s231, %s233
      %p240 = scmp.eq.s32.totalorder %s29, 1
      %p241 = por %p239, %p240
      %p242 = scmp.ne.s32.totalorder %s233, %s234
      %p243 = scmp.eq.s32.totalorder %s29, 0
      %p244 = por %p242, %p243
      %p245 = scmp.ne.s32.totalorder %s233, %s234
      %p246 = scmp.eq.s32.totalorder %s30, 1
      %p247 = por %p245, %p246
      %p249 = scmp.ne.s32.totalorder %s234, %s248
      %p250 = scmp.eq.s32.totalorder %s30, 0
      %p251 = por %p249, %p250
      %s253 = sadd.s32 %s252, 1
      %p256 = scmp.eq.s32.totalorder %s24, 1
      %p257 = scmp.ne.s32.totalorder %s252, %s254
      %p258 = scmp.eq.s32.totalorder %s24, 0
      %p259 = por %p257, %p258
      %p260 = scmp.ne.s32.totalorder %s252, %s254
      %p261 = scmp.eq.s32.totalorder %s29, 1
      %p262 = por %p260, %p261
      %p263 = scmp.ne.s32.totalorder %s254, %s255
      %p264 = scmp.eq.s32.totalorder %s29, 0
      %p265 = por %p263, %p264
      %p266 = scmp.ne.s32.totalorder %s254, %s255
      %p267 = scmp.eq.s32.totalorder %s30, 1
      %p268 = por %p266, %p267
      %p270 = scmp.ne.s32.totalorder %s255, %s269
      %p271 = scmp.eq.s32.totalorder %s30, 0
      %p272 = por %p270, %p271
      %s274 = sadd.s32 %s273, 1
      %p277 = scmp.eq.s32.totalorder %s24, 1
      %p278 = scmp.ne.s32.totalorder %s273, %s275
      %p279 = scmp.eq.s32.totalorder %s24, 0
      %p280 = por %p278, %p279
      %p281 = scmp.ne.s32.totalorder %s273, %s275
      %p282 = scmp.eq.s32.totalorder %s29, 1
      %p283 = por %p281, %p282
      %p284 = scmp.ne.s32.totalorder %s275, %s276
      %p285 = scmp.eq.s32.totalorder %s29, 0
      %p286 = por %p284, %p285
      %p287 = scmp.ne.s32.totalorder %s275, %s276
      %p288 = scmp.eq.s32.totalorder %s30, 1
      %p289 = por %p287, %p288
      %p291 = scmp.ne.s32.totalorder %s276, %s290
      %p292 = scmp.eq.s32.totalorder %s30, 0
      %p293 = por %p291, %p292
      %s295 = sadd.s32 %s294, 1
      %p298 = scmp.eq.s32.totalorder %s24, 1
      %p299 = scmp.ne.s32.totalorder %s294, %s296
      %p300 = scmp.eq.s32.totalorder %s24, 0
      %p301 = por %p299, %p300
      %p302 = scmp.ne.s32.totalorder %s294, %s296
      %p303 = scmp.eq.s32.totalorder %s29, 1
      %p304 = por %p302, %p303
      %p305 = scmp.ne.s32.totalorder %s296, %s297
      %p306 = scmp.eq.s32.totalorder %s29, 0
      %p307 = por %p305, %p306
      %p308 = scmp.ne.s32.totalorder %s296, %s297
      %p309 = scmp.eq.s32.totalorder %s30, 1
      %p310 = por %p308, %p309
      %p312 = scmp.ne.s32.totalorder %s297, %s311
      %p313 = scmp.eq.s32.totalorder %s30, 0
      %p314 = por %p312, %p313
      %s316 = sadd.s32 %s315, 1
      %p319 = scmp.eq.s32.totalorder %s24, 1
      %p320 = scmp.ne.s32.totalorder %s315, %s317
      %p321 = scmp.eq.s32.totalorder %s24, 0
      %p322 = por %p320, %p321
      %p323 = scmp.ne.s32.totalorder %s315, %s317
      %p324 = scmp.eq.s32.totalorder %s29, 1
      %p325 = por %p323, %p324
      %p326 = scmp.ne.s32.totalorder %s317, %s318
      %p327 = scmp.eq.s32.totalorder %s29, 0
      %p328 = por %p326, %p327
      %p329 = scmp.ne.s32.totalorder %s317, %s318
      %p330 = scmp.eq.s32.totalorder %s30, 1
      %p331 = por %p329, %p330
      %p333 = scmp.ne.s32.totalorder %s318, %s332
      %p334 = scmp.eq.s32.totalorder %s30, 0
      %p335 = por %p333, %p334
      %s337 = sadd.s32 %s336, 1
      %p340 = scmp.eq.s32.totalorder %s24, 1
      %p341 = scmp.ne.s32.totalorder %s336, %s338
      %p342 = scmp.eq.s32.totalorder %s24, 0
      %p343 = por %p341, %p342
      %p344 = scmp.ne.s32.totalorder %s336, %s338
      %p345 = scmp.eq.s32.totalorder %s29, 1
      %p346 = por %p344, %p345
      %p347 = scmp.ne.s32.totalorder %s338, %s339
      %p348 = scmp.eq.s32.totalorder %s29, 0
      %p349 = por %p347, %p348
      %p350 = scmp.ne.s32.totalorder %s338, %s339
      %p351 = scmp.eq.s32.totalorder %s30, 1
      %p352 = por %p350, %p351
      %p354 = scmp.ne.s32.totalorder %s339, %s353
      %p355 = scmp.eq.s32.totalorder %s30, 0
      %p356 = por %p354, %p355
      %p357 = scmp.le.s32.totalorder 1, %s24
      %p358 = scmp.lt.s32.totalorder %s24, 3
      %p359 = pnand %p357, %p358
      %p360 = pneg %p359
      // Predicated region
      $region9: #{encoder_list_forward.1} parent=5 // pred_check
        _
      $region10: #{encoder_list_forward.1} parent=5 // pred_check_branch
        %362 = sbr.rel (%p359) target = $region12
      $region11: #{encoder_list_forward.1} parent=5 // pred_region
        %s363 = ssub.s32 %s24, 1
        // Predicated region
        $region13: #{encoder_list_forward.1} parent=11 // pred_check
          %p364 = pneg %p45
        $region14: #{encoder_list_forward.1} parent=11 // pred_check_branch
          %366 = sbr.rel (%p364) target = $region16
        $region15: #{encoder_list_forward.1} parent=11 // pred_region
          _
        $region16: #{encoder_list_forward.1} parent=11 // pred_fallthru
          _
        // Predicated region
        $region17: #{encoder_list_forward.1} parent=11 // pred_check
          %p367 = pneg %p118
        $region18: #{encoder_list_forward.1} parent=11 // pred_check_branch
          %369 = sbr.rel (%p367) target = $region20
        $region19: #{encoder_list_forward.1} parent=11 // pred_region
          _
        $region20: #{encoder_list_forward.1} parent=11 // pred_fallthru
          _
        // Predicated region
        $region21: #{encoder_list_forward.1} parent=11 // pred_check
          %p370 = pneg %p139
        $region22: #{encoder_list_forward.1} parent=11 // pred_check_branch
          %372 = sbr.rel (%p370) target = $region24
        $region23: #{encoder_list_forward.1} parent=11 // pred_region
          _
        $region24: #{encoder_list_forward.1} parent=11 // pred_fallthru
          _
        // Predicated region
        $region25: #{encoder_list_forward.1} parent=11 // pred_check
          %p373 = pneg %p160
        $region26: #{encoder_list_forward.1} parent=11 // pred_check_branch
          %375 = sbr.rel (%p373) target = $region28
        $region27: #{encoder_list_forward.1} parent=11 // pred_region
          _
        $region28: #{encoder_list_forward.1} parent=11 // pred_fallthru
          _
        // Predicated region
        $region29: #{encoder_list_forward.1} parent=11 // pred_check
          %p376 = pneg %p181
        $region30: #{encoder_list_forward.1} parent=11 // pred_check_branch
          %378 = sbr.rel (%p376) target = $region32
        $region31: #{encoder_list_forward.1} parent=11 // pred_region
          _
        $region32: #{encoder_list_forward.1} parent=11 // pred_fallthru
          _
        // Predicated region
        $region33: #{encoder_list_forward.1} parent=11 // pred_check
          %p379 = pneg %p202
        $region34: #{encoder_list_forward.1} parent=11 // pred_check_branch
          %381 = sbr.rel (%p379) target = $region36
        $region35: #{encoder_list_forward.1} parent=11 // pred_region
          _
        $region36: #{encoder_list_forward.1} parent=11 // pred_fallthru
          _
        // Predicated region
        $region37: #{encoder_list_forward.1} parent=11 // pred_check
          %p382 = pneg %p223
        $region38: #{encoder_list_forward.1} parent=11 // pred_check_branch
          %384 = sbr.rel (%p382) target = $region40
        $region39: #{encoder_list_forward.1} parent=11 // pred_region
          _
        $region40: #{encoder_list_forward.1} parent=11 // pred_fallthru
          _
        // Predicated region
        $region41: #{encoder_list_forward.1} parent=11 // pred_check
          %p385 = pneg %p244
        $region42: #{encoder_list_forward.1} parent=11 // pred_check_branch
          %387 = sbr.rel (%p385) target = $region44
        $region43: #{encoder_list_forward.1} parent=11 // pred_region
          _
        $region44: #{encoder_list_forward.1} parent=11 // pred_fallthru
          _
        // Predicated region
        $region45: #{encoder_list_forward.1} parent=11 // pred_check
          %p388 = pneg %p265
        $region46: #{encoder_list_forward.1} parent=11 // pred_check_branch
          %390 = sbr.rel (%p388) target = $region48
        $region47: #{encoder_list_forward.1} parent=11 // pred_region
          _
        $region48: #{encoder_list_forward.1} parent=11 // pred_fallthru
          _
        // Predicated region
        $region49: #{encoder_list_forward.1} parent=11 // pred_check
          %p391 = pneg %p286
        $region50: #{encoder_list_forward.1} parent=11 // pred_check_branch
          %393 = sbr.rel (%p391) target = $region52
        $region51: #{encoder_list_forward.1} parent=11 // pred_region
          _
        $region52: #{encoder_list_forward.1} parent=11 // pred_fallthru
          _
        // Predicated region
        $region53: #{encoder_list_forward.1} parent=11 // pred_check
          %p394 = pneg %p307
        $region54: #{encoder_list_forward.1} parent=11 // pred_check_branch
          %396 = sbr.rel (%p394) target = $region56
        $region55: #{encoder_list_forward.1} parent=11 // pred_region
          _
        $region56: #{encoder_list_forward.1} parent=11 // pred_fallthru
          _
        // Predicated region
        $region57: #{encoder_list_forward.1} parent=11 // pred_check
          %p397 = pneg %p328
        $region58: #{encoder_list_forward.1} parent=11 // pred_check_branch
          %399 = sbr.rel (%p397) target = $region60
        $region59: #{encoder_list_forward.1} parent=11 // pred_region
          _
        $region60: #{encoder_list_forward.1} parent=11 // pred_fallthru
          _
      $region12: #{encoder_list_forward.1} parent=5 // pred_fallthru
        _
      %p400 = scmp.lt.s32.totalorder %s24, 2
      // Predicated region
      $region61: #{encoder_list_forward.1} parent=5 // pred_check
        %p401 = pneg %p400
      $region62: #{encoder_list_forward.1} parent=5 // pred_check_branch
        %403 = sbr.rel (%p401) target = $region64
      $region63: #{encoder_list_forward.1} parent=5 // pred_region
        // Predicated region
        $region65: #{encoder_list_forward.1} parent=63 // pred_check
          %p404 = pneg %p65
        $region66: #{encoder_list_forward.1} parent=63 // pred_check_branch
          %406 = sbr.rel (%p404) target = $region68
        $region67: #{encoder_list_forward.1} parent=63 // pred_region
          %s407 = sand.u32 %s55, 1
          %s408 = scalar_lea.sflag [#allocation4], %s407
          %s409 = sand.u32 %s55, 1
          %s410 = smul.addr %s409, 384
          %s411 = scalar_lea.vmem [#allocation3], %s410
          %s413 = ssub.s32 6144, 6144
          %414 = vsyncadd %s408, %s413
          %s415 = smul.addr %s24, 48
          %s416 = smul.addr %s415, 128
          %s417 = scalar_lea.hbm %s1, %s416
          %s418 = sshll.u32 %s411, 4
          %s419 = int_to_ptr.vmem [resolvable:$true] %s418
          %424 = dma.hbm_to_vmem [thread:$0]  %s417, 6144, %s419, %s408, 384, 384, 24
        $region68: #{encoder_list_forward.1} parent=63 // pred_fallthru
          _
        // Predicated region
        $region69: #{encoder_list_forward.1} parent=63 // pred_check
          %p425 = pneg %p91
        $region70: #{encoder_list_forward.1} parent=63 // pred_check_branch
          %427 = sbr.rel (%p425) target = $region72
        $region71: #{encoder_list_forward.1} parent=63 // pred_region
          %p428 = scmp.lt.s32.totalorder %s24, 1
          %s429 = scalar_select %p428, %s24, 1
          %s430 = smul.addr %s429, 3
          %s431 = scalar_lea.vmem %s2, %s430
        $region72: #{encoder_list_forward.1} parent=63 // pred_fallthru
          _
      $region64: #{encoder_list_forward.1} parent=5 // pred_fallthru
        _
      %p432 = scmp.le.s32.totalorder 1, %s24
      %p433 = scmp.lt.s32.totalorder %s24, 3
      %p434 = pnand %p432, %p433
      %p435 = pneg %p434
      // Predicated region
      $region73: #{encoder_list_forward.1} parent=5 // pred_check
        _
      $region74: #{encoder_list_forward.1} parent=5 // pred_check_branch
        %437 = sbr.rel (%p434) target = $region76
      $region75: #{encoder_list_forward.1} parent=5 // pred_region
        %s438 = ssub.s32 %s24, 1
        %s439 = sand.u32 %s58, 1
        %s440 = scalar_lea.sflag [#allocation4], %s439
        %s441 = sand.u32 %s58, 1
        %s442 = smul.addr %s441, 384
        %s443 = scalar_lea.vmem [#allocation3], %s442
        // Predicated region
        $region77: #{encoder_list_forward.1} parent=75 // pred_check
          %p444 = pneg %p71
        $region78: #{encoder_list_forward.1} parent=75 // pred_check_branch
          %446 = sbr.rel (%p444) target = $region80
        $region79: #{encoder_list_forward.1} parent=75 // pred_region
          %447 = dma.done %s440, 6144
        $region80: #{encoder_list_forward.1} parent=75 // pred_fallthru
          _
        %p448 = pneg %p45
        %p449 = pneg %p42
        %s450 = sand.u32 %s58, 1
        %s451 = scalar_lea.sflag [#allocation4], %s450
        %s452 = sand.u32 %s58, 1
        %s453 = smul.addr %s452, 384
        %s454 = scalar_lea.vmem [#allocation3], %s453
        %p455 = pneg %p71
        %p456 = pneg %p68
        %p457 = scmp.lt.s32.totalorder %s29, 1
        %s458 = scalar_select %p457, %s29, 1
        %s459 = smul.addr %s458, 3
        %s460 = scalar_lea.vmem %s2, %s459
        %p461 = pneg %p97
        %p462 = pneg %p94
        %p463 = pneg %p118
        %p464 = pneg %p115
        %p465 = pneg %p139
        %p466 = pneg %p136
        %p467 = pneg %p160
        %p468 = pneg %p157
        %p469 = pneg %p181
        %p470 = pneg %p178
        %p471 = pneg %p202
        %p472 = pneg %p199
        %p473 = pneg %p223
        %p474 = pneg %p220
        %p475 = pneg %p244
        %p476 = pneg %p241
        %p477 = pneg %p265
        %p478 = pneg %p262
        %p479 = pneg %p286
        %p480 = pneg %p283
        %p481 = pneg %p307
        %p482 = pneg %p304
        %p483 = pneg %p328
        %p484 = pneg %p325
        %p485 = pneg %p349
        %p486 = pneg %p346
        %p487 = scmp.lt.s32.totalorder %s29, 1
        %s488 = scalar_select %p487, %s29, 1
        %s489 = smul.addr %s488, 3
        %s490 = scalar_lea.vmem %s2, %s489
        %p491 = scmp.eq.s32.totalorder %s29, 0
        // Predicated region
        $region81: #{encoder_list_forward.1} parent=75 // pred_check
          %p492 = pneg %p491
        $region82: #{encoder_list_forward.1} parent=75 // pred_check_branch
          %494 = sbr.rel (%p492) target = $region84
        $region83: #{encoder_list_forward.1} parent=75 // pred_region
          %v495 = vld [vmem:[%s0] sm:$0xff]
          %v496 = vld [vmem:[%s0 + $0x8] sm:$0xff]
          %497 = vst [vmem:[#allocation2] sm:$0xff] %v495
          %498 = vst [vmem:[#allocation2 + $0x8] sm:$0xff] %v496
        $region84: #{encoder_list_forward.1} parent=75 // pred_fallthru
          _
        %v499 = vld [vmem:[#allocation2] sm:$0xff]
        %v500 = vld [vmem:[#allocation2 + $0x8] sm:$0xff]
        %v501 = vld [vmem:[%s7] sm:$0xff]
        %v502 = vld [vmem:[%s7 + $0x8] sm:$0xff]
        %v503 = vld [vmem:[%s8] sm:$0xff]
        %v504 = vld [vmem:[%s8 + $0x8] sm:$0xff]
        %v505 = vld [vmem:[%s9] sm:$0xff]
        %v506 = vld [vmem:[%s9 + $0x8] sm:$0xff]
        %v507 = vld [vmem:[%s10] sm:$0xff]
        %v508 = vld [vmem:[%s10 + $0x8] sm:$0xff]
        %v509 = vld [vmem:[%s10 + $0x10] sm:$0xff]
        %v510 = vld [vmem:[%s10 + $0x18] sm:$0xff]
        %v511 = vld [vmem:[%s10 + $0x20] sm:$0xff]
        %v512 = vld [vmem:[%s10 + $0x28] sm:$0xff]
        %v513 = vld [vmem:[%s10 + $0x30] sm:$0xff]
        %v514 = vld [vmem:[%s10 + $0x38] sm:$0xff]
        %v515 = vld [vmem:[%s443] sm:$0xff]
        %v516 = vld [vmem:[%s443 + $0x8] sm:$0xff]
        %v517 = vld [vmem:[%s443 + $0x10] sm:$0xff]
        %v518 = vld [vmem:[%s443 + $0x18] sm:$0xff]
        %v519 = vld [vmem:[%s443 + $0x20] sm:$0xff]
        %v520 = vld [vmem:[%s443 + $0x28] sm:$0xff]
        %v521 = vld [vmem:[%s443 + $0x30] sm:$0xff]
        %v522 = vld [vmem:[%s443 + $0x38] sm:$0xff]
        %v523 = vld [vmem:[%s443 + $0x40] sm:$0xff]
        %v524 = vld [vmem:[%s443 + $0x48] sm:$0xff]
        %v525 = vld [vmem:[%s443 + $0x50] sm:$0xff]
        %v526 = vld [vmem:[%s443 + $0x58] sm:$0xff]
        %v527 = vld [vmem:[%s443 + $0x60] sm:$0xff]
        %v528 = vld [vmem:[%s443 + $0x68] sm:$0xff]
        %v529 = vld [vmem:[%s443 + $0x70] sm:$0xff]
        %v530 = vld [vmem:[%s443 + $0x78] sm:$0xff]
        %v531 = vld [vmem:[%s443 + $0x80] sm:$0xff]
        %v532 = vld [vmem:[%s443 + $0x88] sm:$0xff]
        %v533 = vld [vmem:[%s443 + $0x90] sm:$0xff]
        %v534 = vld [vmem:[%s443 + $0x98] sm:$0xff]
        %v535 = vld [vmem:[%s443 + $0xa0] sm:$0xff]
        %v536 = vld [vmem:[%s443 + $0xa8] sm:$0xff]
        %v537 = vld [vmem:[%s443 + $0xb0] sm:$0xff]
        %v538 = vld [vmem:[%s443 + $0xb8] sm:$0xff]
        %v539 = vld [vmem:[%s443 + $0xc0] sm:$0xff]
        %v540 = vld [vmem:[%s443 + $0xc8] sm:$0xff]
        %v541 = vld [vmem:[%s443 + $0xd0] sm:$0xff]
        %v542 = vld [vmem:[%s443 + $0xd8] sm:$0xff]
        %v543 = vld [vmem:[%s443 + $0xe0] sm:$0xff]
        %v544 = vld [vmem:[%s443 + $0xe8] sm:$0xff]
        %v545 = vld [vmem:[%s443 + $0xf0] sm:$0xff]
        %v546 = vld [vmem:[%s443 + $0xf8] sm:$0xff]
        %v547 = vld [vmem:[%s443 + $0x100] sm:$0xff]
        %v548 = vld [vmem:[%s443 + $0x108] sm:$0xff]
        %v549 = vld [vmem:[%s443 + $0x110] sm:$0xff]
        %v550 = vld [vmem:[%s443 + $0x118] sm:$0xff]
        %v551 = vld [vmem:[%s443 + $0x120] sm:$0xff]
        %v552 = vld [vmem:[%s443 + $0x128] sm:$0xff]
        %v553 = vld [vmem:[%s443 + $0x130] sm:$0xff]
        %v554 = vld [vmem:[%s443 + $0x138] sm:$0xff]
        %v555 = vld [vmem:[%s443 + $0x140] sm:$0xff]
        %v556 = vld [vmem:[%s443 + $0x148] sm:$0xff]
        %v557 = vld [vmem:[%s443 + $0x150] sm:$0xff]
        %v558 = vld [vmem:[%s443 + $0x158] sm:$0xff]
        %v559 = vld [vmem:[%s443 + $0x160] sm:$0xff]
        %v560 = vld [vmem:[%s443 + $0x168] sm:$0xff]
        %v561 = vld [vmem:[%s443 + $0x170] sm:$0xff]
        %v562 = vld [vmem:[%s443 + $0x178] sm:$0xff]
        %v563 = vld [vmem:[%s490] sm:$0x7]
        %v565 = vlaneseq
        %v566 = vshrl.u32 %v565, 7
        %v567 = vsub.s32 0, %v566
        %v568 = vrot.slane %v563, %v567
        %v569 = vlaneseq
        %v570 = vshrl.u32 %v569, 7
        %v571 = vsub.s32 1, %v570
        %v572 = vrot.slane %v563, %v571
        %v573 = vlaneseq
        %v574 = vshrl.u32 %v573, 7
        %v575 = vsub.s32 2, %v574
        %v576 = vrot.slane %v563, %v575
        %v580 = vand.u32 %v516, 4294901760
        %581 = vmatprep.subr.mxu0 %v580
        %v582 = vand.u32 %v515, 4294901760
        %583 = vmatpush1.msra.mxu0 %v582
        %v584 = vand.u32 %v519, 4294901760
        %585 = vmatprep.subr.mxu0 %v584
        %v586 = vand.u32 %v518, 4294901760
        %587 = vmatpush1.msra.mxu0 %v586
        %v588 = vand.u32 %v522, 4294901760
        %589 = vmatprep.subr.mxu0 %v588
        %v590 = vand.u32 %v521, 4294901760
        %591 = vmatpush1.msra.mxu0 %v590
        %v592 = vand.u32 %v525, 4294901760
        %593 = vmatprep.subr.mxu0 %v592
        %v594 = vand.u32 %v524, 4294901760
        %595 = vmatpush1.msra.mxu0 %v594
        %v596 = vand.u32 %v528, 4294901760
        %597 = vmatprep.subr.mxu0 %v596
        %v598 = vand.u32 %v527, 4294901760
        %599 = vmatpush1.msra.mxu0 %v598
        %v600 = vand.u32 %v531, 4294901760
        %601 = vmatprep.subr.mxu0 %v600
        %v602 = vand.u32 %v530, 4294901760
        %603 = vmatpush1.msra.mxu0 %v602
        %v604 = vand.u32 %v534, 4294901760
        %605 = vmatprep.subr.mxu0 %v604
        %v606 = vand.u32 %v533, 4294901760
        %607 = vmatpush1.msra.mxu0 %v606
        %v608 = vand.u32 %v537, 4294901760
        %609 = vmatprep.subr.mxu0 %v608
        %v610 = vand.u32 %v536, 4294901760
        %611 = vmatpush1.msra.mxu0 %v610
        %v612 = vand.u32 %v540, 4294901760
        %613 = vmatprep.subr.mxu0 %v612
        %v614 = vand.u32 %v539, 4294901760
        %615 = vmatpush1.msra.mxu0 %v614
        %v616 = vand.u32 %v543, 4294901760
        %617 = vmatprep.subr.mxu0 %v616
        %v618 = vand.u32 %v542, 4294901760
        %619 = vmatpush1.msra.mxu0 %v618
        %v620 = vand.u32 %v546, 4294901760
        %621 = vmatprep.subr.mxu0 %v620
        %v622 = vand.u32 %v545, 4294901760
        %623 = vmatpush1.msra.mxu0 %v622
        %v624 = vand.u32 %v549, 4294901760
        %625 = vmatprep.subr.mxu0 %v624
        %v626 = vand.u32 %v548, 4294901760
        %627 = vmatpush1.msra.mxu0 %v626
        %v628 = vand.u32 %v552, 4294901760
        %629 = vmatprep.subr.mxu0 %v628
        %v630 = vand.u32 %v551, 4294901760
        %631 = vmatpush1.msra.mxu0 %v630
        %v632 = vand.u32 %v555, 4294901760
        %633 = vmatprep.subr.mxu0 %v632
        %v634 = vand.u32 %v554, 4294901760
        %635 = vmatpush1.msra.mxu0 %v634
        %v636 = vand.u32 %v558, 4294901760
        %637 = vmatprep.subr.mxu0 %v636
        %v638 = vand.u32 %v557, 4294901760
        %639 = vmatpush1.msra.mxu0 %v638
        %v640 = vand.u32 %v561, 4294901760
        %641 = vmatprep.subr.mxu0 %v640
        %v642 = vand.u32 %v560, 4294901760
        %643 = vmatpush1.msra.mxu0 %v642
        %644 = vmatprep.subr.mxu0 0.0
        %645 = vmatpush1.msra.mxu0 0.0
        %646 = vmatprep.subr.mxu0 0.0
        %647 = vmatpush1.msra.mxu0 0.0
        %648 = vmatprep.subr.mxu0 0.0
        %649 = vmatpush1.msra.mxu0 0.0
        %650 = vmatprep.subr.mxu0 0.0
        %651 = vmatpush1.msra.mxu0 0.0
        %652 = vmatprep.subr.mxu0 0.0
        %653 = vmatpush1.msra.mxu0 0.0
        %654 = vmatprep.subr.mxu0 0.0
        %655 = vmatpush1.msra.mxu0 0.0
        %656 = vmatprep.subr.mxu0 0.0
        %657 = vmatpush1.msra.mxu0 0.0
        %658 = vmatprep.subr.mxu0 0.0
        %659 = vmatpush1.msra.mxu0 0.0
        %660 = vmatprep.subr.mxu0 0.0
        %661 = vmatpush1.msra.mxu0 0.0
        %662 = vmatprep.subr.mxu0 0.0
        %663 = vmatpush1.msra.mxu0 0.0
        %664 = vmatprep.subr.mxu0 0.0
        %665 = vmatpush1.msra.mxu0 0.0
        %666 = vmatprep.subr.mxu0 0.0
        %667 = vmatpush1.msra.mxu0 0.0
        %668 = vmatprep.subr.mxu0 0.0
        %669 = vmatpush1.msra.mxu0 0.0
        %670 = vmatprep.subr.mxu0 0.0
        %671 = vmatpush1.msra.mxu0 0.0
        %672 = vmatprep.subr.mxu0 0.0
        %673 = vmatpush1.msra.mxu0 0.0
        %674 = vmatprep.subr.mxu0 0.0
        %675 = vmatpush1.msra.mxu0 0.0
        %676 = vmatprep.mubr.f32.mxu0 0.0
        %v677 = vand.u32 %v499, 4294901760
        %v678 = vsub.f32 %v499, %v677
        %v679 = vand.u32 %v678, 4294901760
        %v680 = vsub.f32 %v678, %v679
        %v681 = vand.u32 %v680, 4294901760
        %682 = vmatmul.mubr.f32.gmra.mrb[0].mxu0 %v681
        %v683 = vpop.f32.mrb[0].mxu0
        %v684 = vadd.f32 %v568, %v683
        %v685 = vpop.f32.mrb[0].mxu0
        %v686 = vadd.f32 %v572, %v685
        %687 = vmatprep.mubr.f32.mxu0 0.0
        %v688 = vand.u32 %v500, 4294901760
        %v689 = vsub.f32 %v500, %v688
        %v690 = vand.u32 %v689, 4294901760
        %v691 = vsub.f32 %v689, %v690
        %v692 = vand.u32 %v691, 4294901760
        %693 = vmatmul.mubr.f32.gmra.mrb[0].mxu0 %v692
        %v694 = vpop.f32.mrb[0].mxu0
        %v695 = vadd.f32 %v568, %v694
        %v696 = vpop.f32.mrb[0].mxu0
        %v697 = vadd.f32 %v572, %v696
        %698 = vdwg.mxu0
        %v699 = vand.u32 %v516, 4294901760
        %v700 = vsub.f32 %v516, %v699
        %v701 = vand.u32 %v700, 4294901760
        %v702 = vsub.f32 %v700, %v701
        %v703 = vand.u32 %v702, 4294901760
        %704 = vmatprep.subr.mxu0 %v703
        %v705 = vand.u32 %v515, 4294901760
        %v706 = vsub.f32 %v515, %v705
        %v707 = vand.u32 %v706, 4294901760
        %v708 = vsub.f32 %v706, %v707
        %v709 = vand.u32 %v708, 4294901760
        %710 = vmatpush1.msra.mxu0 %v709
        %v711 = vand.u32 %v519, 4294901760
        %v712 = vsub.f32 %v519, %v711
        %v713 = vand.u32 %v712, 4294901760
        %v714 = vsub.f32 %v712, %v713
        %v715 = vand.u32 %v714, 4294901760
        %716 = vmatprep.subr.mxu0 %v715
        %v717 = vand.u32 %v518, 4294901760
        %v718 = vsub.f32 %v518, %v717
        %v719 = vand.u32 %v718, 4294901760
        %v720 = vsub.f32 %v718, %v719
        %v721 = vand.u32 %v720, 4294901760
        %722 = vmatpush1.msra.mxu0 %v721
        %v723 = vand.u32 %v522, 4294901760
        %v724 = vsub.f32 %v522, %v723
        %v725 = vand.u32 %v724, 4294901760
        %v726 = vsub.f32 %v724, %v725
        %v727 = vand.u32 %v726, 4294901760
        %728 = vmatprep.subr.mxu0 %v727
        %v729 = vand.u32 %v521, 4294901760
        %v730 = vsub.f32 %v521, %v729
        %v731 = vand.u32 %v730, 4294901760
        %v732 = vsub.f32 %v730, %v731
        %v733 = vand.u32 %v732, 4294901760
        %734 = vmatpush1.msra.mxu0 %v733
        %v735 = vand.u32 %v525, 4294901760
        %v736 = vsub.f32 %v525, %v735
        %v737 = vand.u32 %v736, 4294901760
        %v738 = vsub.f32 %v736, %v737
        %v739 = vand.u32 %v738, 4294901760
        %740 = vmatprep.subr.mxu0 %v739
        %v741 = vand.u32 %v524, 4294901760
        %v742 = vsub.f32 %v524, %v741
        %v743 = vand.u32 %v742, 4294901760
        %v744 = vsub.f32 %v742, %v743
        %v745 = vand.u32 %v744, 4294901760
        %746 = vmatpush1.msra.mxu0 %v745
        %v747 = vand.u32 %v528, 4294901760
        %v748 = vsub.f32 %v528, %v747
        %v749 = vand.u32 %v748, 4294901760
        %v750 = vsub.f32 %v748, %v749
        %v751 = vand.u32 %v750, 4294901760
        %752 = vmatprep.subr.mxu0 %v751
        %v753 = vand.u32 %v527, 4294901760
        %v754 = vsub.f32 %v527, %v753
        %v755 = vand.u32 %v754, 4294901760
        %v756 = vsub.f32 %v754, %v755
        %v757 = vand.u32 %v756, 4294901760
        %758 = vmatpush1.msra.mxu0 %v757
        %v759 = vand.u32 %v531, 4294901760
        %v760 = vsub.f32 %v531, %v759
        %v761 = vand.u32 %v760, 4294901760
        %v762 = vsub.f32 %v760, %v761
        %v763 = vand.u32 %v762, 4294901760
        %764 = vmatprep.subr.mxu0 %v763
        %v765 = vand.u32 %v530, 4294901760
        %v766 = vsub.f32 %v530, %v765
        %v767 = vand.u32 %v766, 4294901760
        %v768 = vsub.f32 %v766, %v767
        %v769 = vand.u32 %v768, 4294901760
        %770 = vmatpush1.msra.mxu0 %v769
        %v771 = vand.u32 %v534, 4294901760
        %v772 = vsub.f32 %v534, %v771
        %v773 = vand.u32 %v772, 4294901760
        %v774 = vsub.f32 %v772, %v773
        %v775 = vand.u32 %v774, 4294901760
        %776 = vmatprep.subr.mxu0 %v775
        %v777 = vand.u32 %v533, 4294901760
        %v778 = vsub.f32 %v533, %v777
        %v779 = vand.u32 %v778, 4294901760
        %v780 = vsub.f32 %v778, %v779
        %v781 = vand.u32 %v780, 4294901760
        %782 = vmatpush1.msra.mxu0 %v781
        %v783 = vand.u32 %v537, 4294901760
        %v784 = vsub.f32 %v537, %v783
        %v785 = vand.u32 %v784, 4294901760
        %v786 = vsub.f32 %v784, %v785
        %v787 = vand.u32 %v786, 4294901760
        %788 = vmatprep.subr.mxu0 %v787
        %v789 = vand.u32 %v536, 4294901760
        %v790 = vsub.f32 %v536, %v789
        %v791 = vand.u32 %v790, 4294901760
        %v792 = vsub.f32 %v790, %v791
        %v793 = vand.u32 %v792, 4294901760
        %794 = vmatpush1.msra.mxu0 %v793
        %v795 = vand.u32 %v540, 4294901760
        %v796 = vsub.f32 %v540, %v795
        %v797 = vand.u32 %v796, 4294901760
        %v798 = vsub.f32 %v796, %v797
        %v799 = vand.u32 %v798, 4294901760
        %800 = vmatprep.subr.mxu0 %v799
        %v801 = vand.u32 %v539, 4294901760
        %v802 = vsub.f32 %v539, %v801
        %v803 = vand.u32 %v802, 4294901760
        %v804 = vsub.f32 %v802, %v803
        %v805 = vand.u32 %v804, 4294901760
        %806 = vmatpush1.msra.mxu0 %v805
        %v807 = vand.u32 %v543, 4294901760
        %v808 = vsub.f32 %v543, %v807
        %v809 = vand.u32 %v808, 4294901760
        %v810 = vsub.f32 %v808, %v809
        %v811 = vand.u32 %v810, 4294901760
        %812 = vmatprep.subr.mxu0 %v811
        %v813 = vand.u32 %v542, 4294901760
        %v814 = vsub.f32 %v542, %v813
        %v815 = vand.u32 %v814, 4294901760
        %v816 = vsub.f32 %v814, %v815
        %v817 = vand.u32 %v816, 4294901760
        %818 = vmatpush1.msra.mxu0 %v817
        %v819 = vand.u32 %v546, 4294901760
        %v820 = vsub.f32 %v546, %v819
        %v821 = vand.u32 %v820, 4294901760
        %v822 = vsub.f32 %v820, %v821
        %v823 = vand.u32 %v822, 4294901760
        %824 = vmatprep.subr.mxu0 %v823
        %v825 = vand.u32 %v545, 4294901760
        %v826 = vsub.f32 %v545, %v825
        %v827 = vand.u32 %v826, 4294901760
        %v828 = vsub.f32 %v826, %v827
        %v829 = vand.u32 %v828, 4294901760
        %830 = vmatpush1.msra.mxu0 %v829
        %v831 = vand.u32 %v549, 4294901760
        %v832 = vsub.f32 %v549, %v831
        %v833 = vand.u32 %v832, 4294901760
        %v834 = vsub.f32 %v832, %v833
        %v835 = vand.u32 %v834, 4294901760
        %836 = vmatprep.subr.mxu0 %v835
        %v837 = vand.u32 %v548, 4294901760
        %v838 = vsub.f32 %v548, %v837
        %v839 = vand.u32 %v838, 4294901760
        %v840 = vsub.f32 %v838, %v839
        %v841 = vand.u32 %v840, 4294901760
        %842 = vmatpush1.msra.mxu0 %v841
        %v843 = vand.u32 %v552, 4294901760
        %v844 = vsub.f32 %v552, %v843
        %v845 = vand.u32 %v844, 4294901760
        %v846 = vsub.f32 %v844, %v845
        %v847 = vand.u32 %v846, 4294901760
        %848 = vmatprep.subr.mxu0 %v847
        %v849 = vand.u32 %v551, 4294901760
        %v850 = vsub.f32 %v551, %v849
        %v851 = vand.u32 %v850, 4294901760
        %v852 = vsub.f32 %v850, %v851
        %v853 = vand.u32 %v852, 4294901760
        %854 = vmatpush1.msra.mxu0 %v853
        %v855 = vand.u32 %v555, 4294901760
        %v856 = vsub.f32 %v555, %v855
        %v857 = vand.u32 %v856, 4294901760
        %v858 = vsub.f32 %v856, %v857
        %v859 = vand.u32 %v858, 4294901760
        %860 = vmatprep.subr.mxu0 %v859
        %v861 = vand.u32 %v554, 4294901760
        %v862 = vsub.f32 %v554, %v861
        %v863 = vand.u32 %v862, 4294901760
        %v864 = vsub.f32 %v862, %v863
        %v865 = vand.u32 %v864, 4294901760
        %866 = vmatpush1.msra.mxu0 %v865
        %v867 = vand.u32 %v558, 4294901760
        %v868 = vsub.f32 %v558, %v867
        %v869 = vand.u32 %v868, 4294901760
        %v870 = vsub.f32 %v868, %v869
        %v871 = vand.u32 %v870, 4294901760
        %872 = vmatprep.subr.mxu0 %v871
        %v873 = vand.u32 %v557, 4294901760
        %v874 = vsub.f32 %v557, %v873
        %v875 = vand.u32 %v874, 4294901760
        %v876 = vsub.f32 %v874, %v875
        %v877 = vand.u32 %v876, 4294901760
        %878 = vmatpush1.msra.mxu0 %v877
        %v879 = vand.u32 %v561, 4294901760
        %v880 = vsub.f32 %v561, %v879
        %v881 = vand.u32 %v880, 4294901760
        %v882 = vsub.f32 %v880, %v881
        %v883 = vand.u32 %v882, 4294901760
        %884 = vmatprep.subr.mxu0 %v883
        %v885 = vand.u32 %v560, 4294901760
        %v886 = vsub.f32 %v560, %v885
        %v887 = vand.u32 %v886, 4294901760
        %v888 = vsub.f32 %v886, %v887
        %v889 = vand.u32 %v888, 4294901760
        %890 = vmatpush1.msra.mxu0 %v889
        %891 = vmatprep.subr.mxu0 0.0
        %892 = vmatpush1.msra.mxu0 0.0
        %893 = vmatprep.subr.mxu0 0.0
        %894 = vmatpush1.msra.mxu0 0.0
        %895 = vmatprep.subr.mxu0 0.0
        %896 = vmatpush1.msra.mxu0 0.0
        %897 = vmatprep.subr.mxu0 0.0
        %898 = vmatpush1.msra.mxu0 0.0
        %899 = vmatprep.subr.mxu0 0.0
        %900 = vmatpush1.msra.mxu0 0.0
        %901 = vmatprep.subr.mxu0 0.0
        %902 = vmatpush1.msra.mxu0 0.0
        %903 = vmatprep.subr.mxu0 0.0
        %904 = vmatpush1.msra.mxu0 0.0
        %905 = vmatprep.subr.mxu0 0.0
        %906 = vmatpush1.msra.mxu0 0.0
        %907 = vmatprep.subr.mxu0 0.0
        %908 = vmatpush1.msra.mxu0 0.0
        %909 = vmatprep.subr.mxu0 0.0
        %910 = vmatpush1.msra.mxu0 0.0
        %911 = vmatprep.subr.mxu0 0.0
        %912 = vmatpush1.msra.mxu0 0.0
        %913 = vmatprep.subr.mxu0 0.0
        %914 = vmatpush1.msra.mxu0 0.0
        %915 = vmatprep.subr.mxu0 0.0
        %916 = vmatpush1.msra.mxu0 0.0
        %917 = vmatprep.subr.mxu0 0.0
        %918 = vmatpush1.msra.mxu0 0.0
        %919 = vmatprep.subr.mxu0 0.0
        %920 = vmatpush1.msra.mxu0 0.0
        %921 = vmatprep.subr.mxu0 0.0
        %922 = vmatpush1.msra.mxu0 0.0
        %923 = vmatprep.mubr.f32.mxu0 0.0
        %v924 = vand.u32 %v499, 4294901760
        %925 = vmatmul.mubr.f32.gmra.mrb[0].mxu0 %v924
        %v926 = vpop.f32.mrb[0].mxu0
        %v927 = vadd.f32 %v684, %v926
        %v928 = vpop.f32.mrb[0].mxu0
        %v929 = vadd.f32 %v686, %v928
        %930 = vmatprep.mubr.f32.mxu0 0.0
        %v931 = vand.u32 %v500, 4294901760
        %932 = vmatmul.mubr.f32.gmra.mrb[0].mxu0 %v931
        %v933 = vpop.f32.mrb[0].mxu0
        %v934 = vadd.f32 %v695, %v933
        %v935 = vpop.f32.mrb[0].mxu0
        %v936 = vadd.f32 %v697, %v935
        %937 = vdwg.mxu0
        %v938 = vand.u32 %v516, 4294901760
        %v939 = vsub.f32 %v516, %v938
        %940 = vmatprep.subr.mxu0 %v939
        %v941 = vand.u32 %v515, 4294901760
        %v942 = vsub.f32 %v515, %v941
        %943 = vmatpush1.msra.mxu0 %v942
        %v944 = vand.u32 %v519, 4294901760
        %v945 = vsub.f32 %v519, %v944
        %946 = vmatprep.subr.mxu0 %v945
        %v947 = vand.u32 %v518, 4294901760
        %v948 = vsub.f32 %v518, %v947
        %949 = vmatpush1.msra.mxu0 %v948
        %v950 = vand.u32 %v522, 4294901760
        %v951 = vsub.f32 %v522, %v950
        %952 = vmatprep.subr.mxu0 %v951
        %v953 = vand.u32 %v521, 4294901760
        %v954 = vsub.f32 %v521, %v953
        %955 = vmatpush1.msra.mxu0 %v954
        %v956 = vand.u32 %v525, 4294901760
        %v957 = vsub.f32 %v525, %v956
        %958 = vmatprep.subr.mxu0 %v957
        %v959 = vand.u32 %v524, 4294901760
        %v960 = vsub.f32 %v524, %v959
        %961 = vmatpush1.msra.mxu0 %v960
        %v962 = vand.u32 %v528, 4294901760
        %v963 = vsub.f32 %v528, %v962
        %964 = vmatprep.subr.mxu0 %v963
        %v965 = vand.u32 %v527, 4294901760
        %v966 = vsub.f32 %v527, %v965
        %967 = vmatpush1.msra.mxu0 %v966
        %v968 = vand.u32 %v531, 4294901760
        %v969 = vsub.f32 %v531, %v968
        %970 = vmatprep.subr.mxu0 %v969
        %v971 = vand.u32 %v530, 4294901760
        %v972 = vsub.f32 %v530, %v971
        %973 = vmatpush1.msra.mxu0 %v972
        %v974 = vand.u32 %v534, 4294901760
        %v975 = vsub.f32 %v534, %v974
        %976 = vmatprep.subr.mxu0 %v975
        %v977 = vand.u32 %v533, 4294901760
        %v978 = vsub.f32 %v533, %v977
        %979 = vmatpush1.msra.mxu0 %v978
        %v980 = vand.u32 %v537, 4294901760
        %v981 = vsub.f32 %v537, %v980
        %982 = vmatprep.subr.mxu0 %v981
        %v983 = vand.u32 %v536, 4294901760
        %v984 = vsub.f32 %v536, %v983
        %985 = vmatpush1.msra.mxu0 %v984
        %v986 = vand.u32 %v540, 4294901760
        %v987 = vsub.f32 %v540, %v986
        %988 = vmatprep.subr.mxu0 %v987
        %v989 = vand.u32 %v539, 4294901760
        %v990 = vsub.f32 %v539, %v989
        %991 = vmatpush1.msra.mxu0 %v990
        %v992 = vand.u32 %v543, 4294901760
        %v993 = vsub.f32 %v543, %v992
        %994 = vmatprep.subr.mxu0 %v993
        %v995 = vand.u32 %v542, 4294901760
        %v996 = vsub.f32 %v542, %v995
        %997 = vmatpush1.msra.mxu0 %v996
        %v998 = vand.u32 %v546, 4294901760
        %v999 = vsub.f32 %v546, %v998
        %1000 = vmatprep.subr.mxu0 %v999
        %v1001 = vand.u32 %v545, 4294901760
        %v1002 = vsub.f32 %v545, %v1001
        %1003 = vmatpush1.msra.mxu0 %v1002
        %v1004 = vand.u32 %v549, 4294901760
        %v1005 = vsub.f32 %v549, %v1004
        %1006 = vmatprep.subr.mxu0 %v1005
        %v1007 = vand.u32 %v548, 4294901760
        %v1008 = vsub.f32 %v548, %v1007
        %1009 = vmatpush1.msra.mxu0 %v1008
        %v1010 = vand.u32 %v552, 4294901760
        %v1011 = vsub.f32 %v552, %v1010
        %1012 = vmatprep.subr.mxu0 %v1011
        %v1013 = vand.u32 %v551, 4294901760
        %v1014 = vsub.f32 %v551, %v1013
        %1015 = vmatpush1.msra.mxu0 %v1014
        %v1016 = vand.u32 %v555, 4294901760
        %v1017 = vsub.f32 %v555, %v1016
        %1018 = vmatprep.subr.mxu0 %v1017
        %v1019 = vand.u32 %v554, 4294901760
        %v1020 = vsub.f32 %v554, %v1019
        %1021 = vmatpush1.msra.mxu0 %v1020
        %v1022 = vand.u32 %v558, 4294901760
        %v1023 = vsub.f32 %v558, %v1022
        %1024 = vmatprep.subr.mxu0 %v1023
        %v1025 = vand.u32 %v557, 4294901760
        %v1026 = vsub.f32 %v557, %v1025
        %1027 = vmatpush1.msra.mxu0 %v1026
        %v1028 = vand.u32 %v561, 4294901760
        %v1029 = vsub.f32 %v561, %v1028
        %1030 = vmatprep.subr.mxu0 %v1029
        %v1031 = vand.u32 %v560, 4294901760
        %v1032 = vsub.f32 %v560, %v1031
        %1033 = vmatpush1.msra.mxu0 %v1032
        %1034 = vmatprep.subr.mxu0 0.0
        %1035 = vmatpush1.msra.mxu0 0.0
        %1036 = vmatprep.subr.mxu0 0.0
        %1037 = vmatpush1.msra.mxu0 0.0
        %1038 = vmatprep.subr.mxu0 0.0
        %1039 = vmatpush1.msra.mxu0 0.0
        %1040 = vmatprep.subr.mxu0 0.0
        %1041 = vmatpush1.msra.mxu0 0.0
        %1042 = vmatprep.subr.mxu0 0.0
        %1043 = vmatpush1.msra.mxu0 0.0
        %1044 = vmatprep.subr.mxu0 0.0
        %1045 = vmatpush1.msra.mxu0 0.0
        %1046 = vmatprep.subr.mxu0 0.0
        %1047 = vmatpush1.msra.mxu0 0.0
        %1048 = vmatprep.subr.mxu0 0.0
        %1049 = vmatpush1.msra.mxu0 0.0
        %1050 = vmatprep.subr.mxu0 0.0
        %1051 = vmatpush1.msra.mxu0 0.0
        %1052 = vmatprep.subr.mxu0 0.0
        %1053 = vmatpush1.msra.mxu0 0.0
        %1054 = vmatprep.subr.mxu0 0.0
        %1055 = vmatpush1.msra.mxu0 0.0
        %1056 = vmatprep.subr.mxu0 0.0
        %1057 = vmatpush1.msra.mxu0 0.0
        %1058 = vmatprep.subr.mxu0 0.0
        %1059 = vmatpush1.msra.mxu0 0.0
        %1060 = vmatprep.subr.mxu0 0.0
        %1061 = vmatpush1.msra.mxu0 0.0
        %1062 = vmatprep.subr.mxu0 0.0
        %1063 = vmatpush1.msra.mxu0 0.0
        %1064 = vmatprep.subr.mxu0 0.0
        %1065 = vmatpush1.msra.mxu0 0.0
        %1066 = vmatprep.mubr.f32.mxu0 0.0
        %v1067 = vand.u32 %v499, 4294901760
        %v1068 = vsub.f32 %v499, %v1067
        %1069 = vmatmul.mubr.f32.gmra.mrb[0].mxu0 %v1068
        %v1070 = vpop.f32.mrb[0].mxu0
        %v1071 = vadd.f32 %v927, %v1070
        %v1072 = vpop.f32.mrb[0].mxu0
        %v1073 = vadd.f32 %v929, %v1072
        %1074 = vmatprep.mubr.f32.mxu0 0.0
        %v1075 = vand.u32 %v500, 4294901760
        %v1076 = vsub.f32 %v500, %v1075
        %1077 = vmatmul.mubr.f32.gmra.mrb[0].mxu0 %v1076
        %v1078 = vpop.f32.mrb[0].mxu0
        %v1079 = vadd.f32 %v934, %v1078
        %v1080 = vpop.f32.mrb[0].mxu0
        %v1081 = vadd.f32 %v936, %v1080
        %1082 = vdwg.mxu0
        %v1083 = vand.u32 %v516, 4294901760
        %1084 = vmatprep.subr.mxu0 %v1083
        %v1085 = vand.u32 %v515, 4294901760
        %1086 = vmatpush1.msra.mxu0 %v1085
        %v1087 = vand.u32 %v519, 4294901760
        %1088 = vmatprep.subr.mxu0 %v1087
        %v1089 = vand.u32 %v518, 4294901760
        %1090 = vmatpush1.msra.mxu0 %v1089
        %v1091 = vand.u32 %v522, 4294901760
        %1092 = vmatprep.subr.mxu0 %v1091
        %v1093 = vand.u32 %v521, 4294901760
        %1094 = vmatpush1.msra.mxu0 %v1093
        %v1095 = vand.u32 %v525, 4294901760
        %1096 = vmatprep.subr.mxu0 %v1095
        %v1097 = vand.u32 %v524, 4294901760
        %1098 = vmatpush1.msra.mxu0 %v1097
        %v1099 = vand.u32 %v528, 4294901760
        %1100 = vmatprep.subr.mxu0 %v1099
        %v1101 = vand.u32 %v527, 4294901760
        %1102 = vmatpush1.msra.mxu0 %v1101
        %v1103 = vand.u32 %v531, 4294901760
        %1104 = vmatprep.subr.mxu0 %v1103
        %v1105 = vand.u32 %v530, 4294901760
        %1106 = vmatpush1.msra.mxu0 %v1105
        %v1107 = vand.u32 %v534, 4294901760
        %1108 = vmatprep.subr.mxu0 %v1107
        %v1109 = vand.u32 %v533, 4294901760
        %1110 = vmatpush1.msra.mxu0 %v1109
        %v1111 = vand.u32 %v537, 4294901760
        %1112 = vmatprep.subr.mxu0 %v1111
        %v1113 = vand.u32 %v536, 4294901760
        %1114 = vmatpush1.msra.mxu0 %v1113
        %v1115 = vand.u32 %v540, 4294901760
        %1116 = vmatprep.subr.mxu0 %v1115
        %v1117 = vand.u32 %v539, 4294901760
        %1118 = vmatpush1.msra.mxu0 %v1117
        %v1119 = vand.u32 %v543, 4294901760
        %1120 = vmatprep.subr.mxu0 %v1119
        %v1121 = vand.u32 %v542, 4294901760
        %1122 = vmatpush1.msra.mxu0 %v1121
        %v1123 = vand.u32 %v546, 4294901760
        %1124 = vmatprep.subr.mxu0 %v1123
        %v1125 = vand.u32 %v545, 4294901760
        %1126 = vmatpush1.msra.mxu0 %v1125
        %v1127 = vand.u32 %v549, 4294901760
        %1128 = vmatprep.subr.mxu0 %v1127
        %v1129 = vand.u32 %v548, 4294901760
        %1130 = vmatpush1.msra.mxu0 %v1129
        %v1131 = vand.u32 %v552, 4294901760
        %1132 = vmatprep.subr.mxu0 %v1131
        %v1133 = vand.u32 %v551, 4294901760
        %1134 = vmatpush1.msra.mxu0 %v1133
        %v1135 = vand.u32 %v555, 4294901760
        %1136 = vmatprep.subr.mxu0 %v1135
        %v1137 = vand.u32 %v554, 4294901760
        %1138 = vmatpush1.msra.mxu0 %v1137
        %v1139 = vand.u32 %v558, 4294901760
        %1140 = vmatprep.subr.mxu0 %v1139
        %v1141 = vand.u32 %v557, 4294901760
        %1142 = vmatpush1.msra.mxu0 %v1141
        %v1143 = vand.u32 %v561, 4294901760
        %1144 = vmatprep.subr.mxu0 %v1143
        %v1145 = vand.u32 %v560, 4294901760
        %1146 = vmatpush1.msra.mxu0 %v1145
        %1147 = vmatprep.subr.mxu0 0.0
        %1148 = vmatpush1.msra.mxu0 0.0
        %1149 = vmatprep.subr.mxu0 0.0
        %1150 = vmatpush1.msra.mxu0 0.0
        %1151 = vmatprep.subr.mxu0 0.0
        %1152 = vmatpush1.msra.mxu0 0.0
        %1153 = vmatprep.subr.mxu0 0.0
        %1154 = vmatpush1.msra.mxu0 0.0
        %1155 = vmatprep.subr.mxu0 0.0
        %1156 = vmatpush1.msra.mxu0 0.0
        %1157 = vmatprep.subr.mxu0 0.0
        %1158 = vmatpush1.msra.mxu0 0.0
        %1159 = vmatprep.subr.mxu0 0.0
        %1160 = vmatpush1.msra.mxu0 0.0
        %1161 = vmatprep.subr.mxu0 0.0
        %1162 = vmatpush1.msra.mxu0 0.0
        %1163 = vmatprep.subr.mxu0 0.0
        %1164 = vmatpush1.msra.mxu0 0.0
        %1165 = vmatprep.subr.mxu0 0.0
        %1166 = vmatpush1.msra.mxu0 0.0
        %1167 = vmatprep.subr.mxu0 0.0
        %1168 = vmatpush1.msra.mxu0 0.0
        %1169 = vmatprep.subr.mxu0 0.0
        %1170 = vmatpush1.msra.mxu0 0.0
        %1171 = vmatprep.subr.mxu0 0.0
        %1172 = vmatpush1.msra.mxu0 0.0
        %1173 = vmatprep.subr.mxu0 0.0
        %1174 = vmatpush1.msra.mxu0 0.0
        %1175 = vmatprep.subr.mxu0 0.0
        %1176 = vmatpush1.msra.mxu0 0.0
        %1177 = vmatprep.subr.mxu0 0.0
        %1178 = vmatpush1.msra.mxu0 0.0
        %1179 = vmatprep.mubr.f32.mxu0 0.0
        %v1180 = vand.u32 %v499, 4294901760
        %v1181 = vsub.f32 %v499, %v1180
        %v1182 = vand.u32 %v1181, 4294901760
        %1183 = vmatmul.mubr.f32.gmra.mrb[0].mxu0 %v1182
        %v1184 = vpop.f32.mrb[0].mxu0
        %v1185 = vadd.f32 %v1071, %v1184
        %v1186 = vpop.f32.mrb[0].mxu0
        %v1187 = vadd.f32 %v1073, %v1186
        %1188 = vmatprep.mubr.f32.mxu0 0.0
        %v1189 = vand.u32 %v500, 4294901760
        %v1190 = vsub.f32 %v500, %v1189
        %v1191 = vand.u32 %v1190, 4294901760
        %1192 = vmatmul.mubr.f32.gmra.mrb[0].mxu0 %v1191
        %v1193 = vpop.f32.mrb[0].mxu0
        %v1194 = vadd.f32 %v1079, %v1193
        %v1195 = vpop.f32.mrb[0].mxu0
        %v1196 = vadd.f32 %v1081, %v1195
        %1197 = vdwg.mxu0
        %v1198 = vand.u32 %v516, 4294901760
        %v1199 = vsub.f32 %v516, %v1198
        %v1200 = vand.u32 %v1199, 4294901760
        %1201 = vmatprep.subr.mxu0 %v1200
        %v1202 = vand.u32 %v515, 4294901760
        %v1203 = vsub.f32 %v515, %v1202
        %v1204 = vand.u32 %v1203, 4294901760
        %1205 = vmatpush1.msra.mxu0 %v1204
        %v1206 = vand.u32 %v519, 4294901760
        %v1207 = vsub.f32 %v519, %v1206
        %v1208 = vand.u32 %v1207, 4294901760
        %1209 = vmatprep.subr.mxu0 %v1208
        %v1210 = vand.u32 %v518, 4294901760
        %v1211 = vsub.f32 %v518, %v1210
        %v1212 = vand.u32 %v1211, 4294901760
        %1213 = vmatpush1.msra.mxu0 %v1212
        %v1214 = vand.u32 %v522, 4294901760
        %v1215 = vsub.f32 %v522, %v1214
        %v1216 = vand.u32 %v1215, 4294901760
        %1217 = vmatprep.subr.mxu0 %v1216
        %v1218 = vand.u32 %v521, 4294901760
        %v1219 = vsub.f32 %v521, %v1218
        %v1220 = vand.u32 %v1219, 4294901760
        %1221 = vmatpush1.msra.mxu0 %v1220
        %v1222 = vand.u32 %v525, 4294901760
        %v1223 = vsub.f32 %v525, %v1222
        %v1224 = vand.u32 %v1223, 4294901760
        %1225 = vmatprep.subr.mxu0 %v1224
        %v1226 = vand.u32 %v524, 4294901760
        %v1227 = vsub.f32 %v524, %v1226
        %v1228 = vand.u32 %v1227, 4294901760
        %1229 = vmatpush1.msra.mxu0 %v1228
        %v1230 = vand.u32 %v528, 4294901760
        %v1231 = vsub.f32 %v528, %v1230
        %v1232 = vand.u32 %v1231, 4294901760
        %1233 = vmatprep.subr.mxu0 %v1232
        %v1234 = vand.u32 %v527, 4294901760
        %v1235 = vsub.f32 %v527, %v1234
        %v1236 = vand.u32 %v1235, 4294901760
        %1237 = vmatpush1.msra.mxu0 %v1236
        %v1238 = vand.u32 %v531, 4294901760
        %v1239 = vsub.f32 %v531, %v1238
        %v1240 = vand.u32 %v1239, 4294901760
        %1241 = vmatprep.subr.mxu0 %v1240
        %v1242 = vand.u32 %v530, 4294901760
        %v1243 = vsub.f32 %v530, %v1242
        %v1244 = vand.u32 %v1243, 4294901760
        %1245 = vmatpush1.msra.mxu0 %v1244
        %v1246 = vand.u32 %v534, 4294901760
        %v1247 = vsub.f32 %v534, %v1246
        %v1248 = vand.u32 %v1247, 4294901760
        %1249 = vmatprep.subr.mxu0 %v1248
        %v1250 = vand.u32 %v533, 4294901760
        %v1251 = vsub.f32 %v533, %v1250
        %v1252 = vand.u32 %v1251, 4294901760
        %1253 = vmatpush1.msra.mxu0 %v1252
        %v1254 = vand.u32 %v537, 4294901760
        %v1255 = vsub.f32 %v537, %v1254
        %v1256 = vand.u32 %v1255, 4294901760
        %1257 = vmatprep.subr.mxu0 %v1256
        %v1258 = vand.u32 %v536, 4294901760
        %v1259 = vsub.f32 %v536, %v1258
        %v1260 = vand.u32 %v1259, 4294901760
        %1261 = vmatpush1.msra.mxu0 %v1260
        %v1262 = vand.u32 %v540, 4294901760
        %v1263 = vsub.f32 %v540, %v1262
        %v1264 = vand.u32 %v1263, 4294901760
        %1265 = vmatprep.subr.mxu0 %v1264
        %v1266 = vand.u32 %v539, 4294901760
        %v1267 = vsub.f32 %v539, %v1266
        %v1268 = vand.u32 %v1267, 4294901760
        %1269 = vmatpush1.msra.mxu0 %v1268
        %v1270 = vand.u32 %v543, 4294901760
        %v1271 = vsub.f32 %v543, %v1270
        %v1272 = vand.u32 %v1271, 4294901760
        %1273 = vmatprep.subr.mxu0 %v1272
        %v1274 = vand.u32 %v542, 4294901760
        %v1275 = vsub.f32 %v542, %v1274
        %v1276 = vand.u32 %v1275, 4294901760
        %1277 = vmatpush1.msra.mxu0 %v1276
        %v1278 = vand.u32 %v546, 4294901760
        %v1279 = vsub.f32 %v546, %v1278
        %v1280 = vand.u32 %v1279, 4294901760
        %1281 = vmatprep.subr.mxu0 %v1280
        %v1282 = vand.u32 %v545, 4294901760
        %v1283 = vsub.f32 %v545, %v1282
        %v1284 = vand.u32 %v1283, 4294901760
        %1285 = vmatpush1.msra.mxu0 %v1284
        %v1286 = vand.u32 %v549, 4294901760
        %v1287 = vsub.f32 %v549, %v1286
        %v1288 = vand.u32 %v1287, 4294901760
        %1289 = vmatprep.subr.mxu0 %v1288
        %v1290 = vand.u32 %v548, 4294901760
        %v1291 = vsub.f32 %v548, %v1290
        %v1292 = vand.u32 %v1291, 4294901760
        %1293 = vmatpush1.msra.mxu0 %v1292
        %v1294 = vand.u32 %v552, 4294901760
        %v1295 = vsub.f32 %v552, %v1294
        %v1296 = vand.u32 %v1295, 4294901760
        %1297 = vmatprep.subr.mxu0 %v1296
        %v1298 = vand.u32 %v551, 4294901760
        %v1299 = vsub.f32 %v551, %v1298
        %v1300 = vand.u32 %v1299, 4294901760
        %1301 = vmatpush1.msra.mxu0 %v1300
        %v1302 = vand.u32 %v555, 4294901760
        %v1303 = vsub.f32 %v555, %v1302
        %v1304 = vand.u32 %v1303, 4294901760
        %1305 = vmatprep.subr.mxu0 %v1304
        %v1306 = vand.u32 %v554, 4294901760
        %v1307 = vsub.f32 %v554, %v1306
        %v1308 = vand.u32 %v1307, 4294901760
        %1309 = vmatpush1.msra.mxu0 %v1308
        %v1310 = vand.u32 %v558, 4294901760
        %v1311 = vsub.f32 %v558, %v1310
        %v1312 = vand.u32 %v1311, 4294901760
        %1313 = vmatprep.subr.mxu0 %v1312
        %v1314 = vand.u32 %v557, 4294901760
        %v1315 = vsub.f32 %v557, %v1314
        %v1316 = vand.u32 %v1315, 4294901760
        %1317 = vmatpush1.msra.mxu0 %v1316
        %v1318 = vand.u32 %v561, 4294901760
        %v1319 = vsub.f32 %v561, %v1318
        %v1320 = vand.u32 %v1319, 4294901760
        %1321 = vmatprep.subr.mxu0 %v1320
        %v1322 = vand.u32 %v560, 4294901760
        %v1323 = vsub.f32 %v560, %v1322
        %v1324 = vand.u32 %v1323, 4294901760
        %1325 = vmatpush1.msra.mxu0 %v1324
        %1326 = vmatprep.subr.mxu0 0.0
        %1327 = vmatpush1.msra.mxu0 0.0
        %1328 = vmatprep.subr.mxu0 0.0
        %1329 = vmatpush1.msra.mxu0 0.0
        %1330 = vmatprep.subr.mxu0 0.0
        %1331 = vmatpush1.msra.mxu0 0.0
        %1332 = vmatprep.subr.mxu0 0.0
        %1333 = vmatpush1.msra.mxu0 0.0
        %1334 = vmatprep.subr.mxu0 0.0
        %1335 = vmatpush1.msra.mxu0 0.0
        %1336 = vmatprep.subr.mxu0 0.0
        %1337 = vmatpush1.msra.mxu0 0.0
        %1338 = vmatprep.subr.mxu0 0.0
        %1339 = vmatpush1.msra.mxu0 0.0
        %1340 = vmatprep.subr.mxu0 0.0
        %1341 = vmatpush1.msra.mxu0 0.0
        %1342 = vmatprep.subr.mxu0 0.0
        %1343 = vmatpush1.msra.mxu0 0.0
        %1344 = vmatprep.subr.mxu0 0.0
        %1345 = vmatpush1.msra.mxu0 0.0
        %1346 = vmatprep.subr.mxu0 0.0
        %1347 = vmatpush1.msra.mxu0 0.0
        %1348 = vmatprep.subr.mxu0 0.0
        %1349 = vmatpush1.msra.mxu0 0.0
        %1350 = vmatprep.subr.mxu0 0.0
        %1351 = vmatpush1.msra.mxu0 0.0
        %1352 = vmatprep.subr.mxu0 0.0
        %1353 = vmatpush1.msra.mxu0 0.0
        %1354 = vmatprep.subr.mxu0 0.0
        %1355 = vmatpush1.msra.mxu0 0.0
        %1356 = vmatprep.subr.mxu0 0.0
        %1357 = vmatpush1.msra.mxu0 0.0
        %1358 = vmatprep.mubr.f32.mxu0 0.0
        %v1359 = vand.u32 %v499, 4294901760
        %1360 = vmatmul.mubr.f32.gmra.mrb[0].mxu0 %v1359
        %v1361 = vpop.f32.mrb[0].mxu0
        %v1362 = vadd.f32 %v1185, %v1361
        %v1363 = vpop.f32.mrb[0].mxu0
        %v1364 = vadd.f32 %v1187, %v1363
        %1365 = vmatprep.mubr.f32.mxu0 0.0
        %v1366 = vand.u32 %v500, 4294901760
        %1367 = vmatmul.mubr.f32.gmra.mrb[0].mxu0 %v1366
        %v1368 = vpop.f32.mrb[0].mxu0
        %v1369 = vadd.f32 %v1194, %v1368
        %v1370 = vpop.f32.mrb[0].mxu0
        %v1371 = vadd.f32 %v1196, %v1370
        %1372 = vdwg.mxu0
        %v1373 = vand.u32 %v516, 4294901760
        %1374 = vmatprep.subr.mxu0 %v1373
        %v1375 = vand.u32 %v515, 4294901760
        %1376 = vmatpush1.msra.mxu0 %v1375
        %v1377 = vand.u32 %v519, 4294901760
        %1378 = vmatprep.subr.mxu0 %v1377
        %v1379 = vand.u32 %v518, 4294901760
        %1380 = vmatpush1.msra.mxu0 %v1379
        %v1381 = vand.u32 %v522, 4294901760
        %1382 = vmatprep.subr.mxu0 %v1381
        %v1383 = vand.u32 %v521, 4294901760
        %1384 = vmatpush1.msra.mxu0 %v1383
        %v1385 = vand.u32 %v525, 4294901760
        %1386 = vmatprep.subr.mxu0 %v1385
        %v1387 = vand.u32 %v524, 4294901760
        %1388 = vmatpush1.msra.mxu0 %v1387
        %v1389 = vand.u32 %v528, 4294901760
        %1390 = vmatprep.subr.mxu0 %v1389
        %v1391 = vand.u32 %v527, 4294901760
        %1392 = vmatpush1.msra.mxu0 %v1391
        %v1393 = vand.u32 %v531, 4294901760
        %1394 = vmatprep.subr.mxu0 %v1393
        %v1395 = vand.u32 %v530, 4294901760
        %1396 = vmatpush1.msra.mxu0 %v1395
        %v1397 = vand.u32 %v534, 4294901760
        %1398 = vmatprep.subr.mxu0 %v1397
        %v1399 = vand.u32 %v533, 4294901760
        %1400 = vmatpush1.msra.mxu0 %v1399
        %v1401 = vand.u32 %v537, 4294901760
        %1402 = vmatprep.subr.mxu0 %v1401
        %v1403 = vand.u32 %v536, 4294901760
        %1404 = vmatpush1.msra.mxu0 %v1403
        %v1405 = vand.u32 %v540, 4294901760
        %1406 = vmatprep.subr.mxu0 %v1405
        %v1407 = vand.u32 %v539, 4294901760
        %1408 = vmatpush1.msra.mxu0 %v1407
        %v1409 = vand.u32 %v543, 4294901760
        %1410 = vmatprep.subr.mxu0 %v1409
        %v1411 = vand.u32 %v542, 4294901760
        %1412 = vmatpush1.msra.mxu0 %v1411
        %v1413 = vand.u32 %v546, 4294901760
        %1414 = vmatprep.subr.mxu0 %v1413
        %v1415 = vand.u32 %v545, 4294901760
        %1416 = vmatpush1.msra.mxu0 %v1415
        %v1417 = vand.u32 %v549, 4294901760
        %1418 = vmatprep.subr.mxu0 %v1417
        %v1419 = vand.u32 %v548, 4294901760
        %1420 = vmatpush1.msra.mxu0 %v1419
        %v1421 = vand.u32 %v552, 4294901760
        %1422 = vmatprep.subr.mxu0 %v1421
        %v1423 = vand.u32 %v551, 4294901760
        %1424 = vmatpush1.msra.mxu0 %v1423
        %v1425 = vand.u32 %v555, 4294901760
        %1426 = vmatprep.subr.mxu0 %v1425
        %v1427 = vand.u32 %v554, 4294901760
        %1428 = vmatpush1.msra.mxu0 %v1427
        %v1429 = vand.u32 %v558, 4294901760
        %1430 = vmatprep.subr.mxu0 %v1429
        %v1431 = vand.u32 %v557, 4294901760
        %1432 = vmatpush1.msra.mxu0 %v1431
        %v1433 = vand.u32 %v561, 4294901760
        %1434 = vmatprep.subr.mxu0 %v1433
        %v1435 = vand.u32 %v560, 4294901760
        %1436 = vmatpush1.msra.mxu0 %v1435
        %1437 = vmatprep.subr.mxu0 0.0
        %1438 = vmatpush1.msra.mxu0 0.0
        %1439 = vmatprep.subr.mxu0 0.0
        %1440 = vmatpush1.msra.mxu0 0.0
        %1441 = vmatprep.subr.mxu0 0.0
        %1442 = vmatpush1.msra.mxu0 0.0
        %1443 = vmatprep.subr.mxu0 0.0
        %1444 = vmatpush1.msra.mxu0 0.0
        %1445 = vmatprep.subr.mxu0 0.0
        %1446 = vmatpush1.msra.mxu0 0.0
        %1447 = vmatprep.subr.mxu0 0.0
        %1448 = vmatpush1.msra.mxu0 0.0
        %1449 = vmatprep.subr.mxu0 0.0
        %1450 = vmatpush1.msra.mxu0 0.0
        %1451 = vmatprep.subr.mxu0 0.0
        %1452 = vmatpush1.msra.mxu0 0.0
        %1453 = vmatprep.subr.mxu0 0.0
        %1454 = vmatpush1.msra.mxu0 0.0
        %1455 = vmatprep.subr.mxu0 0.0
        %1456 = vmatpush1.msra.mxu0 0.0
        %1457 = vmatprep.subr.mxu0 0.0
        %1458 = vmatpush1.msra.mxu0 0.0
        %1459 = vmatprep.subr.mxu0 0.0
        %1460 = vmatpush1.msra.mxu0 0.0
        %1461 = vmatprep.subr.mxu0 0.0
        %1462 = vmatpush1.msra.mxu0 0.0
        %1463 = vmatprep.subr.mxu0 0.0
        %1464 = vmatpush1.msra.mxu0 0.0
        %1465 = vmatprep.subr.mxu0 0.0
        %1466 = vmatpush1.msra.mxu0 0.0
        %1467 = vmatprep.subr.mxu0 0.0
        %1468 = vmatpush1.msra.mxu0 0.0
        %1469 = vmatprep.mubr.f32.mxu0 0.0
        %v1470 = vand.u32 %v499, 4294901760
        %1471 = vmatmul.mubr.f32.gmra.mrb[0].mxu0 %v1470
        %v1472 = vpop.f32.mrb[0].mxu0
        %v1473 = vadd.f32 %v1362, %v1472
        %v1474 = vpop.f32.mrb[0].mxu0
        %v1475 = vadd.f32 %v1364, %v1474
        %1476 = vmatprep.mubr.f32.mxu0 0.0
        %v1477 = vand.u32 %v500, 4294901760
        %1478 = vmatmul.mubr.f32.gmra.mrb[0].mxu0 %v1477
        %v1479 = vpop.f32.mrb[0].mxu0
        %v1480 = vadd.f32 %v1369, %v1479
        %v1481 = vpop.f32.mrb[0].mxu0
        %v1482 = vadd.f32 %v1371, %v1481
        %1483 = vdwg.mxu0
        %1484 = vmatprep.subr.mxu0 0.0
        %v1485 = vand.u32 %v517, 4294901760
        %1486 = vmatpush1.msra.mxu0 %v1485
        %1487 = vmatprep.subr.mxu0 0.0
        %v1488 = vand.u32 %v520, 4294901760
        %1489 = vmatpush1.msra.mxu0 %v1488
        %1490 = vmatprep.subr.mxu0 0.0
        %v1491 = vand.u32 %v523, 4294901760
        %1492 = vmatpush1.msra.mxu0 %v1491
        %1493 = vmatprep.subr.mxu0 0.0
        %v1494 = vand.u32 %v526, 4294901760
        %1495 = vmatpush1.msra.mxu0 %v1494
        %1496 = vmatprep.subr.mxu0 0.0
        %v1497 = vand.u32 %v529, 4294901760
        %1498 = vmatpush1.msra.mxu0 %v1497
        %1499 = vmatprep.subr.mxu0 0.0
        %v1500 = vand.u32 %v532, 4294901760
        %1501 = vmatpush1.msra.mxu0 %v1500
        %1502 = vmatprep.subr.mxu0 0.0
        %v1503 = vand.u32 %v535, 4294901760
        %1504 = vmatpush1.msra.mxu0 %v1503
        %1505 = vmatprep.subr.mxu0 0.0
        %v1506 = vand.u32 %v538, 4294901760
        %1507 = vmatpush1.msra.mxu0 %v1506
        %1508 = vmatprep.subr.mxu0 0.0
        %v1509 = vand.u32 %v541, 4294901760
        %1510 = vmatpush1.msra.mxu0 %v1509
        %1511 = vmatprep.subr.mxu0 0.0
        %v1512 = vand.u32 %v544, 4294901760
        %1513 = vmatpush1.msra.mxu0 %v1512
        %1514 = vmatprep.subr.mxu0 0.0
        %v1515 = vand.u32 %v547, 4294901760
        %1516 = vmatpush1.msra.mxu0 %v1515
        %1517 = vmatprep.subr.mxu0 0.0
        %v1518 = vand.u32 %v550, 4294901760
        %1519 = vmatpush1.msra.mxu0 %v1518
        %1520 = vmatprep.subr.mxu0 0.0
        %v1521 = vand.u32 %v553, 4294901760
        %1522 = vmatpush1.msra.mxu0 %v1521
        %1523 = vmatprep.subr.mxu0 0.0
        %v1524 = vand.u32 %v556, 4294901760
        %1525 = vmatpush1.msra.mxu0 %v1524
        %1526 = vmatprep.subr.mxu0 0.0
        %v1527 = vand.u32 %v559, 4294901760
        %1528 = vmatpush1.msra.mxu0 %v1527
        %1529 = vmatprep.subr.mxu0 0.0
        %v1530 = vand.u32 %v562, 4294901760
        %1531 = vmatpush1.msra.mxu0 %v1530
        %1532 = vmatprep.subr.mxu0 0.0
        %1533 = vmatpush1.msra.mxu0 0.0
        %1534 = vmatprep.subr.mxu0 0.0
        %1535 = vmatpush1.msra.mxu0 0.0
        %1536 = vmatprep.subr.mxu0 0.0
        %1537 = vmatpush1.msra.mxu0 0.0
        %1538 = vmatprep.subr.mxu0 0.0
        %1539 = vmatpush1.msra.mxu0 0.0
        %1540 = vmatprep.subr.mxu0 0.0
        %1541 = vmatpush1.msra.mxu0 0.0
        %1542 = vmatprep.subr.mxu0 0.0
        %1543 = vmatpush1.msra.mxu0 0.0
        %1544 = vmatprep.subr.mxu0 0.0
        %1545 = vmatpush1.msra.mxu0 0.0
        %1546 = vmatprep.subr.mxu0 0.0
        %1547 = vmatpush1.msra.mxu0 0.0
        %1548 = vmatprep.subr.mxu0 0.0
        %1549 = vmatpush1.msra.mxu0 0.0
        %1550 = vmatprep.subr.mxu0 0.0
        %1551 = vmatpush1.msra.mxu0 0.0
        %1552 = vmatprep.subr.mxu0 0.0
        %1553 = vmatpush1.msra.mxu0 0.0
        %1554 = vmatprep.subr.mxu0 0.0
        %1555 = vmatpush1.msra.mxu0 0.0
        %1556 = vmatprep.subr.mxu0 0.0
        %1557 = vmatpush1.msra.mxu0 0.0
        %1558 = vmatprep.subr.mxu0 0.0
        %1559 = vmatpush1.msra.mxu0 0.0
        %1560 = vmatprep.subr.mxu0 0.0
        %1561 = vmatpush1.msra.mxu0 0.0
        %1562 = vmatprep.subr.mxu0 0.0
        %1563 = vmatpush1.msra.mxu0 0.0
        %1564 = vmatprep.mubr.f32.mxu0 0.0
        %v1565 = vand.u32 %v499, 4294901760
        %v1566 = vsub.f32 %v499, %v1565
        %v1567 = vand.u32 %v1566, 4294901760
        %v1568 = vsub.f32 %v1566, %v1567
        %v1569 = vand.u32 %v1568, 4294901760
        %1570 = vmatmul.mubr.f32.gmra.mrb[0].mxu0 %v1569
        %v1571 = vpop.f32.mrb[0].mxu0
        %v1572 = vadd.f32 %v576, %v1571
        %v1573 = vpop.f32.mrb[0].mxu0
        %1574 = vmatprep.mubr.f32.mxu0 0.0
        %v1575 = vand.u32 %v500, 4294901760
        %v1576 = vsub.f32 %v500, %v1575
        %v1577 = vand.u32 %v1576, 4294901760
        %v1578 = vsub.f32 %v1576, %v1577
        %v1579 = vand.u32 %v1578, 4294901760
        %1580 = vmatmul.mubr.f32.gmra.mrb[0].mxu0 %v1579
        %v1581 = vpop.f32.mrb[0].mxu0
        %v1582 = vadd.f32 %v576, %v1581
        %v1583 = vpop.f32.mrb[0].mxu0
        %1584 = vdwg.mxu0
        %1585 = vmatprep.subr.mxu0 0.0
        %v1586 = vand.u32 %v517, 4294901760
        %v1587 = vsub.f32 %v517, %v1586
        %v1588 = vand.u32 %v1587, 4294901760
        %v1589 = vsub.f32 %v1587, %v1588
        %v1590 = vand.u32 %v1589, 4294901760
        %1591 = vmatpush1.msra.mxu0 %v1590
        %1592 = vmatprep.subr.mxu0 0.0
        %v1593 = vand.u32 %v520, 4294901760
        %v1594 = vsub.f32 %v520, %v1593
        %v1595 = vand.u32 %v1594, 4294901760
        %v1596 = vsub.f32 %v1594, %v1595
        %v1597 = vand.u32 %v1596, 4294901760
        %1598 = vmatpush1.msra.mxu0 %v1597
        %1599 = vmatprep.subr.mxu0 0.0
        %v1600 = vand.u32 %v523, 4294901760
        %v1601 = vsub.f32 %v523, %v1600
        %v1602 = vand.u32 %v1601, 4294901760
        %v1603 = vsub.f32 %v1601, %v1602
        %v1604 = vand.u32 %v1603, 4294901760
        %1605 = vmatpush1.msra.mxu0 %v1604
        %1606 = vmatprep.subr.mxu0 0.0
        %v1607 = vand.u32 %v526, 4294901760
        %v1608 = vsub.f32 %v526, %v1607
        %v1609 = vand.u32 %v1608, 4294901760
        %v1610 = vsub.f32 %v1608, %v1609
        %v1611 = vand.u32 %v1610, 4294901760
        %1612 = vmatpush1.msra.mxu0 %v1611
        %1613 = vmatprep.subr.mxu0 0.0
        %v1614 = vand.u32 %v529, 4294901760
        %v1615 = vsub.f32 %v529, %v1614
        %v1616 = vand.u32 %v1615, 4294901760
        %v1617 = vsub.f32 %v1615, %v1616
        %v1618 = vand.u32 %v1617, 4294901760
        %1619 = vmatpush1.msra.mxu0 %v1618
        %1620 = vmatprep.subr.mxu0 0.0
        %v1621 = vand.u32 %v532, 4294901760
        %v1622 = vsub.f32 %v532, %v1621
        %v1623 = vand.u32 %v1622, 4294901760
        %v1624 = vsub.f32 %v1622, %v1623
        %v1625 = vand.u32 %v1624, 4294901760
        %1626 = vmatpush1.msra.mxu0 %v1625
        %1627 = vmatprep.subr.mxu0 0.0
        %v1628 = vand.u32 %v535, 4294901760
        %v1629 = vsub.f32 %v535, %v1628
        %v1630 = vand.u32 %v1629, 4294901760
        %v1631 = vsub.f32 %v1629, %v1630
        %v1632 = vand.u32 %v1631, 4294901760
        %1633 = vmatpush1.msra.mxu0 %v1632
        %1634 = vmatprep.subr.mxu0 0.0
        %v1635 = vand.u32 %v538, 4294901760
        %v1636 = vsub.f32 %v538, %v1635
        %v1637 = vand.u32 %v1636, 4294901760
        %v1638 = vsub.f32 %v1636, %v1637
        %v1639 = vand.u32 %v1638, 4294901760
        %1640 = vmatpush1.msra.mxu0 %v1639
        %1641 = vmatprep.subr.mxu0 0.0
        %v1642 = vand.u32 %v541, 4294901760
        %v1643 = vsub.f32 %v541, %v1642
        %v1644 = vand.u32 %v1643, 4294901760
        %v1645 = vsub.f32 %v1643, %v1644
        %v1646 = vand.u32 %v1645, 4294901760
        %1647 = vmatpush1.msra.mxu0 %v1646
        %1648 = vmatprep.subr.mxu0 0.0
        %v1649 = vand.u32 %v544, 4294901760
        %v1650 = vsub.f32 %v544, %v1649
        %v1651 = vand.u32 %v1650, 4294901760
        %v1652 = vsub.f32 %v1650, %v1651
        %v1653 = vand.u32 %v1652, 4294901760
        %1654 = vmatpush1.msra.mxu0 %v1653
        %1655 = vmatprep.subr.mxu0 0.0
        %v1656 = vand.u32 %v547, 4294901760
        %v1657 = vsub.f32 %v547, %v1656
        %v1658 = vand.u32 %v1657, 4294901760
        %v1659 = vsub.f32 %v1657, %v1658
        %v1660 = vand.u32 %v1659, 4294901760
        %1661 = vmatpush1.msra.mxu0 %v1660
        %1662 = vmatprep.subr.mxu0 0.0
        %v1663 = vand.u32 %v550, 4294901760
        %v1664 = vsub.f32 %v550, %v1663
        %v1665 = vand.u32 %v1664, 4294901760
        %v1666 = vsub.f32 %v1664, %v1665
        %v1667 = vand.u32 %v1666, 4294901760
        %1668 = vmatpush1.msra.mxu0 %v1667
        %1669 = vmatprep.subr.mxu0 0.0
        %v1670 = vand.u32 %v553, 4294901760
        %v1671 = vsub.f32 %v553, %v1670
        %v1672 = vand.u32 %v1671, 4294901760
        %v1673 = vsub.f32 %v1671, %v1672
        %v1674 = vand.u32 %v1673, 4294901760
        %1675 = vmatpush1.msra.mxu0 %v1674
        %1676 = vmatprep.subr.mxu0 0.0
        %v1677 = vand.u32 %v556, 4294901760
        %v1678 = vsub.f32 %v556, %v1677
        %v1679 = vand.u32 %v1678, 4294901760
        %v1680 = vsub.f32 %v1678, %v1679
        %v1681 = vand.u32 %v1680, 4294901760
        %1682 = vmatpush1.msra.mxu0 %v1681
        %1683 = vmatprep.subr.mxu0 0.0
        %v1684 = vand.u32 %v559, 4294901760
        %v1685 = vsub.f32 %v559, %v1684
        %v1686 = vand.u32 %v1685, 4294901760
        %v1687 = vsub.f32 %v1685, %v1686
        %v1688 = vand.u32 %v1687, 4294901760
        %1689 = vmatpush1.msra.mxu0 %v1688
        %1690 = vmatprep.subr.mxu0 0.0
        %v1691 = vand.u32 %v562, 4294901760
        %v1692 = vsub.f32 %v562, %v1691
        %v1693 = vand.u32 %v1692, 4294901760
        %v1694 = vsub.f32 %v1692, %v1693
        %v1695 = vand.u32 %v1694, 4294901760
        %1696 = vmatpush1.msra.mxu0 %v1695
        %1697 = vmatprep.subr.mxu0 0.0
        %1698 = vmatpush1.msra.mxu0 0.0
        %1699 = vmatprep.subr.mxu0 0.0
        %1700 = vmatpush1.msra.mxu0 0.0
        %1701 = vmatprep.subr.mxu0 0.0
        %1702 = vmatpush1.msra.mxu0 0.0
        %1703 = vmatprep.subr.mxu0 0.0
        %1704 = vmatpush1.msra.mxu0 0.0
        %1705 = vmatprep.subr.mxu0 0.0
        %1706 = vmatpush1.msra.mxu0 0.0
        %1707 = vmatprep.subr.mxu0 0.0
        %1708 = vmatpush1.msra.mxu0 0.0
        %1709 = vmatprep.subr.mxu0 0.0
        %1710 = vmatpush1.msra.mxu0 0.0
        %1711 = vmatprep.subr.mxu0 0.0
        %1712 = vmatpush1.msra.mxu0 0.0
        %1713 = vmatprep.subr.mxu0 0.0
        %1714 = vmatpush1.msra.mxu0 0.0
        %1715 = vmatprep.subr.mxu0 0.0
        %1716 = vmatpush1.msra.mxu0 0.0
        %1717 = vmatprep.subr.mxu0 0.0
        %1718 = vmatpush1.msra.mxu0 0.0
        %1719 = vmatprep.subr.mxu0 0.0
        %1720 = vmatpush1.msra.mxu0 0.0
        %1721 = vmatprep.subr.mxu0 0.0
        %1722 = vmatpush1.msra.mxu0 0.0
        %1723 = vmatprep.subr.mxu0 0.0
        %1724 = vmatpush1.msra.mxu0 0.0
        %1725 = vmatprep.subr.mxu0 0.0
        %1726 = vmatpush1.msra.mxu0 0.0
        %1727 = vmatprep.subr.mxu0 0.0
        %1728 = vmatpush1.msra.mxu0 0.0
        %1729 = vmatprep.mubr.f32.mxu0 0.0
        %v1730 = vand.u32 %v499, 4294901760
        %1731 = vmatmul.mubr.f32.gmra.mrb[0].mxu0 %v1730
        %v1732 = vpop.f32.mrb[0].mxu0
        %v1733 = vadd.f32 %v1572, %v1732
        %v1734 = vpop.f32.mrb[0].mxu0
        %1735 = vmatprep.mubr.f32.mxu0 0.0
        %v1736 = vand.u32 %v500, 4294901760
        %1737 = vmatmul.mubr.f32.gmra.mrb[0].mxu0 %v1736
        %v1738 = vpop.f32.mrb[0].mxu0
        %v1739 = vadd.f32 %v1582, %v1738
        %v1740 = vpop.f32.mrb[0].mxu0
        %1741 = vdwg.mxu0
        %1742 = vmatprep.subr.mxu0 0.0
        %v1743 = vand.u32 %v517, 4294901760
        %v1744 = vsub.f32 %v517, %v1743
        %1745 = vmatpush1.msra.mxu0 %v1744
        %1746 = vmatprep.subr.mxu0 0.0
        %v1747 = vand.u32 %v520, 4294901760
        %v1748 = vsub.f32 %v520, %v1747
        %1749 = vmatpush1.msra.mxu0 %v1748
        %1750 = vmatprep.subr.mxu0 0.0
        %v1751 = vand.u32 %v523, 4294901760
        %v1752 = vsub.f32 %v523, %v1751
        %1753 = vmatpush1.msra.mxu0 %v1752
        %1754 = vmatprep.subr.mxu0 0.0
        %v1755 = vand.u32 %v526, 4294901760
        %v1756 = vsub.f32 %v526, %v1755
        %1757 = vmatpush1.msra.mxu0 %v1756
        %1758 = vmatprep.subr.mxu0 0.0
        %v1759 = vand.u32 %v529, 4294901760
        %v1760 = vsub.f32 %v529, %v1759
        %1761 = vmatpush1.msra.mxu0 %v1760
        %1762 = vmatprep.subr.mxu0 0.0
        %v1763 = vand.u32 %v532, 4294901760
        %v1764 = vsub.f32 %v532, %v1763
        %1765 = vmatpush1.msra.mxu0 %v1764
        %1766 = vmatprep.subr.mxu0 0.0
        %v1767 = vand.u32 %v535, 4294901760
        %v1768 = vsub.f32 %v535, %v1767
        %1769 = vmatpush1.msra.mxu0 %v1768
        %1770 = vmatprep.subr.mxu0 0.0
        %v1771 = vand.u32 %v538, 4294901760
        %v1772 = vsub.f32 %v538, %v1771
        %1773 = vmatpush1.msra.mxu0 %v1772
        %1774 = vmatprep.subr.mxu0 0.0
        %v1775 = vand.u32 %v541, 4294901760
        %v1776 = vsub.f32 %v541, %v1775
        %1777 = vmatpush1.msra.mxu0 %v1776
        %1778 = vmatprep.subr.mxu0 0.0
        %v1779 = vand.u32 %v544, 4294901760
        %v1780 = vsub.f32 %v544, %v1779
        %1781 = vmatpush1.msra.mxu0 %v1780
        %1782 = vmatprep.subr.mxu0 0.0
        %v1783 = vand.u32 %v547, 4294901760
        %v1784 = vsub.f32 %v547, %v1783
        %1785 = vmatpush1.msra.mxu0 %v1784
        %1786 = vmatprep.subr.mxu0 0.0
        %v1787 = vand.u32 %v550, 4294901760
        %v1788 = vsub.f32 %v550, %v1787
        %1789 = vmatpush1.msra.mxu0 %v1788
        %1790 = vmatprep.subr.mxu0 0.0
        %v1791 = vand.u32 %v553, 4294901760
        %v1792 = vsub.f32 %v553, %v1791
        %1793 = vmatpush1.msra.mxu0 %v1792
        %1794 = vmatprep.subr.mxu0 0.0
        %v1795 = vand.u32 %v556, 4294901760
        %v1796 = vsub.f32 %v556, %v1795
        %1797 = vmatpush1.msra.mxu0 %v1796
        %1798 = vmatprep.subr.mxu0 0.0
        %v1799 = vand.u32 %v559, 4294901760
        %v1800 = vsub.f32 %v559, %v1799
        %1801 = vmatpush1.msra.mxu0 %v1800
        %1802 = vmatprep.subr.mxu0 0.0
        %v1803 = vand.u32 %v562, 4294901760
        %v1804 = vsub.f32 %v562, %v1803
        %1805 = vmatpush1.msra.mxu0 %v1804
        %1806 = vmatprep.subr.mxu0 0.0
        %1807 = vmatpush1.msra.mxu0 0.0
        %1808 = vmatprep.subr.mxu0 0.0
        %1809 = vmatpush1.msra.mxu0 0.0
        %1810 = vmatprep.subr.mxu0 0.0
        %1811 = vmatpush1.msra.mxu0 0.0
        %1812 = vmatprep.subr.mxu0 0.0
        %1813 = vmatpush1.msra.mxu0 0.0
        %1814 = vmatprep.subr.mxu0 0.0
        %1815 = vmatpush1.msra.mxu0 0.0
        %1816 = vmatprep.subr.mxu0 0.0
        %1817 = vmatpush1.msra.mxu0 0.0
        %1818 = vmatprep.subr.mxu0 0.0
        %1819 = vmatpush1.msra.mxu0 0.0
        %1820 = vmatprep.subr.mxu0 0.0
        %1821 = vmatpush1.msra.mxu0 0.0
        %1822 = vmatprep.subr.mxu0 0.0
        %1823 = vmatpush1.msra.mxu0 0.0
        %1824 = vmatprep.subr.mxu0 0.0
        %1825 = vmatpush1.msra.mxu0 0.0
        %1826 = vmatprep.subr.mxu0 0.0
        %1827 = vmatpush1.msra.mxu0 0.0
        %1828 = vmatprep.subr.mxu0 0.0
        %1829 = vmatpush1.msra.mxu0 0.0
        %1830 = vmatprep.subr.mxu0 0.0
        %1831 = vmatpush1.msra.mxu0 0.0
        %1832 = vmatprep.subr.mxu0 0.0
        %1833 = vmatpush1.msra.mxu0 0.0
        %1834 = vmatprep.subr.mxu0 0.0
        %1835 = vmatpush1.msra.mxu0 0.0
        %1836 = vmatprep.subr.mxu0 0.0
        %1837 = vmatpush1.msra.mxu0 0.0
        %1838 = vmatprep.mubr.f32.mxu0 0.0
        %v1839 = vand.u32 %v499, 4294901760
        %v1840 = vsub.f32 %v499, %v1839
        %1841 = vmatmul.mubr.f32.gmra.mrb[0].mxu0 %v1840
        %v1842 = vpop.f32.mrb[0].mxu0
        %v1843 = vadd.f32 %v1733, %v1842
        %v1844 = vpop.f32.mrb[0].mxu0
        %1845 = vmatprep.mubr.f32.mxu0 0.0
        %v1846 = vand.u32 %v500, 4294901760
        %v1847 = vsub.f32 %v500, %v1846
        %1848 = vmatmul.mubr.f32.gmra.mrb[0].mxu0 %v1847
        %v1849 = vpop.f32.mrb[0].mxu0
        %v1850 = vadd.f32 %v1739, %v1849
        %v1851 = vpop.f32.mrb[0].mxu0
        %1852 = vdwg.mxu0
        %1853 = vmatprep.subr.mxu0 0.0
        %v1854 = vand.u32 %v517, 4294901760
        %1855 = vmatpush1.msra.mxu0 %v1854
        %1856 = vmatprep.subr.mxu0 0.0
        %v1857 = vand.u32 %v520, 4294901760
        %1858 = vmatpush1.msra.mxu0 %v1857
        %1859 = vmatprep.subr.mxu0 0.0
        %v1860 = vand.u32 %v523, 4294901760
        %1861 = vmatpush1.msra.mxu0 %v1860
        %1862 = vmatprep.subr.mxu0 0.0
        %v1863 = vand.u32 %v526, 4294901760
        %1864 = vmatpush1.msra.mxu0 %v1863
        %1865 = vmatprep.subr.mxu0 0.0
        %v1866 = vand.u32 %v529, 4294901760
        %1867 = vmatpush1.msra.mxu0 %v1866
        %1868 = vmatprep.subr.mxu0 0.0
        %v1869 = vand.u32 %v532, 4294901760
        %1870 = vmatpush1.msra.mxu0 %v1869
        %1871 = vmatprep.subr.mxu0 0.0
        %v1872 = vand.u32 %v535, 4294901760
        %1873 = vmatpush1.msra.mxu0 %v1872
        %1874 = vmatprep.subr.mxu0 0.0
        %v1875 = vand.u32 %v538, 4294901760
        %1876 = vmatpush1.msra.mxu0 %v1875
        %1877 = vmatprep.subr.mxu0 0.0
        %v1878 = vand.u32 %v541, 4294901760
        %1879 = vmatpush1.msra.mxu0 %v1878
        %1880 = vmatprep.subr.mxu0 0.0
        %v1881 = vand.u32 %v544, 4294901760
        %1882 = vmatpush1.msra.mxu0 %v1881
        %1883 = vmatprep.subr.mxu0 0.0
        %v1884 = vand.u32 %v547, 4294901760
        %1885 = vmatpush1.msra.mxu0 %v1884
        %1886 = vmatprep.subr.mxu0 0.0
        %v1887 = vand.u32 %v550, 4294901760
        %1888 = vmatpush1.msra.mxu0 %v1887
        %1889 = vmatprep.subr.mxu0 0.0
        %v1890 = vand.u32 %v553, 4294901760
        %1891 = vmatpush1.msra.mxu0 %v1890
        %1892 = vmatprep.subr.mxu0 0.0
        %v1893 = vand.u32 %v556, 4294901760
        %1894 = vmatpush1.msra.mxu0 %v1893
        %1895 = vmatprep.subr.mxu0 0.0
        %v1896 = vand.u32 %v559, 4294901760
        %1897 = vmatpush1.msra.mxu0 %v1896
        %1898 = vmatprep.subr.mxu0 0.0
        %v1899 = vand.u32 %v562, 4294901760
        %1900 = vmatpush1.msra.mxu0 %v1899
        %1901 = vmatprep.subr.mxu0 0.0
        %1902 = vmatpush1.msra.mxu0 0.0
        %1903 = vmatprep.subr.mxu0 0.0
        %1904 = vmatpush1.msra.mxu0 0.0
        %1905 = vmatprep.subr.mxu0 0.0
        %1906 = vmatpush1.msra.mxu0 0.0
        %1907 = vmatprep.subr.mxu0 0.0
        %1908 = vmatpush1.msra.mxu0 0.0
        %1909 = vmatprep.subr.mxu0 0.0
        %1910 = vmatpush1.msra.mxu0 0.0
        %1911 = vmatprep.subr.mxu0 0.0
        %1912 = vmatpush1.msra.mxu0 0.0
        %1913 = vmatprep.subr.mxu0 0.0
        %1914 = vmatpush1.msra.mxu0 0.0
        %1915 = vmatprep.subr.mxu0 0.0
        %1916 = vmatpush1.msra.mxu0 0.0
        %1917 = vmatprep.subr.mxu0 0.0
        %1918 = vmatpush1.msra.mxu0 0.0
        %1919 = vmatprep.subr.mxu0 0.0
        %1920 = vmatpush1.msra.mxu0 0.0
        %1921 = vmatprep.subr.mxu0 0.0
        %1922 = vmatpush1.msra.mxu0 0.0
        %1923 = vmatprep.subr.mxu0 0.0
        %1924 = vmatpush1.msra.mxu0 0.0
        %1925 = vmatprep.subr.mxu0 0.0
        %1926 = vmatpush1.msra.mxu0 0.0
        %1927 = vmatprep.subr.mxu0 0.0
        %1928 = vmatpush1.msra.mxu0 0.0
        %1929 = vmatprep.subr.mxu0 0.0
        %1930 = vmatpush1.msra.mxu0 0.0
        %1931 = vmatprep.subr.mxu0 0.0
        %1932 = vmatpush1.msra.mxu0 0.0
        %1933 = vmatprep.mubr.f32.mxu0 0.0
        %v1934 = vand.u32 %v499, 4294901760
        %v1935 = vsub.f32 %v499, %v1934
        %v1936 = vand.u32 %v1935, 4294901760
        %1937 = vmatmul.mubr.f32.gmra.mrb[0].mxu0 %v1936
        %v1938 = vpop.f32.mrb[0].mxu0
        %v1939 = vadd.f32 %v1843, %v1938
        %v1940 = vpop.f32.mrb[0].mxu0
        %1941 = vmatprep.mubr.f32.mxu0 0.0
        %v1942 = vand.u32 %v500, 4294901760
        %v1943 = vsub.f32 %v500, %v1942
        %v1944 = vand.u32 %v1943, 4294901760
        %1945 = vmatmul.mubr.f32.gmra.mrb[0].mxu0 %v1944
        %v1946 = vpop.f32.mrb[0].mxu0
        %v1947 = vadd.f32 %v1850, %v1946
        %v1948 = vpop.f32.mrb[0].mxu0
        %1949 = vdwg.mxu0
        %1950 = vmatprep.subr.mxu0 0.0
        %v1951 = vand.u32 %v517, 4294901760
        %v1952 = vsub.f32 %v517, %v1951
        %v1953 = vand.u32 %v1952, 4294901760
        %1954 = vmatpush1.msra.mxu0 %v1953
        %1955 = vmatprep.subr.mxu0 0.0
        %v1956 = vand.u32 %v520, 4294901760
        %v1957 = vsub.f32 %v520, %v1956
        %v1958 = vand.u32 %v1957, 4294901760
        %1959 = vmatpush1.msra.mxu0 %v1958
        %1960 = vmatprep.subr.mxu0 0.0
        %v1961 = vand.u32 %v523, 4294901760
        %v1962 = vsub.f32 %v523, %v1961
        %v1963 = vand.u32 %v1962, 4294901760
        %1964 = vmatpush1.msra.mxu0 %v1963
        %1965 = vmatprep.subr.mxu0 0.0
        %v1966 = vand.u32 %v526, 4294901760
        %v1967 = vsub.f32 %v526, %v1966
        %v1968 = vand.u32 %v1967, 4294901760
        %1969 = vmatpush1.msra.mxu0 %v1968
        %1970 = vmatprep.subr.mxu0 0.0
        %v1971 = vand.u32 %v529, 4294901760
        %v1972 = vsub.f32 %v529, %v1971
        %v1973 = vand.u32 %v1972, 4294901760
        %1974 = vmatpush1.msra.mxu0 %v1973
        %1975 = vmatprep.subr.mxu0 0.0
        %v1976 = vand.u32 %v532, 4294901760
        %v1977 = vsub.f32 %v532, %v1976
        %v1978 = vand.u32 %v1977, 4294901760
        %1979 = vmatpush1.msra.mxu0 %v1978
        %1980 = vmatprep.subr.mxu0 0.0
        %v1981 = vand.u32 %v535, 4294901760
        %v1982 = vsub.f32 %v535, %v1981
        %v1983 = vand.u32 %v1982, 4294901760
        %1984 = vmatpush1.msra.mxu0 %v1983
        %1985 = vmatprep.subr.mxu0 0.0
        %v1986 = vand.u32 %v538, 4294901760
        %v1987 = vsub.f32 %v538, %v1986
        %v1988 = vand.u32 %v1987, 4294901760
        %1989 = vmatpush1.msra.mxu0 %v1988
        %1990 = vmatprep.subr.mxu0 0.0
        %v1991 = vand.u32 %v541, 4294901760
        %v1992 = vsub.f32 %v541, %v1991
        %v1993 = vand.u32 %v1992, 4294901760
        %1994 = vmatpush1.msra.mxu0 %v1993
        %1995 = vmatprep.subr.mxu0 0.0
        %v1996 = vand.u32 %v544, 4294901760
        %v1997 = vsub.f32 %v544, %v1996
        %v1998 = vand.u32 %v1997, 4294901760
        %1999 = vmatpush1.msra.mxu0 %v1998
        %2000 = vmatprep.subr.mxu0 0.0
        %v2001 = vand.u32 %v547, 4294901760
        %v2002 = vsub.f32 %v547, %v2001
        %v2003 = vand.u32 %v2002, 4294901760
        %2004 = vmatpush1.msra.mxu0 %v2003
        %2005 = vmatprep.subr.mxu0 0.0
        %v2006 = vand.u32 %v550, 4294901760
        %v2007 = vsub.f32 %v550, %v2006
        %v2008 = vand.u32 %v2007, 4294901760
        %2009 = vmatpush1.msra.mxu0 %v2008
        %2010 = vmatprep.subr.mxu0 0.0
        %v2011 = vand.u32 %v553, 4294901760
        %v2012 = vsub.f32 %v553, %v2011
        %v2013 = vand.u32 %v2012, 4294901760
        %2014 = vmatpush1.msra.mxu0 %v2013
        %2015 = vmatprep.subr.mxu0 0.0
        %v2016 = vand.u32 %v556, 4294901760
        %v2017 = vsub.f32 %v556, %v2016
        %v2018 = vand.u32 %v2017, 4294901760
        %2019 = vmatpush1.msra.mxu0 %v2018
        %2020 = vmatprep.subr.mxu0 0.0
        %v2021 = vand.u32 %v559, 4294901760
        %v2022 = vsub.f32 %v559, %v2021
        %v2023 = vand.u32 %v2022, 4294901760
        %2024 = vmatpush1.msra.mxu0 %v2023
        %2025 = vmatprep.subr.mxu0 0.0
        %v2026 = vand.u32 %v562, 4294901760
        %v2027 = vsub.f32 %v562, %v2026
        %v2028 = vand.u32 %v2027, 4294901760
        %2029 = vmatpush1.msra.mxu0 %v2028
        %2030 = vmatprep.subr.mxu0 0.0
        %2031 = vmatpush1.msra.mxu0 0.0
        %2032 = vmatprep.subr.mxu0 0.0
        %2033 = vmatpush1.msra.mxu0 0.0
        %2034 = vmatprep.subr.mxu0 0.0
        %2035 = vmatpush1.msra.mxu0 0.0
        %2036 = vmatprep.subr.mxu0 0.0
        %2037 = vmatpush1.msra.mxu0 0.0
        %2038 = vmatprep.subr.mxu0 0.0
        %2039 = vmatpush1.msra.mxu0 0.0
        %2040 = vmatprep.subr.mxu0 0.0
        %2041 = vmatpush1.msra.mxu0 0.0
        %2042 = vmatprep.subr.mxu0 0.0
        %2043 = vmatpush1.msra.mxu0 0.0
        %2044 = vmatprep.subr.mxu0 0.0
        %2045 = vmatpush1.msra.mxu0 0.0
        %2046 = vmatprep.subr.mxu0 0.0
        %2047 = vmatpush1.msra.mxu0 0.0
        %2048 = vmatprep.subr.mxu0 0.0
        %2049 = vmatpush1.msra.mxu0 0.0
        %2050 = vmatprep.subr.mxu0 0.0
        %2051 = vmatpush1.msra.mxu0 0.0
        %2052 = vmatprep.subr.mxu0 0.0
        %2053 = vmatpush1.msra.mxu0 0.0
        %2054 = vmatprep.subr.mxu0 0.0
        %2055 = vmatpush1.msra.mxu0 0.0
        %2056 = vmatprep.subr.mxu0 0.0
        %2057 = vmatpush1.msra.mxu0 0.0
        %2058 = vmatprep.subr.mxu0 0.0
        %2059 = vmatpush1.msra.mxu0 0.0
        %2060 = vmatprep.subr.mxu0 0.0
        %2061 = vmatpush1.msra.mxu0 0.0
        %2062 = vmatprep.mubr.f32.mxu0 0.0
        %v2063 = vand.u32 %v499, 4294901760
        %2064 = vmatmul.mubr.f32.gmra.mrb[0].mxu0 %v2063
        %v2065 = vpop.f32.mrb[0].mxu0
        %v2066 = vadd.f32 %v1939, %v2065
        %v2067 = vpop.f32.mrb[0].mxu0
        %2068 = vmatprep.mubr.f32.mxu0 0.0
        %v2069 = vand.u32 %v500, 4294901760
        %2070 = vmatmul.mubr.f32.gmra.mrb[0].mxu0 %v2069
        %v2071 = vpop.f32.mrb[0].mxu0
        %v2072 = vadd.f32 %v1947, %v2071
        %v2073 = vpop.f32.mrb[0].mxu0
        %2074 = vdwg.mxu0
        %2075 = vmatprep.subr.mxu0 0.0
        %v2076 = vand.u32 %v517, 4294901760
        %2077 = vmatpush1.msra.mxu0 %v2076
        %2078 = vmatprep.subr.mxu0 0.0
        %v2079 = vand.u32 %v520, 4294901760
        %2080 = vmatpush1.msra.mxu0 %v2079
        %2081 = vmatprep.subr.mxu0 0.0
        %v2082 = vand.u32 %v523, 4294901760
        %2083 = vmatpush1.msra.mxu0 %v2082
        %2084 = vmatprep.subr.mxu0 0.0
        %v2085 = vand.u32 %v526, 4294901760
        %2086 = vmatpush1.msra.mxu0 %v2085
        %2087 = vmatprep.subr.mxu0 0.0
        %v2088 = vand.u32 %v529, 4294901760
        %2089 = vmatpush1.msra.mxu0 %v2088
        %2090 = vmatprep.subr.mxu0 0.0
        %v2091 = vand.u32 %v532, 4294901760
        %2092 = vmatpush1.msra.mxu0 %v2091
        %2093 = vmatprep.subr.mxu0 0.0
        %v2094 = vand.u32 %v535, 4294901760
        %2095 = vmatpush1.msra.mxu0 %v2094
        %2096 = vmatprep.subr.mxu0 0.0
        %v2097 = vand.u32 %v538, 4294901760
        %2098 = vmatpush1.msra.mxu0 %v2097
        %2099 = vmatprep.subr.mxu0 0.0
        %v2100 = vand.u32 %v541, 4294901760
        %2101 = vmatpush1.msra.mxu0 %v2100
        %2102 = vmatprep.subr.mxu0 0.0
        %v2103 = vand.u32 %v544, 4294901760
        %2104 = vmatpush1.msra.mxu0 %v2103
        %2105 = vmatprep.subr.mxu0 0.0
        %v2106 = vand.u32 %v547, 4294901760
        %2107 = vmatpush1.msra.mxu0 %v2106
        %2108 = vmatprep.subr.mxu0 0.0
        %v2109 = vand.u32 %v550, 4294901760
        %2110 = vmatpush1.msra.mxu0 %v2109
        %2111 = vmatprep.subr.mxu0 0.0
        %v2112 = vand.u32 %v553, 4294901760
        %2113 = vmatpush1.msra.mxu0 %v2112
        %2114 = vmatprep.subr.mxu0 0.0
        %v2115 = vand.u32 %v556, 4294901760
        %2116 = vmatpush1.msra.mxu0 %v2115
        %2117 = vmatprep.subr.mxu0 0.0
        %v2118 = vand.u32 %v559, 4294901760
        %2119 = vmatpush1.msra.mxu0 %v2118
        %2120 = vmatprep.subr.mxu0 0.0
        %v2121 = vand.u32 %v562, 4294901760
        %2122 = vmatpush1.msra.mxu0 %v2121
        %2123 = vmatprep.subr.mxu0 0.0
        %2124 = vmatpush1.msra.mxu0 0.0
        %2125 = vmatprep.subr.mxu0 0.0
        %2126 = vmatpush1.msra.mxu0 0.0
        %2127 = vmatprep.subr.mxu0 0.0
        %2128 = vmatpush1.msra.mxu0 0.0
        %2129 = vmatprep.subr.mxu0 0.0
        %2130 = vmatpush1.msra.mxu0 0.0
        %2131 = vmatprep.subr.mxu0 0.0
        %2132 = vmatpush1.msra.mxu0 0.0
        %2133 = vmatprep.subr.mxu0 0.0
        %2134 = vmatpush1.msra.mxu0 0.0
        %2135 = vmatprep.subr.mxu0 0.0
        %2136 = vmatpush1.msra.mxu0 0.0
        %2137 = vmatprep.subr.mxu0 0.0
        %2138 = vmatpush1.msra.mxu0 0.0
        %2139 = vmatprep.subr.mxu0 0.0
        %2140 = vmatpush1.msra.mxu0 0.0
        %2141 = vmatprep.subr.mxu0 0.0
        %2142 = vmatpush1.msra.mxu0 0.0
        %2143 = vmatprep.subr.mxu0 0.0
        %2144 = vmatpush1.msra.mxu0 0.0
        %2145 = vmatprep.subr.mxu0 0.0
        %2146 = vmatpush1.msra.mxu0 0.0
        %2147 = vmatprep.subr.mxu0 0.0
        %2148 = vmatpush1.msra.mxu0 0.0
        %2149 = vmatprep.subr.mxu0 0.0
        %2150 = vmatpush1.msra.mxu0 0.0
        %2151 = vmatprep.subr.mxu0 0.0
        %2152 = vmatpush1.msra.mxu0 0.0
        %2153 = vmatprep.subr.mxu0 0.0
        %2154 = vmatpush1.msra.mxu0 0.0
        %2155 = vmatprep.mubr.f32.mxu0 0.0
        %v2156 = vand.u32 %v499, 4294901760
        %2157 = vmatmul.mubr.f32.gmra.mrb[0].mxu0 %v2156
        %v2158 = vpop.f32.mrb[0].mxu0
        %v2159 = vadd.f32 %v2066, %v2158
        %v2160 = vpop.f32.mrb[0].mxu0
        %2161 = vmatprep.mubr.f32.mxu0 0.0
        %v2162 = vand.u32 %v500, 4294901760
        %2163 = vmatmul.mubr.f32.gmra.mrb[0].mxu0 %v2162
        %v2164 = vpop.f32.mrb[0].mxu0
        %v2165 = vadd.f32 %v2072, %v2164
        %v2166 = vpop.f32.mrb[0].mxu0
        %2167 = vdwg.mxu0
        %v2168 = vmul.f32 %v1473, %v501
        %v2169 = vmul.f32 %v1480, %v502
        %2170 = vrot.lane.b32.xlu0 %v1473, 112
        %v2171 = vpop.permute.xlu0 %2170
        %2172 = vrot.lane.b32.xlu0 %v1480, 112
        %v2173 = vpop.permute.xlu0 %2172
        %v2174 = vmul.f32 %v2171, %v503
        %v2175 = vmul.f32 %v2173, %v504
        %v2176 = vadd.f32 %v2168, %v2174
        %v2177 = vadd.f32 %v2169, %v2175
        %2178 = vrot.lane.b32.xlu0 %v1473, 16
        %v2179 = vpop.permute.xlu0 %2178
        %2180 = vrot.lane.b32.xlu0 %v1480, 16
        %v2181 = vpop.permute.xlu0 %2180
        %v2182 = vmul.f32 %v2179, %v505
        %v2183 = vmul.f32 %v2181, %v506
        %v2184 = vadd.f32 %v2176, %v2182
        %v2185 = vadd.f32 %v2177, %v2183
        %v2186 = vmul.f32 %v1475, %v501
        %v2187 = vmul.f32 %v1482, %v502
        %2188 = vrot.lane.b32.xlu0 %v1475, 112
        %v2189 = vpop.permute.xlu0 %2188
        %2190 = vrot.lane.b32.xlu0 %v1482, 112
        %v2191 = vpop.permute.xlu0 %2190
        %v2192 = vmul.f32 %v2189, %v503
        %v2193 = vmul.f32 %v2191, %v504
        %v2194 = vadd.f32 %v2186, %v2192
        %v2195 = vadd.f32 %v2187, %v2193
        %2196 = vrot.lane.b32.xlu0 %v1475, 16
        %v2197 = vpop.permute.xlu0 %2196
        %2198 = vrot.lane.b32.xlu0 %v1482, 16
        %v2199 = vpop.permute.xlu0 %2198
        %v2200 = vmul.f32 %v2197, %v505
        %v2201 = vmul.f32 %v2199, %v506
        %v2202 = vadd.f32 %v2194, %v2200
        %v2203 = vadd.f32 %v2195, %v2201
        %v2204 = vmul.f32 %v2159, %v2159
        %v2205 = vmul.f32 %v2165, %v2165
        %v2206 = vmul.f32 %v2204, %v2159
        %v2207 = vmul.f32 %v2205, %v2165
        %v2208 = vand.u32 2147483647, %v2206
        %v2209 = vand.u32 2147483647, %v2207
        %v2210 = vlaneseq
        %v2211 = vshrl.u32 %v2210, 7
        %v2212 = vsub.s32 0, %v2211
        %v2213 = vrot.slane %v507, %v2212
        %v2214 = vmul.f32 %v2208, %v2213
        %v2215 = vmul.f32 %v2209, %v2213
        %2216 = vmax.xlane.f32.xlu0 %v2214
        %v2217 = vpop.xlane.xlu0 %2216
        %2218 = vmax.xlane.f32.xlu0 %v2215
        %v2219 = vpop.xlane.xlu0 %2218
        %v2220 = vmul.f32 %v2213, %v2217
        %v2221 = vmul.f32 %v2213, %v2219
        %v2222 = vlaneseq
        %v2223 = vshrl.u32 %v2222, 7
        %v2224 = vsub.s32 0, %v2223
        %v2225 = vrot.slane %v509, %v2224
        %v2226 = vmul.f32 %v2208, %v2225
        %v2227 = vmul.f32 %v2209, %v2225
        %2228 = vmax.xlane.f32.xlu0 %v2226
        %v2229 = vpop.xlane.xlu0 %2228
        %2230 = vmax.xlane.f32.xlu0 %v2227
        %v2231 = vpop.xlane.xlu0 %2230
        %v2232 = vmul.f32 %v2225, %v2229
        %v2233 = vmul.f32 %v2225, %v2231
        %v2234 = vadd.f32 %v2220, %v2232
        %v2235 = vadd.f32 %v2221, %v2233
        %v2236 = vlaneseq
        %v2237 = vshrl.u32 %v2236, 7
        %v2238 = vsub.s32 0, %v2237
        %v2239 = vrot.slane %v511, %v2238
        %v2240 = vmul.f32 %v2208, %v2239
        %v2241 = vmul.f32 %v2209, %v2239
        %2242 = vmax.xlane.f32.xlu0 %v2240
        %v2243 = vpop.xlane.xlu0 %2242
        %2244 = vmax.xlane.f32.xlu0 %v2241
        %v2245 = vpop.xlane.xlu0 %2244
        %v2246 = vmul.f32 %v2239, %v2243
        %v2247 = vmul.f32 %v2239, %v2245
        %v2248 = vadd.f32 %v2234, %v2246
        %v2249 = vadd.f32 %v2235, %v2247
        %v2250 = vlaneseq
        %v2251 = vshrl.u32 %v2250, 7
        %v2252 = vsub.s32 0, %v2251
        %v2253 = vrot.slane %v513, %v2252
        %v2254 = vmul.f32 %v2208, %v2253
        %v2255 = vmul.f32 %v2209, %v2253
        %2256 = vmax.xlane.f32.xlu0 %v2254
        %v2257 = vpop.xlane.xlu0 %2256
        %2258 = vmax.xlane.f32.xlu0 %v2255
        %v2259 = vpop.xlane.xlu0 %2258
        %v2260 = vmul.f32 %v2253, %v2257
        %v2261 = vmul.f32 %v2253, %v2259
        %v2262 = vadd.f32 %v2248, %v2260
        %v2263 = vadd.f32 %v2249, %v2261
        %v2264 = vmax.f32 %v2262, 1.1754944e-38
        %v2265 = vmax.f32 %v2263, 1.1754944e-38
        %v2266 = vrcp.pop %v2264
        %v2267 = vmul.f32 %v2206, %v2266
        %v2268 = vrcp.pop %v2265
        %v2269 = vmul.f32 %v2207, %v2268
        %v2270 = vmul.f32 %v2184, %v507
        %v2271 = vmul.f32 %v2185, %v508
        %v2272 = vmul.f32 %v2184, %v509
        %v2273 = vmul.f32 %v2185, %v510
        %v2274 = vmul.f32 %v2184, %v511
        %v2275 = vmul.f32 %v2185, %v512
        %v2276 = vmul.f32 %v2184, %v513
        %v2277 = vmul.f32 %v2185, %v514
        %2278 = vmatprep.subr.mxu0 0.0
        %v2279 = vand.u32 %v2202, 4294901760
        %2280 = vmatpush1.xpose.msra.mxu0 %v2279
        %2281 = vmatprep.subr.mxu0 0.0
        %v2282 = vand.u32 %v2203, 4294901760
        %2283 = vmatpush1.xpose.msra.mxu0 %v2282
        %2284 = vmatprep.subr.mxu0 0.0
        %2285 = vmatpush1.xpose.msra.mxu0 0.0
        %2286 = vmatprep.subr.mxu0 0.0
        %2287 = vmatpush1.xpose.msra.mxu0 0.0
        %2288 = vmatprep.subr.mxu0 0.0
        %2289 = vmatpush1.xpose.msra.mxu0 0.0
        %2290 = vmatprep.subr.mxu0 0.0
        %2291 = vmatpush1.xpose.msra.mxu0 0.0
        %2292 = vmatprep.subr.mxu0 0.0
        %2293 = vmatpush1.xpose.msra.mxu0 0.0
        %2294 = vmatprep.subr.mxu0 0.0
        %2295 = vmatpush1.xpose.msra.mxu0 0.0
        %2296 = vmatprep.subr.mxu0 0.0
        %2297 = vmatpush1.xpose.msra.mxu0 0.0
        %2298 = vmatprep.subr.mxu0 0.0
        %2299 = vmatpush1.xpose.msra.mxu0 0.0
        %2300 = vmatprep.subr.mxu0 0.0
        %2301 = vmatpush1.xpose.msra.mxu0 0.0
        %2302 = vmatprep.subr.mxu0 0.0
        %2303 = vmatpush1.xpose.msra.mxu0 0.0
        %2304 = vmatprep.subr.mxu0 0.0
        %2305 = vmatpush1.xpose.msra.mxu0 0.0
        %2306 = vmatprep.subr.mxu0 0.0
        %2307 = vmatpush1.xpose.msra.mxu0 0.0
        %2308 = vmatprep.subr.mxu0 0.0
        %2309 = vmatpush1.xpose.msra.mxu0 0.0
        %2310 = vmatprep.subr.mxu0 0.0
        %2311 = vmatpush1.xpose.msra.mxu0 0.0
        %2312 = vmatprep.subr.mxu0 0.0
        %2313 = vmatpush1.xpose.msra.mxu0 0.0
        %2314 = vmatprep.subr.mxu0 0.0
        %2315 = vmatpush1.xpose.msra.mxu0 0.0
        %2316 = vmatprep.subr.mxu0 0.0
        %2317 = vmatpush1.xpose.msra.mxu0 0.0
        %2318 = vmatprep.subr.mxu0 0.0
        %2319 = vmatpush1.xpose.msra.mxu0 0.0
        %2320 = vmatprep.subr.mxu0 0.0
        %2321 = vmatpush1.xpose.msra.mxu0 0.0
        %2322 = vmatprep.subr.mxu0 0.0
        %2323 = vmatpush1.xpose.msra.mxu0 0.0
        %2324 = vmatprep.subr.mxu0 0.0
        %2325 = vmatpush1.xpose.msra.mxu0 0.0
        %2326 = vmatprep.subr.mxu0 0.0
        %2327 = vmatpush1.xpose.msra.mxu0 0.0
        %2328 = vmatprep.subr.mxu0 0.0
        %2329 = vmatpush1.xpose.msra.mxu0 0.0
        %2330 = vmatprep.subr.mxu0 0.0
        %2331 = vmatpush1.xpose.msra.mxu0 0.0
        %2332 = vmatprep.subr.mxu0 0.0
        %2333 = vmatpush1.xpose.msra.mxu0 0.0
        %2334 = vmatprep.subr.mxu0 0.0
        %2335 = vmatpush1.xpose.msra.mxu0 0.0
        %2336 = vmatprep.subr.mxu0 0.0
        %2337 = vmatpush1.xpose.msra.mxu0 0.0
        %2338 = vmatprep.subr.mxu0 0.0
        %2339 = vmatpush1.xpose.msra.mxu0 0.0
        %2340 = vmatprep.subr.mxu0 0.0
        %2341 = vmatpush1.xpose.msra.mxu0 0.0
        %2342 = vmatprep.subr.mxu0 0.0
        %2343 = vmatpush1.xpose.msra.mxu0 0.0
        %2344 = vmatprep.mubr.f32.mxu0 0.0
        %v2345 = vand.u32 %v2270, 4294901760
        %v2346 = vsub.f32 %v2270, %v2345
        %v2347 = vand.u32 %v2346, 4294901760
        %v2348 = vsub.f32 %v2346, %v2347
        %v2349 = vand.u32 %v2348, 4294901760
        %2350 = vmatmul.mubr.f32.gmra.mrb[0].mxu0 %v2349
        %v2351 = vpop.f32.mrb[0].mxu0
        %v2352 = vadd.f32 0.0, %v2351
        %v2353 = vpop.f32.mrb[0].mxu0
        %2354 = vmatprep.mubr.f32.mxu0 0.0
        %v2355 = vand.u32 %v2271, 4294901760
        %v2356 = vsub.f32 %v2271, %v2355
        %v2357 = vand.u32 %v2356, 4294901760
        %v2358 = vsub.f32 %v2356, %v2357
        %v2359 = vand.u32 %v2358, 4294901760
        %2360 = vmatmul.mubr.f32.gmra.mrb[0].mxu0 %v2359
        %v2361 = vpop.f32.mrb[0].mxu0
        %v2362 = vadd.f32 0.0, %v2361
        %v2363 = vpop.f32.mrb[0].mxu0
        %2364 = vmatprep.mubr.f32.mxu0 0.0
        %v2365 = vand.u32 %v2272, 4294901760
        %v2366 = vsub.f32 %v2272, %v2365
        %v2367 = vand.u32 %v2366, 4294901760
        %v2368 = vsub.f32 %v2366, %v2367
        %v2369 = vand.u32 %v2368, 4294901760
        %2370 = vmatmul.mubr.f32.gmra.mrb[0].mxu0 %v2369
        %v2371 = vpop.f32.mrb[0].mxu0
        %v2372 = vadd.f32 0.0, %v2371
        %v2373 = vpop.f32.mrb[0].mxu0
        %2374 = vmatprep.mubr.f32.mxu0 0.0
        %v2375 = vand.u32 %v2273, 4294901760
        %v2376 = vsub.f32 %v2273, %v2375
        %v2377 = vand.u32 %v2376, 4294901760
        %v2378 = vsub.f32 %v2376, %v2377
        %v2379 = vand.u32 %v2378, 4294901760
        %2380 = vmatmul.mubr.f32.gmra.mrb[0].mxu0 %v2379
        %v2381 = vpop.f32.mrb[0].mxu0
        %v2382 = vadd.f32 0.0, %v2381
        %v2383 = vpop.f32.mrb[0].mxu0
        %2384 = vmatprep.mubr.f32.mxu0 0.0
        %v2385 = vand.u32 %v2274, 4294901760
        %v2386 = vsub.f32 %v2274, %v2385
        %v2387 = vand.u32 %v2386, 4294901760
        %v2388 = vsub.f32 %v2386, %v2387
        %v2389 = vand.u32 %v2388, 4294901760
        %2390 = vmatmul.mubr.f32.gmra.mrb[0].mxu0 %v2389
        %v2391 = vpop.f32.mrb[0].mxu0
        %v2392 = vadd.f32 0.0, %v2391
        %v2393 = vpop.f32.mrb[0].mxu0
        %2394 = vmatprep.mubr.f32.mxu0 0.0
        %v2395 = vand.u32 %v2275, 4294901760
        %v2396 = vsub.f32 %v2275, %v2395
        %v2397 = vand.u32 %v2396, 4294901760
        %v2398 = vsub.f32 %v2396, %v2397
        %v2399 = vand.u32 %v2398, 4294901760
        %2400 = vmatmul.mubr.f32.gmra.mrb[0].mxu0 %v2399
        %v2401 = vpop.f32.mrb[0].mxu0
        %v2402 = vadd.f32 0.0, %v2401
        %v2403 = vpop.f32.mrb[0].mxu0
        %2404 = vmatprep.mubr.f32.mxu0 0.0
        %v2405 = vand.u32 %v2276, 4294901760
        %v2406 = vsub.f32 %v2276, %v2405
        %v2407 = vand.u32 %v2406, 4294901760
        %v2408 = vsub.f32 %v2406, %v2407
        %v2409 = vand.u32 %v2408, 4294901760
        %2410 = vmatmul.mubr.f32.gmra.mrb[0].mxu0 %v2409
        %v2411 = vpop.f32.mrb[0].mxu0
        %v2412 = vadd.f32 0.0, %v2411
        %v2413 = vpop.f32.mrb[0].mxu0
        %2414 = vmatprep.mubr.f32.mxu0 0.0
        %v2415 = vand.u32 %v2277, 4294901760
        %v2416 = vsub.f32 %v2277, %v2415
        %v2417 = vand.u32 %v2416, 4294901760
        %v2418 = vsub.f32 %v2416, %v2417
        %v2419 = vand.u32 %v2418, 4294901760
        %2420 = vmatmul.mubr.f32.gmra.mrb[0].mxu0 %v2419
        %v2421 = vpop.f32.mrb[0].mxu0
        %v2422 = vadd.f32 0.0, %v2421
        %v2423 = vpop.f32.mrb[0].mxu0
        %2424 = vdwg.mxu0
        %2425 = vmatprep.subr.mxu0 0.0
        %v2426 = vand.u32 %v2202, 4294901760
        %v2427 = vsub.f32 %v2202, %v2426
        %v2428 = vand.u32 %v2427, 4294901760
        %v2429 = vsub.f32 %v2427, %v2428
        %v2430 = vand.u32 %v2429, 4294901760
        %2431 = vmatpush1.xpose.msra.mxu0 %v2430
        %2432 = vmatprep.subr.mxu0 0.0
        %v2433 = vand.u32 %v2203, 4294901760
        %v2434 = vsub.f32 %v2203, %v2433
        %v2435 = vand.u32 %v2434, 4294901760
        %v2436 = vsub.f32 %v2434, %v2435
        %v2437 = vand.u32 %v2436, 4294901760
        %2438 = vmatpush1.xpose.msra.mxu0 %v2437
        %2439 = vmatprep.subr.mxu0 0.0
        %2440 = vmatpush1.xpose.msra.mxu0 0.0
        %2441 = vmatprep.subr.mxu0 0.0
        %2442 = vmatpush1.xpose.msra.mxu0 0.0
        %2443 = vmatprep.subr.mxu0 0.0
        %2444 = vmatpush1.xpose.msra.mxu0 0.0
        %2445 = vmatprep.subr.mxu0 0.0
        %2446 = vmatpush1.xpose.msra.mxu0 0.0
        %2447 = vmatprep.subr.mxu0 0.0
        %2448 = vmatpush1.xpose.msra.mxu0 0.0
        %2449 = vmatprep.subr.mxu0 0.0
        %2450 = vmatpush1.xpose.msra.mxu0 0.0
        %2451 = vmatprep.subr.mxu0 0.0
        %2452 = vmatpush1.xpose.msra.mxu0 0.0
        %2453 = vmatprep.subr.mxu0 0.0
        %2454 = vmatpush1.xpose.msra.mxu0 0.0
        %2455 = vmatprep.subr.mxu0 0.0
        %2456 = vmatpush1.xpose.msra.mxu0 0.0
        %2457 = vmatprep.subr.mxu0 0.0
        %2458 = vmatpush1.xpose.msra.mxu0 0.0
        %2459 = vmatprep.subr.mxu0 0.0
        %2460 = vmatpush1.xpose.msra.mxu0 0.0
        %2461 = vmatprep.subr.mxu0 0.0
        %2462 = vmatpush1.xpose.msra.mxu0 0.0
        %2463 = vmatprep.subr.mxu0 0.0
        %2464 = vmatpush1.xpose.msra.mxu0 0.0
        %2465 = vmatprep.subr.mxu0 0.0
        %2466 = vmatpush1.xpose.msra.mxu0 0.0
        %2467 = vmatprep.subr.mxu0 0.0
        %2468 = vmatpush1.xpose.msra.mxu0 0.0
        %2469 = vmatprep.subr.mxu0 0.0
        %2470 = vmatpush1.xpose.msra.mxu0 0.0
        %2471 = vmatprep.subr.mxu0 0.0
        %2472 = vmatpush1.xpose.msra.mxu0 0.0
        %2473 = vmatprep.subr.mxu0 0.0
        %2474 = vmatpush1.xpose.msra.mxu0 0.0
        %2475 = vmatprep.subr.mxu0 0.0
        %2476 = vmatpush1.xpose.msra.mxu0 0.0
        %2477 = vmatprep.subr.mxu0 0.0
        %2478 = vmatpush1.xpose.msra.mxu0 0.0
        %2479 = vmatprep.subr.mxu0 0.0
        %2480 = vmatpush1.xpose.msra.mxu0 0.0
        %2481 = vmatprep.subr.mxu0 0.0
        %2482 = vmatpush1.xpose.msra.mxu0 0.0
        %2483 = vmatprep.subr.mxu0 0.0
        %2484 = vmatpush1.xpose.msra.mxu0 0.0
        %2485 = vmatprep.subr.mxu0 0.0
        %2486 = vmatpush1.xpose.msra.mxu0 0.0
        %2487 = vmatprep.subr.mxu0 0.0
        %2488 = vmatpush1.xpose.msra.mxu0 0.0
        %2489 = vmatprep.subr.mxu0 0.0
        %2490 = vmatpush1.xpose.msra.mxu0 0.0
        %2491 = vmatprep.subr.mxu0 0.0
        %2492 = vmatpush1.xpose.msra.mxu0 0.0
        %2493 = vmatprep.subr.mxu0 0.0
        %2494 = vmatpush1.xpose.msra.mxu0 0.0
        %2495 = vmatprep.subr.mxu0 0.0
        %2496 = vmatpush1.xpose.msra.mxu0 0.0
        %2497 = vmatprep.subr.mxu0 0.0
        %2498 = vmatpush1.xpose.msra.mxu0 0.0
        %2499 = vmatprep.mubr.f32.mxu0 0.0
        %v2500 = vand.u32 %v2270, 4294901760
        %2501 = vmatmul.mubr.f32.gmra.mrb[0].mxu0 %v2500
        %v2502 = vpop.f32.mrb[0].mxu0
        %v2503 = vadd.f32 %v2352, %v2502
        %v2504 = vpop.f32.mrb[0].mxu0
        %2505 = vmatprep.mubr.f32.mxu0 0.0
        %v2506 = vand.u32 %v2271, 4294901760
        %2507 = vmatmul.mubr.f32.gmra.mrb[0].mxu0 %v2506
        %v2508 = vpop.f32.mrb[0].mxu0
        %v2509 = vadd.f32 %v2362, %v2508
        %v2510 = vpop.f32.mrb[0].mxu0
        %2511 = vmatprep.mubr.f32.mxu0 0.0
        %v2512 = vand.u32 %v2272, 4294901760
        %2513 = vmatmul.mubr.f32.gmra.mrb[0].mxu0 %v2512
        %v2514 = vpop.f32.mrb[0].mxu0
        %v2515 = vadd.f32 %v2372, %v2514
        %v2516 = vpop.f32.mrb[0].mxu0
        %2517 = vmatprep.mubr.f32.mxu0 0.0
        %v2518 = vand.u32 %v2273, 4294901760
        %2519 = vmatmul.mubr.f32.gmra.mrb[0].mxu0 %v2518
        %v2520 = vpop.f32.mrb[0].mxu0
        %v2521 = vadd.f32 %v2382, %v2520
        %v2522 = vpop.f32.mrb[0].mxu0
        %2523 = vmatprep.mubr.f32.mxu0 0.0
        %v2524 = vand.u32 %v2274, 4294901760
        %2525 = vmatmul.mubr.f32.gmra.mrb[0].mxu0 %v2524
        %v2526 = vpop.f32.mrb[0].mxu0
        %v2527 = vadd.f32 %v2392, %v2526
        %v2528 = vpop.f32.mrb[0].mxu0
        %2529 = vmatprep.mubr.f32.mxu0 0.0
        %v2530 = vand.u32 %v2275, 4294901760
        %2531 = vmatmul.mubr.f32.gmra.mrb[0].mxu0 %v2530
        %v2532 = vpop.f32.mrb[0].mxu0
        %v2533 = vadd.f32 %v2402, %v2532
        %v2534 = vpop.f32.mrb[0].mxu0
        %2535 = vmatprep.mubr.f32.mxu0 0.0
        %v2536 = vand.u32 %v2276, 4294901760
        %2537 = vmatmul.mubr.f32.gmra.mrb[0].mxu0 %v2536
        %v2538 = vpop.f32.mrb[0].mxu0
        %v2539 = vadd.f32 %v2412, %v2538
        %v2540 = vpop.f32.mrb[0].mxu0
        %2541 = vmatprep.mubr.f32.mxu0 0.0
        %v2542 = vand.u32 %v2277, 4294901760
        %2543 = vmatmul.mubr.f32.gmra.mrb[0].mxu0 %v2542
        %v2544 = vpop.f32.mrb[0].mxu0
        %v2545 = vadd.f32 %v2422, %v2544
        %v2546 = vpop.f32.mrb[0].mxu0
        %2547 = vdwg.mxu0
        %2548 = vmatprep.subr.mxu0 0.0
        %v2549 = vand.u32 %v2202, 4294901760
        %v2550 = vsub.f32 %v2202, %v2549
        %2551 = vmatpush1.xpose.msra.mxu0 %v2550
        %2552 = vmatprep.subr.mxu0 0.0
        %v2553 = vand.u32 %v2203, 4294901760
        %v2554 = vsub.f32 %v2203, %v2553
        %2555 = vmatpush1.xpose.msra.mxu0 %v2554
        %2556 = vmatprep.subr.mxu0 0.0
        %2557 = vmatpush1.xpose.msra.mxu0 0.0
        %2558 = vmatprep.subr.mxu0 0.0
        %2559 = vmatpush1.xpose.msra.mxu0 0.0
        %2560 = vmatprep.subr.mxu0 0.0
        %2561 = vmatpush1.xpose.msra.mxu0 0.0
        %2562 = vmatprep.subr.mxu0 0.0
        %2563 = vmatpush1.xpose.msra.mxu0 0.0
        %2564 = vmatprep.subr.mxu0 0.0
        %2565 = vmatpush1.xpose.msra.mxu0 0.0
        %2566 = vmatprep.subr.mxu0 0.0
        %2567 = vmatpush1.xpose.msra.mxu0 0.0
        %2568 = vmatprep.subr.mxu0 0.0
        %2569 = vmatpush1.xpose.msra.mxu0 0.0
        %2570 = vmatprep.subr.mxu0 0.0
        %2571 = vmatpush1.xpose.msra.mxu0 0.0
        %2572 = vmatprep.subr.mxu0 0.0
        %2573 = vmatpush1.xpose.msra.mxu0 0.0
        %2574 = vmatprep.subr.mxu0 0.0
        %2575 = vmatpush1.xpose.msra.mxu0 0.0
        %2576 = vmatprep.subr.mxu0 0.0
        %2577 = vmatpush1.xpose.msra.mxu0 0.0
        %2578 = vmatprep.subr.mxu0 0.0
        %2579 = vmatpush1.xpose.msra.mxu0 0.0
        %2580 = vmatprep.subr.mxu0 0.0
        %2581 = vmatpush1.xpose.msra.mxu0 0.0
        %2582 = vmatprep.subr.mxu0 0.0
        %2583 = vmatpush1.xpose.msra.mxu0 0.0
        %2584 = vmatprep.subr.mxu0 0.0
        %2585 = vmatpush1.xpose.msra.mxu0 0.0
        %2586 = vmatprep.subr.mxu0 0.0
        %2587 = vmatpush1.xpose.msra.mxu0 0.0
        %2588 = vmatprep.subr.mxu0 0.0
        %2589 = vmatpush1.xpose.msra.mxu0 0.0
        %2590 = vmatprep.subr.mxu0 0.0
        %2591 = vmatpush1.xpose.msra.mxu0 0.0
        %2592 = vmatprep.subr.mxu0 0.0
        %2593 = vmatpush1.xpose.msra.mxu0 0.0
        %2594 = vmatprep.subr.mxu0 0.0
        %2595 = vmatpush1.xpose.msra.mxu0 0.0
        %2596 = vmatprep.subr.mxu0 0.0
        %2597 = vmatpush1.xpose.msra.mxu0 0.0
        %2598 = vmatprep.subr.mxu0 0.0
        %2599 = vmatpush1.xpose.msra.mxu0 0.0
        %2600 = vmatprep.subr.mxu0 0.0
        %2601 = vmatpush1.xpose.msra.mxu0 0.0
        %2602 = vmatprep.subr.mxu0 0.0
        %2603 = vmatpush1.xpose.msra.mxu0 0.0
        %2604 = vmatprep.subr.mxu0 0.0
        %2605 = vmatpush1.xpose.msra.mxu0 0.0
        %2606 = vmatprep.subr.mxu0 0.0
        %2607 = vmatpush1.xpose.msra.mxu0 0.0
        %2608 = vmatprep.subr.mxu0 0.0
        %2609 = vmatpush1.xpose.msra.mxu0 0.0
        %2610 = vmatprep.subr.mxu0 0.0
        %2611 = vmatpush1.xpose.msra.mxu0 0.0
        %2612 = vmatprep.subr.mxu0 0.0
        %2613 = vmatpush1.xpose.msra.mxu0 0.0
        %2614 = vmatprep.subr.mxu0 0.0
        %2615 = vmatpush1.xpose.msra.mxu0 0.0
        %2616 = vmatprep.mubr.f32.mxu0 0.0
        %v2617 = vand.u32 %v2270, 4294901760
        %v2618 = vsub.f32 %v2270, %v2617
        %2619 = vmatmul.mubr.f32.gmra.mrb[0].mxu0 %v2618
        %v2620 = vpop.f32.mrb[0].mxu0
        %v2621 = vadd.f32 %v2503, %v2620
        %v2622 = vpop.f32.mrb[0].mxu0
        %2623 = vmatprep.mubr.f32.mxu0 0.0
        %v2624 = vand.u32 %v2271, 4294901760
        %v2625 = vsub.f32 %v2271, %v2624
        %2626 = vmatmul.mubr.f32.gmra.mrb[0].mxu0 %v2625
        %v2627 = vpop.f32.mrb[0].mxu0
        %v2628 = vadd.f32 %v2509, %v2627
        %v2629 = vpop.f32.mrb[0].mxu0
        %2630 = vmatprep.mubr.f32.mxu0 0.0
        %v2631 = vand.u32 %v2272, 4294901760
        %v2632 = vsub.f32 %v2272, %v2631
        %2633 = vmatmul.mubr.f32.gmra.mrb[0].mxu0 %v2632
        %v2634 = vpop.f32.mrb[0].mxu0
        %v2635 = vadd.f32 %v2515, %v2634
        %v2636 = vpop.f32.mrb[0].mxu0
        %2637 = vmatprep.mubr.f32.mxu0 0.0
        %v2638 = vand.u32 %v2273, 4294901760
        %v2639 = vsub.f32 %v2273, %v2638
        %2640 = vmatmul.mubr.f32.gmra.mrb[0].mxu0 %v2639
        %v2641 = vpop.f32.mrb[0].mxu0
        %v2642 = vadd.f32 %v2521, %v2641
        %v2643 = vpop.f32.mrb[0].mxu0
        %2644 = vmatprep.mubr.f32.mxu0 0.0
        %v2645 = vand.u32 %v2274, 4294901760
        %v2646 = vsub.f32 %v2274, %v2645
        %2647 = vmatmul.mubr.f32.gmra.mrb[0].mxu0 %v2646
        %v2648 = vpop.f32.mrb[0].mxu0
        %v2649 = vadd.f32 %v2527, %v2648
        %v2650 = vpop.f32.mrb[0].mxu0
        %2651 = vmatprep.mubr.f32.mxu0 0.0
        %v2652 = vand.u32 %v2275, 4294901760
        %v2653 = vsub.f32 %v2275, %v2652
        %2654 = vmatmul.mubr.f32.gmra.mrb[0].mxu0 %v2653
        %v2655 = vpop.f32.mrb[0].mxu0
        %v2656 = vadd.f32 %v2533, %v2655
        %v2657 = vpop.f32.mrb[0].mxu0
        %2658 = vmatprep.mubr.f32.mxu0 0.0
        %v2659 = vand.u32 %v2276, 4294901760
        %v2660 = vsub.f32 %v2276, %v2659
        %2661 = vmatmul.mubr.f32.gmra.mrb[0].mxu0 %v2660
        %v2662 = vpop.f32.mrb[0].mxu0
        %v2663 = vadd.f32 %v2539, %v2662
        %v2664 = vpop.f32.mrb[0].mxu0
        %2665 = vmatprep.mubr.f32.mxu0 0.0
        %v2666 = vand.u32 %v2277, 4294901760
        %v2667 = vsub.f32 %v2277, %v2666
        %2668 = vmatmul.mubr.f32.gmra.mrb[0].mxu0 %v2667
        %v2669 = vpop.f32.mrb[0].mxu0
        %v2670 = vadd.f32 %v2545, %v2669
        %v2671 = vpop.f32.mrb[0].mxu0
        %2672 = vdwg.mxu0
        %2673 = vmatprep.subr.mxu0 0.0
        %v2674 = vand.u32 %v2202, 4294901760
        %2675 = vmatpush1.xpose.msra.mxu0 %v2674
        %2676 = vmatprep.subr.mxu0 0.0
        %v2677 = vand.u32 %v2203, 4294901760
        %2678 = vmatpush1.xpose.msra.mxu0 %v2677
        %2679 = vmatprep.subr.mxu0 0.0
        %2680 = vmatpush1.xpose.msra.mxu0 0.0
        %2681 = vmatprep.subr.mxu0 0.0
        %2682 = vmatpush1.xpose.msra.mxu0 0.0
        %2683 = vmatprep.subr.mxu0 0.0
        %2684 = vmatpush1.xpose.msra.mxu0 0.0
        %2685 = vmatprep.subr.mxu0 0.0
        %2686 = vmatpush1.xpose.msra.mxu0 0.0
        %2687 = vmatprep.subr.mxu0 0.0
        %2688 = vmatpush1.xpose.msra.mxu0 0.0
        %2689 = vmatprep.subr.mxu0 0.0
        %2690 = vmatpush1.xpose.msra.mxu0 0.0
        %2691 = vmatprep.subr.mxu0 0.0
        %2692 = vmatpush1.xpose.msra.mxu0 0.0
        %2693 = vmatprep.subr.mxu0 0.0
        %2694 = vmatpush1.xpose.msra.mxu0 0.0
        %2695 = vmatprep.subr.mxu0 0.0
        %2696 = vmatpush1.xpose.msra.mxu0 0.0
        %2697 = vmatprep.subr.mxu0 0.0
        %2698 = vmatpush1.xpose.msra.mxu0 0.0
        %2699 = vmatprep.subr.mxu0 0.0
        %2700 = vmatpush1.xpose.msra.mxu0 0.0
        %2701 = vmatprep.subr.mxu0 0.0
        %2702 = vmatpush1.xpose.msra.mxu0 0.0
        %2703 = vmatprep.subr.mxu0 0.0
        %2704 = vmatpush1.xpose.msra.mxu0 0.0
        %2705 = vmatprep.subr.mxu0 0.0
        %2706 = vmatpush1.xpose.msra.mxu0 0.0
        %2707 = vmatprep.subr.mxu0 0.0
        %2708 = vmatpush1.xpose.msra.mxu0 0.0
        %2709 = vmatprep.subr.mxu0 0.0
        %2710 = vmatpush1.xpose.msra.mxu0 0.0
        %2711 = vmatprep.subr.mxu0 0.0
        %2712 = vmatpush1.xpose.msra.mxu0 0.0
        %2713 = vmatprep.subr.mxu0 0.0
        %2714 = vmatpush1.xpose.msra.mxu0 0.0
        %2715 = vmatprep.subr.mxu0 0.0
        %2716 = vmatpush1.xpose.msra.mxu0 0.0
        %2717 = vmatprep.subr.mxu0 0.0
        %2718 = vmatpush1.xpose.msra.mxu0 0.0
        %2719 = vmatprep.subr.mxu0 0.0
        %2720 = vmatpush1.xpose.msra.mxu0 0.0
        %2721 = vmatprep.subr.mxu0 0.0
        %2722 = vmatpush1.xpose.msra.mxu0 0.0
        %2723 = vmatprep.subr.mxu0 0.0
        %2724 = vmatpush1.xpose.msra.mxu0 0.0
        %2725 = vmatprep.subr.mxu0 0.0
        %2726 = vmatpush1.xpose.msra.mxu0 0.0
        %2727 = vmatprep.subr.mxu0 0.0
        %2728 = vmatpush1.xpose.msra.mxu0 0.0
        %2729 = vmatprep.subr.mxu0 0.0
        %2730 = vmatpush1.xpose.msra.mxu0 0.0
        %2731 = vmatprep.subr.mxu0 0.0
        %2732 = vmatpush1.xpose.msra.mxu0 0.0
        %2733 = vmatprep.subr.mxu0 0.0
        %2734 = vmatpush1.xpose.msra.mxu0 0.0
        %2735 = vmatprep.subr.mxu0 0.0
        %2736 = vmatpush1.xpose.msra.mxu0 0.0
        %2737 = vmatprep.subr.mxu0 0.0
        %2738 = vmatpush1.xpose.msra.mxu0 0.0
        %2739 = vmatprep.mubr.f32.mxu0 0.0
        %v2740 = vand.u32 %v2270, 4294901760
        %v2741 = vsub.f32 %v2270, %v2740
        %v2742 = vand.u32 %v2741, 4294901760
        %2743 = vmatmul.mubr.f32.gmra.mrb[0].mxu0 %v2742
        %v2744 = vpop.f32.mrb[0].mxu0
        %v2745 = vadd.f32 %v2621, %v2744
        %v2746 = vpop.f32.mrb[0].mxu0
        %2747 = vmatprep.mubr.f32.mxu0 0.0
        %v2748 = vand.u32 %v2271, 4294901760
        %v2749 = vsub.f32 %v2271, %v2748
        %v2750 = vand.u32 %v2749, 4294901760
        %2751 = vmatmul.mubr.f32.gmra.mrb[0].mxu0 %v2750
        %v2752 = vpop.f32.mrb[0].mxu0
        %v2753 = vadd.f32 %v2628, %v2752
        %v2754 = vpop.f32.mrb[0].mxu0
        %2755 = vmatprep.mubr.f32.mxu0 0.0
        %v2756 = vand.u32 %v2272, 4294901760
        %v2757 = vsub.f32 %v2272, %v2756
        %v2758 = vand.u32 %v2757, 4294901760
        %2759 = vmatmul.mubr.f32.gmra.mrb[0].mxu0 %v2758
        %v2760 = vpop.f32.mrb[0].mxu0
        %v2761 = vadd.f32 %v2635, %v2760
        %v2762 = vpop.f32.mrb[0].mxu0
        %2763 = vmatprep.mubr.f32.mxu0 0.0
        %v2764 = vand.u32 %v2273, 4294901760
        %v2765 = vsub.f32 %v2273, %v2764
        %v2766 = vand.u32 %v2765, 4294901760
        %2767 = vmatmul.mubr.f32.gmra.mrb[0].mxu0 %v2766
        %v2768 = vpop.f32.mrb[0].mxu0
        %v2769 = vadd.f32 %v2642, %v2768
        %v2770 = vpop.f32.mrb[0].mxu0
        %2771 = vmatprep.mubr.f32.mxu0 0.0
        %v2772 = vand.u32 %v2274, 4294901760
        %v2773 = vsub.f32 %v2274, %v2772
        %v2774 = vand.u32 %v2773, 4294901760
        %2775 = vmatmul.mubr.f32.gmra.mrb[0].mxu0 %v2774
        %v2776 = vpop.f32.mrb[0].mxu0
        %v2777 = vadd.f32 %v2649, %v2776
        %v2778 = vpop.f32.mrb[0].mxu0
        %2779 = vmatprep.mubr.f32.mxu0 0.0
        %v2780 = vand.u32 %v2275, 4294901760
        %v2781 = vsub.f32 %v2275, %v2780
        %v2782 = vand.u32 %v2781, 4294901760
        %2783 = vmatmul.mubr.f32.gmra.mrb[0].mxu0 %v2782
        %v2784 = vpop.f32.mrb[0].mxu0
        %v2785 = vadd.f32 %v2656, %v2784
        %v2786 = vpop.f32.mrb[0].mxu0
        %2787 = vmatprep.mubr.f32.mxu0 0.0
        %v2788 = vand.u32 %v2276, 4294901760
        %v2789 = vsub.f32 %v2276, %v2788
        %v2790 = vand.u32 %v2789, 4294901760
        %2791 = vmatmul.mubr.f32.gmra.mrb[0].mxu0 %v2790
        %v2792 = vpop.f32.mrb[0].mxu0
        %v2793 = vadd.f32 %v2663, %v2792
        %v2794 = vpop.f32.mrb[0].mxu0
        %2795 = vmatprep.mubr.f32.mxu0 0.0
        %v2796 = vand.u32 %v2277, 4294901760
        %v2797 = vsub.f32 %v2277, %v2796
        %v2798 = vand.u32 %v2797, 4294901760
        %2799 = vmatmul.mubr.f32.gmra.mrb[0].mxu0 %v2798
        %v2800 = vpop.f32.mrb[0].mxu0
        %v2801 = vadd.f32 %v2670, %v2800
        %v2802 = vpop.f32.mrb[0].mxu0
        %2803 = vdwg.mxu0
        %2804 = vmatprep.subr.mxu0 0.0
        %v2805 = vand.u32 %v2202, 4294901760
        %v2806 = vsub.f32 %v2202, %v2805
        %v2807 = vand.u32 %v2806, 4294901760
        %2808 = vmatpush1.xpose.msra.mxu0 %v2807
        %2809 = vmatprep.subr.mxu0 0.0
        %v2810 = vand.u32 %v2203, 4294901760
        %v2811 = vsub.f32 %v2203, %v2810
        %v2812 = vand.u32 %v2811, 4294901760
        %2813 = vmatpush1.xpose.msra.mxu0 %v2812
        %2814 = vmatprep.subr.mxu0 0.0
        %2815 = vmatpush1.xpose.msra.mxu0 0.0
        %2816 = vmatprep.subr.mxu0 0.0
        %2817 = vmatpush1.xpose.msra.mxu0 0.0
        %2818 = vmatprep.subr.mxu0 0.0
        %2819 = vmatpush1.xpose.msra.mxu0 0.0
        %2820 = vmatprep.subr.mxu0 0.0
        %2821 = vmatpush1.xpose.msra.mxu0 0.0
        %2822 = vmatprep.subr.mxu0 0.0
        %2823 = vmatpush1.xpose.msra.mxu0 0.0
        %2824 = vmatprep.subr.mxu0 0.0
        %2825 = vmatpush1.xpose.msra.mxu0 0.0
        %2826 = vmatprep.subr.mxu0 0.0
        %2827 = vmatpush1.xpose.msra.mxu0 0.0
        %2828 = vmatprep.subr.mxu0 0.0
        %2829 = vmatpush1.xpose.msra.mxu0 0.0
        %2830 = vmatprep.subr.mxu0 0.0
        %2831 = vmatpush1.xpose.msra.mxu0 0.0
        %2832 = vmatprep.subr.mxu0 0.0
        %2833 = vmatpush1.xpose.msra.mxu0 0.0
        %2834 = vmatprep.subr.mxu0 0.0
        %2835 = vmatpush1.xpose.msra.mxu0 0.0
        %2836 = vmatprep.subr.mxu0 0.0
        %2837 = vmatpush1.xpose.msra.mxu0 0.0
        %2838 = vmatprep.subr.mxu0 0.0
        %2839 = vmatpush1.xpose.msra.mxu0 0.0
        %2840 = vmatprep.subr.mxu0 0.0
        %2841 = vmatpush1.xpose.msra.mxu0 0.0
        %2842 = vmatprep.subr.mxu0 0.0
        %2843 = vmatpush1.xpose.msra.mxu0 0.0
        %2844 = vmatprep.subr.mxu0 0.0
        %2845 = vmatpush1.xpose.msra.mxu0 0.0
        %2846 = vmatprep.subr.mxu0 0.0
        %2847 = vmatpush1.xpose.msra.mxu0 0.0
        %2848 = vmatprep.subr.mxu0 0.0
        %2849 = vmatpush1.xpose.msra.mxu0 0.0
        %2850 = vmatprep.subr.mxu0 0.0
        %2851 = vmatpush1.xpose.msra.mxu0 0.0
        %2852 = vmatprep.subr.mxu0 0.0
        %2853 = vmatpush1.xpose.msra.mxu0 0.0
        %2854 = vmatprep.subr.mxu0 0.0
        %2855 = vmatpush1.xpose.msra.mxu0 0.0
        %2856 = vmatprep.subr.mxu0 0.0
        %2857 = vmatpush1.xpose.msra.mxu0 0.0
        %2858 = vmatprep.subr.mxu0 0.0
        %2859 = vmatpush1.xpose.msra.mxu0 0.0
        %2860 = vmatprep.subr.mxu0 0.0
        %2861 = vmatpush1.xpose.msra.mxu0 0.0
        %2862 = vmatprep.subr.mxu0 0.0
        %2863 = vmatpush1.xpose.msra.mxu0 0.0
        %2864 = vmatprep.subr.mxu0 0.0
        %2865 = vmatpush1.xpose.msra.mxu0 0.0
        %2866 = vmatprep.subr.mxu0 0.0
        %2867 = vmatpush1.xpose.msra.mxu0 0.0
        %2868 = vmatprep.subr.mxu0 0.0
        %2869 = vmatpush1.xpose.msra.mxu0 0.0
        %2870 = vmatprep.subr.mxu0 0.0
        %2871 = vmatpush1.xpose.msra.mxu0 0.0
        %2872 = vmatprep.subr.mxu0 0.0
        %2873 = vmatpush1.xpose.msra.mxu0 0.0
        %2874 = vmatprep.mubr.f32.mxu0 0.0
        %v2875 = vand.u32 %v2270, 4294901760
        %2876 = vmatmul.mubr.f32.gmra.mrb[0].mxu0 %v2875
        %v2877 = vpop.f32.mrb[0].mxu0
        %v2878 = vadd.f32 %v2745, %v2877
        %v2879 = vpop.f32.mrb[0].mxu0
        %2880 = vmatprep.mubr.f32.mxu0 0.0
        %v2881 = vand.u32 %v2271, 4294901760
        %2882 = vmatmul.mubr.f32.gmra.mrb[0].mxu0 %v2881
        %v2883 = vpop.f32.mrb[0].mxu0
        %v2884 = vadd.f32 %v2753, %v2883
        %v2885 = vpop.f32.mrb[0].mxu0
        %2886 = vmatprep.mubr.f32.mxu0 0.0
        %v2887 = vand.u32 %v2272, 4294901760
        %2888 = vmatmul.mubr.f32.gmra.mrb[0].mxu0 %v2887
        %v2889 = vpop.f32.mrb[0].mxu0
        %v2890 = vadd.f32 %v2761, %v2889
        %v2891 = vpop.f32.mrb[0].mxu0
        %2892 = vmatprep.mubr.f32.mxu0 0.0
        %v2893 = vand.u32 %v2273, 4294901760
        %2894 = vmatmul.mubr.f32.gmra.mrb[0].mxu0 %v2893
        %v2895 = vpop.f32.mrb[0].mxu0
        %v2896 = vadd.f32 %v2769, %v2895
        %v2897 = vpop.f32.mrb[0].mxu0
        %2898 = vmatprep.mubr.f32.mxu0 0.0
        %v2899 = vand.u32 %v2274, 4294901760
        %2900 = vmatmul.mubr.f32.gmra.mrb[0].mxu0 %v2899
        %v2901 = vpop.f32.mrb[0].mxu0
        %v2902 = vadd.f32 %v2777, %v2901
        %v2903 = vpop.f32.mrb[0].mxu0
        %2904 = vmatprep.mubr.f32.mxu0 0.0
        %v2905 = vand.u32 %v2275, 4294901760
        %2906 = vmatmul.mubr.f32.gmra.mrb[0].mxu0 %v2905
        %v2907 = vpop.f32.mrb[0].mxu0
        %v2908 = vadd.f32 %v2785, %v2907
        %v2909 = vpop.f32.mrb[0].mxu0
        %2910 = vmatprep.mubr.f32.mxu0 0.0
        %v2911 = vand.u32 %v2276, 4294901760
        %2912 = vmatmul.mubr.f32.gmra.mrb[0].mxu0 %v2911
        %v2913 = vpop.f32.mrb[0].mxu0
        %v2914 = vadd.f32 %v2793, %v2913
        %v2915 = vpop.f32.mrb[0].mxu0
        %2916 = vmatprep.mubr.f32.mxu0 0.0
        %v2917 = vand.u32 %v2277, 4294901760
        %2918 = vmatmul.mubr.f32.gmra.mrb[0].mxu0 %v2917
        %v2919 = vpop.f32.mrb[0].mxu0
        %v2920 = vadd.f32 %v2801, %v2919
        %v2921 = vpop.f32.mrb[0].mxu0
        %2922 = vdwg.mxu0
        %2923 = vmatprep.subr.mxu0 0.0
        %v2924 = vand.u32 %v2202, 4294901760
        %2925 = vmatpush1.xpose.msra.mxu0 %v2924
        %2926 = vmatprep.subr.mxu0 0.0
        %v2927 = vand.u32 %v2203, 4294901760
        %2928 = vmatpush1.xpose.msra.mxu0 %v2927
        %2929 = vmatprep.subr.mxu0 0.0
        %2930 = vmatpush1.xpose.msra.mxu0 0.0
        %2931 = vmatprep.subr.mxu0 0.0
        %2932 = vmatpush1.xpose.msra.mxu0 0.0
        %2933 = vmatprep.subr.mxu0 0.0
        %2934 = vmatpush1.xpose.msra.mxu0 0.0
        %2935 = vmatprep.subr.mxu0 0.0
        %2936 = vmatpush1.xpose.msra.mxu0 0.0
        %2937 = vmatprep.subr.mxu0 0.0
        %2938 = vmatpush1.xpose.msra.mxu0 0.0
        %2939 = vmatprep.subr.mxu0 0.0
        %2940 = vmatpush1.xpose.msra.mxu0 0.0
        %2941 = vmatprep.subr.mxu0 0.0
        %2942 = vmatpush1.xpose.msra.mxu0 0.0
        %2943 = vmatprep.subr.mxu0 0.0
        %2944 = vmatpush1.xpose.msra.mxu0 0.0
        %2945 = vmatprep.subr.mxu0 0.0
        %2946 = vmatpush1.xpose.msra.mxu0 0.0
        %2947 = vmatprep.subr.mxu0 0.0
        %2948 = vmatpush1.xpose.msra.mxu0 0.0
        %2949 = vmatprep.subr.mxu0 0.0
        %2950 = vmatpush1.xpose.msra.mxu0 0.0
        %2951 = vmatprep.subr.mxu0 0.0
        %2952 = vmatpush1.xpose.msra.mxu0 0.0
        %2953 = vmatprep.subr.mxu0 0.0
        %2954 = vmatpush1.xpose.msra.mxu0 0.0
        %2955 = vmatprep.subr.mxu0 0.0
        %2956 = vmatpush1.xpose.msra.mxu0 0.0
        %2957 = vmatprep.subr.mxu0 0.0
        %2958 = vmatpush1.xpose.msra.mxu0 0.0
        %2959 = vmatprep.subr.mxu0 0.0
        %2960 = vmatpush1.xpose.msra.mxu0 0.0
        %2961 = vmatprep.subr.mxu0 0.0
        %2962 = vmatpush1.xpose.msra.mxu0 0.0
        %2963 = vmatprep.subr.mxu0 0.0
        %2964 = vmatpush1.xpose.msra.mxu0 0.0
        %2965 = vmatprep.subr.mxu0 0.0
        %2966 = vmatpush1.xpose.msra.mxu0 0.0
        %2967 = vmatprep.subr.mxu0 0.0
        %2968 = vmatpush1.xpose.msra.mxu0 0.0
        %2969 = vmatprep.subr.mxu0 0.0
        %2970 = vmatpush1.xpose.msra.mxu0 0.0
        %2971 = vmatprep.subr.mxu0 0.0
        %2972 = vmatpush1.xpose.msra.mxu0 0.0
        %2973 = vmatprep.subr.mxu0 0.0
        %2974 = vmatpush1.xpose.msra.mxu0 0.0
        %2975 = vmatprep.subr.mxu0 0.0
        %2976 = vmatpush1.xpose.msra.mxu0 0.0
        %2977 = vmatprep.subr.mxu0 0.0
        %2978 = vmatpush1.xpose.msra.mxu0 0.0
        %2979 = vmatprep.subr.mxu0 0.0
        %2980 = vmatpush1.xpose.msra.mxu0 0.0
        %2981 = vmatprep.subr.mxu0 0.0
        %2982 = vmatpush1.xpose.msra.mxu0 0.0
        %2983 = vmatprep.subr.mxu0 0.0
        %2984 = vmatpush1.xpose.msra.mxu0 0.0
        %2985 = vmatprep.subr.mxu0 0.0
        %2986 = vmatpush1.xpose.msra.mxu0 0.0
        %2987 = vmatprep.subr.mxu0 0.0
        %2988 = vmatpush1.xpose.msra.mxu0 0.0
        %2989 = vmatprep.mubr.f32.mxu0 0.0
        %v2990 = vand.u32 %v2270, 4294901760
        %2991 = vmatmul.mubr.f32.gmra.mrb[0].mxu0 %v2990
        %v2992 = vpop.f32.mrb[0].mxu0
        %v2993 = vadd.f32 %v2878, %v2992
        %v2994 = vpop.f32.mrb[0].mxu0
        %2995 = vmatprep.mubr.f32.mxu0 0.0
        %v2996 = vand.u32 %v2271, 4294901760
        %2997 = vmatmul.mubr.f32.gmra.mrb[0].mxu0 %v2996
        %v2998 = vpop.f32.mrb[0].mxu0
        %v2999 = vadd.f32 %v2884, %v2998
        %v3000 = vpop.f32.mrb[0].mxu0
        %3001 = vmatprep.mubr.f32.mxu0 0.0
        %v3002 = vand.u32 %v2272, 4294901760
        %3003 = vmatmul.mubr.f32.gmra.mrb[0].mxu0 %v3002
        %v3004 = vpop.f32.mrb[0].mxu0
        %v3005 = vadd.f32 %v2890, %v3004
        %v3006 = vpop.f32.mrb[0].mxu0
        %3007 = vmatprep.mubr.f32.mxu0 0.0
        %v3008 = vand.u32 %v2273, 4294901760
        %3009 = vmatmul.mubr.f32.gmra.mrb[0].mxu0 %v3008
        %v3010 = vpop.f32.mrb[0].mxu0
        %v3011 = vadd.f32 %v2896, %v3010
        %v3012 = vpop.f32.mrb[0].mxu0
        %3013 = vmatprep.mubr.f32.mxu0 0.0
        %v3014 = vand.u32 %v2274, 4294901760
        %3015 = vmatmul.mubr.f32.gmra.mrb[0].mxu0 %v3014
        %v3016 = vpop.f32.mrb[0].mxu0
        %v3017 = vadd.f32 %v2902, %v3016
        %v3018 = vpop.f32.mrb[0].mxu0
        %3019 = vmatprep.mubr.f32.mxu0 0.0
        %v3020 = vand.u32 %v2275, 4294901760
        %3021 = vmatmul.mubr.f32.gmra.mrb[0].mxu0 %v3020
        %v3022 = vpop.f32.mrb[0].mxu0
        %v3023 = vadd.f32 %v2908, %v3022
        %v3024 = vpop.f32.mrb[0].mxu0
        %3025 = vmatprep.mubr.f32.mxu0 0.0
        %v3026 = vand.u32 %v2276, 4294901760
        %3027 = vmatmul.mubr.f32.gmra.mrb[0].mxu0 %v3026
        %v3028 = vpop.f32.mrb[0].mxu0
        %v3029 = vadd.f32 %v2914, %v3028
        %v3030 = vpop.f32.mrb[0].mxu0
        %3031 = vmatprep.mubr.f32.mxu0 0.0
        %v3032 = vand.u32 %v2277, 4294901760
        %3033 = vmatmul.mubr.f32.gmra.mrb[0].mxu0 %v3032
        %v3034 = vpop.f32.mrb[0].mxu0
        %v3035 = vadd.f32 %v2920, %v3034
        %v3036 = vpop.f32.mrb[0].mxu0
        %3037 = vdwg.mxu0
        %v3038 = vld [vmem:[%s12] sm:$0xff]
        %v3039 = vld [vmem:[%s12 + $0x8] sm:$0xff]
        %v3040 = vld [vmem:[%s12 + $0x10] sm:$0xff]
        %v3041 = vld [vmem:[%s12 + $0x18] sm:$0xff]
        %v3042 = vld [vmem:[%s12 + $0x20] sm:$0xff]
        %v3043 = vld [vmem:[%s12 + $0x28] sm:$0xff]
        %v3044 = vld [vmem:[%s12 + $0x30] sm:$0xff]
        %v3045 = vld [vmem:[%s12 + $0x38] sm:$0xff]
        %v3046 = vmul.f32 %v2993, %v3038
        %v3047 = vmul.f32 %v2999, %v3039
        %v3048 = vmul.f32 %v3005, %v3040
        %v3049 = vmul.f32 %v3011, %v3041
        %v3050 = vmul.f32 %v3017, %v3042
        %v3051 = vmul.f32 %v3023, %v3043
        %v3052 = vmul.f32 %v3029, %v3044
        %v3053 = vmul.f32 %v3035, %v3045
        %v3054 = vmul.f32 %v3046, %v3046
        %v3055 = vmul.f32 %v3047, %v3047
        %v3056 = vmul.f32 %v3048, %v3048
        %v3057 = vmul.f32 %v3049, %v3049
        %v3058 = vmul.f32 %v3050, %v3050
        %v3059 = vmul.f32 %v3051, %v3051
        %v3060 = vmul.f32 %v3052, %v3052
        %v3061 = vmul.f32 %v3053, %v3053
        %vm3062 = vcmask 130048
        %v3063 = vsel %vm3062, %v3054, 0.0
        %3064 = vadd.xlane.f32.xlu0 %v3063
        %v3065 = vpop.xlane.xlu0 %3064
        %v3066 = vsel %vm3062, %v3055, 0.0
        %3067 = vadd.xlane.f32.xlu0 %v3066
        %v3068 = vpop.xlane.xlu0 %3067
        %v3069 = vsel %vm3062, %v3056, 0.0
        %3070 = vadd.xlane.f32.xlu0 %v3069
        %v3071 = vpop.xlane.xlu0 %3070
        %v3072 = vsel %vm3062, %v3057, 0.0
        %3073 = vadd.xlane.f32.xlu0 %v3072
        %v3074 = vpop.xlane.xlu0 %3073
        %v3075 = vsel %vm3062, %v3058, 0.0
        %3076 = vadd.xlane.f32.xlu0 %v3075
        %v3077 = vpop.xlane.xlu0 %3076
        %v3078 = vsel %vm3062, %v3059, 0.0
        %3079 = vadd.xlane.f32.xlu0 %v3078
        %v3080 = vpop.xlane.xlu0 %3079
        %v3081 = vsel %vm3062, %v3060, 0.0
        %3082 = vadd.xlane.f32.xlu0 %v3081
        %v3083 = vpop.xlane.xlu0 %3082
        %v3084 = vsel %vm3062, %v3061, 0.0
        %3085 = vadd.xlane.f32.xlu0 %v3084
        %v3086 = vpop.xlane.xlu0 %3085
        %v3087 = vmax.f32 %v3065, 1.1754944e-38
        %v3088 = vmax.f32 %v3068, 1.1754944e-38
        %v3089 = vmax.f32 %v3071, 1.1754944e-38
        %v3090 = vmax.f32 %v3074, 1.1754944e-38
        %v3091 = vmax.f32 %v3077, 1.1754944e-38
        %v3092 = vmax.f32 %v3080, 1.1754944e-38
        %v3093 = vmax.f32 %v3083, 1.1754944e-38
        %v3094 = vmax.f32 %v3086, 1.1754944e-38
        %v3095 = vrcp.pop %v3087
        %v3096 = vmul.f32 %v3054, %v3095
        %v3097 = vrcp.pop %v3088
        %v3098 = vmul.f32 %v3055, %v3097
        %v3099 = vrcp.pop %v3089
        %v3100 = vmul.f32 %v3056, %v3099
        %v3101 = vrcp.pop %v3090
        %v3102 = vmul.f32 %v3057, %v3101
        %v3103 = vrcp.pop %v3091
        %v3104 = vmul.f32 %v3058, %v3103
        %v3105 = vrcp.pop %v3092
        %v3106 = vmul.f32 %v3059, %v3105
        %v3107 = vrcp.pop %v3093
        %v3108 = vmul.f32 %v3060, %v3107
        %v3109 = vrcp.pop %v3094
        %v3110 = vmul.f32 %v3061, %v3109
        %v3112 = vsel %vm3062, %v3096, 0
        %v3115 = vsel %vm3062, %v3098, 0
        %v3118 = vsel %vm3062, %v3100, 0
        %v3121 = vsel %vm3062, %v3102, 0
        %v3124 = vsel %vm3062, %v3104, 0
        %v3127 = vsel %vm3062, %v3106, 0
        %v3130 = vsel %vm3062, %v3108, 0
        %v3133 = vsel %vm3062, %v3110, 0
        %3135 = vmatprep.subr.mxu0 0.0
        %v3136 = vand.u32 %v2267, 4294901760
        %3137 = vmatpush1.msra.mxu0 %v3136
        %3138 = vmatprep.subr.mxu0 0.0
        %v3139 = vand.u32 %v2269, 4294901760
        %3140 = vmatpush1.msra.mxu0 %v3139
        %3141 = vmatprep.subr.mxu0 0.0
        %3142 = vmatpush1.msra.mxu0 0.0
        %3143 = vmatprep.subr.mxu0 0.0
        %3144 = vmatpush1.msra.mxu0 0.0
        %3145 = vmatprep.subr.mxu0 0.0
        %3146 = vmatpush1.msra.mxu0 0.0
        %3147 = vmatprep.subr.mxu0 0.0
        %3148 = vmatpush1.msra.mxu0 0.0
        %3149 = vmatprep.subr.mxu0 0.0
        %3150 = vmatpush1.msra.mxu0 0.0
        %3151 = vmatprep.subr.mxu0 0.0
        %3152 = vmatpush1.msra.mxu0 0.0
        %3153 = vmatprep.subr.mxu0 0.0
        %3154 = vmatpush1.msra.mxu0 0.0
        %3155 = vmatprep.subr.mxu0 0.0
        %3156 = vmatpush1.msra.mxu0 0.0
        %3157 = vmatprep.subr.mxu0 0.0
        %3158 = vmatpush1.msra.mxu0 0.0
        %3159 = vmatprep.subr.mxu0 0.0
        %3160 = vmatpush1.msra.mxu0 0.0
        %3161 = vmatprep.subr.mxu0 0.0
        %3162 = vmatpush1.msra.mxu0 0.0
        %3163 = vmatprep.subr.mxu0 0.0
        %3164 = vmatpush1.msra.mxu0 0.0
        %3165 = vmatprep.subr.mxu0 0.0
        %3166 = vmatpush1.msra.mxu0 0.0
        %3167 = vmatprep.subr.mxu0 0.0
        %3168 = vmatpush1.msra.mxu0 0.0
        %3169 = vmatprep.subr.mxu0 0.0
        %3170 = vmatpush1.msra.mxu0 0.0
        %3171 = vmatprep.subr.mxu0 0.0
        %3172 = vmatpush1.msra.mxu0 0.0
        %3173 = vmatprep.subr.mxu0 0.0
        %3174 = vmatpush1.msra.mxu0 0.0
        %3175 = vmatprep.subr.mxu0 0.0
        %3176 = vmatpush1.msra.mxu0 0.0
        %3177 = vmatprep.subr.mxu0 0.0
        %3178 = vmatpush1.msra.mxu0 0.0
        %3179 = vmatprep.subr.mxu0 0.0
        %3180 = vmatpush1.msra.mxu0 0.0
        %3181 = vmatprep.subr.mxu0 0.0
        %3182 = vmatpush1.msra.mxu0 0.0
        %3183 = vmatprep.subr.mxu0 0.0
        %3184 = vmatpush1.msra.mxu0 0.0
        %3185 = vmatprep.subr.mxu0 0.0
        %3186 = vmatpush1.msra.mxu0 0.0
        %3187 = vmatprep.subr.mxu0 0.0
        %3188 = vmatpush1.msra.mxu0 0.0
        %3189 = vmatprep.subr.mxu0 0.0
        %3190 = vmatpush1.msra.mxu0 0.0
        %3191 = vmatprep.subr.mxu0 0.0
        %3192 = vmatpush1.msra.mxu0 0.0
        %3193 = vmatprep.subr.mxu0 0.0
        %3194 = vmatpush1.msra.mxu0 0.0
        %3195 = vmatprep.subr.mxu0 0.0
        %3196 = vmatpush1.msra.mxu0 0.0
        %3197 = vmatprep.subr.mxu0 0.0
        %3198 = vmatpush1.msra.mxu0 0.0
        %3199 = vmatprep.subr.mxu0 0.0
        %3200 = vmatpush1.msra.mxu0 0.0
        %3201 = vmatprep.mubr.f32.mxu0 0.0
        %v3202 = vand.u32 %v3112, 4294901760
        %v3203 = vsub.f32 %v3112, %v3202
        %v3204 = vand.u32 %v3203, 4294901760
        %v3205 = vsub.f32 %v3203, %v3204
        %v3206 = vand.u32 %v3205, 4294901760
        %3207 = vmatmul.mubr.f32.gmra.mrb[0].mxu0 %v3206
        %v3208 = vpop.f32.mrb[0].mxu0
        %v3209 = vadd.f32 0.0, %v3208
        %v3210 = vpop.f32.mrb[0].mxu0
        %3211 = vmatprep.mubr.f32.mxu0 0.0
        %v3212 = vand.u32 %v3115, 4294901760
        %v3213 = vsub.f32 %v3115, %v3212
        %v3214 = vand.u32 %v3213, 4294901760
        %v3215 = vsub.f32 %v3213, %v3214
        %v3216 = vand.u32 %v3215, 4294901760
        %3217 = vmatmul.mubr.f32.gmra.mrb[0].mxu0 %v3216
        %v3218 = vpop.f32.mrb[0].mxu0
        %v3219 = vadd.f32 0.0, %v3218
        %v3220 = vpop.f32.mrb[0].mxu0
        %3221 = vmatprep.mubr.f32.mxu0 0.0
        %v3222 = vand.u32 %v3118, 4294901760
        %v3223 = vsub.f32 %v3118, %v3222
        %v3224 = vand.u32 %v3223, 4294901760
        %v3225 = vsub.f32 %v3223, %v3224
        %v3226 = vand.u32 %v3225, 4294901760
        %3227 = vmatmul.mubr.f32.gmra.mrb[0].mxu0 %v3226
        %v3228 = vpop.f32.mrb[0].mxu0
        %v3229 = vadd.f32 0.0, %v3228
        %v3230 = vpop.f32.mrb[0].mxu0
        %3231 = vmatprep.mubr.f32.mxu0 0.0
        %v3232 = vand.u32 %v3121, 4294901760
        %v3233 = vsub.f32 %v3121, %v3232
        %v3234 = vand.u32 %v3233, 4294901760
        %v3235 = vsub.f32 %v3233, %v3234
        %v3236 = vand.u32 %v3235, 4294901760
        %3237 = vmatmul.mubr.f32.gmra.mrb[0].mxu0 %v3236
        %v3238 = vpop.f32.mrb[0].mxu0
        %v3239 = vadd.f32 0.0, %v3238
        %v3240 = vpop.f32.mrb[0].mxu0
        %3241 = vmatprep.mubr.f32.mxu0 0.0
        %v3242 = vand.u32 %v3124, 4294901760
        %v3243 = vsub.f32 %v3124, %v3242
        %v3244 = vand.u32 %v3243, 4294901760
        %v3245 = vsub.f32 %v3243, %v3244
        %v3246 = vand.u32 %v3245, 4294901760
        %3247 = vmatmul.mubr.f32.gmra.mrb[0].mxu0 %v3246
        %v3248 = vpop.f32.mrb[0].mxu0
        %v3249 = vadd.f32 0.0, %v3248
        %v3250 = vpop.f32.mrb[0].mxu0
        %3251 = vmatprep.mubr.f32.mxu0 0.0
        %v3252 = vand.u32 %v3127, 4294901760
        %v3253 = vsub.f32 %v3127, %v3252
        %v3254 = vand.u32 %v3253, 4294901760
        %v3255 = vsub.f32 %v3253, %v3254
        %v3256 = vand.u32 %v3255, 4294901760
        %3257 = vmatmul.mubr.f32.gmra.mrb[0].mxu0 %v3256
        %v3258 = vpop.f32.mrb[0].mxu0
        %v3259 = vadd.f32 0.0, %v3258
        %v3260 = vpop.f32.mrb[0].mxu0
        %3261 = vmatprep.mubr.f32.mxu0 0.0
        %v3262 = vand.u32 %v3130, 4294901760
        %v3263 = vsub.f32 %v3130, %v3262
        %v3264 = vand.u32 %v3263, 4294901760
        %v3265 = vsub.f32 %v3263, %v3264
        %v3266 = vand.u32 %v3265, 4294901760
        %3267 = vmatmul.mubr.f32.gmra.mrb[0].mxu0 %v3266
        %v3268 = vpop.f32.mrb[0].mxu0
        %v3269 = vadd.f32 0.0, %v3268
        %v3270 = vpop.f32.mrb[0].mxu0
        %3271 = vmatprep.mubr.f32.mxu0 0.0
        %v3272 = vand.u32 %v3133, 4294901760
        %v3273 = vsub.f32 %v3133, %v3272
        %v3274 = vand.u32 %v3273, 4294901760
        %v3275 = vsub.f32 %v3273, %v3274
        %v3276 = vand.u32 %v3275, 4294901760
        %3277 = vmatmul.mubr.f32.gmra.mrb[0].mxu0 %v3276
        %v3278 = vpop.f32.mrb[0].mxu0
        %v3279 = vadd.f32 0.0, %v3278
        %v3280 = vpop.f32.mrb[0].mxu0
        %3281 = vdwg.mxu0
        %3282 = vmatprep.subr.mxu0 0.0
        %v3283 = vand.u32 %v2267, 4294901760
        %v3284 = vsub.f32 %v2267, %v3283
        %v3285 = vand.u32 %v3284, 4294901760
        %v3286 = vsub.f32 %v3284, %v3285
        %v3287 = vand.u32 %v3286, 4294901760
        %3288 = vmatpush1.msra.mxu0 %v3287
        %3289 = vmatprep.subr.mxu0 0.0
        %v3290 = vand.u32 %v2269, 4294901760
        %v3291 = vsub.f32 %v2269, %v3290
        %v3292 = vand.u32 %v3291, 4294901760
        %v3293 = vsub.f32 %v3291, %v3292
        %v3294 = vand.u32 %v3293, 4294901760
        %3295 = vmatpush1.msra.mxu0 %v3294
        %3296 = vmatprep.subr.mxu0 0.0
        %3297 = vmatpush1.msra.mxu0 0.0
        %3298 = vmatprep.subr.mxu0 0.0
        %3299 = vmatpush1.msra.mxu0 0.0
        %3300 = vmatprep.subr.mxu0 0.0
        %3301 = vmatpush1.msra.mxu0 0.0
        %3302 = vmatprep.subr.mxu0 0.0
        %3303 = vmatpush1.msra.mxu0 0.0
        %3304 = vmatprep.subr.mxu0 0.0
        %3305 = vmatpush1.msra.mxu0 0.0
        %3306 = vmatprep.subr.mxu0 0.0
        %3307 = vmatpush1.msra.mxu0 0.0
        %3308 = vmatprep.subr.mxu0 0.0
        %3309 = vmatpush1.msra.mxu0 0.0
        %3310 = vmatprep.subr.mxu0 0.0
        %3311 = vmatpush1.msra.mxu0 0.0
        %3312 = vmatprep.subr.mxu0 0.0
        %3313 = vmatpush1.msra.mxu0 0.0
        %3314 = vmatprep.subr.mxu0 0.0
        %3315 = vmatpush1.msra.mxu0 0.0
        %3316 = vmatprep.subr.mxu0 0.0
        %3317 = vmatpush1.msra.mxu0 0.0
        %3318 = vmatprep.subr.mxu0 0.0
        %3319 = vmatpush1.msra.mxu0 0.0
        %3320 = vmatprep.subr.mxu0 0.0
        %3321 = vmatpush1.msra.mxu0 0.0
        %3322 = vmatprep.subr.mxu0 0.0
        %3323 = vmatpush1.msra.mxu0 0.0
        %3324 = vmatprep.subr.mxu0 0.0
        %3325 = vmatpush1.msra.mxu0 0.0
        %3326 = vmatprep.subr.mxu0 0.0
        %3327 = vmatpush1.msra.mxu0 0.0
        %3328 = vmatprep.subr.mxu0 0.0
        %3329 = vmatpush1.msra.mxu0 0.0
        %3330 = vmatprep.subr.mxu0 0.0
        %3331 = vmatpush1.msra.mxu0 0.0
        %3332 = vmatprep.subr.mxu0 0.0
        %3333 = vmatpush1.msra.mxu0 0.0
        %3334 = vmatprep.subr.mxu0 0.0
        %3335 = vmatpush1.msra.mxu0 0.0
        %3336 = vmatprep.subr.mxu0 0.0
        %3337 = vmatpush1.msra.mxu0 0.0
        %3338 = vmatprep.subr.mxu0 0.0
        %3339 = vmatpush1.msra.mxu0 0.0
        %3340 = vmatprep.subr.mxu0 0.0
        %3341 = vmatpush1.msra.mxu0 0.0
        %3342 = vmatprep.subr.mxu0 0.0
        %3343 = vmatpush1.msra.mxu0 0.0
        %3344 = vmatprep.subr.mxu0 0.0
        %3345 = vmatpush1.msra.mxu0 0.0
        %3346 = vmatprep.subr.mxu0 0.0
        %3347 = vmatpush1.msra.mxu0 0.0
        %3348 = vmatprep.subr.mxu0 0.0
        %3349 = vmatpush1.msra.mxu0 0.0
        %3350 = vmatprep.subr.mxu0 0.0
        %3351 = vmatpush1.msra.mxu0 0.0
        %3352 = vmatprep.subr.mxu0 0.0
        %3353 = vmatpush1.msra.mxu0 0.0
        %3354 = vmatprep.subr.mxu0 0.0
        %3355 = vmatpush1.msra.mxu0 0.0
        %3356 = vmatprep.mubr.f32.mxu0 0.0
        %v3357 = vand.u32 %v3112, 4294901760
        %3358 = vmatmul.mubr.f32.gmra.mrb[0].mxu0 %v3357
        %v3359 = vpop.f32.mrb[0].mxu0
        %v3360 = vadd.f32 %v3209, %v3359
        %v3361 = vpop.f32.mrb[0].mxu0
        %3362 = vmatprep.mubr.f32.mxu0 0.0
        %v3363 = vand.u32 %v3115, 4294901760
        %3364 = vmatmul.mubr.f32.gmra.mrb[0].mxu0 %v3363
        %v3365 = vpop.f32.mrb[0].mxu0
        %v3366 = vadd.f32 %v3219, %v3365
        %v3367 = vpop.f32.mrb[0].mxu0
        %3368 = vmatprep.mubr.f32.mxu0 0.0
        %v3369 = vand.u32 %v3118, 4294901760
        %3370 = vmatmul.mubr.f32.gmra.mrb[0].mxu0 %v3369
        %v3371 = vpop.f32.mrb[0].mxu0
        %v3372 = vadd.f32 %v3229, %v3371
        %v3373 = vpop.f32.mrb[0].mxu0
        %3374 = vmatprep.mubr.f32.mxu0 0.0
        %v3375 = vand.u32 %v3121, 4294901760
        %3376 = vmatmul.mubr.f32.gmra.mrb[0].mxu0 %v3375
        %v3377 = vpop.f32.mrb[0].mxu0
        %v3378 = vadd.f32 %v3239, %v3377
        %v3379 = vpop.f32.mrb[0].mxu0
        %3380 = vmatprep.mubr.f32.mxu0 0.0
        %v3381 = vand.u32 %v3124, 4294901760
        %3382 = vmatmul.mubr.f32.gmra.mrb[0].mxu0 %v3381
        %v3383 = vpop.f32.mrb[0].mxu0
        %v3384 = vadd.f32 %v3249, %v3383
        %v3385 = vpop.f32.mrb[0].mxu0
        %3386 = vmatprep.mubr.f32.mxu0 0.0
        %v3387 = vand.u32 %v3127, 4294901760
        %3388 = vmatmul.mubr.f32.gmra.mrb[0].mxu0 %v3387
        %v3389 = vpop.f32.mrb[0].mxu0
        %v3390 = vadd.f32 %v3259, %v3389
        %v3391 = vpop.f32.mrb[0].mxu0
        %3392 = vmatprep.mubr.f32.mxu0 0.0
        %v3393 = vand.u32 %v3130, 4294901760
        %3394 = vmatmul.mubr.f32.gmra.mrb[0].mxu0 %v3393
        %v3395 = vpop.f32.mrb[0].mxu0
        %v3396 = vadd.f32 %v3269, %v3395
        %v3397 = vpop.f32.mrb[0].mxu0
        %3398 = vmatprep.mubr.f32.mxu0 0.0
        %v3399 = vand.u32 %v3133, 4294901760
        %3400 = vmatmul.mubr.f32.gmra.mrb[0].mxu0 %v3399
        %v3401 = vpop.f32.mrb[0].mxu0
        %v3402 = vadd.f32 %v3279, %v3401
        %v3403 = vpop.f32.mrb[0].mxu0
        %3404 = vdwg.mxu0
        %3405 = vmatprep.subr.mxu0 0.0
        %v3406 = vand.u32 %v2267, 4294901760
        %v3407 = vsub.f32 %v2267, %v3406
        %3408 = vmatpush1.msra.mxu0 %v3407
        %3409 = vmatprep.subr.mxu0 0.0
        %v3410 = vand.u32 %v2269, 4294901760
        %v3411 = vsub.f32 %v2269, %v3410
        %3412 = vmatpush1.msra.mxu0 %v3411
        %3413 = vmatprep.subr.mxu0 0.0
        %3414 = vmatpush1.msra.mxu0 0.0
        %3415 = vmatprep.subr.mxu0 0.0
        %3416 = vmatpush1.msra.mxu0 0.0
        %3417 = vmatprep.subr.mxu0 0.0
        %3418 = vmatpush1.msra.mxu0 0.0
        %3419 = vmatprep.subr.mxu0 0.0
        %3420 = vmatpush1.msra.mxu0 0.0
        %3421 = vmatprep.subr.mxu0 0.0
        %3422 = vmatpush1.msra.mxu0 0.0
        %3423 = vmatprep.subr.mxu0 0.0
        %3424 = vmatpush1.msra.mxu0 0.0
        %3425 = vmatprep.subr.mxu0 0.0
        %3426 = vmatpush1.msra.mxu0 0.0
        %3427 = vmatprep.subr.mxu0 0.0
        %3428 = vmatpush1.msra.mxu0 0.0
        %3429 = vmatprep.subr.mxu0 0.0
        %3430 = vmatpush1.msra.mxu0 0.0
        %3431 = vmatprep.subr.mxu0 0.0
        %3432 = vmatpush1.msra.mxu0 0.0
        %3433 = vmatprep.subr.mxu0 0.0
        %3434 = vmatpush1.msra.mxu0 0.0
        %3435 = vmatprep.subr.mxu0 0.0
        %3436 = vmatpush1.msra.mxu0 0.0
        %3437 = vmatprep.subr.mxu0 0.0
        %3438 = vmatpush1.msra.mxu0 0.0
        %3439 = vmatprep.subr.mxu0 0.0
        %3440 = vmatpush1.msra.mxu0 0.0
        %3441 = vmatprep.subr.mxu0 0.0
        %3442 = vmatpush1.msra.mxu0 0.0
        %3443 = vmatprep.subr.mxu0 0.0
        %3444 = vmatpush1.msra.mxu0 0.0
        %3445 = vmatprep.subr.mxu0 0.0
        %3446 = vmatpush1.msra.mxu0 0.0
        %3447 = vmatprep.subr.mxu0 0.0
        %3448 = vmatpush1.msra.mxu0 0.0
        %3449 = vmatprep.subr.mxu0 0.0
        %3450 = vmatpush1.msra.mxu0 0.0
        %3451 = vmatprep.subr.mxu0 0.0
        %3452 = vmatpush1.msra.mxu0 0.0
        %3453 = vmatprep.subr.mxu0 0.0
        %3454 = vmatpush1.msra.mxu0 0.0
        %3455 = vmatprep.subr.mxu0 0.0
        %3456 = vmatpush1.msra.mxu0 0.0
        %3457 = vmatprep.subr.mxu0 0.0
        %3458 = vmatpush1.msra.mxu0 0.0
        %3459 = vmatprep.subr.mxu0 0.0
        %3460 = vmatpush1.msra.mxu0 0.0
        %3461 = vmatprep.subr.mxu0 0.0
        %3462 = vmatpush1.msra.mxu0 0.0
        %3463 = vmatprep.subr.mxu0 0.0
        %3464 = vmatpush1.msra.mxu0 0.0
        %3465 = vmatprep.subr.mxu0 0.0
        %3466 = vmatpush1.msra.mxu0 0.0
        %3467 = vmatprep.subr.mxu0 0.0
        %3468 = vmatpush1.msra.mxu0 0.0
        %3469 = vmatprep.subr.mxu0 0.0
        %3470 = vmatpush1.msra.mxu0 0.0
        %3471 = vmatprep.subr.mxu0 0.0
        %3472 = vmatpush1.msra.mxu0 0.0
        %3473 = vmatprep.mubr.f32.mxu0 0.0
        %v3474 = vand.u32 %v3112, 4294901760
        %v3475 = vsub.f32 %v3112, %v3474
        %3476 = vmatmul.mubr.f32.gmra.mrb[0].mxu0 %v3475
        %v3477 = vpop.f32.mrb[0].mxu0
        %v3478 = vadd.f32 %v3360, %v3477
        %v3479 = vpop.f32.mrb[0].mxu0
        %3480 = vmatprep.mubr.f32.mxu0 0.0
        %v3481 = vand.u32 %v3115, 4294901760
        %v3482 = vsub.f32 %v3115, %v3481
        %3483 = vmatmul.mubr.f32.gmra.mrb[0].mxu0 %v3482
        %v3484 = vpop.f32.mrb[0].mxu0
        %v3485 = vadd.f32 %v3366, %v3484
        %v3486 = vpop.f32.mrb[0].mxu0
        %3487 = vmatprep.mubr.f32.mxu0 0.0
        %v3488 = vand.u32 %v3118, 4294901760
        %v3489 = vsub.f32 %v3118, %v3488
        %3490 = vmatmul.mubr.f32.gmra.mrb[0].mxu0 %v3489
        %v3491 = vpop.f32.mrb[0].mxu0
        %v3492 = vadd.f32 %v3372, %v3491
        %v3493 = vpop.f32.mrb[0].mxu0
        %3494 = vmatprep.mubr.f32.mxu0 0.0
        %v3495 = vand.u32 %v3121, 4294901760
        %v3496 = vsub.f32 %v3121, %v3495
        %3497 = vmatmul.mubr.f32.gmra.mrb[0].mxu0 %v3496
        %v3498 = vpop.f32.mrb[0].mxu0
        %v3499 = vadd.f32 %v3378, %v3498
        %v3500 = vpop.f32.mrb[0].mxu0
        %3501 = vmatprep.mubr.f32.mxu0 0.0
        %v3502 = vand.u32 %v3124, 4294901760
        %v3503 = vsub.f32 %v3124, %v3502
        %3504 = vmatmul.mubr.f32.gmra.mrb[0].mxu0 %v3503
        %v3505 = vpop.f32.mrb[0].mxu0
        %v3506 = vadd.f32 %v3384, %v3505
        %v3507 = vpop.f32.mrb[0].mxu0
        %3508 = vmatprep.mubr.f32.mxu0 0.0
        %v3509 = vand.u32 %v3127, 4294901760
        %v3510 = vsub.f32 %v3127, %v3509
        %3511 = vmatmul.mubr.f32.gmra.mrb[0].mxu0 %v3510
        %v3512 = vpop.f32.mrb[0].mxu0
        %v3513 = vadd.f32 %v3390, %v3512
        %v3514 = vpop.f32.mrb[0].mxu0
        %3515 = vmatprep.mubr.f32.mxu0 0.0
        %v3516 = vand.u32 %v3130, 4294901760
        %v3517 = vsub.f32 %v3130, %v3516
        %3518 = vmatmul.mubr.f32.gmra.mrb[0].mxu0 %v3517
        %v3519 = vpop.f32.mrb[0].mxu0
        %v3520 = vadd.f32 %v3396, %v3519
        %v3521 = vpop.f32.mrb[0].mxu0
        %3522 = vmatprep.mubr.f32.mxu0 0.0
        %v3523 = vand.u32 %v3133, 4294901760
        %v3524 = vsub.f32 %v3133, %v3523
        %3525 = vmatmul.mubr.f32.gmra.mrb[0].mxu0 %v3524
        %v3526 = vpop.f32.mrb[0].mxu0
        %v3527 = vadd.f32 %v3402, %v3526
        %v3528 = vpop.f32.mrb[0].mxu0
        %3529 = vdwg.mxu0
        %3530 = vmatprep.subr.mxu0 0.0
        %v3531 = vand.u32 %v2267, 4294901760
        %3532 = vmatpush1.msra.mxu0 %v3531
        %3533 = vmatprep.subr.mxu0 0.0
        %v3534 = vand.u32 %v2269, 4294901760
        %3535 = vmatpush1.msra.mxu0 %v3534
        %3536 = vmatprep.subr.mxu0 0.0
        %3537 = vmatpush1.msra.mxu0 0.0
        %3538 = vmatprep.subr.mxu0 0.0
        %3539 = vmatpush1.msra.mxu0 0.0
        %3540 = vmatprep.subr.mxu0 0.0
        %3541 = vmatpush1.msra.mxu0 0.0
        %3542 = vmatprep.subr.mxu0 0.0
        %3543 = vmatpush1.msra.mxu0 0.0
        %3544 = vmatprep.subr.mxu0 0.0
        %3545 = vmatpush1.msra.mxu0 0.0
        %3546 = vmatprep.subr.mxu0 0.0
        %3547 = vmatpush1.msra.mxu0 0.0
        %3548 = vmatprep.subr.mxu0 0.0
        %3549 = vmatpush1.msra.mxu0 0.0
        %3550 = vmatprep.subr.mxu0 0.0
        %3551 = vmatpush1.msra.mxu0 0.0
        %3552 = vmatprep.subr.mxu0 0.0
        %3553 = vmatpush1.msra.mxu0 0.0
        %3554 = vmatprep.subr.mxu0 0.0
        %3555 = vmatpush1.msra.mxu0 0.0
        %3556 = vmatprep.subr.mxu0 0.0
        %3557 = vmatpush1.msra.mxu0 0.0
        %3558 = vmatprep.subr.mxu0 0.0
        %3559 = vmatpush1.msra.mxu0 0.0
        %3560 = vmatprep.subr.mxu0 0.0
        %3561 = vmatpush1.msra.mxu0 0.0
        %3562 = vmatprep.subr.mxu0 0.0
        %3563 = vmatpush1.msra.mxu0 0.0
        %3564 = vmatprep.subr.mxu0 0.0
        %3565 = vmatpush1.msra.mxu0 0.0
        %3566 = vmatprep.subr.mxu0 0.0
        %3567 = vmatpush1.msra.mxu0 0.0
        %3568 = vmatprep.subr.mxu0 0.0
        %3569 = vmatpush1.msra.mxu0 0.0
        %3570 = vmatprep.subr.mxu0 0.0
        %3571 = vmatpush1.msra.mxu0 0.0
        %3572 = vmatprep.subr.mxu0 0.0
        %3573 = vmatpush1.msra.mxu0 0.0
        %3574 = vmatprep.subr.mxu0 0.0
        %3575 = vmatpush1.msra.mxu0 0.0
        %3576 = vmatprep.subr.mxu0 0.0
        %3577 = vmatpush1.msra.mxu0 0.0
        %3578 = vmatprep.subr.mxu0 0.0
        %3579 = vmatpush1.msra.mxu0 0.0
        %3580 = vmatprep.subr.mxu0 0.0
        %3581 = vmatpush1.msra.mxu0 0.0
        %3582 = vmatprep.subr.mxu0 0.0
        %3583 = vmatpush1.msra.mxu0 0.0
        %3584 = vmatprep.subr.mxu0 0.0
        %3585 = vmatpush1.msra.mxu0 0.0
        %3586 = vmatprep.subr.mxu0 0.0
        %3587 = vmatpush1.msra.mxu0 0.0
        %3588 = vmatprep.subr.mxu0 0.0
        %3589 = vmatpush1.msra.mxu0 0.0
        %3590 = vmatprep.subr.mxu0 0.0
        %3591 = vmatpush1.msra.mxu0 0.0
        %3592 = vmatprep.subr.mxu0 0.0
        %3593 = vmatpush1.msra.mxu0 0.0
        %3594 = vmatprep.subr.mxu0 0.0
        %3595 = vmatpush1.msra.mxu0 0.0
        %3596 = vmatprep.mubr.f32.mxu0 0.0
        %v3597 = vand.u32 %v3112, 4294901760
        %v3598 = vsub.f32 %v3112, %v3597
        %v3599 = vand.u32 %v3598, 4294901760
        %3600 = vmatmul.mubr.f32.gmra.mrb[0].mxu0 %v3599
        %v3601 = vpop.f32.mrb[0].mxu0
        %v3602 = vadd.f32 %v3478, %v3601
        %v3603 = vpop.f32.mrb[0].mxu0
        %3604 = vmatprep.mubr.f32.mxu0 0.0
        %v3605 = vand.u32 %v3115, 4294901760
        %v3606 = vsub.f32 %v3115, %v3605
        %v3607 = vand.u32 %v3606, 4294901760
        %3608 = vmatmul.mubr.f32.gmra.mrb[0].mxu0 %v3607
        %v3609 = vpop.f32.mrb[0].mxu0
        %v3610 = vadd.f32 %v3485, %v3609
        %v3611 = vpop.f32.mrb[0].mxu0
        %3612 = vmatprep.mubr.f32.mxu0 0.0
        %v3613 = vand.u32 %v3118, 4294901760
        %v3614 = vsub.f32 %v3118, %v3613
        %v3615 = vand.u32 %v3614, 4294901760
        %3616 = vmatmul.mubr.f32.gmra.mrb[0].mxu0 %v3615
        %v3617 = vpop.f32.mrb[0].mxu0
        %v3618 = vadd.f32 %v3492, %v3617
        %v3619 = vpop.f32.mrb[0].mxu0
        %3620 = vmatprep.mubr.f32.mxu0 0.0
        %v3621 = vand.u32 %v3121, 4294901760
        %v3622 = vsub.f32 %v3121, %v3621
        %v3623 = vand.u32 %v3622, 4294901760
        %3624 = vmatmul.mubr.f32.gmra.mrb[0].mxu0 %v3623
        %v3625 = vpop.f32.mrb[0].mxu0
        %v3626 = vadd.f32 %v3499, %v3625
        %v3627 = vpop.f32.mrb[0].mxu0
        %3628 = vmatprep.mubr.f32.mxu0 0.0
        %v3629 = vand.u32 %v3124, 4294901760
        %v3630 = vsub.f32 %v3124, %v3629
        %v3631 = vand.u32 %v3630, 4294901760
        %3632 = vmatmul.mubr.f32.gmra.mrb[0].mxu0 %v3631
        %v3633 = vpop.f32.mrb[0].mxu0
        %v3634 = vadd.f32 %v3506, %v3633
        %v3635 = vpop.f32.mrb[0].mxu0
        %3636 = vmatprep.mubr.f32.mxu0 0.0
        %v3637 = vand.u32 %v3127, 4294901760
        %v3638 = vsub.f32 %v3127, %v3637
        %v3639 = vand.u32 %v3638, 4294901760
        %3640 = vmatmul.mubr.f32.gmra.mrb[0].mxu0 %v3639
        %v3641 = vpop.f32.mrb[0].mxu0
        %v3642 = vadd.f32 %v3513, %v3641
        %v3643 = vpop.f32.mrb[0].mxu0
        %3644 = vmatprep.mubr.f32.mxu0 0.0
        %v3645 = vand.u32 %v3130, 4294901760
        %v3646 = vsub.f32 %v3130, %v3645
        %v3647 = vand.u32 %v3646, 4294901760
        %3648 = vmatmul.mubr.f32.gmra.mrb[0].mxu0 %v3647
        %v3649 = vpop.f32.mrb[0].mxu0
        %v3650 = vadd.f32 %v3520, %v3649
        %v3651 = vpop.f32.mrb[0].mxu0
        %3652 = vmatprep.mubr.f32.mxu0 0.0
        %v3653 = vand.u32 %v3133, 4294901760
        %v3654 = vsub.f32 %v3133, %v3653
        %v3655 = vand.u32 %v3654, 4294901760
        %3656 = vmatmul.mubr.f32.gmra.mrb[0].mxu0 %v3655
        %v3657 = vpop.f32.mrb[0].mxu0
        %v3658 = vadd.f32 %v3527, %v3657
        %v3659 = vpop.f32.mrb[0].mxu0
        %3660 = vdwg.mxu0
        %3661 = vmatprep.subr.mxu0 0.0
        %v3662 = vand.u32 %v2267, 4294901760
        %v3663 = vsub.f32 %v2267, %v3662
        %v3664 = vand.u32 %v3663, 4294901760
        %3665 = vmatpush1.msra.mxu0 %v3664
        %3666 = vmatprep.subr.mxu0 0.0
        %v3667 = vand.u32 %v2269, 4294901760
        %v3668 = vsub.f32 %v2269, %v3667
        %v3669 = vand.u32 %v3668, 4294901760
        %3670 = vmatpush1.msra.mxu0 %v3669
        %3671 = vmatprep.subr.mxu0 0.0
        %3672 = vmatpush1.msra.mxu0 0.0
        %3673 = vmatprep.subr.mxu0 0.0
        %3674 = vmatpush1.msra.mxu0 0.0
        %3675 = vmatprep.subr.mxu0 0.0
        %3676 = vmatpush1.msra.mxu0 0.0
        %3677 = vmatprep.subr.mxu0 0.0
        %3678 = vmatpush1.msra.mxu0 0.0
        %3679 = vmatprep.subr.mxu0 0.0
        %3680 = vmatpush1.msra.mxu0 0.0
        %3681 = vmatprep.subr.mxu0 0.0
        %3682 = vmatpush1.msra.mxu0 0.0
        %3683 = vmatprep.subr.mxu0 0.0
        %3684 = vmatpush1.msra.mxu0 0.0
        %3685 = vmatprep.subr.mxu0 0.0
        %3686 = vmatpush1.msra.mxu0 0.0
        %3687 = vmatprep.subr.mxu0 0.0
        %3688 = vmatpush1.msra.mxu0 0.0
        %3689 = vmatprep.subr.mxu0 0.0
        %3690 = vmatpush1.msra.mxu0 0.0
        %3691 = vmatprep.subr.mxu0 0.0
        %3692 = vmatpush1.msra.mxu0 0.0
        %3693 = vmatprep.subr.mxu0 0.0
        %3694 = vmatpush1.msra.mxu0 0.0
        %3695 = vmatprep.subr.mxu0 0.0
        %3696 = vmatpush1.msra.mxu0 0.0
        %3697 = vmatprep.subr.mxu0 0.0
        %3698 = vmatpush1.msra.mxu0 0.0
        %3699 = vmatprep.subr.mxu0 0.0
        %3700 = vmatpush1.msra.mxu0 0.0
        %3701 = vmatprep.subr.mxu0 0.0
        %3702 = vmatpush1.msra.mxu0 0.0
        %3703 = vmatprep.subr.mxu0 0.0
        %3704 = vmatpush1.msra.mxu0 0.0
        %3705 = vmatprep.subr.mxu0 0.0
        %3706 = vmatpush1.msra.mxu0 0.0
        %3707 = vmatprep.subr.mxu0 0.0
        %3708 = vmatpush1.msra.mxu0 0.0
        %3709 = vmatprep.subr.mxu0 0.0
        %3710 = vmatpush1.msra.mxu0 0.0
        %3711 = vmatprep.subr.mxu0 0.0
        %3712 = vmatpush1.msra.mxu0 0.0
        %3713 = vmatprep.subr.mxu0 0.0
        %3714 = vmatpush1.msra.mxu0 0.0
        %3715 = vmatprep.subr.mxu0 0.0
        %3716 = vmatpush1.msra.mxu0 0.0
        %3717 = vmatprep.subr.mxu0 0.0
        %3718 = vmatpush1.msra.mxu0 0.0
        %3719 = vmatprep.subr.mxu0 0.0
        %3720 = vmatpush1.msra.mxu0 0.0
        %3721 = vmatprep.subr.mxu0 0.0
        %3722 = vmatpush1.msra.mxu0 0.0
        %3723 = vmatprep.subr.mxu0 0.0
        %3724 = vmatpush1.msra.mxu0 0.0
        %3725 = vmatprep.subr.mxu0 0.0
        %3726 = vmatpush1.msra.mxu0 0.0
        %3727 = vmatprep.subr.mxu0 0.0
        %3728 = vmatpush1.msra.mxu0 0.0
        %3729 = vmatprep.subr.mxu0 0.0
        %3730 = vmatpush1.msra.mxu0 0.0
        %3731 = vmatprep.mubr.f32.mxu0 0.0
        %v3732 = vand.u32 %v3112, 4294901760
        %3733 = vmatmul.mubr.f32.gmra.mrb[0].mxu0 %v3732
        %v3734 = vpop.f32.mrb[0].mxu0
        %v3735 = vadd.f32 %v3602, %v3734
        %v3736 = vpop.f32.mrb[0].mxu0
        %3737 = vmatprep.mubr.f32.mxu0 0.0
        %v3738 = vand.u32 %v3115, 4294901760
        %3739 = vmatmul.mubr.f32.gmra.mrb[0].mxu0 %v3738
        %v3740 = vpop.f32.mrb[0].mxu0
        %v3741 = vadd.f32 %v3610, %v3740
        %v3742 = vpop.f32.mrb[0].mxu0
        %3743 = vmatprep.mubr.f32.mxu0 0.0
        %v3744 = vand.u32 %v3118, 4294901760
        %3745 = vmatmul.mubr.f32.gmra.mrb[0].mxu0 %v3744
        %v3746 = vpop.f32.mrb[0].mxu0
        %v3747 = vadd.f32 %v3618, %v3746
        %v3748 = vpop.f32.mrb[0].mxu0
        %3749 = vmatprep.mubr.f32.mxu0 0.0
        %v3750 = vand.u32 %v3121, 4294901760
        %3751 = vmatmul.mubr.f32.gmra.mrb[0].mxu0 %v3750
        %v3752 = vpop.f32.mrb[0].mxu0
        %v3753 = vadd.f32 %v3626, %v3752
        %v3754 = vpop.f32.mrb[0].mxu0
        %3755 = vmatprep.mubr.f32.mxu0 0.0
        %v3756 = vand.u32 %v3124, 4294901760
        %3757 = vmatmul.mubr.f32.gmra.mrb[0].mxu0 %v3756
        %v3758 = vpop.f32.mrb[0].mxu0
        %v3759 = vadd.f32 %v3634, %v3758
        %v3760 = vpop.f32.mrb[0].mxu0
        %3761 = vmatprep.mubr.f32.mxu0 0.0
        %v3762 = vand.u32 %v3127, 4294901760
        %3763 = vmatmul.mubr.f32.gmra.mrb[0].mxu0 %v3762
        %v3764 = vpop.f32.mrb[0].mxu0
        %v3765 = vadd.f32 %v3642, %v3764
        %v3766 = vpop.f32.mrb[0].mxu0
        %3767 = vmatprep.mubr.f32.mxu0 0.0
        %v3768 = vand.u32 %v3130, 4294901760
        %3769 = vmatmul.mubr.f32.gmra.mrb[0].mxu0 %v3768
        %v3770 = vpop.f32.mrb[0].mxu0
        %v3771 = vadd.f32 %v3650, %v3770
        %v3772 = vpop.f32.mrb[0].mxu0
        %3773 = vmatprep.mubr.f32.mxu0 0.0
        %v3774 = vand.u32 %v3133, 4294901760
        %3775 = vmatmul.mubr.f32.gmra.mrb[0].mxu0 %v3774
        %v3776 = vpop.f32.mrb[0].mxu0
        %v3777 = vadd.f32 %v3658, %v3776
        %v3778 = vpop.f32.mrb[0].mxu0
        %3779 = vdwg.mxu0
        %3780 = vmatprep.subr.mxu0 0.0
        %v3781 = vand.u32 %v2267, 4294901760
        %3782 = vmatpush1.msra.mxu0 %v3781
        %3783 = vmatprep.subr.mxu0 0.0
        %v3784 = vand.u32 %v2269, 4294901760
        %3785 = vmatpush1.msra.mxu0 %v3784
        %3786 = vmatprep.subr.mxu0 0.0
        %3787 = vmatpush1.msra.mxu0 0.0
        %3788 = vmatprep.subr.mxu0 0.0
        %3789 = vmatpush1.msra.mxu0 0.0
        %3790 = vmatprep.subr.mxu0 0.0
        %3791 = vmatpush1.msra.mxu0 0.0
        %3792 = vmatprep.subr.mxu0 0.0
        %3793 = vmatpush1.msra.mxu0 0.0
        %3794 = vmatprep.subr.mxu0 0.0
        %3795 = vmatpush1.msra.mxu0 0.0
        %3796 = vmatprep.subr.mxu0 0.0
        %3797 = vmatpush1.msra.mxu0 0.0
        %3798 = vmatprep.subr.mxu0 0.0
        %3799 = vmatpush1.msra.mxu0 0.0
        %3800 = vmatprep.subr.mxu0 0.0
        %3801 = vmatpush1.msra.mxu0 0.0
        %3802 = vmatprep.subr.mxu0 0.0
        %3803 = vmatpush1.msra.mxu0 0.0
        %3804 = vmatprep.subr.mxu0 0.0
        %3805 = vmatpush1.msra.mxu0 0.0
        %3806 = vmatprep.subr.mxu0 0.0
        %3807 = vmatpush1.msra.mxu0 0.0
        %3808 = vmatprep.subr.mxu0 0.0
        %3809 = vmatpush1.msra.mxu0 0.0
        %3810 = vmatprep.subr.mxu0 0.0
        %3811 = vmatpush1.msra.mxu0 0.0
        %3812 = vmatprep.subr.mxu0 0.0
        %3813 = vmatpush1.msra.mxu0 0.0
        %3814 = vmatprep.subr.mxu0 0.0
        %3815 = vmatpush1.msra.mxu0 0.0
        %3816 = vmatprep.subr.mxu0 0.0
        %3817 = vmatpush1.msra.mxu0 0.0
        %3818 = vmatprep.subr.mxu0 0.0
        %3819 = vmatpush1.msra.mxu0 0.0
        %3820 = vmatprep.subr.mxu0 0.0
        %3821 = vmatpush1.msra.mxu0 0.0
        %3822 = vmatprep.subr.mxu0 0.0
        %3823 = vmatpush1.msra.mxu0 0.0
        %3824 = vmatprep.subr.mxu0 0.0
        %3825 = vmatpush1.msra.mxu0 0.0
        %3826 = vmatprep.subr.mxu0 0.0
        %3827 = vmatpush1.msra.mxu0 0.0
        %3828 = vmatprep.subr.mxu0 0.0
        %3829 = vmatpush1.msra.mxu0 0.0
        %3830 = vmatprep.subr.mxu0 0.0
        %3831 = vmatpush1.msra.mxu0 0.0
        %3832 = vmatprep.subr.mxu0 0.0
        %3833 = vmatpush1.msra.mxu0 0.0
        %3834 = vmatprep.subr.mxu0 0.0
        %3835 = vmatpush1.msra.mxu0 0.0
        %3836 = vmatprep.subr.mxu0 0.0
        %3837 = vmatpush1.msra.mxu0 0.0
        %3838 = vmatprep.subr.mxu0 0.0
        %3839 = vmatpush1.msra.mxu0 0.0
        %3840 = vmatprep.subr.mxu0 0.0
        %3841 = vmatpush1.msra.mxu0 0.0
        %3842 = vmatprep.subr.mxu0 0.0
        %3843 = vmatpush1.msra.mxu0 0.0
        %3844 = vmatprep.subr.mxu0 0.0
        %3845 = vmatpush1.msra.mxu0 0.0
        %3846 = vmatprep.mubr.f32.mxu0 0.0
        %v3847 = vand.u32 %v3112, 4294901760
        %3848 = vmatmul.mubr.f32.gmra.mrb[0].mxu0 %v3847
        %v3849 = vpop.f32.mrb[0].mxu0
        %v3850 = vadd.f32 %v3735, %v3849
        %v3851 = vpop.f32.mrb[0].mxu0
        %3852 = vmatprep.mubr.f32.mxu0 0.0
        %v3853 = vand.u32 %v3115, 4294901760
        %3854 = vmatmul.mubr.f32.gmra.mrb[0].mxu0 %v3853
        %v3855 = vpop.f32.mrb[0].mxu0
        %v3856 = vadd.f32 %v3741, %v3855
        %v3857 = vpop.f32.mrb[0].mxu0
        %3858 = vmatprep.mubr.f32.mxu0 0.0
        %v3859 = vand.u32 %v3118, 4294901760
        %3860 = vmatmul.mubr.f32.gmra.mrb[0].mxu0 %v3859
        %v3861 = vpop.f32.mrb[0].mxu0
        %v3862 = vadd.f32 %v3747, %v3861
        %v3863 = vpop.f32.mrb[0].mxu0
        %3864 = vmatprep.mubr.f32.mxu0 0.0
        %v3865 = vand.u32 %v3121, 4294901760
        %3866 = vmatmul.mubr.f32.gmra.mrb[0].mxu0 %v3865
        %v3867 = vpop.f32.mrb[0].mxu0
        %v3868 = vadd.f32 %v3753, %v3867
        %v3869 = vpop.f32.mrb[0].mxu0
        %3870 = vmatprep.mubr.f32.mxu0 0.0
        %v3871 = vand.u32 %v3124, 4294901760
        %3872 = vmatmul.mubr.f32.gmra.mrb[0].mxu0 %v3871
        %v3873 = vpop.f32.mrb[0].mxu0
        %v3874 = vadd.f32 %v3759, %v3873
        %v3875 = vpop.f32.mrb[0].mxu0
        %3876 = vmatprep.mubr.f32.mxu0 0.0
        %v3877 = vand.u32 %v3127, 4294901760
        %3878 = vmatmul.mubr.f32.gmra.mrb[0].mxu0 %v3877
        %v3879 = vpop.f32.mrb[0].mxu0
        %v3880 = vadd.f32 %v3765, %v3879
        %v3881 = vpop.f32.mrb[0].mxu0
        %3882 = vmatprep.mubr.f32.mxu0 0.0
        %v3883 = vand.u32 %v3130, 4294901760
        %3884 = vmatmul.mubr.f32.gmra.mrb[0].mxu0 %v3883
        %v3885 = vpop.f32.mrb[0].mxu0
        %v3886 = vadd.f32 %v3771, %v3885
        %v3887 = vpop.f32.mrb[0].mxu0
        %3888 = vmatprep.mubr.f32.mxu0 0.0
        %v3889 = vand.u32 %v3133, 4294901760
        %3890 = vmatmul.mubr.f32.gmra.mrb[0].mxu0 %v3889
        %v3891 = vpop.f32.mrb[0].mxu0
        %v3892 = vadd.f32 %v3777, %v3891
        %v3893 = vpop.f32.mrb[0].mxu0
        %3894 = vdwg.mxu0
        %v3895 = vmul.f32 %v3850, %v507
        %v3896 = vmul.f32 %v3856, %v508
        %v3897 = vmul.f32 %v3862, %v509
        %v3898 = vmul.f32 %v3868, %v510
        %v3899 = vmul.f32 %v3874, %v511
        %v3900 = vmul.f32 %v3880, %v512
        %v3901 = vmul.f32 %v3886, %v513
        %v3902 = vmul.f32 %v3892, %v514
        %v3903 = vadd.f32 %v3895, %v3897
        %v3904 = vadd.f32 %v3896, %v3898
        %v3905 = vadd.f32 %v3903, %v3899
        %v3906 = vadd.f32 %v3904, %v3900
        %v3907 = vadd.f32 %v3905, %v3901
        %v3908 = vadd.f32 %v3906, %v3902
        %v3909 = vadd.f32 %v499, %v3907
        %v3910 = vadd.f32 %v500, %v3908
        %3911 = vst [vmem:[#allocation2] sm:$0xff] %v3909
        %3912 = vst [vmem:[#allocation2 + $0x8] sm:$0xff] %v3910
        %p3913 = scmp.eq.s32.totalorder %s29, 1
        // Predicated region
        $region85: #{encoder_list_forward.1} parent=75 // pred_check
          %p3914 = pneg %p3913
        $region86: #{encoder_list_forward.1} parent=75 // pred_check_branch
          %3916 = sbr.rel (%p3914) target = $region88
        $region87: #{encoder_list_forward.1} parent=75 // pred_region
          %v3917 = vld [vmem:[%s11] sm:$0xff]
          %v3918 = vld [vmem:[%s5] sm:$0xff]
          %v3919 = vld [vmem:[%s5 + $0x8] sm:$0xff]
          %v3920 = vld [vmem:[%s5 + $0x10] sm:$0xff]
          %v3921 = vld [vmem:[%s5 + $0x18] sm:$0xff]
          %v3922 = vld [vmem:[%s5 + $0x20] sm:$0xff]
          %v3923 = vld [vmem:[%s5 + $0x28] sm:$0xff]
          %v3924 = vld [vmem:[%s5 + $0x30] sm:$0xff]
          %v3925 = vld [vmem:[%s5 + $0x38] sm:$0xff]
          %v3926 = vld [vmem:[%s5 + $0x40] sm:$0xff]
          %v3927 = vld [vmem:[%s5 + $0x48] sm:$0xff]
          %v3928 = vld [vmem:[%s5 + $0x50] sm:$0xff]
          %v3929 = vld [vmem:[%s5 + $0x58] sm:$0xff]
          %v3930 = vld [vmem:[%s5 + $0x60] sm:$0xff]
          %v3931 = vld [vmem:[%s5 + $0x68] sm:$0xff]
          %v3932 = vld [vmem:[%s5 + $0x70] sm:$0xff]
          %v3933 = vld [vmem:[%s5 + $0x78] sm:$0xff]
          %v3934 = vld [vmem:[%s5 + $0x80] sm:$0xff]
          %v3935 = vld [vmem:[%s5 + $0x88] sm:$0xff]
          %v3936 = vld [vmem:[%s5 + $0x90] sm:$0xff]
          %v3937 = vld [vmem:[%s5 + $0x98] sm:$0xff]
          %v3938 = vld [vmem:[%s5 + $0xa0] sm:$0xff]
          %v3939 = vld [vmem:[%s5 + $0xa8] sm:$0xff]
          %v3940 = vld [vmem:[%s5 + $0xb0] sm:$0xff]
          %v3941 = vld [vmem:[%s5 + $0xb8] sm:$0xff]
          %v3942 = vld [vmem:[%s5 + $0xc0] sm:$0xff]
          %v3943 = vld [vmem:[%s5 + $0xc8] sm:$0xff]
          %v3944 = vld [vmem:[%s5 + $0xd0] sm:$0xff]
          %v3945 = vld [vmem:[%s5 + $0xd8] sm:$0xff]
          %v3946 = vld [vmem:[%s5 + $0xe0] sm:$0xff]
          %v3947 = vld [vmem:[%s5 + $0xe8] sm:$0xff]
          %v3948 = vld [vmem:[%s5 + $0xf0] sm:$0xff]
          %v3949 = vld [vmem:[%s5 + $0xf8] sm:$0xff]
          %v3950 = vld [vmem:[%s6] sm:$0x3]
          %v3952 = vlaneseq
          %v3953 = vshrl.u32 %v3952, 7
          %v3954 = vsub.s32 0, %v3953
          %v3955 = vrot.slane %v3950, %v3954
          %v3956 = vlaneseq
          %v3957 = vshrl.u32 %v3956, 7
          %v3958 = vsub.s32 1, %v3957
          %v3959 = vrot.slane %v3950, %v3958
          %v3962 = vand.u32 %v3919, 4294901760
          %3963 = vmatprep.subr.mxu0 %v3962
          %v3964 = vand.u32 %v3918, 4294901760
          %3965 = vmatpush1.msra.mxu0 %v3964
          %v3966 = vand.u32 %v3921, 4294901760
          %3967 = vmatprep.subr.mxu0 %v3966
          %v3968 = vand.u32 %v3920, 4294901760
          %3969 = vmatpush1.msra.mxu0 %v3968
          %v3970 = vand.u32 %v3923, 4294901760
          %3971 = vmatprep.subr.mxu0 %v3970
          %v3972 = vand.u32 %v3922, 4294901760
          %3973 = vmatpush1.msra.mxu0 %v3972
          %v3974 = vand.u32 %v3925, 4294901760
          %3975 = vmatprep.subr.mxu0 %v3974
          %v3976 = vand.u32 %v3924, 4294901760
          %3977 = vmatpush1.msra.mxu0 %v3976
          %v3978 = vand.u32 %v3927, 4294901760
          %3979 = vmatprep.subr.mxu0 %v3978
          %v3980 = vand.u32 %v3926, 4294901760
          %3981 = vmatpush1.msra.mxu0 %v3980
          %v3982 = vand.u32 %v3929, 4294901760
          %3983 = vmatprep.subr.mxu0 %v3982
          %v3984 = vand.u32 %v3928, 4294901760
          %3985 = vmatpush1.msra.mxu0 %v3984
          %v3986 = vand.u32 %v3931, 4294901760
          %3987 = vmatprep.subr.mxu0 %v3986
          %v3988 = vand.u32 %v3930, 4294901760
          %3989 = vmatpush1.msra.mxu0 %v3988
          %v3990 = vand.u32 %v3933, 4294901760
          %3991 = vmatprep.subr.mxu0 %v3990
          %v3992 = vand.u32 %v3932, 4294901760
          %3993 = vmatpush1.msra.mxu0 %v3992
          %v3994 = vand.u32 %v3935, 4294901760
          %3995 = vmatprep.subr.mxu0 %v3994
          %v3996 = vand.u32 %v3934, 4294901760
          %3997 = vmatpush1.msra.mxu0 %v3996
          %v3998 = vand.u32 %v3937, 4294901760
          %3999 = vmatprep.subr.mxu0 %v3998
          %v4000 = vand.u32 %v3936, 4294901760
          %4001 = vmatpush1.msra.mxu0 %v4000
          %v4002 = vand.u32 %v3939, 4294901760
          %4003 = vmatprep.subr.mxu0 %v4002
          %v4004 = vand.u32 %v3938, 4294901760
          %4005 = vmatpush1.msra.mxu0 %v4004
          %v4006 = vand.u32 %v3941, 4294901760
          %4007 = vmatprep.subr.mxu0 %v4006
          %v4008 = vand.u32 %v3940, 4294901760
          %4009 = vmatpush1.msra.mxu0 %v4008
          %v4010 = vand.u32 %v3943, 4294901760
          %4011 = vmatprep.subr.mxu0 %v4010
          %v4012 = vand.u32 %v3942, 4294901760
          %4013 = vmatpush1.msra.mxu0 %v4012
          %v4014 = vand.u32 %v3945, 4294901760
          %4015 = vmatprep.subr.mxu0 %v4014
          %v4016 = vand.u32 %v3944, 4294901760
          %4017 = vmatpush1.msra.mxu0 %v4016
          %v4018 = vand.u32 %v3947, 4294901760
          %4019 = vmatprep.subr.mxu0 %v4018
          %v4020 = vand.u32 %v3946, 4294901760
          %4021 = vmatpush1.msra.mxu0 %v4020
          %v4022 = vand.u32 %v3949, 4294901760
          %4023 = vmatprep.subr.mxu0 %v4022
          %v4024 = vand.u32 %v3948, 4294901760
          %4025 = vmatpush1.msra.mxu0 %v4024
          %4026 = vmatprep.subr.mxu0 0.0
          %4027 = vmatpush1.msra.mxu0 0.0
          %4028 = vmatprep.subr.mxu0 0.0
          %4029 = vmatpush1.msra.mxu0 0.0
          %4030 = vmatprep.subr.mxu0 0.0
          %4031 = vmatpush1.msra.mxu0 0.0
          %4032 = vmatprep.subr.mxu0 0.0
          %4033 = vmatpush1.msra.mxu0 0.0
          %4034 = vmatprep.subr.mxu0 0.0
          %4035 = vmatpush1.msra.mxu0 0.0
          %4036 = vmatprep.subr.mxu0 0.0
          %4037 = vmatpush1.msra.mxu0 0.0
          %4038 = vmatprep.subr.mxu0 0.0
          %4039 = vmatpush1.msra.mxu0 0.0
          %4040 = vmatprep.subr.mxu0 0.0
          %4041 = vmatpush1.msra.mxu0 0.0
          %4042 = vmatprep.subr.mxu0 0.0
          %4043 = vmatpush1.msra.mxu0 0.0
          %4044 = vmatprep.subr.mxu0 0.0
          %4045 = vmatpush1.msra.mxu0 0.0
          %4046 = vmatprep.subr.mxu0 0.0
          %4047 = vmatpush1.msra.mxu0 0.0
          %4048 = vmatprep.subr.mxu0 0.0
          %4049 = vmatpush1.msra.mxu0 0.0
          %4050 = vmatprep.subr.mxu0 0.0
          %4051 = vmatpush1.msra.mxu0 0.0
          %4052 = vmatprep.subr.mxu0 0.0
          %4053 = vmatpush1.msra.mxu0 0.0
          %4054 = vmatprep.subr.mxu0 0.0
          %4055 = vmatpush1.msra.mxu0 0.0
          %4056 = vmatprep.subr.mxu0 0.0
          %4057 = vmatpush1.msra.mxu0 0.0
          %4058 = vmatprep.mubr.f32.mxu0 0.0
          %v4059 = vand.u32 %v3909, 4294901760
          %v4060 = vsub.f32 %v3909, %v4059
          %v4061 = vand.u32 %v4060, 4294901760
          %v4062 = vsub.f32 %v4060, %v4061
          %v4063 = vand.u32 %v4062, 4294901760
          %4064 = vmatmul.mubr.f32.gmra.mrb[0].mxu0 %v4063
          %v4065 = vpop.f32.mrb[0].mxu0
          %v4066 = vadd.f32 %v3955, %v4065
          %v4067 = vpop.f32.mrb[0].mxu0
          %v4068 = vadd.f32 %v3959, %v4067
          %4069 = vmatprep.mubr.f32.mxu0 0.0
          %v4070 = vand.u32 %v3910, 4294901760
          %v4071 = vsub.f32 %v3910, %v4070
          %v4072 = vand.u32 %v4071, 4294901760
          %v4073 = vsub.f32 %v4071, %v4072
          %v4074 = vand.u32 %v4073, 4294901760
          %4075 = vmatmul.mubr.f32.gmra.mrb[0].mxu0 %v4074
          %v4076 = vpop.f32.mrb[0].mxu0
          %v4077 = vadd.f32 %v3955, %v4076
          %v4078 = vpop.f32.mrb[0].mxu0
          %v4079 = vadd.f32 %v3959, %v4078
          %4080 = vdwg.mxu0
          %v4081 = vand.u32 %v3919, 4294901760
          %v4082 = vsub.f32 %v3919, %v4081
          %v4083 = vand.u32 %v4082, 4294901760
          %v4084 = vsub.f32 %v4082, %v4083
          %v4085 = vand.u32 %v4084, 4294901760
          %4086 = vmatprep.subr.mxu0 %v4085
          %v4087 = vand.u32 %v3918, 4294901760
          %v4088 = vsub.f32 %v3918, %v4087
          %v4089 = vand.u32 %v4088, 4294901760
          %v4090 = vsub.f32 %v4088, %v4089
          %v4091 = vand.u32 %v4090, 4294901760
          %4092 = vmatpush1.msra.mxu0 %v4091
          %v4093 = vand.u32 %v3921, 4294901760
          %v4094 = vsub.f32 %v3921, %v4093
          %v4095 = vand.u32 %v4094, 4294901760
          %v4096 = vsub.f32 %v4094, %v4095
          %v4097 = vand.u32 %v4096, 4294901760
          %4098 = vmatprep.subr.mxu0 %v4097
          %v4099 = vand.u32 %v3920, 4294901760
          %v4100 = vsub.f32 %v3920, %v4099
          %v4101 = vand.u32 %v4100, 4294901760
          %v4102 = vsub.f32 %v4100, %v4101
          %v4103 = vand.u32 %v4102, 4294901760
          %4104 = vmatpush1.msra.mxu0 %v4103
          %v4105 = vand.u32 %v3923, 4294901760
          %v4106 = vsub.f32 %v3923, %v4105
          %v4107 = vand.u32 %v4106, 4294901760
          %v4108 = vsub.f32 %v4106, %v4107
          %v4109 = vand.u32 %v4108, 4294901760
          %4110 = vmatprep.subr.mxu0 %v4109
          %v4111 = vand.u32 %v3922, 4294901760
          %v4112 = vsub.f32 %v3922, %v4111
          %v4113 = vand.u32 %v4112, 4294901760
          %v4114 = vsub.f32 %v4112, %v4113
          %v4115 = vand.u32 %v4114, 4294901760
          %4116 = vmatpush1.msra.mxu0 %v4115
          %v4117 = vand.u32 %v3925, 4294901760
          %v4118 = vsub.f32 %v3925, %v4117
          %v4119 = vand.u32 %v4118, 4294901760
          %v4120 = vsub.f32 %v4118, %v4119
          %v4121 = vand.u32 %v4120, 4294901760
          %4122 = vmatprep.subr.mxu0 %v4121
          %v4123 = vand.u32 %v3924, 4294901760
          %v4124 = vsub.f32 %v3924, %v4123
          %v4125 = vand.u32 %v4124, 4294901760
          %v4126 = vsub.f32 %v4124, %v4125
          %v4127 = vand.u32 %v4126, 4294901760
          %4128 = vmatpush1.msra.mxu0 %v4127
          %v4129 = vand.u32 %v3927, 4294901760
          %v4130 = vsub.f32 %v3927, %v4129
          %v4131 = vand.u32 %v4130, 4294901760
          %v4132 = vsub.f32 %v4130, %v4131
          %v4133 = vand.u32 %v4132, 4294901760
          %4134 = vmatprep.subr.mxu0 %v4133
          %v4135 = vand.u32 %v3926, 4294901760
          %v4136 = vsub.f32 %v3926, %v4135
          %v4137 = vand.u32 %v4136, 4294901760
          %v4138 = vsub.f32 %v4136, %v4137
          %v4139 = vand.u32 %v4138, 4294901760
          %4140 = vmatpush1.msra.mxu0 %v4139
          %v4141 = vand.u32 %v3929, 4294901760
          %v4142 = vsub.f32 %v3929, %v4141
          %v4143 = vand.u32 %v4142, 4294901760
          %v4144 = vsub.f32 %v4142, %v4143
          %v4145 = vand.u32 %v4144, 4294901760
          %4146 = vmatprep.subr.mxu0 %v4145
          %v4147 = vand.u32 %v3928, 4294901760
          %v4148 = vsub.f32 %v3928, %v4147
          %v4149 = vand.u32 %v4148, 4294901760
          %v4150 = vsub.f32 %v4148, %v4149
          %v4151 = vand.u32 %v4150, 4294901760
          %4152 = vmatpush1.msra.mxu0 %v4151
          %v4153 = vand.u32 %v3931, 4294901760
          %v4154 = vsub.f32 %v3931, %v4153
          %v4155 = vand.u32 %v4154, 4294901760
          %v4156 = vsub.f32 %v4154, %v4155
          %v4157 = vand.u32 %v4156, 4294901760
          %4158 = vmatprep.subr.mxu0 %v4157
          %v4159 = vand.u32 %v3930, 4294901760
          %v4160 = vsub.f32 %v3930, %v4159
          %v4161 = vand.u32 %v4160, 4294901760
          %v4162 = vsub.f32 %v4160, %v4161
          %v4163 = vand.u32 %v4162, 4294901760
          %4164 = vmatpush1.msra.mxu0 %v4163
          %v4165 = vand.u32 %v3933, 4294901760
          %v4166 = vsub.f32 %v3933, %v4165
          %v4167 = vand.u32 %v4166, 4294901760
          %v4168 = vsub.f32 %v4166, %v4167
          %v4169 = vand.u32 %v4168, 4294901760
          %4170 = vmatprep.subr.mxu0 %v4169
          %v4171 = vand.u32 %v3932, 4294901760
          %v4172 = vsub.f32 %v3932, %v4171
          %v4173 = vand.u32 %v4172, 4294901760
          %v4174 = vsub.f32 %v4172, %v4173
          %v4175 = vand.u32 %v4174, 4294901760
          %4176 = vmatpush1.msra.mxu0 %v4175
          %v4177 = vand.u32 %v3935, 4294901760
          %v4178 = vsub.f32 %v3935, %v4177
          %v4179 = vand.u32 %v4178, 4294901760
          %v4180 = vsub.f32 %v4178, %v4179
          %v4181 = vand.u32 %v4180, 4294901760
          %4182 = vmatprep.subr.mxu0 %v4181
          %v4183 = vand.u32 %v3934, 4294901760
          %v4184 = vsub.f32 %v3934, %v4183
          %v4185 = vand.u32 %v4184, 4294901760
          %v4186 = vsub.f32 %v4184, %v4185
          %v4187 = vand.u32 %v4186, 4294901760
          %4188 = vmatpush1.msra.mxu0 %v4187
          %v4189 = vand.u32 %v3937, 4294901760
          %v4190 = vsub.f32 %v3937, %v4189
          %v4191 = vand.u32 %v4190, 4294901760
          %v4192 = vsub.f32 %v4190, %v4191
          %v4193 = vand.u32 %v4192, 4294901760
          %4194 = vmatprep.subr.mxu0 %v4193
          %v4195 = vand.u32 %v3936, 4294901760
          %v4196 = vsub.f32 %v3936, %v4195
          %v4197 = vand.u32 %v4196, 4294901760
          %v4198 = vsub.f32 %v4196, %v4197
          %v4199 = vand.u32 %v4198, 4294901760
          %4200 = vmatpush1.msra.mxu0 %v4199
          %v4201 = vand.u32 %v3939, 4294901760
          %v4202 = vsub.f32 %v3939, %v4201
          %v4203 = vand.u32 %v4202, 4294901760
          %v4204 = vsub.f32 %v4202, %v4203
          %v4205 = vand.u32 %v4204, 4294901760
          %4206 = vmatprep.subr.mxu0 %v4205
          %v4207 = vand.u32 %v3938, 4294901760
          %v4208 = vsub.f32 %v3938, %v4207
          %v4209 = vand.u32 %v4208, 4294901760
          %v4210 = vsub.f32 %v4208, %v4209
          %v4211 = vand.u32 %v4210, 4294901760
          %4212 = vmatpush1.msra.mxu0 %v4211
          %v4213 = vand.u32 %v3941, 4294901760
          %v4214 = vsub.f32 %v3941, %v4213
          %v4215 = vand.u32 %v4214, 4294901760
          %v4216 = vsub.f32 %v4214, %v4215
          %v4217 = vand.u32 %v4216, 4294901760
          %4218 = vmatprep.subr.mxu0 %v4217
          %v4219 = vand.u32 %v3940, 4294901760
          %v4220 = vsub.f32 %v3940, %v4219
          %v4221 = vand.u32 %v4220, 4294901760
          %v4222 = vsub.f32 %v4220, %v4221
          %v4223 = vand.u32 %v4222, 4294901760
          %4224 = vmatpush1.msra.mxu0 %v4223
          %v4225 = vand.u32 %v3943, 4294901760
          %v4226 = vsub.f32 %v3943, %v4225
          %v4227 = vand.u32 %v4226, 4294901760
          %v4228 = vsub.f32 %v4226, %v4227
          %v4229 = vand.u32 %v4228, 4294901760
          %4230 = vmatprep.subr.mxu0 %v4229
          %v4231 = vand.u32 %v3942, 4294901760
          %v4232 = vsub.f32 %v3942, %v4231
          %v4233 = vand.u32 %v4232, 4294901760
          %v4234 = vsub.f32 %v4232, %v4233
          %v4235 = vand.u32 %v4234, 4294901760
          %4236 = vmatpush1.msra.mxu0 %v4235
          %v4237 = vand.u32 %v3945, 4294901760
          %v4238 = vsub.f32 %v3945, %v4237
          %v4239 = vand.u32 %v4238, 4294901760
          %v4240 = vsub.f32 %v4238, %v4239
          %v4241 = vand.u32 %v4240, 4294901760
          %4242 = vmatprep.subr.mxu0 %v4241
          %v4243 = vand.u32 %v3944, 4294901760
          %v4244 = vsub.f32 %v3944, %v4243
          %v4245 = vand.u32 %v4244, 4294901760
          %v4246 = vsub.f32 %v4244, %v4245
          %v4247 = vand.u32 %v4246, 4294901760
          %4248 = vmatpush1.msra.mxu0 %v4247
          %v4249 = vand.u32 %v3947, 4294901760
          %v4250 = vsub.f32 %v3947, %v4249
          %v4251 = vand.u32 %v4250, 4294901760
          %v4252 = vsub.f32 %v4250, %v4251
          %v4253 = vand.u32 %v4252, 4294901760
          %4254 = vmatprep.subr.mxu0 %v4253
          %v4255 = vand.u32 %v3946, 4294901760
          %v4256 = vsub.f32 %v3946, %v4255
          %v4257 = vand.u32 %v4256, 4294901760
          %v4258 = vsub.f32 %v4256, %v4257
          %v4259 = vand.u32 %v4258, 4294901760
          %4260 = vmatpush1.msra.mxu0 %v4259
          %v4261 = vand.u32 %v3949, 4294901760
          %v4262 = vsub.f32 %v3949, %v4261
          %v4263 = vand.u32 %v4262, 4294901760
          %v4264 = vsub.f32 %v4262, %v4263
          %v4265 = vand.u32 %v4264, 4294901760
          %4266 = vmatprep.subr.mxu0 %v4265
          %v4267 = vand.u32 %v3948, 4294901760
          %v4268 = vsub.f32 %v3948, %v4267
          %v4269 = vand.u32 %v4268, 4294901760
          %v4270 = vsub.f32 %v4268, %v4269
          %v4271 = vand.u32 %v4270, 4294901760
          %4272 = vmatpush1.msra.mxu0 %v4271
          %4273 = vmatprep.subr.mxu0 0.0
          %4274 = vmatpush1.msra.mxu0 0.0
          %4275 = vmatprep.subr.mxu0 0.0
          %4276 = vmatpush1.msra.mxu0 0.0
          %4277 = vmatprep.subr.mxu0 0.0
          %4278 = vmatpush1.msra.mxu0 0.0
          %4279 = vmatprep.subr.mxu0 0.0
          %4280 = vmatpush1.msra.mxu0 0.0
          %4281 = vmatprep.subr.mxu0 0.0
          %4282 = vmatpush1.msra.mxu0 0.0
          %4283 = vmatprep.subr.mxu0 0.0
          %4284 = vmatpush1.msra.mxu0 0.0
          %4285 = vmatprep.subr.mxu0 0.0
          %4286 = vmatpush1.msra.mxu0 0.0
          %4287 = vmatprep.subr.mxu0 0.0
          %4288 = vmatpush1.msra.mxu0 0.0
          %4289 = vmatprep.subr.mxu0 0.0
          %4290 = vmatpush1.msra.mxu0 0.0
          %4291 = vmatprep.subr.mxu0 0.0
          %4292 = vmatpush1.msra.mxu0 0.0
          %4293 = vmatprep.subr.mxu0 0.0
          %4294 = vmatpush1.msra.mxu0 0.0
          %4295 = vmatprep.subr.mxu0 0.0
          %4296 = vmatpush1.msra.mxu0 0.0
          %4297 = vmatprep.subr.mxu0 0.0
          %4298 = vmatpush1.msra.mxu0 0.0
          %4299 = vmatprep.subr.mxu0 0.0
          %4300 = vmatpush1.msra.mxu0 0.0
          %4301 = vmatprep.subr.mxu0 0.0
          %4302 = vmatpush1.msra.mxu0 0.0
          %4303 = vmatprep.subr.mxu0 0.0
          %4304 = vmatpush1.msra.mxu0 0.0
          %4305 = vmatprep.mubr.f32.mxu0 0.0
          %v4306 = vand.u32 %v3909, 4294901760
          %4307 = vmatmul.mubr.f32.gmra.mrb[0].mxu0 %v4306
          %v4308 = vpop.f32.mrb[0].mxu0
          %v4309 = vadd.f32 %v4066, %v4308
          %v4310 = vpop.f32.mrb[0].mxu0
          %v4311 = vadd.f32 %v4068, %v4310
          %4312 = vmatprep.mubr.f32.mxu0 0.0
          %v4313 = vand.u32 %v3910, 4294901760
          %4314 = vmatmul.mubr.f32.gmra.mrb[0].mxu0 %v4313
          %v4315 = vpop.f32.mrb[0].mxu0
          %v4316 = vadd.f32 %v4077, %v4315
          %v4317 = vpop.f32.mrb[0].mxu0
          %v4318 = vadd.f32 %v4079, %v4317
          %4319 = vdwg.mxu0
          %v4320 = vand.u32 %v3919, 4294901760
          %v4321 = vsub.f32 %v3919, %v4320
          %4322 = vmatprep.subr.mxu0 %v4321
          %v4323 = vand.u32 %v3918, 4294901760
          %v4324 = vsub.f32 %v3918, %v4323
          %4325 = vmatpush1.msra.mxu0 %v4324
          %v4326 = vand.u32 %v3921, 4294901760
          %v4327 = vsub.f32 %v3921, %v4326
          %4328 = vmatprep.subr.mxu0 %v4327
          %v4329 = vand.u32 %v3920, 4294901760
          %v4330 = vsub.f32 %v3920, %v4329
          %4331 = vmatpush1.msra.mxu0 %v4330
          %v4332 = vand.u32 %v3923, 4294901760
          %v4333 = vsub.f32 %v3923, %v4332
          %4334 = vmatprep.subr.mxu0 %v4333
          %v4335 = vand.u32 %v3922, 4294901760
          %v4336 = vsub.f32 %v3922, %v4335
          %4337 = vmatpush1.msra.mxu0 %v4336
          %v4338 = vand.u32 %v3925, 4294901760
          %v4339 = vsub.f32 %v3925, %v4338
          %4340 = vmatprep.subr.mxu0 %v4339
          %v4341 = vand.u32 %v3924, 4294901760
          %v4342 = vsub.f32 %v3924, %v4341
          %4343 = vmatpush1.msra.mxu0 %v4342
          %v4344 = vand.u32 %v3927, 4294901760
          %v4345 = vsub.f32 %v3927, %v4344
          %4346 = vmatprep.subr.mxu0 %v4345
          %v4347 = vand.u32 %v3926, 4294901760
          %v4348 = vsub.f32 %v3926, %v4347
          %4349 = vmatpush1.msra.mxu0 %v4348
          %v4350 = vand.u32 %v3929, 4294901760
          %v4351 = vsub.f32 %v3929, %v4350
          %4352 = vmatprep.subr.mxu0 %v4351
          %v4353 = vand.u32 %v3928, 4294901760
          %v4354 = vsub.f32 %v3928, %v4353
          %4355 = vmatpush1.msra.mxu0 %v4354
          %v4356 = vand.u32 %v3931, 4294901760
          %v4357 = vsub.f32 %v3931, %v4356
          %4358 = vmatprep.subr.mxu0 %v4357
          %v4359 = vand.u32 %v3930, 4294901760
          %v4360 = vsub.f32 %v3930, %v4359
          %4361 = vmatpush1.msra.mxu0 %v4360
          %v4362 = vand.u32 %v3933, 4294901760
          %v4363 = vsub.f32 %v3933, %v4362
          %4364 = vmatprep.subr.mxu0 %v4363
          %v4365 = vand.u32 %v3932, 4294901760
          %v4366 = vsub.f32 %v3932, %v4365
          %4367 = vmatpush1.msra.mxu0 %v4366
          %v4368 = vand.u32 %v3935, 4294901760
          %v4369 = vsub.f32 %v3935, %v4368
          %4370 = vmatprep.subr.mxu0 %v4369
          %v4371 = vand.u32 %v3934, 4294901760
          %v4372 = vsub.f32 %v3934, %v4371
          %4373 = vmatpush1.msra.mxu0 %v4372
          %v4374 = vand.u32 %v3937, 4294901760
          %v4375 = vsub.f32 %v3937, %v4374
          %4376 = vmatprep.subr.mxu0 %v4375
          %v4377 = vand.u32 %v3936, 4294901760
          %v4378 = vsub.f32 %v3936, %v4377
          %4379 = vmatpush1.msra.mxu0 %v4378
          %v4380 = vand.u32 %v3939, 4294901760
          %v4381 = vsub.f32 %v3939, %v4380
          %4382 = vmatprep.subr.mxu0 %v4381
          %v4383 = vand.u32 %v3938, 4294901760
          %v4384 = vsub.f32 %v3938, %v4383
          %4385 = vmatpush1.msra.mxu0 %v4384
          %v4386 = vand.u32 %v3941, 4294901760
          %v4387 = vsub.f32 %v3941, %v4386
          %4388 = vmatprep.subr.mxu0 %v4387
          %v4389 = vand.u32 %v3940, 4294901760
          %v4390 = vsub.f32 %v3940, %v4389
          %4391 = vmatpush1.msra.mxu0 %v4390
          %v4392 = vand.u32 %v3943, 4294901760
          %v4393 = vsub.f32 %v3943, %v4392
          %4394 = vmatprep.subr.mxu0 %v4393
          %v4395 = vand.u32 %v3942, 4294901760
          %v4396 = vsub.f32 %v3942, %v4395
          %4397 = vmatpush1.msra.mxu0 %v4396
          %v4398 = vand.u32 %v3945, 4294901760
          %v4399 = vsub.f32 %v3945, %v4398
          %4400 = vmatprep.subr.mxu0 %v4399
          %v4401 = vand.u32 %v3944, 4294901760
          %v4402 = vsub.f32 %v3944, %v4401
          %4403 = vmatpush1.msra.mxu0 %v4402
          %v4404 = vand.u32 %v3947, 4294901760
          %v4405 = vsub.f32 %v3947, %v4404
          %4406 = vmatprep.subr.mxu0 %v4405
          %v4407 = vand.u32 %v3946, 4294901760
          %v4408 = vsub.f32 %v3946, %v4407
          %4409 = vmatpush1.msra.mxu0 %v4408
          %v4410 = vand.u32 %v3949, 4294901760
          %v4411 = vsub.f32 %v3949, %v4410
          %4412 = vmatprep.subr.mxu0 %v4411
          %v4413 = vand.u32 %v3948, 4294901760
          %v4414 = vsub.f32 %v3948, %v4413
          %4415 = vmatpush1.msra.mxu0 %v4414
          %4416 = vmatprep.subr.mxu0 0.0
          %4417 = vmatpush1.msra.mxu0 0.0
          %4418 = vmatprep.subr.mxu0 0.0
          %4419 = vmatpush1.msra.mxu0 0.0
          %4420 = vmatprep.subr.mxu0 0.0
          %4421 = vmatpush1.msra.mxu0 0.0
          %4422 = vmatprep.subr.mxu0 0.0
          %4423 = vmatpush1.msra.mxu0 0.0
          %4424 = vmatprep.subr.mxu0 0.0
          %4425 = vmatpush1.msra.mxu0 0.0
          %4426 = vmatprep.subr.mxu0 0.0
          %4427 = vmatpush1.msra.mxu0 0.0
          %4428 = vmatprep.subr.mxu0 0.0
          %4429 = vmatpush1.msra.mxu0 0.0
          %4430 = vmatprep.subr.mxu0 0.0
          %4431 = vmatpush1.msra.mxu0 0.0
          %4432 = vmatprep.subr.mxu0 0.0
          %4433 = vmatpush1.msra.mxu0 0.0
          %4434 = vmatprep.subr.mxu0 0.0
          %4435 = vmatpush1.msra.mxu0 0.0
          %4436 = vmatprep.subr.mxu0 0.0
          %4437 = vmatpush1.msra.mxu0 0.0
          %4438 = vmatprep.subr.mxu0 0.0
          %4439 = vmatpush1.msra.mxu0 0.0
          %4440 = vmatprep.subr.mxu0 0.0
          %4441 = vmatpush1.msra.mxu0 0.0
          %4442 = vmatprep.subr.mxu0 0.0
          %4443 = vmatpush1.msra.mxu0 0.0
          %4444 = vmatprep.subr.mxu0 0.0
          %4445 = vmatpush1.msra.mxu0 0.0
          %4446 = vmatprep.subr.mxu0 0.0
          %4447 = vmatpush1.msra.mxu0 0.0
          %4448 = vmatprep.mubr.f32.mxu0 0.0
          %v4449 = vand.u32 %v3909, 4294901760
          %v4450 = vsub.f32 %v3909, %v4449
          %4451 = vmatmul.mubr.f32.gmra.mrb[0].mxu0 %v4450
          %v4452 = vpop.f32.mrb[0].mxu0
          %v4453 = vadd.f32 %v4309, %v4452
          %v4454 = vpop.f32.mrb[0].mxu0
          %v4455 = vadd.f32 %v4311, %v4454
          %4456 = vmatprep.mubr.f32.mxu0 0.0
          %v4457 = vand.u32 %v3910, 4294901760
          %v4458 = vsub.f32 %v3910, %v4457
          %4459 = vmatmul.mubr.f32.gmra.mrb[0].mxu0 %v4458
          %v4460 = vpop.f32.mrb[0].mxu0
          %v4461 = vadd.f32 %v4316, %v4460
          %v4462 = vpop.f32.mrb[0].mxu0
          %v4463 = vadd.f32 %v4318, %v4462
          %4464 = vdwg.mxu0
          %v4465 = vand.u32 %v3919, 4294901760
          %4466 = vmatprep.subr.mxu0 %v4465
          %v4467 = vand.u32 %v3918, 4294901760
          %4468 = vmatpush1.msra.mxu0 %v4467
          %v4469 = vand.u32 %v3921, 4294901760
          %4470 = vmatprep.subr.mxu0 %v4469
          %v4471 = vand.u32 %v3920, 4294901760
          %4472 = vmatpush1.msra.mxu0 %v4471
          %v4473 = vand.u32 %v3923, 4294901760
          %4474 = vmatprep.subr.mxu0 %v4473
          %v4475 = vand.u32 %v3922, 4294901760
          %4476 = vmatpush1.msra.mxu0 %v4475
          %v4477 = vand.u32 %v3925, 4294901760
          %4478 = vmatprep.subr.mxu0 %v4477
          %v4479 = vand.u32 %v3924, 4294901760
          %4480 = vmatpush1.msra.mxu0 %v4479
          %v4481 = vand.u32 %v3927, 4294901760
          %4482 = vmatprep.subr.mxu0 %v4481
          %v4483 = vand.u32 %v3926, 4294901760
          %4484 = vmatpush1.msra.mxu0 %v4483
          %v4485 = vand.u32 %v3929, 4294901760
          %4486 = vmatprep.subr.mxu0 %v4485
          %v4487 = vand.u32 %v3928, 4294901760
          %4488 = vmatpush1.msra.mxu0 %v4487
          %v4489 = vand.u32 %v3931, 4294901760
          %4490 = vmatprep.subr.mxu0 %v4489
          %v4491 = vand.u32 %v3930, 4294901760
          %4492 = vmatpush1.msra.mxu0 %v4491
          %v4493 = vand.u32 %v3933, 4294901760
          %4494 = vmatprep.subr.mxu0 %v4493
          %v4495 = vand.u32 %v3932, 4294901760
          %4496 = vmatpush1.msra.mxu0 %v4495
          %v4497 = vand.u32 %v3935, 4294901760
          %4498 = vmatprep.subr.mxu0 %v4497
          %v4499 = vand.u32 %v3934, 4294901760
          %4500 = vmatpush1.msra.mxu0 %v4499
          %v4501 = vand.u32 %v3937, 4294901760
          %4502 = vmatprep.subr.mxu0 %v4501
          %v4503 = vand.u32 %v3936, 4294901760
          %4504 = vmatpush1.msra.mxu0 %v4503
          %v4505 = vand.u32 %v3939, 4294901760
          %4506 = vmatprep.subr.mxu0 %v4505
          %v4507 = vand.u32 %v3938, 4294901760
          %4508 = vmatpush1.msra.mxu0 %v4507
          %v4509 = vand.u32 %v3941, 4294901760
          %4510 = vmatprep.subr.mxu0 %v4509
          %v4511 = vand.u32 %v3940, 4294901760
          %4512 = vmatpush1.msra.mxu0 %v4511
          %v4513 = vand.u32 %v3943, 4294901760
          %4514 = vmatprep.subr.mxu0 %v4513
          %v4515 = vand.u32 %v3942, 4294901760
          %4516 = vmatpush1.msra.mxu0 %v4515
          %v4517 = vand.u32 %v3945, 4294901760
          %4518 = vmatprep.subr.mxu0 %v4517
          %v4519 = vand.u32 %v3944, 4294901760
          %4520 = vmatpush1.msra.mxu0 %v4519
          %v4521 = vand.u32 %v3947, 4294901760
          %4522 = vmatprep.subr.mxu0 %v4521
          %v4523 = vand.u32 %v3946, 4294901760
          %4524 = vmatpush1.msra.mxu0 %v4523
          %v4525 = vand.u32 %v3949, 4294901760
          %4526 = vmatprep.subr.mxu0 %v4525
          %v4527 = vand.u32 %v3948, 4294901760
          %4528 = vmatpush1.msra.mxu0 %v4527
          %4529 = vmatprep.subr.mxu0 0.0
          %4530 = vmatpush1.msra.mxu0 0.0
          %4531 = vmatprep.subr.mxu0 0.0
          %4532 = vmatpush1.msra.mxu0 0.0
          %4533 = vmatprep.subr.mxu0 0.0
          %4534 = vmatpush1.msra.mxu0 0.0
          %4535 = vmatprep.subr.mxu0 0.0
          %4536 = vmatpush1.msra.mxu0 0.0
          %4537 = vmatprep.subr.mxu0 0.0
          %4538 = vmatpush1.msra.mxu0 0.0
          %4539 = vmatprep.subr.mxu0 0.0
          %4540 = vmatpush1.msra.mxu0 0.0
          %4541 = vmatprep.subr.mxu0 0.0
          %4542 = vmatpush1.msra.mxu0 0.0
          %4543 = vmatprep.subr.mxu0 0.0
          %4544 = vmatpush1.msra.mxu0 0.0
          %4545 = vmatprep.subr.mxu0 0.0
          %4546 = vmatpush1.msra.mxu0 0.0
          %4547 = vmatprep.subr.mxu0 0.0
          %4548 = vmatpush1.msra.mxu0 0.0
          %4549 = vmatprep.subr.mxu0 0.0
          %4550 = vmatpush1.msra.mxu0 0.0
          %4551 = vmatprep.subr.mxu0 0.0
          %4552 = vmatpush1.msra.mxu0 0.0
          %4553 = vmatprep.subr.mxu0 0.0
          %4554 = vmatpush1.msra.mxu0 0.0
          %4555 = vmatprep.subr.mxu0 0.0
          %4556 = vmatpush1.msra.mxu0 0.0
          %4557 = vmatprep.subr.mxu0 0.0
          %4558 = vmatpush1.msra.mxu0 0.0
          %4559 = vmatprep.subr.mxu0 0.0
          %4560 = vmatpush1.msra.mxu0 0.0
          %4561 = vmatprep.mubr.f32.mxu0 0.0
          %v4562 = vand.u32 %v3909, 4294901760
          %v4563 = vsub.f32 %v3909, %v4562
          %v4564 = vand.u32 %v4563, 4294901760
          %4565 = vmatmul.mubr.f32.gmra.mrb[0].mxu0 %v4564
          %v4566 = vpop.f32.mrb[0].mxu0
          %v4567 = vadd.f32 %v4453, %v4566
          %v4568 = vpop.f32.mrb[0].mxu0
          %v4569 = vadd.f32 %v4455, %v4568
          %4570 = vmatprep.mubr.f32.mxu0 0.0
          %v4571 = vand.u32 %v3910, 4294901760
          %v4572 = vsub.f32 %v3910, %v4571
          %v4573 = vand.u32 %v4572, 4294901760
          %4574 = vmatmul.mubr.f32.gmra.mrb[0].mxu0 %v4573
          %v4575 = vpop.f32.mrb[0].mxu0
          %v4576 = vadd.f32 %v4461, %v4575
          %v4577 = vpop.f32.mrb[0].mxu0
          %v4578 = vadd.f32 %v4463, %v4577
          %4579 = vdwg.mxu0
          %v4580 = vand.u32 %v3919, 4294901760
          %v4581 = vsub.f32 %v3919, %v4580
          %v4582 = vand.u32 %v4581, 4294901760
          %4583 = vmatprep.subr.mxu0 %v4582
          %v4584 = vand.u32 %v3918, 4294901760
          %v4585 = vsub.f32 %v3918, %v4584
          %v4586 = vand.u32 %v4585, 4294901760
          %4587 = vmatpush1.msra.mxu0 %v4586
          %v4588 = vand.u32 %v3921, 4294901760
          %v4589 = vsub.f32 %v3921, %v4588
          %v4590 = vand.u32 %v4589, 4294901760
          %4591 = vmatprep.subr.mxu0 %v4590
          %v4592 = vand.u32 %v3920, 4294901760
          %v4593 = vsub.f32 %v3920, %v4592
          %v4594 = vand.u32 %v4593, 4294901760
          %4595 = vmatpush1.msra.mxu0 %v4594
          %v4596 = vand.u32 %v3923, 4294901760
          %v4597 = vsub.f32 %v3923, %v4596
          %v4598 = vand.u32 %v4597, 4294901760
          %4599 = vmatprep.subr.mxu0 %v4598
          %v4600 = vand.u32 %v3922, 4294901760
          %v4601 = vsub.f32 %v3922, %v4600
          %v4602 = vand.u32 %v4601, 4294901760
          %4603 = vmatpush1.msra.mxu0 %v4602
          %v4604 = vand.u32 %v3925, 4294901760
          %v4605 = vsub.f32 %v3925, %v4604
          %v4606 = vand.u32 %v4605, 4294901760
          %4607 = vmatprep.subr.mxu0 %v4606
          %v4608 = vand.u32 %v3924, 4294901760
          %v4609 = vsub.f32 %v3924, %v4608
          %v4610 = vand.u32 %v4609, 4294901760
          %4611 = vmatpush1.msra.mxu0 %v4610
          %v4612 = vand.u32 %v3927, 4294901760
          %v4613 = vsub.f32 %v3927, %v4612
          %v4614 = vand.u32 %v4613, 4294901760
          %4615 = vmatprep.subr.mxu0 %v4614
          %v4616 = vand.u32 %v3926, 4294901760
          %v4617 = vsub.f32 %v3926, %v4616
          %v4618 = vand.u32 %v4617, 4294901760
          %4619 = vmatpush1.msra.mxu0 %v4618
          %v4620 = vand.u32 %v3929, 4294901760
          %v4621 = vsub.f32 %v3929, %v4620
          %v4622 = vand.u32 %v4621, 4294901760
          %4623 = vmatprep.subr.mxu0 %v4622
          %v4624 = vand.u32 %v3928, 4294901760
          %v4625 = vsub.f32 %v3928, %v4624
          %v4626 = vand.u32 %v4625, 4294901760
          %4627 = vmatpush1.msra.mxu0 %v4626
          %v4628 = vand.u32 %v3931, 4294901760
          %v4629 = vsub.f32 %v3931, %v4628
          %v4630 = vand.u32 %v4629, 4294901760
          %4631 = vmatprep.subr.mxu0 %v4630
          %v4632 = vand.u32 %v3930, 4294901760
          %v4633 = vsub.f32 %v3930, %v4632
          %v4634 = vand.u32 %v4633, 4294901760
          %4635 = vmatpush1.msra.mxu0 %v4634
          %v4636 = vand.u32 %v3933, 4294901760
          %v4637 = vsub.f32 %v3933, %v4636
          %v4638 = vand.u32 %v4637, 4294901760
          %4639 = vmatprep.subr.mxu0 %v4638
          %v4640 = vand.u32 %v3932, 4294901760
          %v4641 = vsub.f32 %v3932, %v4640
          %v4642 = vand.u32 %v4641, 4294901760
          %4643 = vmatpush1.msra.mxu0 %v4642
          %v4644 = vand.u32 %v3935, 4294901760
          %v4645 = vsub.f32 %v3935, %v4644
          %v4646 = vand.u32 %v4645, 4294901760
          %4647 = vmatprep.subr.mxu0 %v4646
          %v4648 = vand.u32 %v3934, 4294901760
          %v4649 = vsub.f32 %v3934, %v4648
          %v4650 = vand.u32 %v4649, 4294901760
          %4651 = vmatpush1.msra.mxu0 %v4650
          %v4652 = vand.u32 %v3937, 4294901760
          %v4653 = vsub.f32 %v3937, %v4652
          %v4654 = vand.u32 %v4653, 4294901760
          %4655 = vmatprep.subr.mxu0 %v4654
          %v4656 = vand.u32 %v3936, 4294901760
          %v4657 = vsub.f32 %v3936, %v4656
          %v4658 = vand.u32 %v4657, 4294901760
          %4659 = vmatpush1.msra.mxu0 %v4658
          %v4660 = vand.u32 %v3939, 4294901760
          %v4661 = vsub.f32 %v3939, %v4660
          %v4662 = vand.u32 %v4661, 4294901760
          %4663 = vmatprep.subr.mxu0 %v4662
          %v4664 = vand.u32 %v3938, 4294901760
          %v4665 = vsub.f32 %v3938, %v4664
          %v4666 = vand.u32 %v4665, 4294901760
          %4667 = vmatpush1.msra.mxu0 %v4666
          %v4668 = vand.u32 %v3941, 4294901760
          %v4669 = vsub.f32 %v3941, %v4668
          %v4670 = vand.u32 %v4669, 4294901760
          %4671 = vmatprep.subr.mxu0 %v4670
          %v4672 = vand.u32 %v3940, 4294901760
          %v4673 = vsub.f32 %v3940, %v4672
          %v4674 = vand.u32 %v4673, 4294901760
          %4675 = vmatpush1.msra.mxu0 %v4674
          %v4676 = vand.u32 %v3943, 4294901760
          %v4677 = vsub.f32 %v3943, %v4676
          %v4678 = vand.u32 %v4677, 4294901760
          %4679 = vmatprep.subr.mxu0 %v4678
          %v4680 = vand.u32 %v3942, 4294901760
          %v4681 = vsub.f32 %v3942, %v4680
          %v4682 = vand.u32 %v4681, 4294901760
          %4683 = vmatpush1.msra.mxu0 %v4682
          %v4684 = vand.u32 %v3945, 4294901760
          %v4685 = vsub.f32 %v3945, %v4684
          %v4686 = vand.u32 %v4685, 4294901760
          %4687 = vmatprep.subr.mxu0 %v4686
          %v4688 = vand.u32 %v3944, 4294901760
          %v4689 = vsub.f32 %v3944, %v4688
          %v4690 = vand.u32 %v4689, 4294901760
          %4691 = vmatpush1.msra.mxu0 %v4690
          %v4692 = vand.u32 %v3947, 4294901760
          %v4693 = vsub.f32 %v3947, %v4692
          %v4694 = vand.u32 %v4693, 4294901760
          %4695 = vmatprep.subr.mxu0 %v4694
          %v4696 = vand.u32 %v3946, 4294901760
          %v4697 = vsub.f32 %v3946, %v4696
          %v4698 = vand.u32 %v4697, 4294901760
          %4699 = vmatpush1.msra.mxu0 %v4698
          %v4700 = vand.u32 %v3949, 4294901760
          %v4701 = vsub.f32 %v3949, %v4700
          %v4702 = vand.u32 %v4701, 4294901760
          %4703 = vmatprep.subr.mxu0 %v4702
          %v4704 = vand.u32 %v3948, 4294901760
          %v4705 = vsub.f32 %v3948, %v4704
          %v4706 = vand.u32 %v4705, 4294901760
          %4707 = vmatpush1.msra.mxu0 %v4706
          %4708 = vmatprep.subr.mxu0 0.0
          %4709 = vmatpush1.msra.mxu0 0.0
          %4710 = vmatprep.subr.mxu0 0.0
          %4711 = vmatpush1.msra.mxu0 0.0
          %4712 = vmatprep.subr.mxu0 0.0
          %4713 = vmatpush1.msra.mxu0 0.0
          %4714 = vmatprep.subr.mxu0 0.0
          %4715 = vmatpush1.msra.mxu0 0.0
          %4716 = vmatprep.subr.mxu0 0.0
          %4717 = vmatpush1.msra.mxu0 0.0
          %4718 = vmatprep.subr.mxu0 0.0
          %4719 = vmatpush1.msra.mxu0 0.0
          %4720 = vmatprep.subr.mxu0 0.0
          %4721 = vmatpush1.msra.mxu0 0.0
          %4722 = vmatprep.subr.mxu0 0.0
          %4723 = vmatpush1.msra.mxu0 0.0
          %4724 = vmatprep.subr.mxu0 0.0
          %4725 = vmatpush1.msra.mxu0 0.0
          %4726 = vmatprep.subr.mxu0 0.0
          %4727 = vmatpush1.msra.mxu0 0.0
          %4728 = vmatprep.subr.mxu0 0.0
          %4729 = vmatpush1.msra.mxu0 0.0
          %4730 = vmatprep.subr.mxu0 0.0
          %4731 = vmatpush1.msra.mxu0 0.0
          %4732 = vmatprep.subr.mxu0 0.0
          %4733 = vmatpush1.msra.mxu0 0.0
          %4734 = vmatprep.subr.mxu0 0.0
          %4735 = vmatpush1.msra.mxu0 0.0
          %4736 = vmatprep.subr.mxu0 0.0
          %4737 = vmatpush1.msra.mxu0 0.0
          %4738 = vmatprep.subr.mxu0 0.0
          %4739 = vmatpush1.msra.mxu0 0.0
          %4740 = vmatprep.mubr.f32.mxu0 0.0
          %v4741 = vand.u32 %v3909, 4294901760
          %4742 = vmatmul.mubr.f32.gmra.mrb[0].mxu0 %v4741
          %v4743 = vpop.f32.mrb[0].mxu0
          %v4744 = vadd.f32 %v4567, %v4743
          %v4745 = vpop.f32.mrb[0].mxu0
          %v4746 = vadd.f32 %v4569, %v4745
          %4747 = vmatprep.mubr.f32.mxu0 0.0
          %v4748 = vand.u32 %v3910, 4294901760
          %4749 = vmatmul.mubr.f32.gmra.mrb[0].mxu0 %v4748
          %v4750 = vpop.f32.mrb[0].mxu0
          %v4751 = vadd.f32 %v4576, %v4750
          %v4752 = vpop.f32.mrb[0].mxu0
          %v4753 = vadd.f32 %v4578, %v4752
          %4754 = vdwg.mxu0
          %v4755 = vand.u32 %v3919, 4294901760
          %4756 = vmatprep.subr.mxu0 %v4755
          %v4757 = vand.u32 %v3918, 4294901760
          %4758 = vmatpush1.msra.mxu0 %v4757
          %v4759 = vand.u32 %v3921, 4294901760
          %4760 = vmatprep.subr.mxu0 %v4759
          %v4761 = vand.u32 %v3920, 4294901760
          %4762 = vmatpush1.msra.mxu0 %v4761
          %v4763 = vand.u32 %v3923, 4294901760
          %4764 = vmatprep.subr.mxu0 %v4763
          %v4765 = vand.u32 %v3922, 4294901760
          %4766 = vmatpush1.msra.mxu0 %v4765
          %v4767 = vand.u32 %v3925, 4294901760
          %4768 = vmatprep.subr.mxu0 %v4767
          %v4769 = vand.u32 %v3924, 4294901760
          %4770 = vmatpush1.msra.mxu0 %v4769
          %v4771 = vand.u32 %v3927, 4294901760
          %4772 = vmatprep.subr.mxu0 %v4771
          %v4773 = vand.u32 %v3926, 4294901760
          %4774 = vmatpush1.msra.mxu0 %v4773
          %v4775 = vand.u32 %v3929, 4294901760
          %4776 = vmatprep.subr.mxu0 %v4775
          %v4777 = vand.u32 %v3928, 4294901760
          %4778 = vmatpush1.msra.mxu0 %v4777
          %v4779 = vand.u32 %v3931, 4294901760
          %4780 = vmatprep.subr.mxu0 %v4779
          %v4781 = vand.u32 %v3930, 4294901760
          %4782 = vmatpush1.msra.mxu0 %v4781
          %v4783 = vand.u32 %v3933, 4294901760
          %4784 = vmatprep.subr.mxu0 %v4783
          %v4785 = vand.u32 %v3932, 4294901760
          %4786 = vmatpush1.msra.mxu0 %v4785
          %v4787 = vand.u32 %v3935, 4294901760
          %4788 = vmatprep.subr.mxu0 %v4787
          %v4789 = vand.u32 %v3934, 4294901760
          %4790 = vmatpush1.msra.mxu0 %v4789
          %v4791 = vand.u32 %v3937, 4294901760
          %4792 = vmatprep.subr.mxu0 %v4791
          %v4793 = vand.u32 %v3936, 4294901760
          %4794 = vmatpush1.msra.mxu0 %v4793
          %v4795 = vand.u32 %v3939, 4294901760
          %4796 = vmatprep.subr.mxu0 %v4795
          %v4797 = vand.u32 %v3938, 4294901760
          %4798 = vmatpush1.msra.mxu0 %v4797
          %v4799 = vand.u32 %v3941, 4294901760
          %4800 = vmatprep.subr.mxu0 %v4799
          %v4801 = vand.u32 %v3940, 4294901760
          %4802 = vmatpush1.msra.mxu0 %v4801
          %v4803 = vand.u32 %v3943, 4294901760
          %4804 = vmatprep.subr.mxu0 %v4803
          %v4805 = vand.u32 %v3942, 4294901760
          %4806 = vmatpush1.msra.mxu0 %v4805
          %v4807 = vand.u32 %v3945, 4294901760
          %4808 = vmatprep.subr.mxu0 %v4807
          %v4809 = vand.u32 %v3944, 4294901760
          %4810 = vmatpush1.msra.mxu0 %v4809
          %v4811 = vand.u32 %v3947, 4294901760
          %4812 = vmatprep.subr.mxu0 %v4811
          %v4813 = vand.u32 %v3946, 4294901760
          %4814 = vmatpush1.msra.mxu0 %v4813
          %v4815 = vand.u32 %v3949, 4294901760
          %4816 = vmatprep.subr.mxu0 %v4815
          %v4817 = vand.u32 %v3948, 4294901760
          %4818 = vmatpush1.msra.mxu0 %v4817
          %4819 = vmatprep.subr.mxu0 0.0
          %4820 = vmatpush1.msra.mxu0 0.0
          %4821 = vmatprep.subr.mxu0 0.0
          %4822 = vmatpush1.msra.mxu0 0.0
          %4823 = vmatprep.subr.mxu0 0.0
          %4824 = vmatpush1.msra.mxu0 0.0
          %4825 = vmatprep.subr.mxu0 0.0
          %4826 = vmatpush1.msra.mxu0 0.0
          %4827 = vmatprep.subr.mxu0 0.0
          %4828 = vmatpush1.msra.mxu0 0.0
          %4829 = vmatprep.subr.mxu0 0.0
          %4830 = vmatpush1.msra.mxu0 0.0
          %4831 = vmatprep.subr.mxu0 0.0
          %4832 = vmatpush1.msra.mxu0 0.0
          %4833 = vmatprep.subr.mxu0 0.0
          %4834 = vmatpush1.msra.mxu0 0.0
          %4835 = vmatprep.subr.mxu0 0.0
          %4836 = vmatpush1.msra.mxu0 0.0
          %4837 = vmatprep.subr.mxu0 0.0
          %4838 = vmatpush1.msra.mxu0 0.0
          %4839 = vmatprep.subr.mxu0 0.0
          %4840 = vmatpush1.msra.mxu0 0.0
          %4841 = vmatprep.subr.mxu0 0.0
          %4842 = vmatpush1.msra.mxu0 0.0
          %4843 = vmatprep.subr.mxu0 0.0
          %4844 = vmatpush1.msra.mxu0 0.0
          %4845 = vmatprep.subr.mxu0 0.0
          %4846 = vmatpush1.msra.mxu0 0.0
          %4847 = vmatprep.subr.mxu0 0.0
          %4848 = vmatpush1.msra.mxu0 0.0
          %4849 = vmatprep.subr.mxu0 0.0
          %4850 = vmatpush1.msra.mxu0 0.0
          %4851 = vmatprep.mubr.f32.mxu0 0.0
          %v4852 = vand.u32 %v3909, 4294901760
          %4853 = vmatmul.mubr.f32.gmra.mrb[0].mxu0 %v4852
          %v4854 = vpop.f32.mrb[0].mxu0
          %v4855 = vadd.f32 %v4744, %v4854
          %v4856 = vpop.f32.mrb[0].mxu0
          %v4857 = vadd.f32 %v4746, %v4856
          %4858 = vmatprep.mubr.f32.mxu0 0.0
          %v4859 = vand.u32 %v3910, 4294901760
          %4860 = vmatmul.mubr.f32.gmra.mrb[0].mxu0 %v4859
          %v4861 = vpop.f32.mrb[0].mxu0
          %v4862 = vadd.f32 %v4751, %v4861
          %v4863 = vpop.f32.mrb[0].mxu0
          %v4864 = vadd.f32 %v4753, %v4863
          %4865 = vdwg.mxu0
          %v4866 = vmul.f32 %v4855, %v501
          %v4867 = vmul.f32 %v4862, %v502
          %4868 = vrot.lane.b32.xlu0 %v4855, 112
          %v4869 = vpop.permute.xlu0 %4868
          %4870 = vrot.lane.b32.xlu0 %v4862, 112
          %v4871 = vpop.permute.xlu0 %4870
          %v4872 = vmul.f32 %v4869, %v503
          %v4873 = vmul.f32 %v4871, %v504
          %v4874 = vadd.f32 %v4866, %v4872
          %v4875 = vadd.f32 %v4867, %v4873
          %4876 = vrot.lane.b32.xlu0 %v4855, 16
          %v4877 = vpop.permute.xlu0 %4876
          %4878 = vrot.lane.b32.xlu0 %v4862, 16
          %v4879 = vpop.permute.xlu0 %4878
          %v4880 = vmul.f32 %v4877, %v505
          %v4881 = vmul.f32 %v4879, %v506
          %v4882 = vadd.f32 %v4874, %v4880
          %v4883 = vadd.f32 %v4875, %v4881
          %v4884 = vmul.f32 %v4857, %v4857
          %v4885 = vmul.f32 %v4864, %v4864
          %v4886 = vmul.f32 %v4884, %v2213
          %v4887 = vmul.f32 %v4885, %v2213
          %4888 = vadd.xlane.f32.xlu0 %v4886
          %v4889 = vpop.xlane.xlu0 %4888
          %4890 = vadd.xlane.f32.xlu0 %v4887
          %v4891 = vpop.xlane.xlu0 %4890
          %v4892 = vmul.f32 %v2213, %v4889
          %v4893 = vmul.f32 %v2213, %v4891
          %v4894 = vmul.f32 %v4884, %v2225
          %v4895 = vmul.f32 %v4885, %v2225
          %4896 = vadd.xlane.f32.xlu0 %v4894
          %v4897 = vpop.xlane.xlu0 %4896
          %4898 = vadd.xlane.f32.xlu0 %v4895
          %v4899 = vpop.xlane.xlu0 %4898
          %v4900 = vmul.f32 %v2225, %v4897
          %v4901 = vmul.f32 %v2225, %v4899
          %v4902 = vadd.f32 %v4892, %v4900
          %v4903 = vadd.f32 %v4893, %v4901
          %v4904 = vmul.f32 %v4884, %v2239
          %v4905 = vmul.f32 %v4885, %v2239
          %4906 = vadd.xlane.f32.xlu0 %v4904
          %v4907 = vpop.xlane.xlu0 %4906
          %4908 = vadd.xlane.f32.xlu0 %v4905
          %v4909 = vpop.xlane.xlu0 %4908
          %v4910 = vmul.f32 %v2239, %v4907
          %v4911 = vmul.f32 %v2239, %v4909
          %v4912 = vadd.f32 %v4902, %v4910
          %v4913 = vadd.f32 %v4903, %v4911
          %v4914 = vmul.f32 %v4884, %v2253
          %v4915 = vmul.f32 %v4885, %v2253
          %4916 = vadd.xlane.f32.xlu0 %v4914
          %v4917 = vpop.xlane.xlu0 %4916
          %4918 = vadd.xlane.f32.xlu0 %v4915
          %v4919 = vpop.xlane.xlu0 %4918
          %v4920 = vmul.f32 %v2253, %v4917
          %v4921 = vmul.f32 %v2253, %v4919
          %v4922 = vadd.f32 %v4912, %v4920
          %v4923 = vadd.f32 %v4913, %v4921
          %v4924 = vmax.f32 %v4922, 1.1754944e-38
          %v4925 = vmax.f32 %v4923, 1.1754944e-38
          %v4926 = vrcp.pop %v4924
          %v4927 = vmul.f32 %v4884, %v4926
          %v4928 = vrcp.pop %v4925
          %v4929 = vmul.f32 %v4885, %v4928
          %v4931 = vrot.slane %v3910, 7
          %vm4933 = vcmask 1040384
          %v4934 = vsel %vm4933, %v3909, %v4931
          %v4935 = vld [vmem:[%s3] sm:$0xff]
          %v4936 = vld [vmem:[%s3 + $0x8] sm:$0xff]
          %v4937 = vld [vmem:[%s3 + $0x10] sm:$0xff]
          %v4938 = vld [vmem:[%s3 + $0x18] sm:$0xff]
          %v4939 = vld [vmem:[%s3 + $0x20] sm:$0xff]
          %v4940 = vld [vmem:[%s3 + $0x28] sm:$0xff]
          %v4941 = vld [vmem:[%s3 + $0x30] sm:$0xff]
          %v4942 = vld [vmem:[%s3 + $0x38] sm:$0xff]
          %v4943 = vld [vmem:[%s3 + $0x40] sm:$0xff]
          %v4944 = vld [vmem:[%s3 + $0x48] sm:$0xff]
          %v4945 = vld [vmem:[%s3 + $0x50] sm:$0xff]
          %v4946 = vld [vmem:[%s3 + $0x58] sm:$0xff]
          %v4947 = vld [vmem:[%s3 + $0x60] sm:$0xff]
          %v4948 = vld [vmem:[%s3 + $0x68] sm:$0xff]
          %v4949 = vld [vmem:[%s3 + $0x70] sm:$0xff]
          %v4950 = vld [vmem:[%s3 + $0x78] sm:$0xff]
          %v4951 = vld [vmem:[%s4] sm:$0x1]
          %v4953 = vlaneseq
          %v4954 = vshrl.u32 %v4953, 7
          %v4955 = vsub.s32 0, %v4954
          %v4956 = vrot.slane %v4951, %v4955
          %4958 = vmatprep.subr.mxu0 0.0
          %v4959 = vand.u32 %v4935, 4294901760
          %4960 = vmatpush1.msra.mxu0 %v4959
          %4961 = vmatprep.subr.mxu0 0.0
          %v4962 = vand.u32 %v4936, 4294901760
          %4963 = vmatpush1.msra.mxu0 %v4962
          %4964 = vmatprep.subr.mxu0 0.0
          %v4965 = vand.u32 %v4937, 4294901760
          %4966 = vmatpush1.msra.mxu0 %v4965
          %4967 = vmatprep.subr.mxu0 0.0
          %v4968 = vand.u32 %v4938, 4294901760
          %4969 = vmatpush1.msra.mxu0 %v4968
          %4970 = vmatprep.subr.mxu0 0.0
          %v4971 = vand.u32 %v4939, 4294901760
          %4972 = vmatpush1.msra.mxu0 %v4971
          %4973 = vmatprep.subr.mxu0 0.0
          %v4974 = vand.u32 %v4940, 4294901760
          %4975 = vmatpush1.msra.mxu0 %v4974
          %4976 = vmatprep.subr.mxu0 0.0
          %v4977 = vand.u32 %v4941, 4294901760
          %4978 = vmatpush1.msra.mxu0 %v4977
          %4979 = vmatprep.subr.mxu0 0.0
          %v4980 = vand.u32 %v4942, 4294901760
          %4981 = vmatpush1.msra.mxu0 %v4980
          %4982 = vmatprep.subr.mxu0 0.0
          %v4983 = vand.u32 %v4943, 4294901760
          %4984 = vmatpush1.msra.mxu0 %v4983
          %4985 = vmatprep.subr.mxu0 0.0
          %v4986 = vand.u32 %v4944, 4294901760
          %4987 = vmatpush1.msra.mxu0 %v4986
          %4988 = vmatprep.subr.mxu0 0.0
          %v4989 = vand.u32 %v4945, 4294901760
          %4990 = vmatpush1.msra.mxu0 %v4989
          %4991 = vmatprep.subr.mxu0 0.0
          %v4992 = vand.u32 %v4946, 4294901760
          %4993 = vmatpush1.msra.mxu0 %v4992
          %4994 = vmatprep.subr.mxu0 0.0
          %v4995 = vand.u32 %v4947, 4294901760
          %4996 = vmatpush1.msra.mxu0 %v4995
          %4997 = vmatprep.subr.mxu0 0.0
          %v4998 = vand.u32 %v4948, 4294901760
          %4999 = vmatpush1.msra.mxu0 %v4998
          %5000 = vmatprep.subr.mxu0 0.0
          %v5001 = vand.u32 %v4949, 4294901760
          %5002 = vmatpush1.msra.mxu0 %v5001
          %5003 = vmatprep.subr.mxu0 0.0
          %v5004 = vand.u32 %v4950, 4294901760
          %5005 = vmatpush1.msra.mxu0 %v5004
          %5006 = vmatprep.subr.mxu0 0.0
          %5007 = vmatpush1.msra.mxu0 0.0
          %5008 = vmatprep.subr.mxu0 0.0
          %5009 = vmatpush1.msra.mxu0 0.0
          %5010 = vmatprep.subr.mxu0 0.0
          %5011 = vmatpush1.msra.mxu0 0.0
          %5012 = vmatprep.subr.mxu0 0.0
          %5013 = vmatpush1.msra.mxu0 0.0
          %5014 = vmatprep.subr.mxu0 0.0
          %5015 = vmatpush1.msra.mxu0 0.0
          %5016 = vmatprep.subr.mxu0 0.0
          %5017 = vmatpush1.msra.mxu0 0.0
          %5018 = vmatprep.subr.mxu0 0.0
          %5019 = vmatpush1.msra.mxu0 0.0
          %5020 = vmatprep.subr.mxu0 0.0
          %5021 = vmatpush1.msra.mxu0 0.0
          %5022 = vmatprep.subr.mxu0 0.0
          %5023 = vmatpush1.msra.mxu0 0.0
          %5024 = vmatprep.subr.mxu0 0.0
          %5025 = vmatpush1.msra.mxu0 0.0
          %5026 = vmatprep.subr.mxu0 0.0
          %5027 = vmatpush1.msra.mxu0 0.0
          %5028 = vmatprep.subr.mxu0 0.0
          %5029 = vmatpush1.msra.mxu0 0.0
          %5030 = vmatprep.subr.mxu0 0.0
          %5031 = vmatpush1.msra.mxu0 0.0
          %5032 = vmatprep.subr.mxu0 0.0
          %5033 = vmatpush1.msra.mxu0 0.0
          %5034 = vmatprep.subr.mxu0 0.0
          %5035 = vmatpush1.msra.mxu0 0.0
          %5036 = vmatprep.subr.mxu0 0.0
          %5037 = vmatpush1.msra.mxu0 0.0
          %5038 = vmatprep.mubr.f32.mxu0 0.0
          %v5039 = vand.u32 %v4934, 4294901760
          %v5040 = vsub.f32 %v4934, %v5039
          %v5041 = vand.u32 %v5040, 4294901760
          %v5042 = vsub.f32 %v5040, %v5041
          %v5043 = vand.u32 %v5042, 4294901760
          %5044 = vmatmul.mubr.f32.gmra.mrb[0].mxu0 %v5043
          %v5045 = vpop.f32.mrb[0].mxu0
          %v5046 = vadd.f32 %v4956, %v5045
          %v5047 = vpop.f32.mrb[0].mxu0
          %5048 = vdwg.mxu0
          %5049 = vmatprep.subr.mxu0 0.0
          %v5050 = vand.u32 %v4935, 4294901760
          %v5051 = vsub.f32 %v4935, %v5050
          %v5052 = vand.u32 %v5051, 4294901760
          %v5053 = vsub.f32 %v5051, %v5052
          %v5054 = vand.u32 %v5053, 4294901760
          %5055 = vmatpush1.msra.mxu0 %v5054
          %5056 = vmatprep.subr.mxu0 0.0
          %v5057 = vand.u32 %v4936, 4294901760
          %v5058 = vsub.f32 %v4936, %v5057
          %v5059 = vand.u32 %v5058, 4294901760
          %v5060 = vsub.f32 %v5058, %v5059
          %v5061 = vand.u32 %v5060, 4294901760
          %5062 = vmatpush1.msra.mxu0 %v5061
          %5063 = vmatprep.subr.mxu0 0.0
          %v5064 = vand.u32 %v4937, 4294901760
          %v5065 = vsub.f32 %v4937, %v5064
          %v5066 = vand.u32 %v5065, 4294901760
          %v5067 = vsub.f32 %v5065, %v5066
          %v5068 = vand.u32 %v5067, 4294901760
          %5069 = vmatpush1.msra.mxu0 %v5068
          %5070 = vmatprep.subr.mxu0 0.0
          %v5071 = vand.u32 %v4938, 4294901760
          %v5072 = vsub.f32 %v4938, %v5071
          %v5073 = vand.u32 %v5072, 4294901760
          %v5074 = vsub.f32 %v5072, %v5073
          %v5075 = vand.u32 %v5074, 4294901760
          %5076 = vmatpush1.msra.mxu0 %v5075
          %5077 = vmatprep.subr.mxu0 0.0
          %v5078 = vand.u32 %v4939, 4294901760
          %v5079 = vsub.f32 %v4939, %v5078
          %v5080 = vand.u32 %v5079, 4294901760
          %v5081 = vsub.f32 %v5079, %v5080
          %v5082 = vand.u32 %v5081, 4294901760
          %5083 = vmatpush1.msra.mxu0 %v5082
          %5084 = vmatprep.subr.mxu0 0.0
          %v5085 = vand.u32 %v4940, 4294901760
          %v5086 = vsub.f32 %v4940, %v5085
          %v5087 = vand.u32 %v5086, 4294901760
          %v5088 = vsub.f32 %v5086, %v5087
          %v5089 = vand.u32 %v5088, 4294901760
          %5090 = vmatpush1.msra.mxu0 %v5089
          %5091 = vmatprep.subr.mxu0 0.0
          %v5092 = vand.u32 %v4941, 4294901760
          %v5093 = vsub.f32 %v4941, %v5092
          %v5094 = vand.u32 %v5093, 4294901760
          %v5095 = vsub.f32 %v5093, %v5094
          %v5096 = vand.u32 %v5095, 4294901760
          %5097 = vmatpush1.msra.mxu0 %v5096
          %5098 = vmatprep.subr.mxu0 0.0
          %v5099 = vand.u32 %v4942, 4294901760
          %v5100 = vsub.f32 %v4942, %v5099
          %v5101 = vand.u32 %v5100, 4294901760
          %v5102 = vsub.f32 %v5100, %v5101
          %v5103 = vand.u32 %v5102, 4294901760
          %5104 = vmatpush1.msra.mxu0 %v5103
          %5105 = vmatprep.subr.mxu0 0.0
          %v5106 = vand.u32 %v4943, 4294901760
          %v5107 = vsub.f32 %v4943, %v5106
          %v5108 = vand.u32 %v5107, 4294901760
          %v5109 = vsub.f32 %v5107, %v5108
          %v5110 = vand.u32 %v5109, 4294901760
          %5111 = vmatpush1.msra.mxu0 %v5110
          %5112 = vmatprep.subr.mxu0 0.0
          %v5113 = vand.u32 %v4944, 4294901760
          %v5114 = vsub.f32 %v4944, %v5113
          %v5115 = vand.u32 %v5114, 4294901760
          %v5116 = vsub.f32 %v5114, %v5115
          %v5117 = vand.u32 %v5116, 4294901760
          %5118 = vmatpush1.msra.mxu0 %v5117
          %5119 = vmatprep.subr.mxu0 0.0
          %v5120 = vand.u32 %v4945, 4294901760
          %v5121 = vsub.f32 %v4945, %v5120
          %v5122 = vand.u32 %v5121, 4294901760
          %v5123 = vsub.f32 %v5121, %v5122
          %v5124 = vand.u32 %v5123, 4294901760
          %5125 = vmatpush1.msra.mxu0 %v5124
          %5126 = vmatprep.subr.mxu0 0.0
          %v5127 = vand.u32 %v4946, 4294901760
          %v5128 = vsub.f32 %v4946, %v5127
          %v5129 = vand.u32 %v5128, 4294901760
          %v5130 = vsub.f32 %v5128, %v5129
          %v5131 = vand.u32 %v5130, 4294901760
          %5132 = vmatpush1.msra.mxu0 %v5131
          %5133 = vmatprep.subr.mxu0 0.0
          %v5134 = vand.u32 %v4947, 4294901760
          %v5135 = vsub.f32 %v4947, %v5134
          %v5136 = vand.u32 %v5135, 4294901760
          %v5137 = vsub.f32 %v5135, %v5136
          %v5138 = vand.u32 %v5137, 4294901760
          %5139 = vmatpush1.msra.mxu0 %v5138
          %5140 = vmatprep.subr.mxu0 0.0
          %v5141 = vand.u32 %v4948, 4294901760
          %v5142 = vsub.f32 %v4948, %v5141
          %v5143 = vand.u32 %v5142, 4294901760
          %v5144 = vsub.f32 %v5142, %v5143
          %v5145 = vand.u32 %v5144, 4294901760
          %5146 = vmatpush1.msra.mxu0 %v5145
          %5147 = vmatprep.subr.mxu0 0.0
          %v5148 = vand.u32 %v4949, 4294901760
          %v5149 = vsub.f32 %v4949, %v5148
          %v5150 = vand.u32 %v5149, 4294901760
          %v5151 = vsub.f32 %v5149, %v5150
          %v5152 = vand.u32 %v5151, 4294901760
          %5153 = vmatpush1.msra.mxu0 %v5152
          %5154 = vmatprep.subr.mxu0 0.0
          %v5155 = vand.u32 %v4950, 4294901760
          %v5156 = vsub.f32 %v4950, %v5155
          %v5157 = vand.u32 %v5156, 4294901760
          %v5158 = vsub.f32 %v5156, %v5157
          %v5159 = vand.u32 %v5158, 4294901760
          %5160 = vmatpush1.msra.mxu0 %v5159
          %5161 = vmatprep.subr.mxu0 0.0
          %5162 = vmatpush1.msra.mxu0 0.0
          %5163 = vmatprep.subr.mxu0 0.0
          %5164 = vmatpush1.msra.mxu0 0.0
          %5165 = vmatprep.subr.mxu0 0.0
          %5166 = vmatpush1.msra.mxu0 0.0
          %5167 = vmatprep.subr.mxu0 0.0
          %5168 = vmatpush1.msra.mxu0 0.0
          %5169 = vmatprep.subr.mxu0 0.0
          %5170 = vmatpush1.msra.mxu0 0.0
          %5171 = vmatprep.subr.mxu0 0.0
          %5172 = vmatpush1.msra.mxu0 0.0
          %5173 = vmatprep.subr.mxu0 0.0
          %5174 = vmatpush1.msra.mxu0 0.0
          %5175 = vmatprep.subr.mxu0 0.0
          %5176 = vmatpush1.msra.mxu0 0.0
          %5177 = vmatprep.subr.mxu0 0.0
          %5178 = vmatpush1.msra.mxu0 0.0
          %5179 = vmatprep.subr.mxu0 0.0
          %5180 = vmatpush1.msra.mxu0 0.0
          %5181 = vmatprep.subr.mxu0 0.0
          %5182 = vmatpush1.msra.mxu0 0.0
          %5183 = vmatprep.subr.mxu0 0.0
          %5184 = vmatpush1.msra.mxu0 0.0
          %5185 = vmatprep.subr.mxu0 0.0
          %5186 = vmatpush1.msra.mxu0 0.0
          %5187 = vmatprep.subr.mxu0 0.0
          %5188 = vmatpush1.msra.mxu0 0.0
          %5189 = vmatprep.subr.mxu0 0.0
          %5190 = vmatpush1.msra.mxu0 0.0
          %5191 = vmatprep.subr.mxu0 0.0
          %5192 = vmatpush1.msra.mxu0 0.0
          %5193 = vmatprep.mubr.f32.mxu0 0.0
          %v5194 = vand.u32 %v4934, 4294901760
          %5195 = vmatmul.mubr.f32.gmra.mrb[0].mxu0 %v5194
          %v5196 = vpop.f32.mrb[0].mxu0
          %v5197 = vadd.f32 %v5046, %v5196
          %v5198 = vpop.f32.mrb[0].mxu0
          %5199 = vdwg.mxu0
          %5200 = vmatprep.subr.mxu0 0.0
          %v5201 = vand.u32 %v4935, 4294901760
          %v5202 = vsub.f32 %v4935, %v5201
          %5203 = vmatpush1.msra.mxu0 %v5202
          %5204 = vmatprep.subr.mxu0 0.0
          %v5205 = vand.u32 %v4936, 4294901760
          %v5206 = vsub.f32 %v4936, %v5205
          %5207 = vmatpush1.msra.mxu0 %v5206
          %5208 = vmatprep.subr.mxu0 0.0
          %v5209 = vand.u32 %v4937, 4294901760
          %v5210 = vsub.f32 %v4937, %v5209
          %5211 = vmatpush1.msra.mxu0 %v5210
          %5212 = vmatprep.subr.mxu0 0.0
          %v5213 = vand.u32 %v4938, 4294901760
          %v5214 = vsub.f32 %v4938, %v5213
          %5215 = vmatpush1.msra.mxu0 %v5214
          %5216 = vmatprep.subr.mxu0 0.0
          %v5217 = vand.u32 %v4939, 4294901760
          %v5218 = vsub.f32 %v4939, %v5217
          %5219 = vmatpush1.msra.mxu0 %v5218
          %5220 = vmatprep.subr.mxu0 0.0
          %v5221 = vand.u32 %v4940, 4294901760
          %v5222 = vsub.f32 %v4940, %v5221
          %5223 = vmatpush1.msra.mxu0 %v5222
          %5224 = vmatprep.subr.mxu0 0.0
          %v5225 = vand.u32 %v4941, 4294901760
          %v5226 = vsub.f32 %v4941, %v5225
          %5227 = vmatpush1.msra.mxu0 %v5226
          %5228 = vmatprep.subr.mxu0 0.0
          %v5229 = vand.u32 %v4942, 4294901760
          %v5230 = vsub.f32 %v4942, %v5229
          %5231 = vmatpush1.msra.mxu0 %v5230
          %5232 = vmatprep.subr.mxu0 0.0
          %v5233 = vand.u32 %v4943, 4294901760
          %v5234 = vsub.f32 %v4943, %v5233
          %5235 = vmatpush1.msra.mxu0 %v5234
          %5236 = vmatprep.subr.mxu0 0.0
          %v5237 = vand.u32 %v4944, 4294901760
          %v5238 = vsub.f32 %v4944, %v5237
          %5239 = vmatpush1.msra.mxu0 %v5238
          %5240 = vmatprep.subr.mxu0 0.0
          %v5241 = vand.u32 %v4945, 4294901760
          %v5242 = vsub.f32 %v4945, %v5241
          %5243 = vmatpush1.msra.mxu0 %v5242
          %5244 = vmatprep.subr.mxu0 0.0
          %v5245 = vand.u32 %v4946, 4294901760
          %v5246 = vsub.f32 %v4946, %v5245
          %5247 = vmatpush1.msra.mxu0 %v5246
          %5248 = vmatprep.subr.mxu0 0.0
          %v5249 = vand.u32 %v4947, 4294901760
          %v5250 = vsub.f32 %v4947, %v5249
          %5251 = vmatpush1.msra.mxu0 %v5250
          %5252 = vmatprep.subr.mxu0 0.0
          %v5253 = vand.u32 %v4948, 4294901760
          %v5254 = vsub.f32 %v4948, %v5253
          %5255 = vmatpush1.msra.mxu0 %v5254
          %5256 = vmatprep.subr.mxu0 0.0
          %v5257 = vand.u32 %v4949, 4294901760
          %v5258 = vsub.f32 %v4949, %v5257
          %5259 = vmatpush1.msra.mxu0 %v5258
          %5260 = vmatprep.subr.mxu0 0.0
          %v5261 = vand.u32 %v4950, 4294901760
          %v5262 = vsub.f32 %v4950, %v5261
          %5263 = vmatpush1.msra.mxu0 %v5262
          %5264 = vmatprep.subr.mxu0 0.0
          %5265 = vmatpush1.msra.mxu0 0.0
          %5266 = vmatprep.subr.mxu0 0.0
          %5267 = vmatpush1.msra.mxu0 0.0
          %5268 = vmatprep.subr.mxu0 0.0
          %5269 = vmatpush1.msra.mxu0 0.0
          %5270 = vmatprep.subr.mxu0 0.0
          %5271 = vmatpush1.msra.mxu0 0.0
          %5272 = vmatprep.subr.mxu0 0.0
          %5273 = vmatpush1.msra.mxu0 0.0
          %5274 = vmatprep.subr.mxu0 0.0
          %5275 = vmatpush1.msra.mxu0 0.0
          %5276 = vmatprep.subr.mxu0 0.0
          %5277 = vmatpush1.msra.mxu0 0.0
          %5278 = vmatprep.subr.mxu0 0.0
          %5279 = vmatpush1.msra.mxu0 0.0
          %5280 = vmatprep.subr.mxu0 0.0
          %5281 = vmatpush1.msra.mxu0 0.0
          %5282 = vmatprep.subr.mxu0 0.0
          %5283 = vmatpush1.msra.mxu0 0.0
          %5284 = vmatprep.subr.mxu0 0.0
          %5285 = vmatpush1.msra.mxu0 0.0
          %5286 = vmatprep.subr.mxu0 0.0
          %5287 = vmatpush1.msra.mxu0 0.0
          %5288 = vmatprep.subr.mxu0 0.0
          %5289 = vmatpush1.msra.mxu0 0.0
          %5290 = vmatprep.subr.mxu0 0.0
          %5291 = vmatpush1.msra.mxu0 0.0
          %5292 = vmatprep.subr.mxu0 0.0
          %5293 = vmatpush1.msra.mxu0 0.0
          %5294 = vmatprep.subr.mxu0 0.0
          %5295 = vmatpush1.msra.mxu0 0.0
          %5296 = vmatprep.mubr.f32.mxu0 0.0
          %v5297 = vand.u32 %v4934, 4294901760
          %v5298 = vsub.f32 %v4934, %v5297
          %5299 = vmatmul.mubr.f32.gmra.mrb[0].mxu0 %v5298
          %v5300 = vpop.f32.mrb[0].mxu0
          %v5301 = vadd.f32 %v5197, %v5300
          %v5302 = vpop.f32.mrb[0].mxu0
          %5303 = vdwg.mxu0
          %5304 = vmatprep.subr.mxu0 0.0
          %v5305 = vand.u32 %v4935, 4294901760
          %5306 = vmatpush1.msra.mxu0 %v5305
          %5307 = vmatprep.subr.mxu0 0.0
          %v5308 = vand.u32 %v4936, 4294901760
          %5309 = vmatpush1.msra.mxu0 %v5308
          %5310 = vmatprep.subr.mxu0 0.0
          %v5311 = vand.u32 %v4937, 4294901760
          %5312 = vmatpush1.msra.mxu0 %v5311
          %5313 = vmatprep.subr.mxu0 0.0
          %v5314 = vand.u32 %v4938, 4294901760
          %5315 = vmatpush1.msra.mxu0 %v5314
          %5316 = vmatprep.subr.mxu0 0.0
          %v5317 = vand.u32 %v4939, 4294901760
          %5318 = vmatpush1.msra.mxu0 %v5317
          %5319 = vmatprep.subr.mxu0 0.0
          %v5320 = vand.u32 %v4940, 4294901760
          %5321 = vmatpush1.msra.mxu0 %v5320
          %5322 = vmatprep.subr.mxu0 0.0
          %v5323 = vand.u32 %v4941, 4294901760
          %5324 = vmatpush1.msra.mxu0 %v5323
          %5325 = vmatprep.subr.mxu0 0.0
          %v5326 = vand.u32 %v4942, 4294901760
          %5327 = vmatpush1.msra.mxu0 %v5326
          %5328 = vmatprep.subr.mxu0 0.0
          %v5329 = vand.u32 %v4943, 4294901760
          %5330 = vmatpush1.msra.mxu0 %v5329
          %5331 = vmatprep.subr.mxu0 0.0
          %v5332 = vand.u32 %v4944, 4294901760
          %5333 = vmatpush1.msra.mxu0 %v5332
          %5334 = vmatprep.subr.mxu0 0.0
          %v5335 = vand.u32 %v4945, 4294901760
          %5336 = vmatpush1.msra.mxu0 %v5335
          %5337 = vmatprep.subr.mxu0 0.0
          %v5338 = vand.u32 %v4946, 4294901760
          %5339 = vmatpush1.msra.mxu0 %v5338
          %5340 = vmatprep.subr.mxu0 0.0
          %v5341 = vand.u32 %v4947, 4294901760
          %5342 = vmatpush1.msra.mxu0 %v5341
          %5343 = vmatprep.subr.mxu0 0.0
          %v5344 = vand.u32 %v4948, 4294901760
          %5345 = vmatpush1.msra.mxu0 %v5344
          %5346 = vmatprep.subr.mxu0 0.0
          %v5347 = vand.u32 %v4949, 4294901760
          %5348 = vmatpush1.msra.mxu0 %v5347
          %5349 = vmatprep.subr.mxu0 0.0
          %v5350 = vand.u32 %v4950, 4294901760
          %5351 = vmatpush1.msra.mxu0 %v5350
          %5352 = vmatprep.subr.mxu0 0.0
          %5353 = vmatpush1.msra.mxu0 0.0
          %5354 = vmatprep.subr.mxu0 0.0
          %5355 = vmatpush1.msra.mxu0 0.0
          %5356 = vmatprep.subr.mxu0 0.0
          %5357 = vmatpush1.msra.mxu0 0.0
          %5358 = vmatprep.subr.mxu0 0.0
          %5359 = vmatpush1.msra.mxu0 0.0
          %5360 = vmatprep.subr.mxu0 0.0
          %5361 = vmatpush1.msra.mxu0 0.0
          %5362 = vmatprep.subr.mxu0 0.0
          %5363 = vmatpush1.msra.mxu0 0.0
          %5364 = vmatprep.subr.mxu0 0.0
          %5365 = vmatpush1.msra.mxu0 0.0
          %5366 = vmatprep.subr.mxu0 0.0
          %5367 = vmatpush1.msra.mxu0 0.0
          %5368 = vmatprep.subr.mxu0 0.0
          %5369 = vmatpush1.msra.mxu0 0.0
          %5370 = vmatprep.subr.mxu0 0.0
          %5371 = vmatpush1.msra.mxu0 0.0
          %5372 = vmatprep.subr.mxu0 0.0
          %5373 = vmatpush1.msra.mxu0 0.0
          %5374 = vmatprep.subr.mxu0 0.0
          %5375 = vmatpush1.msra.mxu0 0.0
          %5376 = vmatprep.subr.mxu0 0.0
          %5377 = vmatpush1.msra.mxu0 0.0
          %5378 = vmatprep.subr.mxu0 0.0
          %5379 = vmatpush1.msra.mxu0 0.0
          %5380 = vmatprep.subr.mxu0 0.0
          %5381 = vmatpush1.msra.mxu0 0.0
          %5382 = vmatprep.subr.mxu0 0.0
          %5383 = vmatpush1.msra.mxu0 0.0
          %5384 = vmatprep.mubr.f32.mxu0 0.0
          %v5385 = vand.u32 %v4934, 4294901760
          %v5386 = vsub.f32 %v4934, %v5385
          %v5387 = vand.u32 %v5386, 4294901760
          %5388 = vmatmul.mubr.f32.gmra.mrb[0].mxu0 %v5387
          %v5389 = vpop.f32.mrb[0].mxu0
          %v5390 = vadd.f32 %v5301, %v5389
          %v5391 = vpop.f32.mrb[0].mxu0
          %5392 = vdwg.mxu0
          %5393 = vmatprep.subr.mxu0 0.0
          %v5394 = vand.u32 %v4935, 4294901760
          %v5395 = vsub.f32 %v4935, %v5394
          %v5396 = vand.u32 %v5395, 4294901760
          %5397 = vmatpush1.msra.mxu0 %v5396
          %5398 = vmatprep.subr.mxu0 0.0
          %v5399 = vand.u32 %v4936, 4294901760
          %v5400 = vsub.f32 %v4936, %v5399
          %v5401 = vand.u32 %v5400, 4294901760
          %5402 = vmatpush1.msra.mxu0 %v5401
          %5403 = vmatprep.subr.mxu0 0.0
          %v5404 = vand.u32 %v4937, 4294901760
          %v5405 = vsub.f32 %v4937, %v5404
          %v5406 = vand.u32 %v5405, 4294901760
          %5407 = vmatpush1.msra.mxu0 %v5406
          %5408 = vmatprep.subr.mxu0 0.0
          %v5409 = vand.u32 %v4938, 4294901760
          %v5410 = vsub.f32 %v4938, %v5409
          %v5411 = vand.u32 %v5410, 4294901760
          %5412 = vmatpush1.msra.mxu0 %v5411
          %5413 = vmatprep.subr.mxu0 0.0
          %v5414 = vand.u32 %v4939, 4294901760
          %v5415 = vsub.f32 %v4939, %v5414
          %v5416 = vand.u32 %v5415, 4294901760
          %5417 = vmatpush1.msra.mxu0 %v5416
          %5418 = vmatprep.subr.mxu0 0.0
          %v5419 = vand.u32 %v4940, 4294901760
          %v5420 = vsub.f32 %v4940, %v5419
          %v5421 = vand.u32 %v5420, 4294901760
          %5422 = vmatpush1.msra.mxu0 %v5421
          %5423 = vmatprep.subr.mxu0 0.0
          %v5424 = vand.u32 %v4941, 4294901760
          %v5425 = vsub.f32 %v4941, %v5424
          %v5426 = vand.u32 %v5425, 4294901760
          %5427 = vmatpush1.msra.mxu0 %v5426
          %5428 = vmatprep.subr.mxu0 0.0
          %v5429 = vand.u32 %v4942, 4294901760
          %v5430 = vsub.f32 %v4942, %v5429
          %v5431 = vand.u32 %v5430, 4294901760
          %5432 = vmatpush1.msra.mxu0 %v5431
          %5433 = vmatprep.subr.mxu0 0.0
          %v5434 = vand.u32 %v4943, 4294901760
          %v5435 = vsub.f32 %v4943, %v5434
          %v5436 = vand.u32 %v5435, 4294901760
          %5437 = vmatpush1.msra.mxu0 %v5436
          %5438 = vmatprep.subr.mxu0 0.0
          %v5439 = vand.u32 %v4944, 4294901760
          %v5440 = vsub.f32 %v4944, %v5439
          %v5441 = vand.u32 %v5440, 4294901760
          %5442 = vmatpush1.msra.mxu0 %v5441
          %5443 = vmatprep.subr.mxu0 0.0
          %v5444 = vand.u32 %v4945, 4294901760
          %v5445 = vsub.f32 %v4945, %v5444
          %v5446 = vand.u32 %v5445, 4294901760
          %5447 = vmatpush1.msra.mxu0 %v5446
          %5448 = vmatprep.subr.mxu0 0.0
          %v5449 = vand.u32 %v4946, 4294901760
          %v5450 = vsub.f32 %v4946, %v5449
          %v5451 = vand.u32 %v5450, 4294901760
          %5452 = vmatpush1.msra.mxu0 %v5451
          %5453 = vmatprep.subr.mxu0 0.0
          %v5454 = vand.u32 %v4947, 4294901760
          %v5455 = vsub.f32 %v4947, %v5454
          %v5456 = vand.u32 %v5455, 4294901760
          %5457 = vmatpush1.msra.mxu0 %v5456
          %5458 = vmatprep.subr.mxu0 0.0
          %v5459 = vand.u32 %v4948, 4294901760
          %v5460 = vsub.f32 %v4948, %v5459
          %v5461 = vand.u32 %v5460, 4294901760
          %5462 = vmatpush1.msra.mxu0 %v5461
          %5463 = vmatprep.subr.mxu0 0.0
          %v5464 = vand.u32 %v4949, 4294901760
          %v5465 = vsub.f32 %v4949, %v5464
          %v5466 = vand.u32 %v5465, 4294901760
          %5467 = vmatpush1.msra.mxu0 %v5466
          %5468 = vmatprep.subr.mxu0 0.0
          %v5469 = vand.u32 %v4950, 4294901760
          %v5470 = vsub.f32 %v4950, %v5469
          %v5471 = vand.u32 %v5470, 4294901760
          %5472 = vmatpush1.msra.mxu0 %v5471
          %5473 = vmatprep.subr.mxu0 0.0
          %5474 = vmatpush1.msra.mxu0 0.0
          %5475 = vmatprep.subr.mxu0 0.0
          %5476 = vmatpush1.msra.mxu0 0.0
          %5477 = vmatprep.subr.mxu0 0.0
          %5478 = vmatpush1.msra.mxu0 0.0
          %5479 = vmatprep.subr.mxu0 0.0
          %5480 = vmatpush1.msra.mxu0 0.0
          %5481 = vmatprep.subr.mxu0 0.0
          %5482 = vmatpush1.msra.mxu0 0.0
          %5483 = vmatprep.subr.mxu0 0.0
          %5484 = vmatpush1.msra.mxu0 0.0
          %5485 = vmatprep.subr.mxu0 0.0
          %5486 = vmatpush1.msra.mxu0 0.0
          %5487 = vmatprep.subr.mxu0 0.0
          %5488 = vmatpush1.msra.mxu0 0.0
          %5489 = vmatprep.subr.mxu0 0.0
          %5490 = vmatpush1.msra.mxu0 0.0
          %5491 = vmatprep.subr.mxu0 0.0
          %5492 = vmatpush1.msra.mxu0 0.0
          %5493 = vmatprep.subr.mxu0 0.0
          %5494 = vmatpush1.msra.mxu0 0.0
          %5495 = vmatprep.subr.mxu0 0.0
          %5496 = vmatpush1.msra.mxu0 0.0
          %5497 = vmatprep.subr.mxu0 0.0
          %5498 = vmatpush1.msra.mxu0 0.0
          %5499 = vmatprep.subr.mxu0 0.0
          %5500 = vmatpush1.msra.mxu0 0.0
          %5501 = vmatprep.subr.mxu0 0.0
          %5502 = vmatpush1.msra.mxu0 0.0
          %5503 = vmatprep.subr.mxu0 0.0
          %5504 = vmatpush1.msra.mxu0 0.0
          %5505 = vmatprep.mubr.f32.mxu0 0.0
          %v5506 = vand.u32 %v4934, 4294901760
          %5507 = vmatmul.mubr.f32.gmra.mrb[0].mxu0 %v5506
          %v5508 = vpop.f32.mrb[0].mxu0
          %v5509 = vadd.f32 %v5390, %v5508
          %v5510 = vpop.f32.mrb[0].mxu0
          %5511 = vdwg.mxu0
          %5512 = vmatprep.subr.mxu0 0.0
          %v5513 = vand.u32 %v4935, 4294901760
          %5514 = vmatpush1.msra.mxu0 %v5513
          %5515 = vmatprep.subr.mxu0 0.0
          %v5516 = vand.u32 %v4936, 4294901760
          %5517 = vmatpush1.msra.mxu0 %v5516
          %5518 = vmatprep.subr.mxu0 0.0
          %v5519 = vand.u32 %v4937, 4294901760
          %5520 = vmatpush1.msra.mxu0 %v5519
          %5521 = vmatprep.subr.mxu0 0.0
          %v5522 = vand.u32 %v4938, 4294901760
          %5523 = vmatpush1.msra.mxu0 %v5522
          %5524 = vmatprep.subr.mxu0 0.0
          %v5525 = vand.u32 %v4939, 4294901760
          %5526 = vmatpush1.msra.mxu0 %v5525
          %5527 = vmatprep.subr.mxu0 0.0
          %v5528 = vand.u32 %v4940, 4294901760
          %5529 = vmatpush1.msra.mxu0 %v5528
          %5530 = vmatprep.subr.mxu0 0.0
          %v5531 = vand.u32 %v4941, 4294901760
          %5532 = vmatpush1.msra.mxu0 %v5531
          %5533 = vmatprep.subr.mxu0 0.0
          %v5534 = vand.u32 %v4942, 4294901760
          %5535 = vmatpush1.msra.mxu0 %v5534
          %5536 = vmatprep.subr.mxu0 0.0
          %v5537 = vand.u32 %v4943, 4294901760
          %5538 = vmatpush1.msra.mxu0 %v5537
          %5539 = vmatprep.subr.mxu0 0.0
          %v5540 = vand.u32 %v4944, 4294901760
          %5541 = vmatpush1.msra.mxu0 %v5540
          %5542 = vmatprep.subr.mxu0 0.0
          %v5543 = vand.u32 %v4945, 4294901760
          %5544 = vmatpush1.msra.mxu0 %v5543
          %5545 = vmatprep.subr.mxu0 0.0
          %v5546 = vand.u32 %v4946, 4294901760
          %5547 = vmatpush1.msra.mxu0 %v5546
          %5548 = vmatprep.subr.mxu0 0.0
          %v5549 = vand.u32 %v4947, 4294901760
          %5550 = vmatpush1.msra.mxu0 %v5549
          %5551 = vmatprep.subr.mxu0 0.0
          %v5552 = vand.u32 %v4948, 4294901760
          %5553 = vmatpush1.msra.mxu0 %v5552
          %5554 = vmatprep.subr.mxu0 0.0
          %v5555 = vand.u32 %v4949, 4294901760
          %5556 = vmatpush1.msra.mxu0 %v5555
          %5557 = vmatprep.subr.mxu0 0.0
          %v5558 = vand.u32 %v4950, 4294901760
          %5559 = vmatpush1.msra.mxu0 %v5558
          %5560 = vmatprep.subr.mxu0 0.0
          %5561 = vmatpush1.msra.mxu0 0.0
          %5562 = vmatprep.subr.mxu0 0.0
          %5563 = vmatpush1.msra.mxu0 0.0
          %5564 = vmatprep.subr.mxu0 0.0
          %5565 = vmatpush1.msra.mxu0 0.0
          %5566 = vmatprep.subr.mxu0 0.0
          %5567 = vmatpush1.msra.mxu0 0.0
          %5568 = vmatprep.subr.mxu0 0.0
          %5569 = vmatpush1.msra.mxu0 0.0
          %5570 = vmatprep.subr.mxu0 0.0
          %5571 = vmatpush1.msra.mxu0 0.0
          %5572 = vmatprep.subr.mxu0 0.0
          %5573 = vmatpush1.msra.mxu0 0.0
          %5574 = vmatprep.subr.mxu0 0.0
          %5575 = vmatpush1.msra.mxu0 0.0
          %5576 = vmatprep.subr.mxu0 0.0
          %5577 = vmatpush1.msra.mxu0 0.0
          %5578 = vmatprep.subr.mxu0 0.0
          %5579 = vmatpush1.msra.mxu0 0.0
          %5580 = vmatprep.subr.mxu0 0.0
          %5581 = vmatpush1.msra.mxu0 0.0
          %5582 = vmatprep.subr.mxu0 0.0
          %5583 = vmatpush1.msra.mxu0 0.0
          %5584 = vmatprep.subr.mxu0 0.0
          %5585 = vmatpush1.msra.mxu0 0.0
          %5586 = vmatprep.subr.mxu0 0.0
          %5587 = vmatpush1.msra.mxu0 0.0
          %5588 = vmatprep.subr.mxu0 0.0
          %5589 = vmatpush1.msra.mxu0 0.0
          %5590 = vmatprep.subr.mxu0 0.0
          %5591 = vmatpush1.msra.mxu0 0.0
          %5592 = vmatprep.mubr.f32.mxu0 0.0
          %v5593 = vand.u32 %v4934, 4294901760
          %5594 = vmatmul.mubr.f32.gmra.mrb[0].mxu0 %v5593
          %v5595 = vpop.f32.mrb[0].mxu0
          %v5596 = vadd.f32 %v5509, %v5595
          %v5597 = vpop.f32.mrb[0].mxu0
          %5598 = vdwg.mxu0
          %v5600 = vrot.slane %v5596, 6
          %v5602 = vrot.slane %v5596, 4
          %v5604 = vrot.slane %v5596, 2
          %vm5606 = vcmask 1041408
          %v5607 = vsel %vm5606, %v5596, %v5600
          %vm5608 = vcmask 1043456
          %v5609 = vsel %vm5608, %v5607, %v5602
          %vm5610 = vcmask 1045504
          %v5611 = vsel %vm5610, %v5609, %v5604
          %v5612 = vmul.f32 %v5611, %v3917
          %5613 = vmatprep.subr.mxu0 0.0
          %v5614 = vand.u32 %v4882, 4294901760
          %5615 = vmatpush1.xpose.msra.mxu0 %v5614
          %5616 = vmatprep.subr.mxu0 0.0
          %v5617 = vand.u32 %v4883, 4294901760
          %5618 = vmatpush1.xpose.msra.mxu0 %v5617
          %5619 = vmatprep.subr.mxu0 0.0
          %5620 = vmatpush1.xpose.msra.mxu0 0.0
          %5621 = vmatprep.subr.mxu0 0.0
          %5622 = vmatpush1.xpose.msra.mxu0 0.0
          %5623 = vmatprep.subr.mxu0 0.0
          %5624 = vmatpush1.xpose.msra.mxu0 0.0
          %5625 = vmatprep.subr.mxu0 0.0
          %5626 = vmatpush1.xpose.msra.mxu0 0.0
          %5627 = vmatprep.subr.mxu0 0.0
          %5628 = vmatpush1.xpose.msra.mxu0 0.0
          %5629 = vmatprep.subr.mxu0 0.0
          %5630 = vmatpush1.xpose.msra.mxu0 0.0
          %5631 = vmatprep.subr.mxu0 0.0
          %5632 = vmatpush1.xpose.msra.mxu0 0.0
          %5633 = vmatprep.subr.mxu0 0.0
          %5634 = vmatpush1.xpose.msra.mxu0 0.0
          %5635 = vmatprep.subr.mxu0 0.0
          %5636 = vmatpush1.xpose.msra.mxu0 0.0
          %5637 = vmatprep.subr.mxu0 0.0
          %5638 = vmatpush1.xpose.msra.mxu0 0.0
          %5639 = vmatprep.subr.mxu0 0.0
          %5640 = vmatpush1.xpose.msra.mxu0 0.0
          %5641 = vmatprep.subr.mxu0 0.0
          %5642 = vmatpush1.xpose.msra.mxu0 0.0
          %5643 = vmatprep.subr.mxu0 0.0
          %5644 = vmatpush1.xpose.msra.mxu0 0.0
          %5645 = vmatprep.subr.mxu0 0.0
          %5646 = vmatpush1.xpose.msra.mxu0 0.0
          %5647 = vmatprep.subr.mxu0 0.0
          %5648 = vmatpush1.xpose.msra.mxu0 0.0
          %5649 = vmatprep.subr.mxu0 0.0
          %5650 = vmatpush1.xpose.msra.mxu0 0.0
          %5651 = vmatprep.subr.mxu0 0.0
          %5652 = vmatpush1.xpose.msra.mxu0 0.0
          %5653 = vmatprep.subr.mxu0 0.0
          %5654 = vmatpush1.xpose.msra.mxu0 0.0
          %5655 = vmatprep.subr.mxu0 0.0
          %5656 = vmatpush1.xpose.msra.mxu0 0.0
          %5657 = vmatprep.subr.mxu0 0.0
          %5658 = vmatpush1.xpose.msra.mxu0 0.0
          %5659 = vmatprep.subr.mxu0 0.0
          %5660 = vmatpush1.xpose.msra.mxu0 0.0
          %5661 = vmatprep.subr.mxu0 0.0
          %5662 = vmatpush1.xpose.msra.mxu0 0.0
          %5663 = vmatprep.subr.mxu0 0.0
          %5664 = vmatpush1.xpose.msra.mxu0 0.0
          %5665 = vmatprep.subr.mxu0 0.0
          %5666 = vmatpush1.xpose.msra.mxu0 0.0
          %5667 = vmatprep.subr.mxu0 0.0
          %5668 = vmatpush1.xpose.msra.mxu0 0.0
          %5669 = vmatprep.subr.mxu0 0.0
          %5670 = vmatpush1.xpose.msra.mxu0 0.0
          %5671 = vmatprep.subr.mxu0 0.0
          %5672 = vmatpush1.xpose.msra.mxu0 0.0
          %5673 = vmatprep.subr.mxu0 0.0
          %5674 = vmatpush1.xpose.msra.mxu0 0.0
          %5675 = vmatprep.subr.mxu0 0.0
          %5676 = vmatpush1.xpose.msra.mxu0 0.0
          %5677 = vmatprep.subr.mxu0 0.0
          %5678 = vmatpush1.xpose.msra.mxu0 0.0
          %5679 = vmatprep.mubr.f32.mxu0 0.0
          %v5680 = vand.u32 %v5612, 4294901760
          %v5681 = vsub.f32 %v5612, %v5680
          %v5682 = vand.u32 %v5681, 4294901760
          %v5683 = vsub.f32 %v5681, %v5682
          %v5684 = vand.u32 %v5683, 4294901760
          %5685 = vmatmul.mubr.f32.gmra.mrb[0].mxu0 %v5684
          %v5686 = vpop.f32.mrb[0].mxu0
          %v5687 = vadd.f32 0.0, %v5686
          %v5688 = vpop.f32.mrb[0].mxu0
          %5689 = vdwg.mxu0
          %5690 = vmatprep.subr.mxu0 0.0
          %v5691 = vand.u32 %v4882, 4294901760
          %v5692 = vsub.f32 %v4882, %v5691
          %v5693 = vand.u32 %v5692, 4294901760
          %v5694 = vsub.f32 %v5692, %v5693
          %v5695 = vand.u32 %v5694, 4294901760
          %5696 = vmatpush1.xpose.msra.mxu0 %v5695
          %5697 = vmatprep.subr.mxu0 0.0
          %v5698 = vand.u32 %v4883, 4294901760
          %v5699 = vsub.f32 %v4883, %v5698
          %v5700 = vand.u32 %v5699, 4294901760
          %v5701 = vsub.f32 %v5699, %v5700
          %v5702 = vand.u32 %v5701, 4294901760
          %5703 = vmatpush1.xpose.msra.mxu0 %v5702
          %5704 = vmatprep.subr.mxu0 0.0
          %5705 = vmatpush1.xpose.msra.mxu0 0.0
          %5706 = vmatprep.subr.mxu0 0.0
          %5707 = vmatpush1.xpose.msra.mxu0 0.0
          %5708 = vmatprep.subr.mxu0 0.0
          %5709 = vmatpush1.xpose.msra.mxu0 0.0
          %5710 = vmatprep.subr.mxu0 0.0
          %5711 = vmatpush1.xpose.msra.mxu0 0.0
          %5712 = vmatprep.subr.mxu0 0.0
          %5713 = vmatpush1.xpose.msra.mxu0 0.0
          %5714 = vmatprep.subr.mxu0 0.0
          %5715 = vmatpush1.xpose.msra.mxu0 0.0
          %5716 = vmatprep.subr.mxu0 0.0
          %5717 = vmatpush1.xpose.msra.mxu0 0.0
          %5718 = vmatprep.subr.mxu0 0.0
          %5719 = vmatpush1.xpose.msra.mxu0 0.0
          %5720 = vmatprep.subr.mxu0 0.0
          %5721 = vmatpush1.xpose.msra.mxu0 0.0
          %5722 = vmatprep.subr.mxu0 0.0
          %5723 = vmatpush1.xpose.msra.mxu0 0.0
          %5724 = vmatprep.subr.mxu0 0.0
          %5725 = vmatpush1.xpose.msra.mxu0 0.0
          %5726 = vmatprep.subr.mxu0 0.0
          %5727 = vmatpush1.xpose.msra.mxu0 0.0
          %5728 = vmatprep.subr.mxu0 0.0
          %5729 = vmatpush1.xpose.msra.mxu0 0.0
          %5730 = vmatprep.subr.mxu0 0.0
          %5731 = vmatpush1.xpose.msra.mxu0 0.0
          %5732 = vmatprep.subr.mxu0 0.0
          %5733 = vmatpush1.xpose.msra.mxu0 0.0
          %5734 = vmatprep.subr.mxu0 0.0
          %5735 = vmatpush1.xpose.msra.mxu0 0.0
          %5736 = vmatprep.subr.mxu0 0.0
          %5737 = vmatpush1.xpose.msra.mxu0 0.0
          %5738 = vmatprep.subr.mxu0 0.0
          %5739 = vmatpush1.xpose.msra.mxu0 0.0
          %5740 = vmatprep.subr.mxu0 0.0
          %5741 = vmatpush1.xpose.msra.mxu0 0.0
          %5742 = vmatprep.subr.mxu0 0.0
          %5743 = vmatpush1.xpose.msra.mxu0 0.0
          %5744 = vmatprep.subr.mxu0 0.0
          %5745 = vmatpush1.xpose.msra.mxu0 0.0
          %5746 = vmatprep.subr.mxu0 0.0
          %5747 = vmatpush1.xpose.msra.mxu0 0.0
          %5748 = vmatprep.subr.mxu0 0.0
          %5749 = vmatpush1.xpose.msra.mxu0 0.0
          %5750 = vmatprep.subr.mxu0 0.0
          %5751 = vmatpush1.xpose.msra.mxu0 0.0
          %5752 = vmatprep.subr.mxu0 0.0
          %5753 = vmatpush1.xpose.msra.mxu0 0.0
          %5754 = vmatprep.subr.mxu0 0.0
          %5755 = vmatpush1.xpose.msra.mxu0 0.0
          %5756 = vmatprep.subr.mxu0 0.0
          %5757 = vmatpush1.xpose.msra.mxu0 0.0
          %5758 = vmatprep.subr.mxu0 0.0
          %5759 = vmatpush1.xpose.msra.mxu0 0.0
          %5760 = vmatprep.subr.mxu0 0.0
          %5761 = vmatpush1.xpose.msra.mxu0 0.0
          %5762 = vmatprep.subr.mxu0 0.0
          %5763 = vmatpush1.xpose.msra.mxu0 0.0
          %5764 = vmatprep.mubr.f32.mxu0 0.0
          %v5765 = vand.u32 %v5612, 4294901760
          %5766 = vmatmul.mubr.f32.gmra.mrb[0].mxu0 %v5765
          %v5767 = vpop.f32.mrb[0].mxu0
          %v5768 = vadd.f32 %v5687, %v5767
          %v5769 = vpop.f32.mrb[0].mxu0
          %5770 = vdwg.mxu0
          %5771 = vmatprep.subr.mxu0 0.0
          %v5772 = vand.u32 %v4882, 4294901760
          %v5773 = vsub.f32 %v4882, %v5772
          %5774 = vmatpush1.xpose.msra.mxu0 %v5773
          %5775 = vmatprep.subr.mxu0 0.0
          %v5776 = vand.u32 %v4883, 4294901760
          %v5777 = vsub.f32 %v4883, %v5776
          %5778 = vmatpush1.xpose.msra.mxu0 %v5777
          %5779 = vmatprep.subr.mxu0 0.0
          %5780 = vmatpush1.xpose.msra.mxu0 0.0
          %5781 = vmatprep.subr.mxu0 0.0
          %5782 = vmatpush1.xpose.msra.mxu0 0.0
          %5783 = vmatprep.subr.mxu0 0.0
          %5784 = vmatpush1.xpose.msra.mxu0 0.0
          %5785 = vmatprep.subr.mxu0 0.0
          %5786 = vmatpush1.xpose.msra.mxu0 0.0
          %5787 = vmatprep.subr.mxu0 0.0
          %5788 = vmatpush1.xpose.msra.mxu0 0.0
          %5789 = vmatprep.subr.mxu0 0.0
          %5790 = vmatpush1.xpose.msra.mxu0 0.0
          %5791 = vmatprep.subr.mxu0 0.0
          %5792 = vmatpush1.xpose.msra.mxu0 0.0
          %5793 = vmatprep.subr.mxu0 0.0
          %5794 = vmatpush1.xpose.msra.mxu0 0.0
          %5795 = vmatprep.subr.mxu0 0.0
          %5796 = vmatpush1.xpose.msra.mxu0 0.0
          %5797 = vmatprep.subr.mxu0 0.0
          %5798 = vmatpush1.xpose.msra.mxu0 0.0
          %5799 = vmatprep.subr.mxu0 0.0
          %5800 = vmatpush1.xpose.msra.mxu0 0.0
          %5801 = vmatprep.subr.mxu0 0.0
          %5802 = vmatpush1.xpose.msra.mxu0 0.0
          %5803 = vmatprep.subr.mxu0 0.0
          %5804 = vmatpush1.xpose.msra.mxu0 0.0
          %5805 = vmatprep.subr.mxu0 0.0
          %5806 = vmatpush1.xpose.msra.mxu0 0.0
          %5807 = vmatprep.subr.mxu0 0.0
          %5808 = vmatpush1.xpose.msra.mxu0 0.0
          %5809 = vmatprep.subr.mxu0 0.0
          %5810 = vmatpush1.xpose.msra.mxu0 0.0
          %5811 = vmatprep.subr.mxu0 0.0
          %5812 = vmatpush1.xpose.msra.mxu0 0.0
          %5813 = vmatprep.subr.mxu0 0.0
          %5814 = vmatpush1.xpose.msra.mxu0 0.0
          %5815 = vmatprep.subr.mxu0 0.0
          %5816 = vmatpush1.xpose.msra.mxu0 0.0
          %5817 = vmatprep.subr.mxu0 0.0
          %5818 = vmatpush1.xpose.msra.mxu0 0.0
          %5819 = vmatprep.subr.mxu0 0.0
          %5820 = vmatpush1.xpose.msra.mxu0 0.0
          %5821 = vmatprep.subr.mxu0 0.0
          %5822 = vmatpush1.xpose.msra.mxu0 0.0
          %5823 = vmatprep.subr.mxu0 0.0
          %5824 = vmatpush1.xpose.msra.mxu0 0.0
          %5825 = vmatprep.subr.mxu0 0.0
          %5826 = vmatpush1.xpose.msra.mxu0 0.0
          %5827 = vmatprep.subr.mxu0 0.0
          %5828 = vmatpush1.xpose.msra.mxu0 0.0
          %5829 = vmatprep.subr.mxu0 0.0
          %5830 = vmatpush1.xpose.msra.mxu0 0.0
          %5831 = vmatprep.subr.mxu0 0.0
          %5832 = vmatpush1.xpose.msra.mxu0 0.0
          %5833 = vmatprep.subr.mxu0 0.0
          %5834 = vmatpush1.xpose.msra.mxu0 0.0
          %5835 = vmatprep.subr.mxu0 0.0
          %5836 = vmatpush1.xpose.msra.mxu0 0.0
          %5837 = vmatprep.subr.mxu0 0.0
          %5838 = vmatpush1.xpose.msra.mxu0 0.0
          %5839 = vmatprep.mubr.f32.mxu0 0.0
          %v5840 = vand.u32 %v5612, 4294901760
          %v5841 = vsub.f32 %v5612, %v5840
          %5842 = vmatmul.mubr.f32.gmra.mrb[0].mxu0 %v5841
          %v5843 = vpop.f32.mrb[0].mxu0
          %v5844 = vadd.f32 %v5768, %v5843
          %v5845 = vpop.f32.mrb[0].mxu0
          %5846 = vdwg.mxu0
          %5847 = vmatprep.subr.mxu0 0.0
          %v5848 = vand.u32 %v4882, 4294901760
          %5849 = vmatpush1.xpose.msra.mxu0 %v5848
          %5850 = vmatprep.subr.mxu0 0.0
          %v5851 = vand.u32 %v4883, 4294901760
          %5852 = vmatpush1.xpose.msra.mxu0 %v5851
          %5853 = vmatprep.subr.mxu0 0.0
          %5854 = vmatpush1.xpose.msra.mxu0 0.0
          %5855 = vmatprep.subr.mxu0 0.0
          %5856 = vmatpush1.xpose.msra.mxu0 0.0
          %5857 = vmatprep.subr.mxu0 0.0
          %5858 = vmatpush1.xpose.msra.mxu0 0.0
          %5859 = vmatprep.subr.mxu0 0.0
          %5860 = vmatpush1.xpose.msra.mxu0 0.0
          %5861 = vmatprep.subr.mxu0 0.0
          %5862 = vmatpush1.xpose.msra.mxu0 0.0
          %5863 = vmatprep.subr.mxu0 0.0
          %5864 = vmatpush1.xpose.msra.mxu0 0.0
          %5865 = vmatprep.subr.mxu0 0.0
          %5866 = vmatpush1.xpose.msra.mxu0 0.0
          %5867 = vmatprep.subr.mxu0 0.0
          %5868 = vmatpush1.xpose.msra.mxu0 0.0
          %5869 = vmatprep.subr.mxu0 0.0
          %5870 = vmatpush1.xpose.msra.mxu0 0.0
          %5871 = vmatprep.subr.mxu0 0.0
          %5872 = vmatpush1.xpose.msra.mxu0 0.0
          %5873 = vmatprep.subr.mxu0 0.0
          %5874 = vmatpush1.xpose.msra.mxu0 0.0
          %5875 = vmatprep.subr.mxu0 0.0
          %5876 = vmatpush1.xpose.msra.mxu0 0.0
          %5877 = vmatprep.subr.mxu0 0.0
          %5878 = vmatpush1.xpose.msra.mxu0 0.0
          %5879 = vmatprep.subr.mxu0 0.0
          %5880 = vmatpush1.xpose.msra.mxu0 0.0
          %5881 = vmatprep.subr.mxu0 0.0
          %5882 = vmatpush1.xpose.msra.mxu0 0.0
          %5883 = vmatprep.subr.mxu0 0.0
          %5884 = vmatpush1.xpose.msra.mxu0 0.0
          %5885 = vmatprep.subr.mxu0 0.0
          %5886 = vmatpush1.xpose.msra.mxu0 0.0
          %5887 = vmatprep.subr.mxu0 0.0
          %5888 = vmatpush1.xpose.msra.mxu0 0.0
          %5889 = vmatprep.subr.mxu0 0.0
          %5890 = vmatpush1.xpose.msra.mxu0 0.0
          %5891 = vmatprep.subr.mxu0 0.0
          %5892 = vmatpush1.xpose.msra.mxu0 0.0
          %5893 = vmatprep.subr.mxu0 0.0
          %5894 = vmatpush1.xpose.msra.mxu0 0.0
          %5895 = vmatprep.subr.mxu0 0.0
          %5896 = vmatpush1.xpose.msra.mxu0 0.0
          %5897 = vmatprep.subr.mxu0 0.0
          %5898 = vmatpush1.xpose.msra.mxu0 0.0
          %5899 = vmatprep.subr.mxu0 0.0
          %5900 = vmatpush1.xpose.msra.mxu0 0.0
          %5901 = vmatprep.subr.mxu0 0.0
          %5902 = vmatpush1.xpose.msra.mxu0 0.0
          %5903 = vmatprep.subr.mxu0 0.0
          %5904 = vmatpush1.xpose.msra.mxu0 0.0
          %5905 = vmatprep.subr.mxu0 0.0
          %5906 = vmatpush1.xpose.msra.mxu0 0.0
          %5907 = vmatprep.subr.mxu0 0.0
          %5908 = vmatpush1.xpose.msra.mxu0 0.0
          %5909 = vmatprep.subr.mxu0 0.0
          %5910 = vmatpush1.xpose.msra.mxu0 0.0
          %5911 = vmatprep.subr.mxu0 0.0
          %5912 = vmatpush1.xpose.msra.mxu0 0.0
          %5913 = vmatprep.mubr.f32.mxu0 0.0
          %v5914 = vand.u32 %v5612, 4294901760
          %v5915 = vsub.f32 %v5612, %v5914
          %v5916 = vand.u32 %v5915, 4294901760
          %5917 = vmatmul.mubr.f32.gmra.mrb[0].mxu0 %v5916
          %v5918 = vpop.f32.mrb[0].mxu0
          %v5919 = vadd.f32 %v5844, %v5918
          %v5920 = vpop.f32.mrb[0].mxu0
          %5921 = vdwg.mxu0
          %5922 = vmatprep.subr.mxu0 0.0
          %v5923 = vand.u32 %v4882, 4294901760
          %v5924 = vsub.f32 %v4882, %v5923
          %v5925 = vand.u32 %v5924, 4294901760
          %5926 = vmatpush1.xpose.msra.mxu0 %v5925
          %5927 = vmatprep.subr.mxu0 0.0
          %v5928 = vand.u32 %v4883, 4294901760
          %v5929 = vsub.f32 %v4883, %v5928
          %v5930 = vand.u32 %v5929, 4294901760
          %5931 = vmatpush1.xpose.msra.mxu0 %v5930
          %5932 = vmatprep.subr.mxu0 0.0
          %5933 = vmatpush1.xpose.msra.mxu0 0.0
          %5934 = vmatprep.subr.mxu0 0.0
          %5935 = vmatpush1.xpose.msra.mxu0 0.0
          %5936 = vmatprep.subr.mxu0 0.0
          %5937 = vmatpush1.xpose.msra.mxu0 0.0
          %5938 = vmatprep.subr.mxu0 0.0
          %5939 = vmatpush1.xpose.msra.mxu0 0.0
          %5940 = vmatprep.subr.mxu0 0.0
          %5941 = vmatpush1.xpose.msra.mxu0 0.0
          %5942 = vmatprep.subr.mxu0 0.0
          %5943 = vmatpush1.xpose.msra.mxu0 0.0
          %5944 = vmatprep.subr.mxu0 0.0
          %5945 = vmatpush1.xpose.msra.mxu0 0.0
          %5946 = vmatprep.subr.mxu0 0.0
          %5947 = vmatpush1.xpose.msra.mxu0 0.0
          %5948 = vmatprep.subr.mxu0 0.0
          %5949 = vmatpush1.xpose.msra.mxu0 0.0
          %5950 = vmatprep.subr.mxu0 0.0
          %5951 = vmatpush1.xpose.msra.mxu0 0.0
          %5952 = vmatprep.subr.mxu0 0.0
          %5953 = vmatpush1.xpose.msra.mxu0 0.0
          %5954 = vmatprep.subr.mxu0 0.0
          %5955 = vmatpush1.xpose.msra.mxu0 0.0
          %5956 = vmatprep.subr.mxu0 0.0
          %5957 = vmatpush1.xpose.msra.mxu0 0.0
          %5958 = vmatprep.subr.mxu0 0.0
          %5959 = vmatpush1.xpose.msra.mxu0 0.0
          %5960 = vmatprep.subr.mxu0 0.0
          %5961 = vmatpush1.xpose.msra.mxu0 0.0
          %5962 = vmatprep.subr.mxu0 0.0
          %5963 = vmatpush1.xpose.msra.mxu0 0.0
          %5964 = vmatprep.subr.mxu0 0.0
          %5965 = vmatpush1.xpose.msra.mxu0 0.0
          %5966 = vmatprep.subr.mxu0 0.0
          %5967 = vmatpush1.xpose.msra.mxu0 0.0
          %5968 = vmatprep.subr.mxu0 0.0
          %5969 = vmatpush1.xpose.msra.mxu0 0.0
          %5970 = vmatprep.subr.mxu0 0.0
          %5971 = vmatpush1.xpose.msra.mxu0 0.0
          %5972 = vmatprep.subr.mxu0 0.0
          %5973 = vmatpush1.xpose.msra.mxu0 0.0
          %5974 = vmatprep.subr.mxu0 0.0
          %5975 = vmatpush1.xpose.msra.mxu0 0.0
          %5976 = vmatprep.subr.mxu0 0.0
          %5977 = vmatpush1.xpose.msra.mxu0 0.0
          %5978 = vmatprep.subr.mxu0 0.0
          %5979 = vmatpush1.xpose.msra.mxu0 0.0
          %5980 = vmatprep.subr.mxu0 0.0
          %5981 = vmatpush1.xpose.msra.mxu0 0.0
          %5982 = vmatprep.subr.mxu0 0.0
          %5983 = vmatpush1.xpose.msra.mxu0 0.0
          %5984 = vmatprep.subr.mxu0 0.0
          %5985 = vmatpush1.xpose.msra.mxu0 0.0
          %5986 = vmatprep.subr.mxu0 0.0
          %5987 = vmatpush1.xpose.msra.mxu0 0.0
          %5988 = vmatprep.subr.mxu0 0.0
          %5989 = vmatpush1.xpose.msra.mxu0 0.0
          %5990 = vmatprep.subr.mxu0 0.0
          %5991 = vmatpush1.xpose.msra.mxu0 0.0
          %5992 = vmatprep.mubr.f32.mxu0 0.0
          %v5993 = vand.u32 %v5612, 4294901760
          %5994 = vmatmul.mubr.f32.gmra.mrb[0].mxu0 %v5993
          %v5995 = vpop.f32.mrb[0].mxu0
          %v5996 = vadd.f32 %v5919, %v5995
          %v5997 = vpop.f32.mrb[0].mxu0
          %5998 = vdwg.mxu0
          %5999 = vmatprep.subr.mxu0 0.0
          %v6000 = vand.u32 %v4882, 4294901760
          %6001 = vmatpush1.xpose.msra.mxu0 %v6000
          %6002 = vmatprep.subr.mxu0 0.0
          %v6003 = vand.u32 %v4883, 4294901760
          %6004 = vmatpush1.xpose.msra.mxu0 %v6003
          %6005 = vmatprep.subr.mxu0 0.0
          %6006 = vmatpush1.xpose.msra.mxu0 0.0
          %6007 = vmatprep.subr.mxu0 0.0
          %6008 = vmatpush1.xpose.msra.mxu0 0.0
          %6009 = vmatprep.subr.mxu0 0.0
          %6010 = vmatpush1.xpose.msra.mxu0 0.0
          %6011 = vmatprep.subr.mxu0 0.0
          %6012 = vmatpush1.xpose.msra.mxu0 0.0
          %6013 = vmatprep.subr.mxu0 0.0
          %6014 = vmatpush1.xpose.msra.mxu0 0.0
          %6015 = vmatprep.subr.mxu0 0.0
          %6016 = vmatpush1.xpose.msra.mxu0 0.0
          %6017 = vmatprep.subr.mxu0 0.0
          %6018 = vmatpush1.xpose.msra.mxu0 0.0
          %6019 = vmatprep.subr.mxu0 0.0
          %6020 = vmatpush1.xpose.msra.mxu0 0.0
          %6021 = vmatprep.subr.mxu0 0.0
          %6022 = vmatpush1.xpose.msra.mxu0 0.0
          %6023 = vmatprep.subr.mxu0 0.0
          %6024 = vmatpush1.xpose.msra.mxu0 0.0
          %6025 = vmatprep.subr.mxu0 0.0
          %6026 = vmatpush1.xpose.msra.mxu0 0.0
          %6027 = vmatprep.subr.mxu0 0.0
          %6028 = vmatpush1.xpose.msra.mxu0 0.0
          %6029 = vmatprep.subr.mxu0 0.0
          %6030 = vmatpush1.xpose.msra.mxu0 0.0
          %6031 = vmatprep.subr.mxu0 0.0
          %6032 = vmatpush1.xpose.msra.mxu0 0.0
          %6033 = vmatprep.subr.mxu0 0.0
          %6034 = vmatpush1.xpose.msra.mxu0 0.0
          %6035 = vmatprep.subr.mxu0 0.0
          %6036 = vmatpush1.xpose.msra.mxu0 0.0
          %6037 = vmatprep.subr.mxu0 0.0
          %6038 = vmatpush1.xpose.msra.mxu0 0.0
          %6039 = vmatprep.subr.mxu0 0.0
          %6040 = vmatpush1.xpose.msra.mxu0 0.0
          %6041 = vmatprep.subr.mxu0 0.0
          %6042 = vmatpush1.xpose.msra.mxu0 0.0
          %6043 = vmatprep.subr.mxu0 0.0
          %6044 = vmatpush1.xpose.msra.mxu0 0.0
          %6045 = vmatprep.subr.mxu0 0.0
          %6046 = vmatpush1.xpose.msra.mxu0 0.0
          %6047 = vmatprep.subr.mxu0 0.0
          %6048 = vmatpush1.xpose.msra.mxu0 0.0
          %6049 = vmatprep.subr.mxu0 0.0
          %6050 = vmatpush1.xpose.msra.mxu0 0.0
          %6051 = vmatprep.subr.mxu0 0.0
          %6052 = vmatpush1.xpose.msra.mxu0 0.0
          %6053 = vmatprep.subr.mxu0 0.0
          %6054 = vmatpush1.xpose.msra.mxu0 0.0
          %6055 = vmatprep.subr.mxu0 0.0
          %6056 = vmatpush1.xpose.msra.mxu0 0.0
          %6057 = vmatprep.subr.mxu0 0.0
          %6058 = vmatpush1.xpose.msra.mxu0 0.0
          %6059 = vmatprep.subr.mxu0 0.0
          %6060 = vmatpush1.xpose.msra.mxu0 0.0
          %6061 = vmatprep.subr.mxu0 0.0
          %6062 = vmatpush1.xpose.msra.mxu0 0.0
          %6063 = vmatprep.subr.mxu0 0.0
          %6064 = vmatpush1.xpose.msra.mxu0 0.0
          %6065 = vmatprep.mubr.f32.mxu0 0.0
          %v6066 = vand.u32 %v5612, 4294901760
          %6067 = vmatmul.mubr.f32.gmra.mrb[0].mxu0 %v6066
          %v6068 = vpop.f32.mrb[0].mxu0
          %v6069 = vadd.f32 %v5996, %v6068
          %v6070 = vpop.f32.mrb[0].mxu0
          %6071 = vdwg.mxu0
          %v6072 = vld [vmem:[%s13] sm:$0xff]
          %v6073 = vmul.f32 %v6069, %v6072
          %v6074 = vmul.f32 %v6073, %v6073
          %v6075 = vsel %vm3062, %v6074, 0.0
          %6076 = vadd.xlane.f32.xlu0 %v6075
          %v6077 = vpop.xlane.xlu0 %6076
          %v6078 = vmax.f32 %v6077, 1.1754944e-38
          %v6079 = vrcp.pop %v6078
          %v6080 = vmul.f32 %v6074, %v6079
          %v6082 = vsel %vm3062, %v6080, 0
          %6084 = vmatprep.subr.mxu0 0.0
          %v6085 = vand.u32 %v4927, 4294901760
          %6086 = vmatpush1.msra.mxu0 %v6085
          %6087 = vmatprep.subr.mxu0 0.0
          %v6088 = vand.u32 %v4929, 4294901760
          %6089 = vmatpush1.msra.mxu0 %v6088
          %6090 = vmatprep.subr.mxu0 0.0
          %6091 = vmatpush1.msra.mxu0 0.0
          %6092 = vmatprep.subr.mxu0 0.0
          %6093 = vmatpush1.msra.mxu0 0.0
          %6094 = vmatprep.subr.mxu0 0.0
          %6095 = vmatpush1.msra.mxu0 0.0
          %6096 = vmatprep.subr.mxu0 0.0
          %6097 = vmatpush1.msra.mxu0 0.0
          %6098 = vmatprep.subr.mxu0 0.0
          %6099 = vmatpush1.msra.mxu0 0.0
          %6100 = vmatprep.subr.mxu0 0.0
          %6101 = vmatpush1.msra.mxu0 0.0
          %6102 = vmatprep.subr.mxu0 0.0
          %6103 = vmatpush1.msra.mxu0 0.0
          %6104 = vmatprep.subr.mxu0 0.0
          %6105 = vmatpush1.msra.mxu0 0.0
          %6106 = vmatprep.subr.mxu0 0.0
          %6107 = vmatpush1.msra.mxu0 0.0
          %6108 = vmatprep.subr.mxu0 0.0
          %6109 = vmatpush1.msra.mxu0 0.0
          %6110 = vmatprep.subr.mxu0 0.0
          %6111 = vmatpush1.msra.mxu0 0.0
          %6112 = vmatprep.subr.mxu0 0.0
          %6113 = vmatpush1.msra.mxu0 0.0
          %6114 = vmatprep.subr.mxu0 0.0
          %6115 = vmatpush1.msra.mxu0 0.0
          %6116 = vmatprep.subr.mxu0 0.0
          %6117 = vmatpush1.msra.mxu0 0.0
          %6118 = vmatprep.subr.mxu0 0.0
          %6119 = vmatpush1.msra.mxu0 0.0
          %6120 = vmatprep.subr.mxu0 0.0
          %6121 = vmatpush1.msra.mxu0 0.0
          %6122 = vmatprep.subr.mxu0 0.0
          %6123 = vmatpush1.msra.mxu0 0.0
          %6124 = vmatprep.subr.mxu0 0.0
          %6125 = vmatpush1.msra.mxu0 0.0
          %6126 = vmatprep.subr.mxu0 0.0
          %6127 = vmatpush1.msra.mxu0 0.0
          %6128 = vmatprep.subr.mxu0 0.0
          %6129 = vmatpush1.msra.mxu0 0.0
          %6130 = vmatprep.subr.mxu0 0.0
          %6131 = vmatpush1.msra.mxu0 0.0
          %6132 = vmatprep.subr.mxu0 0.0
          %6133 = vmatpush1.msra.mxu0 0.0
          %6134 = vmatprep.subr.mxu0 0.0
          %6135 = vmatpush1.msra.mxu0 0.0
          %6136 = vmatprep.subr.mxu0 0.0
          %6137 = vmatpush1.msra.mxu0 0.0
          %6138 = vmatprep.subr.mxu0 0.0
          %6139 = vmatpush1.msra.mxu0 0.0
          %6140 = vmatprep.subr.mxu0 0.0
          %6141 = vmatpush1.msra.mxu0 0.0
          %6142 = vmatprep.subr.mxu0 0.0
          %6143 = vmatpush1.msra.mxu0 0.0
          %6144 = vmatprep.subr.mxu0 0.0
          %6145 = vmatpush1.msra.mxu0 0.0
          %6146 = vmatprep.subr.mxu0 0.0
          %6147 = vmatpush1.msra.mxu0 0.0
          %6148 = vmatprep.subr.mxu0 0.0
          %6149 = vmatpush1.msra.mxu0 0.0
          %6150 = vmatprep.mubr.f32.mxu0 0.0
          %v6151 = vand.u32 %v6082, 4294901760
          %v6152 = vsub.f32 %v6082, %v6151
          %v6153 = vand.u32 %v6152, 4294901760
          %v6154 = vsub.f32 %v6152, %v6153
          %v6155 = vand.u32 %v6154, 4294901760
          %6156 = vmatmul.mubr.f32.gmra.mrb[0].mxu0 %v6155
          %v6157 = vpop.f32.mrb[0].mxu0
          %v6158 = vadd.f32 0.0, %v6157
          %v6159 = vpop.f32.mrb[0].mxu0
          %6160 = vdwg.mxu0
          %6161 = vmatprep.subr.mxu0 0.0
          %v6162 = vand.u32 %v4927, 4294901760
          %v6163 = vsub.f32 %v4927, %v6162
          %v6164 = vand.u32 %v6163, 4294901760
          %v6165 = vsub.f32 %v6163, %v6164
          %v6166 = vand.u32 %v6165, 4294901760
          %6167 = vmatpush1.msra.mxu0 %v6166
          %6168 = vmatprep.subr.mxu0 0.0
          %v6169 = vand.u32 %v4929, 4294901760
          %v6170 = vsub.f32 %v4929, %v6169
          %v6171 = vand.u32 %v6170, 4294901760
          %v6172 = vsub.f32 %v6170, %v6171
          %v6173 = vand.u32 %v6172, 4294901760
          %6174 = vmatpush1.msra.mxu0 %v6173
          %6175 = vmatprep.subr.mxu0 0.0
          %6176 = vmatpush1.msra.mxu0 0.0
          %6177 = vmatprep.subr.mxu0 0.0
          %6178 = vmatpush1.msra.mxu0 0.0
          %6179 = vmatprep.subr.mxu0 0.0
          %6180 = vmatpush1.msra.mxu0 0.0
          %6181 = vmatprep.subr.mxu0 0.0
          %6182 = vmatpush1.msra.mxu0 0.0
          %6183 = vmatprep.subr.mxu0 0.0
          %6184 = vmatpush1.msra.mxu0 0.0
          %6185 = vmatprep.subr.mxu0 0.0
          %6186 = vmatpush1.msra.mxu0 0.0
          %6187 = vmatprep.subr.mxu0 0.0
          %6188 = vmatpush1.msra.mxu0 0.0
          %6189 = vmatprep.subr.mxu0 0.0
          %6190 = vmatpush1.msra.mxu0 0.0
          %6191 = vmatprep.subr.mxu0 0.0
          %6192 = vmatpush1.msra.mxu0 0.0
          %6193 = vmatprep.subr.mxu0 0.0
          %6194 = vmatpush1.msra.mxu0 0.0
          %6195 = vmatprep.subr.mxu0 0.0
          %6196 = vmatpush1.msra.mxu0 0.0
          %6197 = vmatprep.subr.mxu0 0.0
          %6198 = vmatpush1.msra.mxu0 0.0
          %6199 = vmatprep.subr.mxu0 0.0
          %6200 = vmatpush1.msra.mxu0 0.0
          %6201 = vmatprep.subr.mxu0 0.0
          %6202 = vmatpush1.msra.mxu0 0.0
          %6203 = vmatprep.subr.mxu0 0.0
          %6204 = vmatpush1.msra.mxu0 0.0
          %6205 = vmatprep.subr.mxu0 0.0
          %6206 = vmatpush1.msra.mxu0 0.0
          %6207 = vmatprep.subr.mxu0 0.0
          %6208 = vmatpush1.msra.mxu0 0.0
          %6209 = vmatprep.subr.mxu0 0.0
          %6210 = vmatpush1.msra.mxu0 0.0
          %6211 = vmatprep.subr.mxu0 0.0
          %6212 = vmatpush1.msra.mxu0 0.0
          %6213 = vmatprep.subr.mxu0 0.0
          %6214 = vmatpush1.msra.mxu0 0.0
          %6215 = vmatprep.subr.mxu0 0.0
          %6216 = vmatpush1.msra.mxu0 0.0
          %6217 = vmatprep.subr.mxu0 0.0
          %6218 = vmatpush1.msra.mxu0 0.0
          %6219 = vmatprep.subr.mxu0 0.0
          %6220 = vmatpush1.msra.mxu0 0.0
          %6221 = vmatprep.subr.mxu0 0.0
          %6222 = vmatpush1.msra.mxu0 0.0
          %6223 = vmatprep.subr.mxu0 0.0
          %6224 = vmatpush1.msra.mxu0 0.0
          %6225 = vmatprep.subr.mxu0 0.0
          %6226 = vmatpush1.msra.mxu0 0.0
          %6227 = vmatprep.subr.mxu0 0.0
          %6228 = vmatpush1.msra.mxu0 0.0
          %6229 = vmatprep.subr.mxu0 0.0
          %6230 = vmatpush1.msra.mxu0 0.0
          %6231 = vmatprep.subr.mxu0 0.0
          %6232 = vmatpush1.msra.mxu0 0.0
          %6233 = vmatprep.subr.mxu0 0.0
          %6234 = vmatpush1.msra.mxu0 0.0
          %6235 = vmatprep.mubr.f32.mxu0 0.0
          %v6236 = vand.u32 %v6082, 4294901760
          %6237 = vmatmul.mubr.f32.gmra.mrb[0].mxu0 %v6236
          %v6238 = vpop.f32.mrb[0].mxu0
          %v6239 = vadd.f32 %v6158, %v6238
          %v6240 = vpop.f32.mrb[0].mxu0
          %6241 = vdwg.mxu0
          %6242 = vmatprep.subr.mxu0 0.0
          %v6243 = vand.u32 %v4927, 4294901760
          %v6244 = vsub.f32 %v4927, %v6243
          %6245 = vmatpush1.msra.mxu0 %v6244
          %6246 = vmatprep.subr.mxu0 0.0
          %v6247 = vand.u32 %v4929, 4294901760
          %v6248 = vsub.f32 %v4929, %v6247
          %6249 = vmatpush1.msra.mxu0 %v6248
          %6250 = vmatprep.subr.mxu0 0.0
          %6251 = vmatpush1.msra.mxu0 0.0
          %6252 = vmatprep.subr.mxu0 0.0
          %6253 = vmatpush1.msra.mxu0 0.0
          %6254 = vmatprep.subr.mxu0 0.0
          %6255 = vmatpush1.msra.mxu0 0.0
          %6256 = vmatprep.subr.mxu0 0.0
          %6257 = vmatpush1.msra.mxu0 0.0
          %6258 = vmatprep.subr.mxu0 0.0
          %6259 = vmatpush1.msra.mxu0 0.0
          %6260 = vmatprep.subr.mxu0 0.0
          %6261 = vmatpush1.msra.mxu0 0.0
          %6262 = vmatprep.subr.mxu0 0.0
          %6263 = vmatpush1.msra.mxu0 0.0
          %6264 = vmatprep.subr.mxu0 0.0
          %6265 = vmatpush1.msra.mxu0 0.0
          %6266 = vmatprep.subr.mxu0 0.0
          %6267 = vmatpush1.msra.mxu0 0.0
          %6268 = vmatprep.subr.mxu0 0.0
          %6269 = vmatpush1.msra.mxu0 0.0
          %6270 = vmatprep.subr.mxu0 0.0
          %6271 = vmatpush1.msra.mxu0 0.0
          %6272 = vmatprep.subr.mxu0 0.0
          %6273 = vmatpush1.msra.mxu0 0.0
          %6274 = vmatprep.subr.mxu0 0.0
          %6275 = vmatpush1.msra.mxu0 0.0
          %6276 = vmatprep.subr.mxu0 0.0
          %6277 = vmatpush1.msra.mxu0 0.0
          %6278 = vmatprep.subr.mxu0 0.0
          %6279 = vmatpush1.msra.mxu0 0.0
          %6280 = vmatprep.subr.mxu0 0.0
          %6281 = vmatpush1.msra.mxu0 0.0
          %6282 = vmatprep.subr.mxu0 0.0
          %6283 = vmatpush1.msra.mxu0 0.0
          %6284 = vmatprep.subr.mxu0 0.0
          %6285 = vmatpush1.msra.mxu0 0.0
          %6286 = vmatprep.subr.mxu0 0.0
          %6287 = vmatpush1.msra.mxu0 0.0
          %6288 = vmatprep.subr.mxu0 0.0
          %6289 = vmatpush1.msra.mxu0 0.0
          %6290 = vmatprep.subr.mxu0 0.0
          %6291 = vmatpush1.msra.mxu0 0.0
          %6292 = vmatprep.subr.mxu0 0.0
          %6293 = vmatpush1.msra.mxu0 0.0
          %6294 = vmatprep.subr.mxu0 0.0
          %6295 = vmatpush1.msra.mxu0 0.0
          %6296 = vmatprep.subr.mxu0 0.0
          %6297 = vmatpush1.msra.mxu0 0.0
          %6298 = vmatprep.subr.mxu0 0.0
          %6299 = vmatpush1.msra.mxu0 0.0
          %6300 = vmatprep.subr.mxu0 0.0
          %6301 = vmatpush1.msra.mxu0 0.0
          %6302 = vmatprep.subr.mxu0 0.0
          %6303 = vmatpush1.msra.mxu0 0.0
          %6304 = vmatprep.subr.mxu0 0.0
          %6305 = vmatpush1.msra.mxu0 0.0
          %6306 = vmatprep.subr.mxu0 0.0
          %6307 = vmatpush1.msra.mxu0 0.0
          %6308 = vmatprep.subr.mxu0 0.0
          %6309 = vmatpush1.msra.mxu0 0.0
          %6310 = vmatprep.mubr.f32.mxu0 0.0
          %v6311 = vand.u32 %v6082, 4294901760
          %v6312 = vsub.f32 %v6082, %v6311
          %6313 = vmatmul.mubr.f32.gmra.mrb[0].mxu0 %v6312
          %v6314 = vpop.f32.mrb[0].mxu0
          %v6315 = vadd.f32 %v6239, %v6314
          %v6316 = vpop.f32.mrb[0].mxu0
          %6317 = vdwg.mxu0
          %6318 = vmatprep.subr.mxu0 0.0
          %v6319 = vand.u32 %v4927, 4294901760
          %6320 = vmatpush1.msra.mxu0 %v6319
          %6321 = vmatprep.subr.mxu0 0.0
          %v6322 = vand.u32 %v4929, 4294901760
          %6323 = vmatpush1.msra.mxu0 %v6322
          %6324 = vmatprep.subr.mxu0 0.0
          %6325 = vmatpush1.msra.mxu0 0.0
          %6326 = vmatprep.subr.mxu0 0.0
          %6327 = vmatpush1.msra.mxu0 0.0
          %6328 = vmatprep.subr.mxu0 0.0
          %6329 = vmatpush1.msra.mxu0 0.0
          %6330 = vmatprep.subr.mxu0 0.0
          %6331 = vmatpush1.msra.mxu0 0.0
          %6332 = vmatprep.subr.mxu0 0.0
          %6333 = vmatpush1.msra.mxu0 0.0
          %6334 = vmatprep.subr.mxu0 0.0
          %6335 = vmatpush1.msra.mxu0 0.0
          %6336 = vmatprep.subr.mxu0 0.0
          %6337 = vmatpush1.msra.mxu0 0.0
          %6338 = vmatprep.subr.mxu0 0.0
          %6339 = vmatpush1.msra.mxu0 0.0
          %6340 = vmatprep.subr.mxu0 0.0
          %6341 = vmatpush1.msra.mxu0 0.0
          %6342 = vmatprep.subr.mxu0 0.0
          %6343 = vmatpush1.msra.mxu0 0.0
          %6344 = vmatprep.subr.mxu0 0.0
          %6345 = vmatpush1.msra.mxu0 0.0
          %6346 = vmatprep.subr.mxu0 0.0
          %6347 = vmatpush1.msra.mxu0 0.0
          %6348 = vmatprep.subr.mxu0 0.0
          %6349 = vmatpush1.msra.mxu0 0.0
          %6350 = vmatprep.subr.mxu0 0.0
          %6351 = vmatpush1.msra.mxu0 0.0
          %6352 = vmatprep.subr.mxu0 0.0
          %6353 = vmatpush1.msra.mxu0 0.0
          %6354 = vmatprep.subr.mxu0 0.0
          %6355 = vmatpush1.msra.mxu0 0.0
          %6356 = vmatprep.subr.mxu0 0.0
          %6357 = vmatpush1.msra.mxu0 0.0
          %6358 = vmatprep.subr.mxu0 0.0
          %6359 = vmatpush1.msra.mxu0 0.0
          %6360 = vmatprep.subr.mxu0 0.0
          %6361 = vmatpush1.msra.mxu0 0.0
          %6362 = vmatprep.subr.mxu0 0.0
          %6363 = vmatpush1.msra.mxu0 0.0
          %6364 = vmatprep.subr.mxu0 0.0
          %6365 = vmatpush1.msra.mxu0 0.0
          %6366 = vmatprep.subr.mxu0 0.0
          %6367 = vmatpush1.msra.mxu0 0.0
          %6368 = vmatprep.subr.mxu0 0.0
          %6369 = vmatpush1.msra.mxu0 0.0
          %6370 = vmatprep.subr.mxu0 0.0
          %6371 = vmatpush1.msra.mxu0 0.0
          %6372 = vmatprep.subr.mxu0 0.0
          %6373 = vmatpush1.msra.mxu0 0.0
          %6374 = vmatprep.subr.mxu0 0.0
          %6375 = vmatpush1.msra.mxu0 0.0
          %6376 = vmatprep.subr.mxu0 0.0
          %6377 = vmatpush1.msra.mxu0 0.0
          %6378 = vmatprep.subr.mxu0 0.0
          %6379 = vmatpush1.msra.mxu0 0.0
          %6380 = vmatprep.subr.mxu0 0.0
          %6381 = vmatpush1.msra.mxu0 0.0
          %6382 = vmatprep.subr.mxu0 0.0
          %6383 = vmatpush1.msra.mxu0 0.0
          %6384 = vmatprep.mubr.f32.mxu0 0.0
          %v6385 = vand.u32 %v6082, 4294901760
          %v6386 = vsub.f32 %v6082, %v6385
          %v6387 = vand.u32 %v6386, 4294901760
          %6388 = vmatmul.mubr.f32.gmra.mrb[0].mxu0 %v6387
          %v6389 = vpop.f32.mrb[0].mxu0
          %v6390 = vadd.f32 %v6315, %v6389
          %v6391 = vpop.f32.mrb[0].mxu0
          %6392 = vdwg.mxu0
          %6393 = vmatprep.subr.mxu0 0.0
          %v6394 = vand.u32 %v4927, 4294901760
          %v6395 = vsub.f32 %v4927, %v6394
          %v6396 = vand.u32 %v6395, 4294901760
          %6397 = vmatpush1.msra.mxu0 %v6396
          %6398 = vmatprep.subr.mxu0 0.0
          %v6399 = vand.u32 %v4929, 4294901760
          %v6400 = vsub.f32 %v4929, %v6399
          %v6401 = vand.u32 %v6400, 4294901760
          %6402 = vmatpush1.msra.mxu0 %v6401
          %6403 = vmatprep.subr.mxu0 0.0
          %6404 = vmatpush1.msra.mxu0 0.0
          %6405 = vmatprep.subr.mxu0 0.0
          %6406 = vmatpush1.msra.mxu0 0.0
          %6407 = vmatprep.subr.mxu0 0.0
          %6408 = vmatpush1.msra.mxu0 0.0
          %6409 = vmatprep.subr.mxu0 0.0
          %6410 = vmatpush1.msra.mxu0 0.0
          %6411 = vmatprep.subr.mxu0 0.0
          %6412 = vmatpush1.msra.mxu0 0.0
          %6413 = vmatprep.subr.mxu0 0.0
          %6414 = vmatpush1.msra.mxu0 0.0
          %6415 = vmatprep.subr.mxu0 0.0
          %6416 = vmatpush1.msra.mxu0 0.0
          %6417 = vmatprep.subr.mxu0 0.0
          %6418 = vmatpush1.msra.mxu0 0.0
          %6419 = vmatprep.subr.mxu0 0.0
          %6420 = vmatpush1.msra.mxu0 0.0
          %6421 = vmatprep.subr.mxu0 0.0
          %6422 = vmatpush1.msra.mxu0 0.0
          %6423 = vmatprep.subr.mxu0 0.0
          %6424 = vmatpush1.msra.mxu0 0.0
          %6425 = vmatprep.subr.mxu0 0.0
          %6426 = vmatpush1.msra.mxu0 0.0
          %6427 = vmatprep.subr.mxu0 0.0
          %6428 = vmatpush1.msra.mxu0 0.0
          %6429 = vmatprep.subr.mxu0 0.0
          %6430 = vmatpush1.msra.mxu0 0.0
          %6431 = vmatprep.subr.mxu0 0.0
          %6432 = vmatpush1.msra.mxu0 0.0
          %6433 = vmatprep.subr.mxu0 0.0
          %6434 = vmatpush1.msra.mxu0 0.0
          %6435 = vmatprep.subr.mxu0 0.0
          %6436 = vmatpush1.msra.mxu0 0.0
          %6437 = vmatprep.subr.mxu0 0.0
          %6438 = vmatpush1.msra.mxu0 0.0
          %6439 = vmatprep.subr.mxu0 0.0
          %6440 = vmatpush1.msra.mxu0 0.0
          %6441 = vmatprep.subr.mxu0 0.0
          %6442 = vmatpush1.msra.mxu0 0.0
          %6443 = vmatprep.subr.mxu0 0.0
          %6444 = vmatpush1.msra.mxu0 0.0
          %6445 = vmatprep.subr.mxu0 0.0
          %6446 = vmatpush1.msra.mxu0 0.0
          %6447 = vmatprep.subr.mxu0 0.0
          %6448 = vmatpush1.msra.mxu0 0.0
          %6449 = vmatprep.subr.mxu0 0.0
          %6450 = vmatpush1.msra.mxu0 0.0
          %6451 = vmatprep.subr.mxu0 0.0
          %6452 = vmatpush1.msra.mxu0 0.0
          %6453 = vmatprep.subr.mxu0 0.0
          %6454 = vmatpush1.msra.mxu0 0.0
          %6455 = vmatprep.subr.mxu0 0.0
          %6456 = vmatpush1.msra.mxu0 0.0
          %6457 = vmatprep.subr.mxu0 0.0
          %6458 = vmatpush1.msra.mxu0 0.0
          %6459 = vmatprep.subr.mxu0 0.0
          %6460 = vmatpush1.msra.mxu0 0.0
          %6461 = vmatprep.subr.mxu0 0.0
          %6462 = vmatpush1.msra.mxu0 0.0
          %6463 = vmatprep.mubr.f32.mxu0 0.0
          %v6464 = vand.u32 %v6082, 4294901760
          %6465 = vmatmul.mubr.f32.gmra.mrb[0].mxu0 %v6464
          %v6466 = vpop.f32.mrb[0].mxu0
          %v6467 = vadd.f32 %v6390, %v6466
          %v6468 = vpop.f32.mrb[0].mxu0
          %6469 = vdwg.mxu0
          %6470 = vmatprep.subr.mxu0 0.0
          %v6471 = vand.u32 %v4927, 4294901760
          %6472 = vmatpush1.msra.mxu0 %v6471
          %6473 = vmatprep.subr.mxu0 0.0
          %v6474 = vand.u32 %v4929, 4294901760
          %6475 = vmatpush1.msra.mxu0 %v6474
          %6476 = vmatprep.subr.mxu0 0.0
          %6477 = vmatpush1.msra.mxu0 0.0
          %6478 = vmatprep.subr.mxu0 0.0
          %6479 = vmatpush1.msra.mxu0 0.0
          %6480 = vmatprep.subr.mxu0 0.0
          %6481 = vmatpush1.msra.mxu0 0.0
          %6482 = vmatprep.subr.mxu0 0.0
          %6483 = vmatpush1.msra.mxu0 0.0
          %6484 = vmatprep.subr.mxu0 0.0
          %6485 = vmatpush1.msra.mxu0 0.0
          %6486 = vmatprep.subr.mxu0 0.0
          %6487 = vmatpush1.msra.mxu0 0.0
          %6488 = vmatprep.subr.mxu0 0.0
          %6489 = vmatpush1.msra.mxu0 0.0
          %6490 = vmatprep.subr.mxu0 0.0
          %6491 = vmatpush1.msra.mxu0 0.0
          %6492 = vmatprep.subr.mxu0 0.0
          %6493 = vmatpush1.msra.mxu0 0.0
          %6494 = vmatprep.subr.mxu0 0.0
          %6495 = vmatpush1.msra.mxu0 0.0
          %6496 = vmatprep.subr.mxu0 0.0
          %6497 = vmatpush1.msra.mxu0 0.0
          %6498 = vmatprep.subr.mxu0 0.0
          %6499 = vmatpush1.msra.mxu0 0.0
          %6500 = vmatprep.subr.mxu0 0.0
          %6501 = vmatpush1.msra.mxu0 0.0
          %6502 = vmatprep.subr.mxu0 0.0
          %6503 = vmatpush1.msra.mxu0 0.0
          %6504 = vmatprep.subr.mxu0 0.0
          %6505 = vmatpush1.msra.mxu0 0.0
          %6506 = vmatprep.subr.mxu0 0.0
          %6507 = vmatpush1.msra.mxu0 0.0
          %6508 = vmatprep.subr.mxu0 0.0
          %6509 = vmatpush1.msra.mxu0 0.0
          %6510 = vmatprep.subr.mxu0 0.0
          %6511 = vmatpush1.msra.mxu0 0.0
          %6512 = vmatprep.subr.mxu0 0.0
          %6513 = vmatpush1.msra.mxu0 0.0
          %6514 = vmatprep.subr.mxu0 0.0
          %6515 = vmatpush1.msra.mxu0 0.0
          %6516 = vmatprep.subr.mxu0 0.0
          %6517 = vmatpush1.msra.mxu0 0.0
          %6518 = vmatprep.subr.mxu0 0.0
          %6519 = vmatpush1.msra.mxu0 0.0
          %6520 = vmatprep.subr.mxu0 0.0
          %6521 = vmatpush1.msra.mxu0 0.0
          %6522 = vmatprep.subr.mxu0 0.0
          %6523 = vmatpush1.msra.mxu0 0.0
          %6524 = vmatprep.subr.mxu0 0.0
          %6525 = vmatpush1.msra.mxu0 0.0
          %6526 = vmatprep.subr.mxu0 0.0
          %6527 = vmatpush1.msra.mxu0 0.0
          %6528 = vmatprep.subr.mxu0 0.0
          %6529 = vmatpush1.msra.mxu0 0.0
          %6530 = vmatprep.subr.mxu0 0.0
          %6531 = vmatpush1.msra.mxu0 0.0
          %6532 = vmatprep.subr.mxu0 0.0
          %6533 = vmatpush1.msra.mxu0 0.0
          %6534 = vmatprep.subr.mxu0 0.0
          %6535 = vmatpush1.msra.mxu0 0.0
          %6536 = vmatprep.mubr.f32.mxu0 0.0
          %v6537 = vand.u32 %v6082, 4294901760
          %6538 = vmatmul.mubr.f32.gmra.mrb[0].mxu0 %v6537
          %v6539 = vpop.f32.mrb[0].mxu0
          %v6540 = vadd.f32 %v6467, %v6539
          %v6541 = vpop.f32.mrb[0].mxu0
          %6542 = vdwg.mxu0
          %v6543 = vmul.f32 %v6540, %v3917
          %v6545 = vrot.slane %v6543, 2
          %v6547 = vadd.f32 %v6543, %v6545
          %v6548 = vrot.slane %v6543, 4
          %v6550 = vadd.f32 %v6547, %v6548
          %v6551 = vrot.slane %v6543, 6
          %v6553 = vadd.f32 %v6550, %v6551
          %v6554 = vsel %vm5606, %v6553, 0.0
          %6555 = vadd.xlane.f32.xlu0 %v6554
          %v6556 = vpop.xlane.xlu0 %6555
          %v6557 = vmax.f32 %v6556, 1.1754944e-38
          %v6558 = vrcp.pop %v6557
          %v6559 = vmul.f32 %v6553, %v6558
          %6560 = vst [vmem:[#allocation6] sm:$0x3] %v6559
        $region88: #{encoder_list_forward.1} parent=75 // pred_fallthru
          _
        // Predicated region
        $region89: #{encoder_list_forward.1} parent=75 // pred_check
          %p6561 = pneg %p346
        $region90: #{encoder_list_forward.1} parent=75 // pred_check_branch
          %6563 = sbr.rel (%p6561) target = $region92
        $region91: #{encoder_list_forward.1} parent=75 // pred_region
          %s6565 = ssub.s32 32, 32
          %6566 = vsyncadd [#allocation5], %s6565
          %s6568 = sshll.u32 [#allocation6], 4
          %s6569 = int_to_ptr.vmem [resolvable:$true] %s6568
          %6571 = dma.vmem_to_hbm [thread:$0]  %s6569, 32, %s14, [#allocation5]
        $region92: #{encoder_list_forward.1} parent=75 // pred_fallthru
          _
        // Predicated region
        $region93: #{encoder_list_forward.1} parent=75 // pred_check
          %p6572 = pneg %p346
        $region94: #{encoder_list_forward.1} parent=75 // pred_check_branch
          %6574 = sbr.rel (%p6572) target = $region96
        $region95: #{encoder_list_forward.1} parent=75 // pred_region
          %6575 = dma.done [#allocation5], 32
        $region96: #{encoder_list_forward.1} parent=75 // pred_fallthru
          _
      $region76: #{encoder_list_forward.1} parent=5 // pred_fallthru
        _
      %p6576 = scmp.le.s32.totalorder 2, %s24
      // Predicated region
      $region97: #{encoder_list_forward.1} parent=5 // pred_check
        %p6577 = pneg %p6576
      $region98: #{encoder_list_forward.1} parent=5 // pred_check_branch
        %6579 = sbr.rel (%p6577) target = $region100
      $region99: #{encoder_list_forward.1} parent=5 // pred_region
        %s6580 = ssub.s32 %s24, 2
      $region100: #{encoder_list_forward.1} parent=5 // pred_fallthru
        _
    $region6: #{encoder_list_forward.1} parent=1 // loop_footer
      %s28 = sadd.s32 1, %s24
    $region7: #{encoder_list_forward.1} parent=1 // loop_footer_branch
      %23 = sbr.rel target = $region3
    $region8: #{encoder_list_forward.1} parent=1 // loop_exit
      _
    %6581 = vsyncpa [#allocation4], 1
    %s6582 = scalar_lea.sflag [#allocation4], 1
    %6583 = vsyncpa %s6582, 1
    %6584 = vsyncpa [#allocation5], 1
    %s6585 = scalar_lea.sflag [#allocation5], 1
    %6586 = vsyncpa %s6585, 1

</llo_original>
